<compile_context>
chip_gen: v7x
topology: tpu7x:2x2x1
jax: 0.10.0
libtpu: 0.0.40
codegen_flags: <defaults>
</compile_context>

<pallas_src>
import functools
import math

import jax
import jax.numpy as jnp
from jax.experimental import pallas as pl
from jax.experimental.pallas import tpu as pltpu

CP = 128  # lane-dense channel padding for every conv output / inter-block activation


# ---------------------------------------------------------------------------
# Tile selection (generation-aware: only split rows when there are 2 TensorCores).
# ---------------------------------------------------------------------------

@functools.lru_cache(maxsize=None)
def _num_tensorcores():
    try:
        info = pltpu.get_tpu_info()
        for name in ("num_cores", "core_count", "num_tensorcores", "tensorcore_count"):
            v = getattr(info, name, None)
            if isinstance(v, int) and v >= 1:
                return v
    except Exception:
        pass
    return 1


def _pick_tm(M):
    """Row tile: divides M, multiple of 16 (bf16 sublane packing), <= 512.
    Split into >=2 grid steps only on chips with >=2 TensorCores (v7x)."""
    limit = min(M, 512)
    if _num_tensorcores() >= 2 and M >= 32:
        limit = min(limit, M // 2)
    t = (limit // 16) * 16
    while t >= 16:
        if M % t == 0:
            return t
        t -= 16
    t = (min(M, 512) // 8) * 8
    while t >= 8:
        if M % t == 0:
            return t
        t -= 8
    return M


# ---------------------------------------------------------------------------
# Fused conv-as-matmul kernel (single K step: B fully resident, no scratch):
#   y = A @ B  [+ residual * res_scale + res_shift]  [relu]
#   o_ref <- y ; stats outputs <- per-tile column sum / sum-of-squares of y
# A/B are bf16 (MXU native); accumulation and epilogue stay in f32.
# ---------------------------------------------------------------------------

def _conv_mm_kernel(*refs, residual, out_relu):
    if residual:
        a_ref, b_ref, r_ref, rs_ref, rb_ref, o_ref, s1_ref, s2_ref = refs
    else:
        a_ref, b_ref, o_ref, s1_ref, s2_ref = refs

    y = jnp.dot(a_ref[...], b_ref[...], preferred_element_type=jnp.float32)
    if residual:
        y = y + r_ref[...] * rs_ref[...] + rb_ref[...]
    if out_relu:
        y = jnp.maximum(y, 0.0)
    o_ref[...] = y
    # Downstream BatchNorm statistics come for free from this epilogue
    # (no extra full pass / kernel launch over the activation).
    s1_ref[...] = jnp.sum(y, axis=0, keepdims=True)
    s2_ref[...] = jnp.sum(y * y, axis=0, keepdims=True)


def fused_matmul(a, b, *, residual=None, res_scale=None, res_shift=None, out_relu=False):
    """a: (M, K) bf16, b: (K, CP) bf16 (channel-padded) -> (M, CP) f32 output plus
    per-channel sum and sum-of-squares of the output (for the next BatchNorm)."""
    M, K = a.shape
    K2, Np = b.shape
    assert K == K2 and Np % 128 == 0
    tm = _pick_tm(M)
    nm = M // tm
    has_res = residual is not None

    in_specs = [pl.BlockSpec((tm, K), lambda i: (i, 0)),
                pl.BlockSpec((K, Np), lambda i: (0, 0))]   # B fully resident
    args = [a, b]
    if has_res:
        in_specs += [pl.BlockSpec((tm, Np), lambda i: (i, 0)),
                     pl.BlockSpec((1, Np), lambda i: (0, 0)),
                     pl.BlockSpec((1, Np), lambda i: (0, 0))]
        args += [residual.astype(jnp.float32),
                 res_scale.reshape(1, Np).astype(jnp.float32),
                 res_shift.reshape(1, Np).astype(jnp.float32)]

    kernel = functools.partial(_conv_mm_kernel, residual=has_res, out_relu=out_relu)
    out, s1, s2 = pl.pallas_call(
        kernel,
        out_shape=(jax.ShapeDtypeStruct((M, Np), jnp.float32),
                   jax.ShapeDtypeStruct((nm, 1, Np), jnp.float32),
                   jax.ShapeDtypeStruct((nm, 1, Np), jnp.float32)),
        grid=(nm,),
        in_specs=in_specs,
        out_specs=(pl.BlockSpec((tm, Np), lambda i: (i, 0)),
                   pl.BlockSpec((None, 1, Np), lambda i: (i, 0, 0)),
                   pl.BlockSpec((None, 1, Np), lambda i: (i, 0, 0))),
        compiler_params=pltpu.CompilerParams(dimension_semantics=("parallel",)),
    )(*args)
    return out, jnp.sum(s1, axis=(0, 1)), jnp.sum(s2, axis=(0, 1))


# ---------------------------------------------------------------------------
# Elementwise fused BatchNorm affine + ReLU -> bf16 (lane-dense (M, CP) layout).
# ---------------------------------------------------------------------------

def _bn_relu_kernel(x_ref, s_ref, b_ref, o_ref):
    o_ref[...] = jnp.maximum(x_ref[...] * s_ref[...] + b_ref[...],
                             0.0).astype(jnp.bfloat16)


def bn_relu(x2d, scale, shift):
    M, C = x2d.shape
    tr = _pick_tm(M)
    return pl.pallas_call(
        _bn_relu_kernel,
        out_shape=jax.ShapeDtypeStruct((M, C), jnp.bfloat16),
        grid=(M // tr,),
        in_specs=[pl.BlockSpec((tr, C), lambda i: (i, 0)),
                  pl.BlockSpec((1, C), lambda i: (0, 0)),
                  pl.BlockSpec((1, C), lambda i: (0, 0))],
        out_specs=pl.BlockSpec((tr, C), lambda i: (i, 0)),
        compiler_params=pltpu.CompilerParams(dimension_semantics=("parallel",)),
    )(x2d, scale.reshape(1, C), shift.reshape(1, C))


# ---------------------------------------------------------------------------
# Final BN + ReLU + global-avg-pool + classifier (one kernel, no extra GEMM launch).
# ---------------------------------------------------------------------------

def _bn_relu_pool_linear_kernel(x_ref, s_ref, b_ref, w_ref, bias_ref, o_ref):
    y = jnp.maximum(x_ref[...] * s_ref[...] + b_ref[...], 0.0)   # (N, HW, CP)
    pooled = jnp.mean(y, axis=1)                                  # (N, CP)
    o_ref[...] = jnp.dot(pooled, w_ref[...],
                         preferred_element_type=jnp.float32) + bias_ref[...]


def bn_relu_pool_linear(x, scale, shift, w, bias):
    N, HW, C = x.shape
    NC = w.shape[1]
    return pl.pallas_call(
        _bn_relu_pool_linear_kernel,
        out_shape=jax.ShapeDtypeStruct((N, NC), jnp.float32),
    )(x, scale.reshape(1, 1, C), shift.reshape(1, 1, C), w, bias.reshape(1, NC))


# ---------------------------------------------------------------------------
# BatchNorm affine from fused epilogue statistics (training-mode batch stats,
# biased variance, like the PyTorch module's default forward).
# ---------------------------------------------------------------------------

def _pad_cp(v):
    return jnp.pad(v, (0, CP - v.shape[0]))


def _bn_affine(stats, count, gamma, beta, eps=1e-5):
    s1, s2 = stats
    c = gamma.shape[0]
    mean = s1[:c] / count
    var = jnp.maximum(s2[:c] / count - mean * mean, 0.0)
    inv = jax.lax.rsqrt(var + eps)
    scale = gamma * inv
    shift = beta - mean * scale
    return _pad_cp(scale), _pad_cp(shift)


# ---------------------------------------------------------------------------
# Convolutions (im2col in bf16 feeding the fused matmul; BN+ReLU precomputed once).
# ---------------------------------------------------------------------------

def conv3x3(a, w, stride, *, residual=None, res_scale=None, res_shift=None, out_relu=False):
    """a: (N,H,W,Cin) activation (pre-activated, or raw stem input); w: (Cout,Cin,3,3);
    padding=1. Returns channel-padded (N,Ho,Wo,CP) f32 output plus its BN stats."""
    N, H, W, Cin = a.shape
    Cout = w.shape[0]
    Ho = (H + 2 - 3) // stride + 1
    Wo = (W + 2 - 3) // stride + 1
    K = 9 * Cin

    ap = jnp.pad(a.astype(jnp.bfloat16), ((0, 0), (1, 1), (1, 1), (0, 0)))
    # TODO(synk): the 9-tap im2col is still materialized by XLA (bf16, built once from the
    # pre-activated input); accumulating taps inside the kernel via shifted-window DMA
    # would remove this HBM blow-up entirely.
    patches = [ap[:, i:i + stride * Ho:stride, j:j + stride * Wo:stride, :]
               for i in range(3) for j in range(3)]
    cols = jnp.concatenate(patches, axis=-1).reshape(N * Ho * Wo, K)

    wmat = jnp.transpose(w, (2, 3, 1, 0)).reshape(K, Cout).astype(jnp.bfloat16)
    wmat = jnp.pad(wmat, ((0, 0), (0, CP - Cout)))          # lane-dense output

    res2d = None if residual is None else residual.reshape(N * Ho * Wo, CP)
    out, s1, s2 = fused_matmul(cols, wmat, residual=res2d, res_scale=res_scale,
                               res_shift=res_shift, out_relu=out_relu)
    return out.reshape(N, Ho, Wo, CP), (s1, s2)


def conv1x1(x, w, stride, cin):
    """x: (N,H,W,CP) padded raw activation; w: (Cout,Cin,1,1); no padding."""
    N, H, W, _ = x.shape
    Cout = w.shape[0]
    xs = x[:, ::stride, ::stride, :cin].astype(jnp.bfloat16)
    Ho, Wo = xs.shape[1], xs.shape[2]
    a = xs.reshape(N * Ho * Wo, cin)
    b = jnp.pad(w.reshape(Cout, cin).T.astype(jnp.bfloat16), ((0, 0), (0, CP - Cout)))
    out, s1, s2 = fused_matmul(a, b)
    return out.reshape(N, Ho, Wo, CP), (s1, s2)


# ---------------------------------------------------------------------------
# Parameter initialization (deterministic, synthetic).
# ---------------------------------------------------------------------------

def _conv_w(key, cout, cin, kh, kw):
    std = math.sqrt(2.0 / (cin * kh * kw))
    return jax.random.normal(key, (cout, cin, kh, kw), jnp.float32) * std


def _init_block(key, in_planes, planes, stride):
    k0, k1, k2 = jax.random.split(key, 3)
    p = {
        "stride": stride,
        "bn1_gamma": jnp.ones((in_planes,), jnp.float32),
        "bn1_beta": jnp.zeros((in_planes,), jnp.float32),
        "conv1_w": _conv_w(k0, planes, in_planes, 3, 3),
        "bn2_gamma": jnp.ones((planes,), jnp.float32),
        "bn2_beta": jnp.zeros((planes,), jnp.float32),
        "conv2_w": _conv_w(k1, planes, planes, 3, 3),
    }
    if stride != 1 or in_planes != planes:
        p["sc_w"] = _conv_w(k2, planes, in_planes, 1, 1)
        p["sc_gamma"] = jnp.ones((planes,), jnp.float32)
        p["sc_beta"] = jnp.zeros((planes,), jnp.float32)
    return p


def init_wideresnet(key, num_classes, depth, widen_factor):
    assert (depth - 4) % 6 == 0
    n = (depth - 4) // 6
    k = widen_factor
    keys = jax.random.split(key, 2 + 3 * n)
    params = {"conv1_w": _conv_w(keys[0], 16, 3, 3, 3)}
    in_planes = 16
    ki = 1

    def layer(planes, stride):
        nonlocal in_planes, ki
        blocks = []
        strides = [stride] + [1] * (n - 1)
        for s in strides:
            blocks.append(_init_block(keys[ki], in_planes, planes, s))
            in_planes = planes
            ki += 1
        return blocks

    params["layer1"] = layer(16 * k, 1)
    params["layer2"] = layer(32 * k, 2)
    params["layer3"] = layer(64 * k, 2)
    params["bn_gamma"] = jnp.ones((64 * k,), jnp.float32)
    params["bn_beta"] = jnp.zeros((64 * k,), jnp.float32)
    klin = jax.random.split(keys[-1], 2)
    params["linear_w"] = jax.random.normal(
        klin[0], (num_classes, 64 * k), jnp.float32) / math.sqrt(64 * k)
    params["linear_b"] = jnp.zeros((num_classes,), jnp.float32)
    return params


# ---------------------------------------------------------------------------
# Forward pass. Inter-block activations are carried channel-padded (N,H,W,CP) f32,
# together with their per-channel (sum, sum-of-squares) from the producing conv.
# ---------------------------------------------------------------------------

def block_forward(p, x, x_stats):
    N, H, W, _ = x.shape
    stride = p["stride"]
    cin = p["bn1_gamma"].shape[0]
    cout = p["conv1_w"].shape[0]

    # relu(bn1(x)) computed once in bf16; the conv's zero-padding of it is exact.
    sc1, sh1 = _bn_affine(x_stats, float(N * H * W), p["bn1_gamma"], p["bn1_beta"])
    a1 = bn_relu(x.reshape(-1, CP), sc1, sh1).reshape(N, H, W, CP)[..., :cin]

    c1, c1_stats = conv3x3(a1, p["conv1_w"], stride)
    # TODO(synk): dropout with p>0 not implemented (module default dropout_rate=0.0 -> identity)
    Ho, Wo = c1.shape[1], c1.shape[2]

    sc2, sh2 = _bn_affine(c1_stats, float(N * Ho * Wo), p["bn2_gamma"], p["bn2_beta"])
    a2 = bn_relu(c1.reshape(-1, CP), sc2, sh2).reshape(N, Ho, Wo, CP)[..., :cout]

    if "sc_w" in p:
        sc_out, sc_stats = conv1x1(x, p["sc_w"], stride, cin)     # shortcut conv on raw x
        rs, rb = _bn_affine(sc_stats, float(N * Ho * Wo), p["sc_gamma"], p["sc_beta"])
        residual = sc_out
    else:
        residual = x
        rs = _pad_cp(jnp.ones((cout,), jnp.float32))
        rb = jnp.zeros((CP,), jnp.float32)

    # conv2 + shortcut-BN + residual add fused in one kernel; its epilogue also
    # emits the BN stats consumed by the next block (or the final BN).
    return conv3x3(a2, p["conv2_w"], 1, residual=residual,
                   res_scale=rs, res_shift=rb)


def wideresnet_forward(params, x_nchw):
    x = jnp.transpose(x_nchw, (0, 2, 3, 1)).astype(jnp.float32)      # NCHW -> NHWC
    out, stats = conv3x3(x, params["conv1_w"], 1, out_relu=True)     # relu(conv1(x))
    # TODO(synk): Re_Graph / GCNConv graph filtering (conv_forward, block=[1]) relies on
    # torch_geometric GCNConv whose weights are created at forward time; omitted.

    for blk in params["layer1"] + params["layer2"] + params["layer3"]:
        out, stats = block_forward(blk, out, stats)

    N, H, W, _ = out.shape
    assert H == 8 and W == 8, "F.avg_pool2d(_, 8) expects 8x8 spatial (use 32x32 inputs)"
    C = params["bn_gamma"].shape[0]
    scale, shift = _bn_affine(stats, float(N * H * W),
                              params["bn_gamma"], params["bn_beta"])
    wlin = jnp.pad(params["linear_w"].T.astype(jnp.float32), ((0, CP - C), (0, 0)))
    return bn_relu_pool_linear(out.reshape(N, H * W, CP), scale, shift,
                               wlin, params["linear_b"])


# ---------------------------------------------------------------------------
# Main
# ---------------------------------------------------------------------------

if __name__ == "__main__":
    key = jax.random.PRNGKey(0)
    kp, kx = jax.random.split(key)

    num_classes, depth, widen_factor = 10, 10, 1   # n = (10-4)/6 = 1 block per stage
    params = init_wideresnet(kp, num_classes, depth, widen_factor)

    # CIFAR-like input: batch=2, channels=3, spatial=32 (required by avg_pool2d(., 8))
    x = jax.random.normal(kx, (2, 3, 32, 32), jnp.float32)

    fwd = jax.jit(lambda inp: wideresnet_forward(params, inp))
    logits = jax.block_until_ready(fwd(x))
    assert logits.shape == (2, num_classes)
    assert bool(jnp.all(jnp.isfinite(logits)))
    print("KERNEL_OK")
</pallas_src>

<mosaic_0001>
module attributes {stable_mosaic.version = 11 : i64} {
  func.func @_bn_relu_kernel(%arg0: i32, %arg1: memref<512x128xf32, #tpu.memory_space<vmem>>, %arg2: memref<1x128xf32, #tpu.memory_space<vmem>>, %arg3: memref<1x128xf32, #tpu.memory_space<vmem>>, %arg4: memref<512x128xbf16, #tpu.memory_space<vmem>>) attributes {dimension_semantics = [#tpu.dimension_semantics<parallel>], iteration_bounds = array<i64: 4>, scalar_prefetch = 0 : i64, scratch_operands = 0 : i64, tpu.core_type = #tpu.core_type<tc>, window_params = [{transform_indices = @transform_0, window_bounds = array<i64: 512, 128>}, {pipeline_mode = #tpu.pipeline_mode<synchronous>, transform_indices = @transform_1, window_bounds = array<i64: 1, 128>}, {pipeline_mode = #tpu.pipeline_mode<synchronous>, transform_indices = @transform_2, window_bounds = array<i64: 1, 128>}, {transform_indices = @transform_3, window_bounds = array<i64: 512, 128>}]} {
    %c0 = arith.constant 0 : index
    %c0_0 = arith.constant 0 : index
    %0 = vector.load %arg1[%c0, %c0_0] : memref<512x128xf32, #tpu.memory_space<vmem>>, vector<512x128xf32>
    %c0_1 = arith.constant 0 : index
    %c0_2 = arith.constant 0 : index
    %1 = vector.load %arg2[%c0_1, %c0_2] : memref<1x128xf32, #tpu.memory_space<vmem>>, vector<1x128xf32>
    %2 = vector.broadcast %1 : vector<1x128xf32> to vector<512x128xf32>
    %3 = arith.mulf %0, %2 : vector<512x128xf32>
    %c0_3 = arith.constant 0 : index
    %c0_4 = arith.constant 0 : index
    %4 = vector.load %arg3[%c0_3, %c0_4] : memref<1x128xf32, #tpu.memory_space<vmem>>, vector<1x128xf32>
    %5 = vector.broadcast %4 : vector<1x128xf32> to vector<512x128xf32>
    %6 = arith.addf %3, %5 : vector<512x128xf32>
    %cst = arith.constant 0.000000e+00 : f32
    %7 = vector.broadcast %cst : f32 to vector<512x128xf32>
    %8 = arith.maximumf %6, %7 : vector<512x128xf32>
    %9 = arith.truncf %8 : vector<512x128xf32> to vector<512x128xbf16>
    %c0_5 = arith.constant 0 : index
    %c0_6 = arith.constant 0 : index
    %10 = vector.load %arg4[%c0_5, %c0_6] : memref<512x128xbf16, #tpu.memory_space<vmem>>, vector<512x128xbf16>
    tpu.vector_store %arg4[%c0_5, %c0_6], %9 {strides = array<i32>} : memref<512x128xbf16, #tpu.memory_space<vmem>>, vector<512x128xbf16>,
    return
  }
  func.func @transform_0(%arg0: i32) -> (i32, i32) {
    %c0_i32 = arith.constant 0 : i32
    %c0_i32_0 = arith.constant 0 : i32
    return %arg0, %c0_i32 : i32, i32
  }
  func.func @transform_1(%arg0: i32) -> (i32, i32) {
    %c0_i32 = arith.constant 0 : i32
    %c0_i32_0 = arith.constant 0 : i32
    %c0_i32_1 = arith.constant 0 : i32
    return %c0_i32, %c0_i32_0 : i32, i32
  }
  func.func @transform_2(%arg0: i32) -> (i32, i32) {
    %c0_i32 = arith.constant 0 : i32
    %c0_i32_0 = arith.constant 0 : i32
    %c0_i32_1 = arith.constant 0 : i32
    return %c0_i32, %c0_i32_0 : i32, i32
  }
  func.func @transform_3(%arg0: i32) -> (i32, i32) {
    %c0_i32 = arith.constant 0 : i32
    %c0_i32_0 = arith.constant 0 : i32
    return %arg0, %c0_i32 : i32, i32
  }
}

module attributes {stable_mosaic.version = 11 : i64} {
  func.func @_conv_mm_kernel(%arg0: i32, %arg1: memref<512x27xbf16, #tpu.memory_space<vmem>>, %arg2: memref<27x128xbf16, #tpu.memory_space<vmem>>, %arg3: memref<512x128xf32, #tpu.memory_space<vmem>>, %arg4: memref<1x1x128xf32, #tpu.memory_space<vmem>>, %arg5: memref<1x1x128xf32, #tpu.memory_space<vmem>>) attributes {dimension_semantics = [#tpu.dimension_semantics<parallel>], iteration_bounds = array<i64: 4>, scalar_prefetch = 0 : i64, scratch_operands = 0 : i64, tpu.core_type = #tpu.core_type<tc>, window_params = [{transform_indices = @transform_0, window_bounds = array<i64: 512, 27>}, {pipeline_mode = #tpu.pipeline_mode<synchronous>, transform_indices = @transform_1, window_bounds = array<i64: 27, 128>}, {transform_indices = @transform_2, window_bounds = array<i64: 512, 128>}, {transform_indices = @transform_3, window_bounds = array<i64: 1, 1, 128>}, {transform_indices = @transform_4, window_bounds = array<i64: 1, 1, 128>}]} {
    %c0 = arith.constant 0 : index
    %c0_0 = arith.constant 0 : index
    %0 = vector.load %arg1[%c0, %c0_0] : memref<512x27xbf16, #tpu.memory_space<vmem>>, vector<512x27xbf16>
    %c0_1 = arith.constant 0 : index
    %c0_2 = arith.constant 0 : index
    %1 = vector.load %arg2[%c0_1, %c0_2] : memref<27x128xbf16, #tpu.memory_space<vmem>>, vector<27x128xbf16>
    %cst = arith.constant dense<0.000000e+00> : vector<512x128xf32>
    %2 = tpu.matmul %0, %1, %cst {dimension_numbers = #tpu.dot_dimension_numbers<[1], [0], [0], [1], [0, 0, 1, 1], [], []>} : vector<512x27xbf16>, vector<27x128xbf16>, vector<512x128xf32> -> vector<512x128xf32>
    %cst_3 = arith.constant 0.000000e+00 : f32
    %3 = vector.broadcast %cst_3 : f32 to vector<512x128xf32>
    %4 = arith.maximumf %2, %3 : vector<512x128xf32>
    %c0_4 = arith.constant 0 : index
    %c0_5 = arith.constant 0 : index
    %5 = vector.load %arg3[%c0_4, %c0_5] : memref<512x128xf32, #tpu.memory_space<vmem>>, vector<512x128xf32>
    tpu.vector_store %arg3[%c0_4, %c0_5], %4 {strides = array<i32>} : memref<512x128xf32, #tpu.memory_space<vmem>>, vector<512x128xf32>,
    %cst_6 = arith.constant dense<0.000000e+00> : vector<128xf32>
    %6 = vector.multi_reduction <add>, %4, %cst_6 [0] : vector<512x128xf32> to vector<128xf32>
    %7 = vector.shape_cast %6 : vector<128xf32> to vector<1x128xf32>
    %c0_7 = arith.constant 0 : index
    %c0_8 = arith.constant 0 : index
    %c0_9 = arith.constant 0 : index
    %8 = vector.load %arg4[%c0_7, %c0_8, %c0_9] : memref<1x1x128xf32, #tpu.memory_space<vmem>>, vector<1x1x128xf32>
    %9 = vector.shape_cast %8 : vector<1x1x128xf32> to vector<1x128xf32>
    %10 = vector.shape_cast %7 : vector<1x128xf32> to vector<1x1x128xf32>
    tpu.vector_store %arg4[%c0_7, %c0_8, %c0_9], %10 {strides = array<i32>} : memref<1x1x128xf32, #tpu.memory_space<vmem>>, vector<1x1x128xf32>,
    %11 = arith.mulf %4, %4 : vector<512x128xf32>
    %cst_10 = arith.constant dense<0.000000e+00> : vector<128xf32>
    %12 = vector.multi_reduction <add>, %11, %cst_10 [0] : vector<512x128xf32> to vector<128xf32>
    %13 = vector.shape_cast %12 : vector<128xf32> to vector<1x128xf32>
    %c0_11 = arith.constant 0 : index
    %c0_12 = arith.constant 0 : index
    %c0_13 = arith.constant 0 : index
    %14 = vector.load %arg5[%c0_11, %c0_12, %c0_13] : memref<1x1x128xf32, #tpu.memory_space<vmem>>, vector<1x1x128xf32>
    %15 = vector.shape_cast %14 : vector<1x1x128xf32> to vector<1x128xf32>
    %16 = vector.shape_cast %13 : vector<1x128xf32> to vector<1x1x128xf32>
    tpu.vector_store %arg5[%c0_11, %c0_12, %c0_13], %16 {strides = array<i32>} : memref<1x1x128xf32, #tpu.memory_space<vmem>>, vector<1x1x128xf32>,
    return
  }
  func.func @transform_0(%arg0: i32) -> (i32, i32) {
    %c0_i32 = arith.constant 0 : i32
    %c0_i32_0 = arith.constant 0 : i32
    return %arg0, %c0_i32 : i32, i32
  }
  func.func @transform_1(%arg0: i32) -> (i32, i32) {
    %c0_i32 = arith.constant 0 : i32
    %c0_i32_0 = arith.constant 0 : i32
    %c0_i32_1 = arith.constant 0 : i32
    return %c0_i32, %c0_i32_0 : i32, i32
  }
  func.func @transform_2(%arg0: i32) -> (i32, i32) {
    %c0_i32 = arith.constant 0 : i32
    %c0_i32_0 = arith.constant 0 : i32
    return %arg0, %c0_i32 : i32, i32
  }
  func.func @transform_3(%arg0: i32) -> (i32, i32, i32) {
    %c0_i32 = arith.constant 0 : i32
    %c0_i32_0 = arith.constant 0 : i32
    %c0_i32_1 = arith.constant 0 : i32
    return %arg0, %c0_i32, %c0_i32_0 : i32, i32, i32
  }
  func.func @transform_4(%arg0: i32) -> (i32, i32, i32) {
    %c0_i32 = arith.constant 0 : i32
    %c0_i32_0 = arith.constant 0 : i32
    %c0_i32_1 = arith.constant 0 : i32
    return %arg0, %c0_i32, %c0_i32_0 : i32, i32, i32
  }
}

module attributes {stable_mosaic.version = 11 : i64} {
  func.func @_conv_mm_kernel(%arg0: i32, %arg1: memref<512x144xbf16, #tpu.memory_space<vmem>>, %arg2: memref<144x128xbf16, #tpu.memory_space<vmem>>, %arg3: memref<512x128xf32, #tpu.memory_space<vmem>>, %arg4: memref<1x1x128xf32, #tpu.memory_space<vmem>>, %arg5: memref<1x1x128xf32, #tpu.memory_space<vmem>>) attributes {dimension_semantics = [#tpu.dimension_semantics<parallel>], iteration_bounds = array<i64: 4>, scalar_prefetch = 0 : i64, scratch_operands = 0 : i64, tpu.core_type = #tpu.core_type<tc>, window_params = [{transform_indices = @transform_0, window_bounds = array<i64: 512, 144>}, {pipeline_mode = #tpu.pipeline_mode<synchronous>, transform_indices = @transform_1, window_bounds = array<i64: 144, 128>}, {transform_indices = @transform_2, window_bounds = array<i64: 512, 128>}, {transform_indices = @transform_3, window_bounds = array<i64: 1, 1, 128>}, {transform_indices = @transform_4, window_bounds = array<i64: 1, 1, 128>}]} {
    %c0 = arith.constant 0 : index
    %c0_0 = arith.constant 0 : index
    %0 = vector.load %arg1[%c0, %c0_0] : memref<512x144xbf16, #tpu.memory_space<vmem>>, vector<512x144xbf16>
    %c0_1 = arith.constant 0 : index
    %c0_2 = arith.constant 0 : index
    %1 = vector.load %arg2[%c0_1, %c0_2] : memref<144x128xbf16, #tpu.memory_space<vmem>>, vector<144x128xbf16>
    %cst = arith.constant dense<0.000000e+00> : vector<512x128xf32>
    %2 = tpu.matmul %0, %1, %cst {dimension_numbers = #tpu.dot_dimension_numbers<[1], [0], [0], [1], [0, 0, 1, 1], [], []>} : vector<512x144xbf16>, vector<144x128xbf16>, vector<512x128xf32> -> vector<512x128xf32>
    %c0_3 = arith.constant 0 : index
    %c0_4 = arith.constant 0 : index
    %3 = vector.load %arg3[%c0_3, %c0_4] : memref<512x128xf32, #tpu.memory_space<vmem>>, vector<512x128xf32>
    tpu.vector_store %arg3[%c0_3, %c0_4], %2 {strides = array<i32>} : memref<512x128xf32, #tpu.memory_space<vmem>>, vector<512x128xf32>,
    %cst_5 = arith.constant dense<0.000000e+00> : vector<128xf32>
    %4 = vector.multi_reduction <add>, %2, %cst_5 [0] : vector<512x128xf32> to vector<128xf32>
    %5 = vector.shape_cast %4 : vector<128xf32> to vector<1x128xf32>
    %c0_6 = arith.constant 0 : index
    %c0_7 = arith.constant 0 : index
    %c0_8 = arith.constant 0 : index
    %6 = vector.load %arg4[%c0_6, %c0_7, %c0_8] : memref<1x1x128xf32, #tpu.memory_space<vmem>>, vector<1x1x128xf32>
    %7 = vector.shape_cast %6 : vector<1x1x128xf32> to vector<1x128xf32>
    %8 = vector.shape_cast %5 : vector<1x128xf32> to vector<1x1x128xf32>
    tpu.vector_store %arg4[%c0_6, %c0_7, %c0_8], %8 {strides = array<i32>} : memref<1x1x128xf32, #tpu.memory_space<vmem>>, vector<1x1x128xf32>,
    %9 = arith.mulf %2, %2 : vector<512x128xf32>
    %cst_9 = arith.constant dense<0.000000e+00> : vector<128xf32>
    %10 = vector.multi_reduction <add>, %9, %cst_9 [0] : vector<512x128xf32> to vector<128xf32>
    %11 = vector.shape_cast %10 : vector<128xf32> to vector<1x128xf32>
    %c0_10 = arith.constant 0 : index
    %c0_11 = arith.constant 0 : index
    %c0_12 = arith.constant 0 : index
    %12 = vector.load %arg5[%c0_10, %c0_11, %c0_12] : memref<1x1x128xf32, #tpu.memory_space<vmem>>, vector<1x1x128xf32>
    %13 = vector.shape_cast %12 : vector<1x1x128xf32> to vector<1x128xf32>
    %14 = vector.shape_cast %11 : vector<1x128xf32> to vector<1x1x128xf32>
    tpu.vector_store %arg5[%c0_10, %c0_11, %c0_12], %14 {strides = array<i32>} : memref<1x1x128xf32, #tpu.memory_space<vmem>>, vector<1x1x128xf32>,
    return
  }
  func.func @transform_0(%arg0: i32) -> (i32, i32) {
    %c0_i32 = arith.constant 0 : i32
    %c0_i32_0 = arith.constant 0 : i32
    return %arg0, %c0_i32 : i32, i32
  }
  func.func @transform_1(%arg0: i32) -> (i32, i32) {
    %c0_i32 = arith.constant 0 : i32
    %c0_i32_0 = arith.constant 0 : i32
    %c0_i32_1 = arith.constant 0 : i32
    return %c0_i32, %c0_i32_0 : i32, i32
  }
  func.func @transform_2(%arg0: i32) -> (i32, i32) {
    %c0_i32 = arith.constant 0 : i32
    %c0_i32_0 = arith.constant 0 : i32
    return %arg0, %c0_i32 : i32, i32
  }
  func.func @transform_3(%arg0: i32) -> (i32, i32, i32) {
    %c0_i32 = arith.constant 0 : i32
    %c0_i32_0 = arith.constant 0 : i32
    %c0_i32_1 = arith.constant 0 : i32
    return %arg0, %c0_i32, %c0_i32_0 : i32, i32, i32
  }
  func.func @transform_4(%arg0: i32) -> (i32, i32, i32) {
    %c0_i32 = arith.constant 0 : i32
    %c0_i32_0 = arith.constant 0 : i32
    %c0_i32_1 = arith.constant 0 : i32
    return %arg0, %c0_i32, %c0_i32_0 : i32, i32, i32
  }
}

module attributes {stable_mosaic.version = 11 : i64} {
  func.func @_conv_mm_kernel(%arg0: i32, %arg1: memref<512x144xbf16, #tpu.memory_space<vmem>>, %arg2: memref<144x128xbf16, #tpu.memory_space<vmem>>, %arg3: memref<512x128xf32, #tpu.memory_space<vmem>>, %arg4: memref<1x128xf32, #tpu.memory_space<vmem>>, %arg5: memref<1x128xf32, #tpu.memory_space<vmem>>, %arg6: memref<512x128xf32, #tpu.memory_space<vmem>>, %arg7: memref<1x1x128xf32, #tpu.memory_space<vmem>>, %arg8: memref<1x1x128xf32, #tpu.memory_space<vmem>>) attributes {dimension_semantics = [#tpu.dimension_semantics<parallel>], iteration_bounds = array<i64: 4>, scalar_prefetch = 0 : i64, scratch_operands = 0 : i64, tpu.core_type = #tpu.core_type<tc>, window_params = [{transform_indices = @transform_0, window_bounds = array<i64: 512, 144>}, {pipeline_mode = #tpu.pipeline_mode<synchronous>, transform_indices = @transform_1, window_bounds = array<i64: 144, 128>}, {transform_indices = @transform_2, window_bounds = array<i64: 512, 128>}, {pipeline_mode = #tpu.pipeline_mode<synchronous>, transform_indices = @transform_3, window_bounds = array<i64: 1, 128>}, {pipeline_mode = #tpu.pipeline_mode<synchronous>, transform_indices = @transform_4, window_bounds = array<i64: 1, 128>}, {transform_indices = @transform_5, window_bounds = array<i64: 512, 128>}, {transform_indices = @transform_6, window_bounds = array<i64: 1, 1, 128>}, {transform_indices = @transform_7, window_bounds = array<i64: 1, 1, 128>}]} {
    %c0 = arith.constant 0 : index
    %c0_0 = arith.constant 0 : index
    %0 = vector.load %arg1[%c0, %c0_0] : memref<512x144xbf16, #tpu.memory_space<vmem>>, vector<512x144xbf16>
    %c0_1 = arith.constant 0 : index
    %c0_2 = arith.constant 0 : index
    %1 = vector.load %arg2[%c0_1, %c0_2] : memref<144x128xbf16, #tpu.memory_space<vmem>>, vector<144x128xbf16>
    %cst = arith.constant dense<0.000000e+00> : vector<512x128xf32>
    %2 = tpu.matmul %0, %1, %cst {dimension_numbers = #tpu.dot_dimension_numbers<[1], [0], [0], [1], [0, 0, 1, 1], [], []>} : vector<512x144xbf16>, vector<144x128xbf16>, vector<512x128xf32> -> vector<512x128xf32>
    %c0_3 = arith.constant 0 : index
    %c0_4 = arith.constant 0 : index
    %3 = vector.load %arg3[%c0_3, %c0_4] : memref<512x128xf32, #tpu.memory_space<vmem>>, vector<512x128xf32>
    %c0_5 = arith.constant 0 : index
    %c0_6 = arith.constant 0 : index
    %4 = vector.load %arg4[%c0_5, %c0_6] : memref<1x128xf32, #tpu.memory_space<vmem>>, vector<1x128xf32>
    %5 = vector.broadcast %4 : vector<1x128xf32> to vector<512x128xf32>
    %6 = arith.mulf %3, %5 : vector<512x128xf32>
    %7 = arith.addf %2, %6 : vector<512x128xf32>
    %c0_7 = arith.constant 0 : index
    %c0_8 = arith.constant 0 : index
    %8 = vector.load %arg5[%c0_7, %c0_8] : memref<1x128xf32, #tpu.memory_space<vmem>>, vector<1x128xf32>
    %9 = vector.broadcast %8 : vector<1x128xf32> to vector<512x128xf32>
    %10 = arith.addf %7, %9 : vector<512x128xf32>
    %c0_9 = arith.constant 0 : index
    %c0_10 = arith.constant 0 : index
    %11 = vector.load %arg6[%c0_9, %c0_10] : memref<512x128xf32, #tpu.memory_space<vmem>>, vector<512x128xf32>
    tpu.vector_store %arg6[%c0_9, %c0_10], %10 {strides = array<i32>} : memref<512x128xf32, #tpu.memory_space<vmem>>, vector<512x128xf32>,
    %cst_11 = arith.constant dense<0.000000e+00> : vector<128xf32>
    %12 = vector.multi_reduction <add>, %10, %cst_11 [0] : vector<512x128xf32> to vector<128xf32>
    %13 = vector.shape_cast %12 : vector<128xf32> to vector<1x128xf32>
    %c0_12 = arith.constant 0 : index
    %c0_13 = arith.constant 0 : index
    %c0_14 = arith.constant 0 : index
    %14 = vector.load %arg7[%c0_12, %c0_13, %c0_14] : memref<1x1x128xf32, #tpu.memory_space<vmem>>, vector<1x1x128xf32>
    %15 = vector.shape_cast %14 : vector<1x1x128xf32> to vector<1x128xf32>
    %16 = vector.shape_cast %13 : vector<1x128xf32> to vector<1x1x128xf32>
    tpu.vector_store %arg7[%c0_12, %c0_13, %c0_14], %16 {strides = array<i32>} : memref<1x1x128xf32, #tpu.memory_space<vmem>>, vector<1x1x128xf32>,
    %17 = arith.mulf %10, %10 : vector<512x128xf32>
    %cst_15 = arith.constant dense<0.000000e+00> : vector<128xf32>
    %18 = vector.multi_reduction <add>, %17, %cst_15 [0] : vector<512x128xf32> to vector<128xf32>
    %19 = vector.shape_cast %18 : vector<128xf32> to vector<1x128xf32>
    %c0_16 = arith.constant 0 : index
    %c0_17 = arith.constant 0 : index
    %c0_18 = arith.constant 0 : index
    %20 = vector.load %arg8[%c0_16, %c0_17, %c0_18] : memref<1x1x128xf32, #tpu.memory_space<vmem>>, vector<1x1x128xf32>
    %21 = vector.shape_cast %20 : vector<1x1x128xf32> to vector<1x128xf32>
    %22 = vector.shape_cast %19 : vector<1x128xf32> to vector<1x1x128xf32>
    tpu.vector_store %arg8[%c0_16, %c0_17, %c0_18], %22 {strides = array<i32>} : memref<1x1x128xf32, #tpu.memory_space<vmem>>, vector<1x1x128xf32>,
    return
  }
  func.func @transform_0(%arg0: i32) -> (i32, i32) {
    %c0_i32 = arith.constant 0 : i32
    %c0_i32_0 = arith.constant 0 : i32
    return %arg0, %c0_i32 : i32, i32
  }
  func.func @transform_1(%arg0: i32) -> (i32, i32) {
    %c0_i32 = arith.constant 0 : i32
    %c0_i32_0 = arith.constant 0 : i32
    %c0_i32_1 = arith.constant 0 : i32
    return %c0_i32, %c0_i32_0 : i32, i32
  }
  func.func @transform_2(%arg0: i32) -> (i32, i32) {
    %c0_i32 = arith.constant 0 : i32
    %c0_i32_0 = arith.constant 0 : i32
    return %arg0, %c0_i32 : i32, i32
  }
  func.func @transform_3(%arg0: i32) -> (i32, i32) {
    %c0_i32 = arith.constant 0 : i32
    %c0_i32_0 = arith.constant 0 : i32
    %c0_i32_1 = arith.constant 0 : i32
    return %c0_i32, %c0_i32_0 : i32, i32
  }
  func.func @transform_4(%arg0: i32) -> (i32, i32) {
    %c0_i32 = arith.constant 0 : i32
    %c0_i32_0 = arith.constant 0 : i32
    %c0_i32_1 = arith.constant 0 : i32
    return %c0_i32, %c0_i32_0 : i32, i32
  }
  func.func @transform_5(%arg0: i32) -> (i32, i32) {
    %c0_i32 = arith.constant 0 : i32
    %c0_i32_0 = arith.constant 0 : i32
    return %arg0, %c0_i32 : i32, i32
  }
  func.func @transform_6(%arg0: i32) -> (i32, i32, i32) {
    %c0_i32 = arith.constant 0 : i32
    %c0_i32_0 = arith.constant 0 : i32
    %c0_i32_1 = arith.constant 0 : i32
    return %arg0, %c0_i32, %c0_i32_0 : i32, i32, i32
  }
  func.func @transform_7(%arg0: i32) -> (i32, i32, i32) {
    %c0_i32 = arith.constant 0 : i32
    %c0_i32_0 = arith.constant 0 : i32
    %c0_i32_1 = arith.constant 0 : i32
    return %arg0, %c0_i32, %c0_i32_0 : i32, i32, i32
  }
}

module attributes {stable_mosaic.version = 11 : i64} {
  func.func @_conv_mm_kernel(%arg0: i32, %arg1: memref<512x16xbf16, #tpu.memory_space<vmem>>, %arg2: memref<16x128xbf16, #tpu.memory_space<vmem>>, %arg3: memref<512x128xf32, #tpu.memory_space<vmem>>, %arg4: memref<1x1x128xf32, #tpu.memory_space<vmem>>, %arg5: memref<1x1x128xf32, #tpu.memory_space<vmem>>) attributes {dimension_semantics = [#tpu.dimension_semantics<parallel>], iteration_bounds = array<i64: 1>, scalar_prefetch = 0 : i64, scratch_operands = 0 : i64, tpu.core_type = #tpu.core_type<tc>, window_params = [{transform_indices = @transform_0, window_bounds = array<i64: 512, 16>}, {pipeline_mode = #tpu.pipeline_mode<synchronous>, transform_indices = @transform_1, window_bounds = array<i64: 16, 128>}, {transform_indices = @transform_2, window_bounds = array<i64: 512, 128>}, {transform_indices = @transform_3, window_bounds = array<i64: 1, 1, 128>}, {transform_indices = @transform_4, window_bounds = array<i64: 1, 1, 128>}]} {
    %c0 = arith.constant 0 : index
    %c0_0 = arith.constant 0 : index
    %0 = vector.load %arg1[%c0, %c0_0] : memref<512x16xbf16, #tpu.memory_space<vmem>>, vector<512x16xbf16>
    %c0_1 = arith.constant 0 : index
    %c0_2 = arith.constant 0 : index
    %1 = vector.load %arg2[%c0_1, %c0_2] : memref<16x128xbf16, #tpu.memory_space<vmem>>, vector<16x128xbf16>
    %cst = arith.constant dense<0.000000e+00> : vector<512x128xf32>
    %2 = tpu.matmul %0, %1, %cst {dimension_numbers = #tpu.dot_dimension_numbers<[1], [0], [0], [1], [0, 0, 1, 1], [], []>} : vector<512x16xbf16>, vector<16x128xbf16>, vector<512x128xf32> -> vector<512x128xf32>
    %c0_3 = arith.constant 0 : index
    %c0_4 = arith.constant 0 : index
    %3 = vector.load %arg3[%c0_3, %c0_4] : memref<512x128xf32, #tpu.memory_space<vmem>>, vector<512x128xf32>
    tpu.vector_store %arg3[%c0_3, %c0_4], %2 {strides = array<i32>} : memref<512x128xf32, #tpu.memory_space<vmem>>, vector<512x128xf32>,
    %cst_5 = arith.constant dense<0.000000e+00> : vector<128xf32>
    %4 = vector.multi_reduction <add>, %2, %cst_5 [0] : vector<512x128xf32> to vector<128xf32>
    %5 = vector.shape_cast %4 : vector<128xf32> to vector<1x128xf32>
    %c0_6 = arith.constant 0 : index
    %c0_7 = arith.constant 0 : index
    %c0_8 = arith.constant 0 : index
    %6 = vector.load %arg4[%c0_6, %c0_7, %c0_8] : memref<1x1x128xf32, #tpu.memory_space<vmem>>, vector<1x1x128xf32>
    %7 = vector.shape_cast %6 : vector<1x1x128xf32> to vector<1x128xf32>
    %8 = vector.shape_cast %5 : vector<1x128xf32> to vector<1x1x128xf32>
    tpu.vector_store %arg4[%c0_6, %c0_7, %c0_8], %8 {strides = array<i32>} : memref<1x1x128xf32, #tpu.memory_space<vmem>>, vector<1x1x128xf32>,
    %9 = arith.mulf %2, %2 : vector<512x128xf32>
    %cst_9 = arith.constant dense<0.000000e+00> : vector<128xf32>
    %10 = vector.multi_reduction <add>, %9, %cst_9 [0] : vector<512x128xf32> to vector<128xf32>
    %11 = vector.shape_cast %10 : vector<128xf32> to vector<1x128xf32>
    %c0_10 = arith.constant 0 : index
    %c0_11 = arith.constant 0 : index
    %c0_12 = arith.constant 0 : index
    %12 = vector.load %arg5[%c0_10, %c0_11, %c0_12] : memref<1x1x128xf32, #tpu.memory_space<vmem>>, vector<1x1x128xf32>
    %13 = vector.shape_cast %12 : vector<1x1x128xf32> to vector<1x128xf32>
    %14 = vector.shape_cast %11 : vector<1x128xf32> to vector<1x1x128xf32>
    tpu.vector_store %arg5[%c0_10, %c0_11, %c0_12], %14 {strides = array<i32>} : memref<1x1x128xf32, #tpu.memory_space<vmem>>, vector<1x1x128xf32>,
    return
  }
  func.func @transform_0(%arg0: i32) -> (i32, i32) {
    %c0_i32 = arith.constant 0 : i32
    %c0_i32_0 = arith.constant 0 : i32
    return %arg0, %c0_i32 : i32, i32
  }
  func.func @transform_1(%arg0: i32) -> (i32, i32) {
    %c0_i32 = arith.constant 0 : i32
    %c0_i32_0 = arith.constant 0 : i32
    %c0_i32_1 = arith.constant 0 : i32
    return %c0_i32, %c0_i32_0 : i32, i32
  }
  func.func @transform_2(%arg0: i32) -> (i32, i32) {
    %c0_i32 = arith.constant 0 : i32
    %c0_i32_0 = arith.constant 0 : i32
    return %arg0, %c0_i32 : i32, i32
  }
  func.func @transform_3(%arg0: i32) -> (i32, i32, i32) {
    %c0_i32 = arith.constant 0 : i32
    %c0_i32_0 = arith.constant 0 : i32
    %c0_i32_1 = arith.constant 0 : i32
    return %arg0, %c0_i32, %c0_i32_0 : i32, i32, i32
  }
  func.func @transform_4(%arg0: i32) -> (i32, i32, i32) {
    %c0_i32 = arith.constant 0 : i32
    %c0_i32_0 = arith.constant 0 : i32
    %c0_i32_1 = arith.constant 0 : i32
    return %arg0, %c0_i32, %c0_i32_0 : i32, i32, i32
  }
}

module attributes {stable_mosaic.version = 11 : i64} {
  func.func @_conv_mm_kernel(%arg0: i32, %arg1: memref<512x144xbf16, #tpu.memory_space<vmem>>, %arg2: memref<144x128xbf16, #tpu.memory_space<vmem>>, %arg3: memref<512x128xf32, #tpu.memory_space<vmem>>, %arg4: memref<1x1x128xf32, #tpu.memory_space<vmem>>, %arg5: memref<1x1x128xf32, #tpu.memory_space<vmem>>) attributes {dimension_semantics = [#tpu.dimension_semantics<parallel>], iteration_bounds = array<i64: 1>, scalar_prefetch = 0 : i64, scratch_operands = 0 : i64, tpu.core_type = #tpu.core_type<tc>, window_params = [{transform_indices = @transform_0, window_bounds = array<i64: 512, 144>}, {pipeline_mode = #tpu.pipeline_mode<synchronous>, transform_indices = @transform_1, window_bounds = array<i64: 144, 128>}, {transform_indices = @transform_2, window_bounds = array<i64: 512, 128>}, {transform_indices = @transform_3, window_bounds = array<i64: 1, 1, 128>}, {transform_indices = @transform_4, window_bounds = array<i64: 1, 1, 128>}]} {
    %c0 = arith.constant 0 : index
    %c0_0 = arith.constant 0 : index
    %0 = vector.load %arg1[%c0, %c0_0] : memref<512x144xbf16, #tpu.memory_space<vmem>>, vector<512x144xbf16>
    %c0_1 = arith.constant 0 : index
    %c0_2 = arith.constant 0 : index
    %1 = vector.load %arg2[%c0_1, %c0_2] : memref<144x128xbf16, #tpu.memory_space<vmem>>, vector<144x128xbf16>
    %cst = arith.constant dense<0.000000e+00> : vector<512x128xf32>
    %2 = tpu.matmul %0, %1, %cst {dimension_numbers = #tpu.dot_dimension_numbers<[1], [0], [0], [1], [0, 0, 1, 1], [], []>} : vector<512x144xbf16>, vector<144x128xbf16>, vector<512x128xf32> -> vector<512x128xf32>
    %c0_3 = arith.constant 0 : index
    %c0_4 = arith.constant 0 : index
    %3 = vector.load %arg3[%c0_3, %c0_4] : memref<512x128xf32, #tpu.memory_space<vmem>>, vector<512x128xf32>
    tpu.vector_store %arg3[%c0_3, %c0_4], %2 {strides = array<i32>} : memref<512x128xf32, #tpu.memory_space<vmem>>, vector<512x128xf32>,
    %cst_5 = arith.constant dense<0.000000e+00> : vector<128xf32>
    %4 = vector.multi_reduction <add>, %2, %cst_5 [0] : vector<512x128xf32> to vector<128xf32>
    %5 = vector.shape_cast %4 : vector<128xf32> to vector<1x128xf32>
    %c0_6 = arith.constant 0 : index
    %c0_7 = arith.constant 0 : index
    %c0_8 = arith.constant 0 : index
    %6 = vector.load %arg4[%c0_6, %c0_7, %c0_8] : memref<1x1x128xf32, #tpu.memory_space<vmem>>, vector<1x1x128xf32>
    %7 = vector.shape_cast %6 : vector<1x1x128xf32> to vector<1x128xf32>
    %8 = vector.shape_cast %5 : vector<1x128xf32> to vector<1x1x128xf32>
    tpu.vector_store %arg4[%c0_6, %c0_7, %c0_8], %8 {strides = array<i32>} : memref<1x1x128xf32, #tpu.memory_space<vmem>>, vector<1x1x128xf32>,
    %9 = arith.mulf %2, %2 : vector<512x128xf32>
    %cst_9 = arith.constant dense<0.000000e+00> : vector<128xf32>
    %10 = vector.multi_reduction <add>, %9, %cst_9 [0] : vector<512x128xf32> to vector<128xf32>
    %11 = vector.shape_cast %10 : vector<128xf32> to vector<1x128xf32>
    %c0_10 = arith.constant 0 : index
    %c0_11 = arith.constant 0 : index
    %c0_12 = arith.constant 0 : index
    %12 = vector.load %arg5[%c0_10, %c0_11, %c0_12] : memref<1x1x128xf32, #tpu.memory_space<vmem>>, vector<1x1x128xf32>
    %13 = vector.shape_cast %12 : vector<1x1x128xf32> to vector<1x128xf32>
    %14 = vector.shape_cast %11 : vector<1x128xf32> to vector<1x1x128xf32>
    tpu.vector_store %arg5[%c0_10, %c0_11, %c0_12], %14 {strides = array<i32>} : memref<1x1x128xf32, #tpu.memory_space<vmem>>, vector<1x1x128xf32>,
    return
  }
  func.func @transform_0(%arg0: i32) -> (i32, i32) {
    %c0_i32 = arith.constant 0 : i32
    %c0_i32_0 = arith.constant 0 : i32
    return %arg0, %c0_i32 : i32, i32
  }
  func.func @transform_1(%arg0: i32) -> (i32, i32) {
    %c0_i32 = arith.constant 0 : i32
    %c0_i32_0 = arith.constant 0 : i32
    %c0_i32_1 = arith.constant 0 : i32
    return %c0_i32, %c0_i32_0 : i32, i32
  }
  func.func @transform_2(%arg0: i32) -> (i32, i32) {
    %c0_i32 = arith.constant 0 : i32
    %c0_i32_0 = arith.constant 0 : i32
    return %arg0, %c0_i32 : i32, i32
  }
  func.func @transform_3(%arg0: i32) -> (i32, i32, i32) {
    %c0_i32 = arith.constant 0 : i32
    %c0_i32_0 = arith.constant 0 : i32
    %c0_i32_1 = arith.constant 0 : i32
    return %arg0, %c0_i32, %c0_i32_0 : i32, i32, i32
  }
  func.func @transform_4(%arg0: i32) -> (i32, i32, i32) {
    %c0_i32 = arith.constant 0 : i32
    %c0_i32_0 = arith.constant 0 : i32
    %c0_i32_1 = arith.constant 0 : i32
    return %arg0, %c0_i32, %c0_i32_0 : i32, i32, i32
  }
}

module attributes {stable_mosaic.version = 11 : i64} {
  func.func @_bn_relu_kernel(%arg0: i32, %arg1: memref<512x128xf32, #tpu.memory_space<vmem>>, %arg2: memref<1x128xf32, #tpu.memory_space<vmem>>, %arg3: memref<1x128xf32, #tpu.memory_space<vmem>>, %arg4: memref<512x128xbf16, #tpu.memory_space<vmem>>) attributes {dimension_semantics = [#tpu.dimension_semantics<parallel>], iteration_bounds = array<i64: 1>, scalar_prefetch = 0 : i64, scratch_operands = 0 : i64, tpu.core_type = #tpu.core_type<tc>, window_params = [{transform_indices = @transform_0, window_bounds = array<i64: 512, 128>}, {pipeline_mode = #tpu.pipeline_mode<synchronous>, transform_indices = @transform_1, window_bounds = array<i64: 1, 128>}, {pipeline_mode = #tpu.pipeline_mode<synchronous>, transform_indices = @transform_2, window_bounds = array<i64: 1, 128>}, {transform_indices = @transform_3, window_bounds = array<i64: 512, 128>}]} {
    %c0 = arith.constant 0 : index
    %c0_0 = arith.constant 0 : index
    %0 = vector.load %arg1[%c0, %c0_0] : memref<512x128xf32, #tpu.memory_space<vmem>>, vector<512x128xf32>
    %c0_1 = arith.constant 0 : index
    %c0_2 = arith.constant 0 : index
    %1 = vector.load %arg2[%c0_1, %c0_2] : memref<1x128xf32, #tpu.memory_space<vmem>>, vector<1x128xf32>
    %2 = vector.broadcast %1 : vector<1x128xf32> to vector<512x128xf32>
    %3 = arith.mulf %0, %2 : vector<512x128xf32>
    %c0_3 = arith.constant 0 : index
    %c0_4 = arith.constant 0 : index
    %4 = vector.load %arg3[%c0_3, %c0_4] : memref<1x128xf32, #tpu.memory_space<vmem>>, vector<1x128xf32>
    %5 = vector.broadcast %4 : vector<1x128xf32> to vector<512x128xf32>
    %6 = arith.addf %3, %5 : vector<512x128xf32>
    %cst = arith.constant 0.000000e+00 : f32
    %7 = vector.broadcast %cst : f32 to vector<512x128xf32>
    %8 = arith.maximumf %6, %7 : vector<512x128xf32>
    %9 = arith.truncf %8 : vector<512x128xf32> to vector<512x128xbf16>
    %c0_5 = arith.constant 0 : index
    %c0_6 = arith.constant 0 : index
    %10 = vector.load %arg4[%c0_5, %c0_6] : memref<512x128xbf16, #tpu.memory_space<vmem>>, vector<512x128xbf16>
    tpu.vector_store %arg4[%c0_5, %c0_6], %9 {strides = array<i32>} : memref<512x128xbf16, #tpu.memory_space<vmem>>, vector<512x128xbf16>,
    return
  }
  func.func @transform_0(%arg0: i32) -> (i32, i32) {
    %c0_i32 = arith.constant 0 : i32
    %c0_i32_0 = arith.constant 0 : i32
    return %arg0, %c0_i32 : i32, i32
  }
  func.func @transform_1(%arg0: i32) -> (i32, i32) {
    %c0_i32 = arith.constant 0 : i32
    %c0_i32_0 = arith.constant 0 : i32
    %c0_i32_1 = arith.constant 0 : i32
    return %c0_i32, %c0_i32_0 : i32, i32
  }
  func.func @transform_2(%arg0: i32) -> (i32, i32) {
    %c0_i32 = arith.constant 0 : i32
    %c0_i32_0 = arith.constant 0 : i32
    %c0_i32_1 = arith.constant 0 : i32
    return %c0_i32, %c0_i32_0 : i32, i32
  }
  func.func @transform_3(%arg0: i32) -> (i32, i32) {
    %c0_i32 = arith.constant 0 : i32
    %c0_i32_0 = arith.constant 0 : i32
    return %arg0, %c0_i32 : i32, i32
  }
}

module attributes {stable_mosaic.version = 11 : i64} {
  func.func @_conv_mm_kernel(%arg0: i32, %arg1: memref<512x288xbf16, #tpu.memory_space<vmem>>, %arg2: memref<288x128xbf16, #tpu.memory_space<vmem>>, %arg3: memref<512x128xf32, #tpu.memory_space<vmem>>, %arg4: memref<1x128xf32, #tpu.memory_space<vmem>>, %arg5: memref<1x128xf32, #tpu.memory_space<vmem>>, %arg6: memref<512x128xf32, #tpu.memory_space<vmem>>, %arg7: memref<1x1x128xf32, #tpu.memory_space<vmem>>, %arg8: memref<1x1x128xf32, #tpu.memory_space<vmem>>) attributes {dimension_semantics = [#tpu.dimension_semantics<parallel>], iteration_bounds = array<i64: 1>, scalar_prefetch = 0 : i64, scratch_operands = 0 : i64, tpu.core_type = #tpu.core_type<tc>, window_params = [{transform_indices = @transform_0, window_bounds = array<i64: 512, 288>}, {pipeline_mode = #tpu.pipeline_mode<synchronous>, transform_indices = @transform_1, window_bounds = array<i64: 288, 128>}, {transform_indices = @transform_2, window_bounds = array<i64: 512, 128>}, {pipeline_mode = #tpu.pipeline_mode<synchronous>, transform_indices = @transform_3, window_bounds = array<i64: 1, 128>}, {pipeline_mode = #tpu.pipeline_mode<synchronous>, transform_indices = @transform_4, window_bounds = array<i64: 1, 128>}, {transform_indices = @transform_5, window_bounds = array<i64: 512, 128>}, {transform_indices = @transform_6, window_bounds = array<i64: 1, 1, 128>}, {transform_indices = @transform_7, window_bounds = array<i64: 1, 1, 128>}]} {
    %c0 = arith.constant 0 : index
    %c0_0 = arith.constant 0 : index
    %0 = vector.load %arg1[%c0, %c0_0] : memref<512x288xbf16, #tpu.memory_space<vmem>>, vector<512x288xbf16>
    %c0_1 = arith.constant 0 : index
    %c0_2 = arith.constant 0 : index
    %1 = vector.load %arg2[%c0_1, %c0_2] : memref<288x128xbf16, #tpu.memory_space<vmem>>, vector<288x128xbf16>
    %cst = arith.constant dense<0.000000e+00> : vector<512x128xf32>
    %2 = tpu.matmul %0, %1, %cst {dimension_numbers = #tpu.dot_dimension_numbers<[1], [0], [0], [1], [0, 0, 1, 1], [], []>} : vector<512x288xbf16>, vector<288x128xbf16>, vector<512x128xf32> -> vector<512x128xf32>
    %c0_3 = arith.constant 0 : index
    %c0_4 = arith.constant 0 : index
    %3 = vector.load %arg3[%c0_3, %c0_4] : memref<512x128xf32, #tpu.memory_space<vmem>>, vector<512x128xf32>
    %c0_5 = arith.constant 0 : index
    %c0_6 = arith.constant 0 : index
    %4 = vector.load %arg4[%c0_5, %c0_6] : memref<1x128xf32, #tpu.memory_space<vmem>>, vector<1x128xf32>
    %5 = vector.broadcast %4 : vector<1x128xf32> to vector<512x128xf32>
    %6 = arith.mulf %3, %5 : vector<512x128xf32>
    %7 = arith.addf %2, %6 : vector<512x128xf32>
    %c0_7 = arith.constant 0 : index
    %c0_8 = arith.constant 0 : index
    %8 = vector.load %arg5[%c0_7, %c0_8] : memref<1x128xf32, #tpu.memory_space<vmem>>, vector<1x128xf32>
    %9 = vector.broadcast %8 : vector<1x128xf32> to vector<512x128xf32>
    %10 = arith.addf %7, %9 : vector<512x128xf32>
    %c0_9 = arith.constant 0 : index
    %c0_10 = arith.constant 0 : index
    %11 = vector.load %arg6[%c0_9, %c0_10] : memref<512x128xf32, #tpu.memory_space<vmem>>, vector<512x128xf32>
    tpu.vector_store %arg6[%c0_9, %c0_10], %10 {strides = array<i32>} : memref<512x128xf32, #tpu.memory_space<vmem>>, vector<512x128xf32>,
    %cst_11 = arith.constant dense<0.000000e+00> : vector<128xf32>
    %12 = vector.multi_reduction <add>, %10, %cst_11 [0] : vector<512x128xf32> to vector<128xf32>
    %13 = vector.shape_cast %12 : vector<128xf32> to vector<1x128xf32>
    %c0_12 = arith.constant 0 : index
    %c0_13 = arith.constant 0 : index
    %c0_14 = arith.constant 0 : index
    %14 = vector.load %arg7[%c0_12, %c0_13, %c0_14] : memref<1x1x128xf32, #tpu.memory_space<vmem>>, vector<1x1x128xf32>
    %15 = vector.shape_cast %14 : vector<1x1x128xf32> to vector<1x128xf32>
    %16 = vector.shape_cast %13 : vector<1x128xf32> to vector<1x1x128xf32>
    tpu.vector_store %arg7[%c0_12, %c0_13, %c0_14], %16 {strides = array<i32>} : memref<1x1x128xf32, #tpu.memory_space<vmem>>, vector<1x1x128xf32>,
    %17 = arith.mulf %10, %10 : vector<512x128xf32>
    %cst_15 = arith.constant dense<0.000000e+00> : vector<128xf32>
    %18 = vector.multi_reduction <add>, %17, %cst_15 [0] : vector<512x128xf32> to vector<128xf32>
    %19 = vector.shape_cast %18 : vector<128xf32> to vector<1x128xf32>
    %c0_16 = arith.constant 0 : index
    %c0_17 = arith.constant 0 : index
    %c0_18 = arith.constant 0 : index
    %20 = vector.load %arg8[%c0_16, %c0_17, %c0_18] : memref<1x1x128xf32, #tpu.memory_space<vmem>>, vector<1x1x128xf32>
    %21 = vector.shape_cast %20 : vector<1x1x128xf32> to vector<1x128xf32>
    %22 = vector.shape_cast %19 : vector<1x128xf32> to vector<1x1x128xf32>
    tpu.vector_store %arg8[%c0_16, %c0_17, %c0_18], %22 {strides = array<i32>} : memref<1x1x128xf32, #tpu.memory_space<vmem>>, vector<1x1x128xf32>,
    return
  }
  func.func @transform_0(%arg0: i32) -> (i32, i32) {
    %c0_i32 = arith.constant 0 : i32
    %c0_i32_0 = arith.constant 0 : i32
    return %arg0, %c0_i32 : i32, i32
  }
  func.func @transform_1(%arg0: i32) -> (i32, i32) {
    %c0_i32 = arith.constant 0 : i32
    %c0_i32_0 = arith.constant 0 : i32
    %c0_i32_1 = arith.constant 0 : i32
    return %c0_i32, %c0_i32_0 : i32, i32
  }
  func.func @transform_2(%arg0: i32) -> (i32, i32) {
    %c0_i32 = arith.constant 0 : i32
    %c0_i32_0 = arith.constant 0 : i32
    return %arg0, %c0_i32 : i32, i32
  }
  func.func @transform_3(%arg0: i32) -> (i32, i32) {
    %c0_i32 = arith.constant 0 : i32
    %c0_i32_0 = arith.constant 0 : i32
    %c0_i32_1 = arith.constant 0 : i32
    return %c0_i32, %c0_i32_0 : i32, i32
  }
  func.func @transform_4(%arg0: i32) -> (i32, i32) {
    %c0_i32 = arith.constant 0 : i32
    %c0_i32_0 = arith.constant 0 : i32
    %c0_i32_1 = arith.constant 0 : i32
    return %c0_i32, %c0_i32_0 : i32, i32
  }
  func.func @transform_5(%arg0: i32) -> (i32, i32) {
    %c0_i32 = arith.constant 0 : i32
    %c0_i32_0 = arith.constant 0 : i32
    return %arg0, %c0_i32 : i32, i32
  }
  func.func @transform_6(%arg0: i32) -> (i32, i32, i32) {
    %c0_i32 = arith.constant 0 : i32
    %c0_i32_0 = arith.constant 0 : i32
    %c0_i32_1 = arith.constant 0 : i32
    return %arg0, %c0_i32, %c0_i32_0 : i32, i32, i32
  }
  func.func @transform_7(%arg0: i32) -> (i32, i32, i32) {
    %c0_i32 = arith.constant 0 : i32
    %c0_i32_0 = arith.constant 0 : i32
    %c0_i32_1 = arith.constant 0 : i32
    return %arg0, %c0_i32, %c0_i32_0 : i32, i32, i32
  }
}

module attributes {stable_mosaic.version = 11 : i64} {
  func.func @_conv_mm_kernel(%arg0: i32, %arg1: memref<128x32xbf16, #tpu.memory_space<vmem>>, %arg2: memref<32x128xbf16, #tpu.memory_space<vmem>>, %arg3: memref<128x128xf32, #tpu.memory_space<vmem>>, %arg4: memref<1x1x128xf32, #tpu.memory_space<vmem>>, %arg5: memref<1x1x128xf32, #tpu.memory_space<vmem>>) attributes {dimension_semantics = [#tpu.dimension_semantics<parallel>], iteration_bounds = array<i64: 1>, scalar_prefetch = 0 : i64, scratch_operands = 0 : i64, tpu.core_type = #tpu.core_type<tc>, window_params = [{transform_indices = @transform_0, window_bounds = array<i64: 128, 32>}, {pipeline_mode = #tpu.pipeline_mode<synchronous>, transform_indices = @transform_1, window_bounds = array<i64: 32, 128>}, {transform_indices = @transform_2, window_bounds = array<i64: 128, 128>}, {transform_indices = @transform_3, window_bounds = array<i64: 1, 1, 128>}, {transform_indices = @transform_4, window_bounds = array<i64: 1, 1, 128>}]} {
    %c0 = arith.constant 0 : index
    %c0_0 = arith.constant 0 : index
    %0 = vector.load %arg1[%c0, %c0_0] : memref<128x32xbf16, #tpu.memory_space<vmem>>, vector<128x32xbf16>
    %c0_1 = arith.constant 0 : index
    %c0_2 = arith.constant 0 : index
    %1 = vector.load %arg2[%c0_1, %c0_2] : memref<32x128xbf16, #tpu.memory_space<vmem>>, vector<32x128xbf16>
    %cst = arith.constant dense<0.000000e+00> : vector<128x128xf32>
    %2 = tpu.matmul %0, %1, %cst {dimension_numbers = #tpu.dot_dimension_numbers<[1], [0], [0], [1], [0, 0, 1, 1], [], []>} : vector<128x32xbf16>, vector<32x128xbf16>, vector<128x128xf32> -> vector<128x128xf32>
    %c0_3 = arith.constant 0 : index
    %c0_4 = arith.constant 0 : index
    %3 = vector.load %arg3[%c0_3, %c0_4] : memref<128x128xf32, #tpu.memory_space<vmem>>, vector<128x128xf32>
    tpu.vector_store %arg3[%c0_3, %c0_4], %2 {strides = array<i32>} : memref<128x128xf32, #tpu.memory_space<vmem>>, vector<128x128xf32>,
    %cst_5 = arith.constant dense<0.000000e+00> : vector<128xf32>
    %4 = vector.multi_reduction <add>, %2, %cst_5 [0] : vector<128x128xf32> to vector<128xf32>
    %5 = vector.shape_cast %4 : vector<128xf32> to vector<1x128xf32>
    %c0_6 = arith.constant 0 : index
    %c0_7 = arith.constant 0 : index
    %c0_8 = arith.constant 0 : index
    %6 = vector.load %arg4[%c0_6, %c0_7, %c0_8] : memref<1x1x128xf32, #tpu.memory_space<vmem>>, vector<1x1x128xf32>
    %7 = vector.shape_cast %6 : vector<1x1x128xf32> to vector<1x128xf32>
    %8 = vector.shape_cast %5 : vector<1x128xf32> to vector<1x1x128xf32>
    tpu.vector_store %arg4[%c0_6, %c0_7, %c0_8], %8 {strides = array<i32>} : memref<1x1x128xf32, #tpu.memory_space<vmem>>, vector<1x1x128xf32>,
    %9 = arith.mulf %2, %2 : vector<128x128xf32>
    %cst_9 = arith.constant dense<0.000000e+00> : vector<128xf32>
    %10 = vector.multi_reduction <add>, %9, %cst_9 [0] : vector<128x128xf32> to vector<128xf32>
    %11 = vector.shape_cast %10 : vector<128xf32> to vector<1x128xf32>
    %c0_10 = arith.constant 0 : index
    %c0_11 = arith.constant 0 : index
    %c0_12 = arith.constant 0 : index
    %12 = vector.load %arg5[%c0_10, %c0_11, %c0_12] : memref<1x1x128xf32, #tpu.memory_space<vmem>>, vector<1x1x128xf32>
    %13 = vector.shape_cast %12 : vector<1x1x128xf32> to vector<1x128xf32>
    %14 = vector.shape_cast %11 : vector<1x128xf32> to vector<1x1x128xf32>
    tpu.vector_store %arg5[%c0_10, %c0_11, %c0_12], %14 {strides = array<i32>} : memref<1x1x128xf32, #tpu.memory_space<vmem>>, vector<1x1x128xf32>,
    return
  }
  func.func @transform_0(%arg0: i32) -> (i32, i32) {
    %c0_i32 = arith.constant 0 : i32
    %c0_i32_0 = arith.constant 0 : i32
    return %arg0, %c0_i32 : i32, i32
  }
  func.func @transform_1(%arg0: i32) -> (i32, i32) {
    %c0_i32 = arith.constant 0 : i32
    %c0_i32_0 = arith.constant 0 : i32
    %c0_i32_1 = arith.constant 0 : i32
    return %c0_i32, %c0_i32_0 : i32, i32
  }
  func.func @transform_2(%arg0: i32) -> (i32, i32) {
    %c0_i32 = arith.constant 0 : i32
    %c0_i32_0 = arith.constant 0 : i32
    return %arg0, %c0_i32 : i32, i32
  }
  func.func @transform_3(%arg0: i32) -> (i32, i32, i32) {
    %c0_i32 = arith.constant 0 : i32
    %c0_i32_0 = arith.constant 0 : i32
    %c0_i32_1 = arith.constant 0 : i32
    return %arg0, %c0_i32, %c0_i32_0 : i32, i32, i32
  }
  func.func @transform_4(%arg0: i32) -> (i32, i32, i32) {
    %c0_i32 = arith.constant 0 : i32
    %c0_i32_0 = arith.constant 0 : i32
    %c0_i32_1 = arith.constant 0 : i32
    return %arg0, %c0_i32, %c0_i32_0 : i32, i32, i32
  }
}

module attributes {stable_mosaic.version = 11 : i64} {
  func.func @_bn_relu_kernel(%arg0: i32, %arg1: memref<128x128xf32, #tpu.memory_space<vmem>>, %arg2: memref<1x128xf32, #tpu.memory_space<vmem>>, %arg3: memref<1x128xf32, #tpu.memory_space<vmem>>, %arg4: memref<128x128xbf16, #tpu.memory_space<vmem>>) attributes {dimension_semantics = [#tpu.dimension_semantics<parallel>], iteration_bounds = array<i64: 1>, scalar_prefetch = 0 : i64, scratch_operands = 0 : i64, tpu.core_type = #tpu.core_type<tc>, window_params = [{transform_indices = @transform_0, window_bounds = array<i64: 128, 128>}, {pipeline_mode = #tpu.pipeline_mode<synchronous>, transform_indices = @transform_1, window_bounds = array<i64: 1, 128>}, {pipeline_mode = #tpu.pipeline_mode<synchronous>, transform_indices = @transform_2, window_bounds = array<i64: 1, 128>}, {transform_indices = @transform_3, window_bounds = array<i64: 128, 128>}]} {
    %c0 = arith.constant 0 : index
    %c0_0 = arith.constant 0 : index
    %0 = vector.load %arg1[%c0, %c0_0] : memref<128x128xf32, #tpu.memory_space<vmem>>, vector<128x128xf32>
    %c0_1 = arith.constant 0 : index
    %c0_2 = arith.constant 0 : index
    %1 = vector.load %arg2[%c0_1, %c0_2] : memref<1x128xf32, #tpu.memory_space<vmem>>, vector<1x128xf32>
    %2 = vector.broadcast %1 : vector<1x128xf32> to vector<128x128xf32>
    %3 = arith.mulf %0, %2 : vector<128x128xf32>
    %c0_3 = arith.constant 0 : index
    %c0_4 = arith.constant 0 : index
    %4 = vector.load %arg3[%c0_3, %c0_4] : memref<1x128xf32, #tpu.memory_space<vmem>>, vector<1x128xf32>
    %5 = vector.broadcast %4 : vector<1x128xf32> to vector<128x128xf32>
    %6 = arith.addf %3, %5 : vector<128x128xf32>
    %cst = arith.constant 0.000000e+00 : f32
    %7 = vector.broadcast %cst : f32 to vector<128x128xf32>
    %8 = arith.maximumf %6, %7 : vector<128x128xf32>
    %9 = arith.truncf %8 : vector<128x128xf32> to vector<128x128xbf16>
    %c0_5 = arith.constant 0 : index
    %c0_6 = arith.constant 0 : index
    %10 = vector.load %arg4[%c0_5, %c0_6] : memref<128x128xbf16, #tpu.memory_space<vmem>>, vector<128x128xbf16>
    tpu.vector_store %arg4[%c0_5, %c0_6], %9 {strides = array<i32>} : memref<128x128xbf16, #tpu.memory_space<vmem>>, vector<128x128xbf16>,
    return
  }
  func.func @transform_0(%arg0: i32) -> (i32, i32) {
    %c0_i32 = arith.constant 0 : i32
    %c0_i32_0 = arith.constant 0 : i32
    return %arg0, %c0_i32 : i32, i32
  }
  func.func @transform_1(%arg0: i32) -> (i32, i32) {
    %c0_i32 = arith.constant 0 : i32
    %c0_i32_0 = arith.constant 0 : i32
    %c0_i32_1 = arith.constant 0 : i32
    return %c0_i32, %c0_i32_0 : i32, i32
  }
  func.func @transform_2(%arg0: i32) -> (i32, i32) {
    %c0_i32 = arith.constant 0 : i32
    %c0_i32_0 = arith.constant 0 : i32
    %c0_i32_1 = arith.constant 0 : i32
    return %c0_i32, %c0_i32_0 : i32, i32
  }
  func.func @transform_3(%arg0: i32) -> (i32, i32) {
    %c0_i32 = arith.constant 0 : i32
    %c0_i32_0 = arith.constant 0 : i32
    return %arg0, %c0_i32 : i32, i32
  }
}

module attributes {stable_mosaic.version = 11 : i64} {
  func.func @_conv_mm_kernel(%arg0: i32, %arg1: memref<128x288xbf16, #tpu.memory_space<vmem>>, %arg2: memref<288x128xbf16, #tpu.memory_space<vmem>>, %arg3: memref<128x128xf32, #tpu.memory_space<vmem>>, %arg4: memref<1x1x128xf32, #tpu.memory_space<vmem>>, %arg5: memref<1x1x128xf32, #tpu.memory_space<vmem>>) attributes {dimension_semantics = [#tpu.dimension_semantics<parallel>], iteration_bounds = array<i64: 1>, scalar_prefetch = 0 : i64, scratch_operands = 0 : i64, tpu.core_type = #tpu.core_type<tc>, window_params = [{transform_indices = @transform_0, window_bounds = array<i64: 128, 288>}, {pipeline_mode = #tpu.pipeline_mode<synchronous>, transform_indices = @transform_1, window_bounds = array<i64: 288, 128>}, {transform_indices = @transform_2, window_bounds = array<i64: 128, 128>}, {transform_indices = @transform_3, window_bounds = array<i64: 1, 1, 128>}, {transform_indices = @transform_4, window_bounds = array<i64: 1, 1, 128>}]} {
    %c0 = arith.constant 0 : index
    %c0_0 = arith.constant 0 : index
    %0 = vector.load %arg1[%c0, %c0_0] : memref<128x288xbf16, #tpu.memory_space<vmem>>, vector<128x288xbf16>
    %c0_1 = arith.constant 0 : index
    %c0_2 = arith.constant 0 : index
    %1 = vector.load %arg2[%c0_1, %c0_2] : memref<288x128xbf16, #tpu.memory_space<vmem>>, vector<288x128xbf16>
    %cst = arith.constant dense<0.000000e+00> : vector<128x128xf32>
    %2 = tpu.matmul %0, %1, %cst {dimension_numbers = #tpu.dot_dimension_numbers<[1], [0], [0], [1], [0, 0, 1, 1], [], []>} : vector<128x288xbf16>, vector<288x128xbf16>, vector<128x128xf32> -> vector<128x128xf32>
    %c0_3 = arith.constant 0 : index
    %c0_4 = arith.constant 0 : index
    %3 = vector.load %arg3[%c0_3, %c0_4] : memref<128x128xf32, #tpu.memory_space<vmem>>, vector<128x128xf32>
    tpu.vector_store %arg3[%c0_3, %c0_4], %2 {strides = array<i32>} : memref<128x128xf32, #tpu.memory_space<vmem>>, vector<128x128xf32>,
    %cst_5 = arith.constant dense<0.000000e+00> : vector<128xf32>
    %4 = vector.multi_reduction <add>, %2, %cst_5 [0] : vector<128x128xf32> to vector<128xf32>
    %5 = vector.shape_cast %4 : vector<128xf32> to vector<1x128xf32>
    %c0_6 = arith.constant 0 : index
    %c0_7 = arith.constant 0 : index
    %c0_8 = arith.constant 0 : index
    %6 = vector.load %arg4[%c0_6, %c0_7, %c0_8] : memref<1x1x128xf32, #tpu.memory_space<vmem>>, vector<1x1x128xf32>
    %7 = vector.shape_cast %6 : vector<1x1x128xf32> to vector<1x128xf32>
    %8 = vector.shape_cast %5 : vector<1x128xf32> to vector<1x1x128xf32>
    tpu.vector_store %arg4[%c0_6, %c0_7, %c0_8], %8 {strides = array<i32>} : memref<1x1x128xf32, #tpu.memory_space<vmem>>, vector<1x1x128xf32>,
    %9 = arith.mulf %2, %2 : vector<128x128xf32>
    %cst_9 = arith.constant dense<0.000000e+00> : vector<128xf32>
    %10 = vector.multi_reduction <add>, %9, %cst_9 [0] : vector<128x128xf32> to vector<128xf32>
    %11 = vector.shape_cast %10 : vector<128xf32> to vector<1x128xf32>
    %c0_10 = arith.constant 0 : index
    %c0_11 = arith.constant 0 : index
    %c0_12 = arith.constant 0 : index
    %12 = vector.load %arg5[%c0_10, %c0_11, %c0_12] : memref<1x1x128xf32, #tpu.memory_space<vmem>>, vector<1x1x128xf32>
    %13 = vector.shape_cast %12 : vector<1x1x128xf32> to vector<1x128xf32>
    %14 = vector.shape_cast %11 : vector<1x128xf32> to vector<1x1x128xf32>
    tpu.vector_store %arg5[%c0_10, %c0_11, %c0_12], %14 {strides = array<i32>} : memref<1x1x128xf32, #tpu.memory_space<vmem>>, vector<1x1x128xf32>,
    return
  }
  func.func @transform_0(%arg0: i32) -> (i32, i32) {
    %c0_i32 = arith.constant 0 : i32
    %c0_i32_0 = arith.constant 0 : i32
    return %arg0, %c0_i32 : i32, i32
  }
  func.func @transform_1(%arg0: i32) -> (i32, i32) {
    %c0_i32 = arith.constant 0 : i32
    %c0_i32_0 = arith.constant 0 : i32
    %c0_i32_1 = arith.constant 0 : i32
    return %c0_i32, %c0_i32_0 : i32, i32
  }
  func.func @transform_2(%arg0: i32) -> (i32, i32) {
    %c0_i32 = arith.constant 0 : i32
    %c0_i32_0 = arith.constant 0 : i32
    return %arg0, %c0_i32 : i32, i32
  }
  func.func @transform_3(%arg0: i32) -> (i32, i32, i32) {
    %c0_i32 = arith.constant 0 : i32
    %c0_i32_0 = arith.constant 0 : i32
    %c0_i32_1 = arith.constant 0 : i32
    return %arg0, %c0_i32, %c0_i32_0 : i32, i32, i32
  }
  func.func @transform_4(%arg0: i32) -> (i32, i32, i32) {
    %c0_i32 = arith.constant 0 : i32
    %c0_i32_0 = arith.constant 0 : i32
    %c0_i32_1 = arith.constant 0 : i32
    return %arg0, %c0_i32, %c0_i32_0 : i32, i32, i32
  }
}

module attributes {stable_mosaic.version = 11 : i64} {
  func.func @_conv_mm_kernel(%arg0: i32, %arg1: memref<128x576xbf16, #tpu.memory_space<vmem>>, %arg2: memref<576x128xbf16, #tpu.memory_space<vmem>>, %arg3: memref<128x128xf32, #tpu.memory_space<vmem>>, %arg4: memref<1x128xf32, #tpu.memory_space<vmem>>, %arg5: memref<1x128xf32, #tpu.memory_space<vmem>>, %arg6: memref<128x128xf32, #tpu.memory_space<vmem>>, %arg7: memref<1x1x128xf32, #tpu.memory_space<vmem>>, %arg8: memref<1x1x128xf32, #tpu.memory_space<vmem>>) attributes {dimension_semantics = [#tpu.dimension_semantics<parallel>], iteration_bounds = array<i64: 1>, scalar_prefetch = 0 : i64, scratch_operands = 0 : i64, tpu.core_type = #tpu.core_type<tc>, window_params = [{transform_indices = @transform_0, window_bounds = array<i64: 128, 576>}, {pipeline_mode = #tpu.pipeline_mode<synchronous>, transform_indices = @transform_1, window_bounds = array<i64: 576, 128>}, {transform_indices = @transform_2, window_bounds = array<i64: 128, 128>}, {pipeline_mode = #tpu.pipeline_mode<synchronous>, transform_indices = @transform_3, window_bounds = array<i64: 1, 128>}, {pipeline_mode = #tpu.pipeline_mode<synchronous>, transform_indices = @transform_4, window_bounds = array<i64: 1, 128>}, {transform_indices = @transform_5, window_bounds = array<i64: 128, 128>}, {transform_indices = @transform_6, window_bounds = array<i64: 1, 1, 128>}, {transform_indices = @transform_7, window_bounds = array<i64: 1, 1, 128>}]} {
    %c0 = arith.constant 0 : index
    %c0_0 = arith.constant 0 : index
    %0 = vector.load %arg1[%c0, %c0_0] : memref<128x576xbf16, #tpu.memory_space<vmem>>, vector<128x576xbf16>
    %c0_1 = arith.constant 0 : index
    %c0_2 = arith.constant 0 : index
    %1 = vector.load %arg2[%c0_1, %c0_2] : memref<576x128xbf16, #tpu.memory_space<vmem>>, vector<576x128xbf16>
    %cst = arith.constant dense<0.000000e+00> : vector<128x128xf32>
    %2 = tpu.matmul %0, %1, %cst {dimension_numbers = #tpu.dot_dimension_numbers<[1], [0], [0], [1], [0, 0, 1, 1], [], []>} : vector<128x576xbf16>, vector<576x128xbf16>, vector<128x128xf32> -> vector<128x128xf32>
    %c0_3 = arith.constant 0 : index
    %c0_4 = arith.constant 0 : index
    %3 = vector.load %arg3[%c0_3, %c0_4] : memref<128x128xf32, #tpu.memory_space<vmem>>, vector<128x128xf32>
    %c0_5 = arith.constant 0 : index
    %c0_6 = arith.constant 0 : index
    %4 = vector.load %arg4[%c0_5, %c0_6] : memref<1x128xf32, #tpu.memory_space<vmem>>, vector<1x128xf32>
    %5 = vector.broadcast %4 : vector<1x128xf32> to vector<128x128xf32>
    %6 = arith.mulf %3, %5 : vector<128x128xf32>
    %7 = arith.addf %2, %6 : vector<128x128xf32>
    %c0_7 = arith.constant 0 : index
    %c0_8 = arith.constant 0 : index
    %8 = vector.load %arg5[%c0_7, %c0_8] : memref<1x128xf32, #tpu.memory_space<vmem>>, vector<1x128xf32>
    %9 = vector.broadcast %8 : vector<1x128xf32> to vector<128x128xf32>
    %10 = arith.addf %7, %9 : vector<128x128xf32>
    %c0_9 = arith.constant 0 : index
    %c0_10 = arith.constant 0 : index
    %11 = vector.load %arg6[%c0_9, %c0_10] : memref<128x128xf32, #tpu.memory_space<vmem>>, vector<128x128xf32>
    tpu.vector_store %arg6[%c0_9, %c0_10], %10 {strides = array<i32>} : memref<128x128xf32, #tpu.memory_space<vmem>>, vector<128x128xf32>,
    %cst_11 = arith.constant dense<0.000000e+00> : vector<128xf32>
    %12 = vector.multi_reduction <add>, %10, %cst_11 [0] : vector<128x128xf32> to vector<128xf32>
    %13 = vector.shape_cast %12 : vector<128xf32> to vector<1x128xf32>
    %c0_12 = arith.constant 0 : index
    %c0_13 = arith.constant 0 : index
    %c0_14 = arith.constant 0 : index
    %14 = vector.load %arg7[%c0_12, %c0_13, %c0_14] : memref<1x1x128xf32, #tpu.memory_space<vmem>>, vector<1x1x128xf32>
    %15 = vector.shape_cast %14 : vector<1x1x128xf32> to vector<1x128xf32>
    %16 = vector.shape_cast %13 : vector<1x128xf32> to vector<1x1x128xf32>
    tpu.vector_store %arg7[%c0_12, %c0_13, %c0_14], %16 {strides = array<i32>} : memref<1x1x128xf32, #tpu.memory_space<vmem>>, vector<1x1x128xf32>,
    %17 = arith.mulf %10, %10 : vector<128x128xf32>
    %cst_15 = arith.constant dense<0.000000e+00> : vector<128xf32>
    %18 = vector.multi_reduction <add>, %17, %cst_15 [0] : vector<128x128xf32> to vector<128xf32>
    %19 = vector.shape_cast %18 : vector<128xf32> to vector<1x128xf32>
    %c0_16 = arith.constant 0 : index
    %c0_17 = arith.constant 0 : index
    %c0_18 = arith.constant 0 : index
    %20 = vector.load %arg8[%c0_16, %c0_17, %c0_18] : memref<1x1x128xf32, #tpu.memory_space<vmem>>, vector<1x1x128xf32>
    %21 = vector.shape_cast %20 : vector<1x1x128xf32> to vector<1x128xf32>
    %22 = vector.shape_cast %19 : vector<1x128xf32> to vector<1x1x128xf32>
    tpu.vector_store %arg8[%c0_16, %c0_17, %c0_18], %22 {strides = array<i32>} : memref<1x1x128xf32, #tpu.memory_space<vmem>>, vector<1x1x128xf32>,
    return
  }
  func.func @transform_0(%arg0: i32) -> (i32, i32) {
    %c0_i32 = arith.constant 0 : i32
    %c0_i32_0 = arith.constant 0 : i32
    return %arg0, %c0_i32 : i32, i32
  }
  func.func @transform_1(%arg0: i32) -> (i32, i32) {
    %c0_i32 = arith.constant 0 : i32
    %c0_i32_0 = arith.constant 0 : i32
    %c0_i32_1 = arith.constant 0 : i32
    return %c0_i32, %c0_i32_0 : i32, i32
  }
  func.func @transform_2(%arg0: i32) -> (i32, i32) {
    %c0_i32 = arith.constant 0 : i32
    %c0_i32_0 = arith.constant 0 : i32
    return %arg0, %c0_i32 : i32, i32
  }
  func.func @transform_3(%arg0: i32) -> (i32, i32) {
    %c0_i32 = arith.constant 0 : i32
    %c0_i32_0 = arith.constant 0 : i32
    %c0_i32_1 = arith.constant 0 : i32
    return %c0_i32, %c0_i32_0 : i32, i32
  }
  func.func @transform_4(%arg0: i32) -> (i32, i32) {
    %c0_i32 = arith.constant 0 : i32
    %c0_i32_0 = arith.constant 0 : i32
    %c0_i32_1 = arith.constant 0 : i32
    return %c0_i32, %c0_i32_0 : i32, i32
  }
  func.func @transform_5(%arg0: i32) -> (i32, i32) {
    %c0_i32 = arith.constant 0 : i32
    %c0_i32_0 = arith.constant 0 : i32
    return %arg0, %c0_i32 : i32, i32
  }
  func.func @transform_6(%arg0: i32) -> (i32, i32, i32) {
    %c0_i32 = arith.constant 0 : i32
    %c0_i32_0 = arith.constant 0 : i32
    %c0_i32_1 = arith.constant 0 : i32
    return %arg0, %c0_i32, %c0_i32_0 : i32, i32, i32
  }
  func.func @transform_7(%arg0: i32) -> (i32, i32, i32) {
    %c0_i32 = arith.constant 0 : i32
    %c0_i32_0 = arith.constant 0 : i32
    %c0_i32_1 = arith.constant 0 : i32
    return %arg0, %c0_i32, %c0_i32_0 : i32, i32, i32
  }
}

module attributes {stable_mosaic.version = 11 : i64} {
  func.func @_bn_relu_pool_linear_kernel(%arg0: memref<2x64x128xf32, #tpu.memory_space<vmem>>, %arg1: memref<1x1x128xf32, #tpu.memory_space<vmem>>, %arg2: memref<1x1x128xf32, #tpu.memory_space<vmem>>, %arg3: memref<128x10xf32, #tpu.memory_space<vmem>>, %arg4: memref<1x10xf32, #tpu.memory_space<vmem>>, %arg5: memref<2x10xf32, #tpu.memory_space<vmem>>) attributes {dimension_semantics = [], scalar_prefetch = 0 : i64, scratch_operands = 0 : i64, tpu.core_type = #tpu.core_type<tc>} {
    %c0 = arith.constant 0 : index
    %c0_0 = arith.constant 0 : index
    %c0_1 = arith.constant 0 : index
    %0 = vector.load %arg0[%c0, %c0_0, %c0_1] : memref<2x64x128xf32, #tpu.memory_space<vmem>>, vector<2x64x128xf32>
    %c0_2 = arith.constant 0 : index
    %c0_3 = arith.constant 0 : index
    %c0_4 = arith.constant 0 : index
    %1 = vector.load %arg1[%c0_2, %c0_3, %c0_4] : memref<1x1x128xf32, #tpu.memory_space<vmem>>, vector<1x1x128xf32>
    %2 = vector.broadcast %1 : vector<1x1x128xf32> to vector<2x64x128xf32>
    %3 = arith.mulf %0, %2 : vector<2x64x128xf32>
    %c0_5 = arith.constant 0 : index
    %c0_6 = arith.constant 0 : index
    %c0_7 = arith.constant 0 : index
    %4 = vector.load %arg2[%c0_5, %c0_6, %c0_7] : memref<1x1x128xf32, #tpu.memory_space<vmem>>, vector<1x1x128xf32>
    %5 = vector.broadcast %4 : vector<1x1x128xf32> to vector<2x64x128xf32>
    %6 = arith.addf %3, %5 : vector<2x64x128xf32>
    %cst = arith.constant 0.000000e+00 : f32
    %7 = vector.broadcast %cst : f32 to vector<2x64x128xf32>
    %8 = arith.maximumf %6, %7 : vector<2x64x128xf32>
    %cst_8 = arith.constant dense<0.000000e+00> : vector<2x128xf32>
    %9 = vector.multi_reduction <add>, %8, %cst_8 [1] : vector<2x64x128xf32> to vector<2x128xf32>
    %cst_9 = arith.constant 6.400000e+01 : f32
    %10 = vector.broadcast %cst_9 : f32 to vector<2x128xf32>
    %11 = arith.divf %9, %10 : vector<2x128xf32>
    %c0_10 = arith.constant 0 : index
    %c0_11 = arith.constant 0 : index
    %12 = vector.load %arg3[%c0_10, %c0_11] : memref<128x10xf32, #tpu.memory_space<vmem>>, vector<128x10xf32>
    %cst_12 = arith.constant dense<0.000000e+00> : vector<2x10xf32>
    %13 = tpu.matmul %11, %12, %cst_12 {dimension_numbers = #tpu.dot_dimension_numbers<[1], [0], [0], [1], [0, 0, 1, 1], [], []>} : vector<2x128xf32>, vector<128x10xf32>, vector<2x10xf32> -> vector<2x10xf32>
    %c0_13 = arith.constant 0 : index
    %c0_14 = arith.constant 0 : index
    %14 = vector.load %arg4[%c0_13, %c0_14] : memref<1x10xf32, #tpu.memory_space<vmem>>, vector<1x10xf32>
    %15 = vector.broadcast %14 : vector<1x10xf32> to vector<2x10xf32>
    %16 = arith.addf %13, %15 : vector<2x10xf32>
    %c0_15 = arith.constant 0 : index
    %c0_16 = arith.constant 0 : index
    %17 = vector.load %arg5[%c0_15, %c0_16] : memref<2x10xf32, #tpu.memory_space<vmem>>, vector<2x10xf32>
    tpu.vector_store %arg5[%c0_15, %c0_16], %16 {strides = array<i32>} : memref<2x10xf32, #tpu.memory_space<vmem>>, vector<2x10xf32>,
    return
  }
}

</mosaic_0001>

<llo_original>
// kernel: _lambda_.17
$region0: #{_lambda_.17}
  #allocation0 [shape = 'u32[]', space=smem, size = 0x4, offset = 0x4, fixed_abs, tag = 'smem constant byte address 0x4 - core index']
  #allocation1 [shape = 'u32[144,128]{1,0:T(1,128)}', space=vmem, size = 0x12000, scoped, tag = 'internal scratch']
  %s0 = inlined_call_operand.vmem [shape: f32[2048,128], index: 0, kind: input, shape index: {}]
  %s1 = inlined_call_operand.vmem [shape: f32[1,128], index: 1, kind: input, shape index: {}]
  %s2 = inlined_call_operand.vmem [shape: f32[1,128], index: 2, kind: input, shape index: {}]
  %s3 = inlined_call_operand.vmem [shape: bf16[2048,128], index: 3, kind: output, shape index: {}]
  %s4 = sld [smem:[#allocation0]]
  $region45: #{_lambda_.17} parent=0
    _
  %s6 = ssub.s32 1, %s4
  %s7 = scalar_select 0, %s6, %s4
  loop: start=0, step=1, limit=6
  $region2: #{_lambda_.17} parent=0 // loop_pre_header
    _
  $region3: #{_lambda_.17} parent=0 // loop_header
    %s9 = sphi 0, %s13
    %p10 = scmp.ge.s32.totalorder %s9, 6
    %s19 = sphi 0, %s21
    %s22 = sphi 0, %s19
    %s23 = sphi 0, %s22
    %s39 = sphi 0, %s23
    %s43 = sphi 0, %s43
    %s45 = sphi 0, %s43
    %s46 = sphi 0, %s45
    %s60 = sphi 0, %s46
    %s64 = sphi 0, %s64
    %s66 = sphi 0, %s64
    %s67 = sphi 0, %s66
    %s81 = sphi 0, %s67
    %s87 = sphi 0, %s89
    %s90 = sphi 0, %s87
    %s91 = sphi 0, %s90
    %s107 = sphi 0, %s91
  $region4: #{_lambda_.17} parent=0 // loop_header_branch
    %12 = sbr.rel (%p10) target = $region8
  $region5: #{_lambda_.17} parent=0 // loop_body
    %s14 = ssub.s32 %s9, 1
    %s15 = ssub.s32 %s9, 2
    %s16 = sadd.s32 %s9, 1
    %s17 = ssub.s32 %s9, %s16
    %p18 = scmp.eq.s32.totalorder %s17, 0
    %s20 = sadd.s32 %s19, 1
    %s21 = scalar_select %p18, %s19, %s20
    %p24 = pneg %p18
    %p25 = scmp.eq.s32.totalorder %s9, 3
    %p26 = por %p24, %p25
    %p27 = scmp.ne.s32.totalorder %s19, %s22
    %p28 = scmp.eq.s32.totalorder %s9, 0
    %p29 = por %p27, %p28
    %p30 = scmp.ne.s32.totalorder %s19, %s22
    %p31 = scmp.eq.s32.totalorder %s14, 3
    %p32 = por %p30, %p31
    %p33 = scmp.ne.s32.totalorder %s22, %s23
    %p34 = scmp.eq.s32.totalorder %s14, 0
    %p35 = por %p33, %p34
    %p36 = scmp.ne.s32.totalorder %s22, %s23
    %p37 = scmp.eq.s32.totalorder %s15, 3
    %p38 = por %p36, %p37
    %p40 = scmp.ne.s32.totalorder %s23, %s39
    %p41 = scmp.eq.s32.totalorder %s15, 0
    %p42 = por %p40, %p41
    %s44 = sadd.s32 %s43, 1
    %p47 = scmp.eq.s32.totalorder %s9, 3
    %p48 = scmp.ne.s32.totalorder %s43, %s45
    %p49 = scmp.eq.s32.totalorder %s9, 0
    %p50 = por %p48, %p49
    %p51 = scmp.ne.s32.totalorder %s43, %s45
    %p52 = scmp.eq.s32.totalorder %s14, 3
    %p53 = por %p51, %p52
    %p54 = scmp.ne.s32.totalorder %s45, %s46
    %p55 = scmp.eq.s32.totalorder %s14, 0
    %p56 = por %p54, %p55
    %p57 = scmp.ne.s32.totalorder %s45, %s46
    %p58 = scmp.eq.s32.totalorder %s15, 3
    %p59 = por %p57, %p58
    %p61 = scmp.ne.s32.totalorder %s46, %s60
    %p62 = scmp.eq.s32.totalorder %s15, 0
    %p63 = por %p61, %p62
    %s65 = sadd.s32 %s64, 1
    %p68 = scmp.eq.s32.totalorder %s9, 3
    %p69 = scmp.ne.s32.totalorder %s64, %s66
    %p70 = scmp.eq.s32.totalorder %s9, 0
    %p71 = por %p69, %p70
    %p72 = scmp.ne.s32.totalorder %s64, %s66
    %p73 = scmp.eq.s32.totalorder %s14, 3
    %p74 = por %p72, %p73
    %p75 = scmp.ne.s32.totalorder %s66, %s67
    %p76 = scmp.eq.s32.totalorder %s14, 0
    %p77 = por %p75, %p76
    %p78 = scmp.ne.s32.totalorder %s66, %s67
    %p79 = scmp.eq.s32.totalorder %s15, 3
    %p80 = por %p78, %p79
    %p82 = scmp.ne.s32.totalorder %s67, %s81
    %p83 = scmp.eq.s32.totalorder %s15, 0
    %p84 = por %p82, %p83
    %s85 = ssub.s32 %s9, %s16
    %p86 = scmp.eq.s32.totalorder %s85, 0
    %s88 = sadd.s32 %s87, 1
    %s89 = scalar_select %p86, %s87, %s88
    %p92 = pneg %p86
    %p93 = scmp.eq.s32.totalorder %s9, 3
    %p94 = por %p92, %p93
    %p95 = scmp.ne.s32.totalorder %s87, %s90
    %p96 = scmp.eq.s32.totalorder %s9, 0
    %p97 = por %p95, %p96
    %p98 = scmp.ne.s32.totalorder %s87, %s90
    %p99 = scmp.eq.s32.totalorder %s14, 3
    %p100 = por %p98, %p99
    %p101 = scmp.ne.s32.totalorder %s90, %s91
    %p102 = scmp.eq.s32.totalorder %s14, 0
    %p103 = por %p101, %p102
    %p104 = scmp.ne.s32.totalorder %s90, %s91
    %p105 = scmp.eq.s32.totalorder %s15, 3
    %p106 = por %p104, %p105
    %p108 = scmp.ne.s32.totalorder %s91, %s107
    %p109 = scmp.eq.s32.totalorder %s15, 0
    %p110 = por %p108, %p109
    %p111 = scmp.le.s32.totalorder 1, %s9
    %p112 = scmp.lt.s32.totalorder %s9, 5
    %p113 = pnand %p111, %p112
    %p114 = pneg %p113
    // Predicated region
    $region9: #{_lambda_.17} parent=5 // pred_check
      _
    $region10: #{_lambda_.17} parent=5 // pred_check_branch
      %116 = sbr.rel (%p113) target = $region12
    $region11: #{_lambda_.17} parent=5 // pred_region
      %s117 = ssub.s32 %s9, 1
      // Predicated region
      $region13: #{_lambda_.17} parent=11 // pred_check
        %p118 = pneg %p56
      $region14: #{_lambda_.17} parent=11 // pred_check_branch
        %120 = sbr.rel (%p118) target = $region16
      $region15: #{_lambda_.17} parent=11 // pred_region
        _
      $region16: #{_lambda_.17} parent=11 // pred_fallthru
        _
      // Predicated region
      $region17: #{_lambda_.17} parent=11 // pred_check
        %p121 = pneg %p77
      $region18: #{_lambda_.17} parent=11 // pred_check_branch
        %123 = sbr.rel (%p121) target = $region20
      $region19: #{_lambda_.17} parent=11 // pred_region
        _
      $region20: #{_lambda_.17} parent=11 // pred_fallthru
        _
    $region12: #{_lambda_.17} parent=5 // pred_fallthru
      _
    %p124 = scmp.lt.s32.totalorder %s9, 4
    // Predicated region
    $region21: #{_lambda_.17} parent=5 // pred_check
      %p125 = pneg %p124
    $region22: #{_lambda_.17} parent=5 // pred_check_branch
      %127 = sbr.rel (%p125) target = $region24
    $region23: #{_lambda_.17} parent=5 // pred_region
      // Predicated region
      $region25: #{_lambda_.17} parent=23 // pred_check
        %p128 = pneg %p29
      $region26: #{_lambda_.17} parent=23 // pred_check_branch
        %130 = sbr.rel (%p128) target = $region28
      $region27: #{_lambda_.17} parent=23 // pred_region
        %s131 = smul.u32 64, %s9
        %p132 = scmp.lt.s32.totalorder %s131, 255
        %s133 = scalar_select %p132, %s131, 255
        %s134 = smul.addr %s133, 8
        %s135 = scalar_lea.vmem %s0, %s134
        %s136 = smul.u32 64, %s9
      $region28: #{_lambda_.17} parent=23 // pred_fallthru
        _
    $region24: #{_lambda_.17} parent=5 // pred_fallthru
      _
    %p137 = scmp.le.s32.totalorder 1, %s9
    %p138 = scmp.lt.s32.totalorder %s9, 5
    %p139 = pnand %p137, %p138
    %p140 = pneg %p139
    // Predicated region
    $region29: #{_lambda_.17} parent=5 // pred_check
      _
    $region30: #{_lambda_.17} parent=5 // pred_check_branch
      %142 = sbr.rel (%p139) target = $region32
    $region31: #{_lambda_.17} parent=5 // pred_region
      %s143 = ssub.s32 %s9, 1
      %s144 = smul.u32 64, %s14
      %p145 = scmp.lt.s32.totalorder %s144, 255
      %s146 = scalar_select %p145, %s144, 255
      %s147 = smul.addr %s146, 8
      %s148 = scalar_lea.vmem %s0, %s147
      %p149 = pneg %p35
      %p150 = pneg %p32
      %p151 = pneg %p56
      %p152 = pneg %p53
      %p153 = pneg %p77
      %p154 = pneg %p74
      %p155 = pneg %p103
      %p156 = pneg %p100
      %s157 = smul.u32 64, %s14
      %p158 = scmp.lt.s32.totalorder %s157, 255
      %s159 = scalar_select %p158, %s157, 255
      %s160 = smul.addr %s159, 4
      %s161 = scalar_lea.vmem %s3, %s160
      %s162 = smul.u32 64, %s14
      %p163 = scmp.lt.s32.totalorder %s162, 255
      %s164 = scalar_select %p163, %s162, 255
      %s165 = smul.addr %s164, 8
      %s166 = scalar_lea.vmem %s0, %s165
      %s167 = smul.u32 64, %s14
      %s168 = smul.u32 64, %s14
      %p169 = scmp.lt.s32.totalorder %s168, 255
      %s170 = scalar_select %p169, %s168, 255
      %s171 = smul.addr %s170, 4
      %s172 = scalar_lea.vmem %s3, %s171
      %s173 = smul.u32 64, %s14
      %v174 = vld [vmem:[%s166] sm:$0xff]
      %v175 = vld [vmem:[%s166 + $0x8] sm:$0xff]
      %v176 = vld [vmem:[%s166 + $0x10] sm:$0xff]
      %v177 = vld [vmem:[%s166 + $0x18] sm:$0xff]
      %v178 = vld [vmem:[%s166 + $0x20] sm:$0xff]
      %v179 = vld [vmem:[%s166 + $0x28] sm:$0xff]
      %v180 = vld [vmem:[%s166 + $0x30] sm:$0xff]
      %v181 = vld [vmem:[%s166 + $0x38] sm:$0xff]
      %v182 = vld [vmem:[%s166 + $0x40] sm:$0xff]
      %v183 = vld [vmem:[%s166 + $0x48] sm:$0xff]
      %v184 = vld [vmem:[%s166 + $0x50] sm:$0xff]
      %v185 = vld [vmem:[%s166 + $0x58] sm:$0xff]
      %v186 = vld [vmem:[%s166 + $0x60] sm:$0xff]
      %v187 = vld [vmem:[%s166 + $0x68] sm:$0xff]
      %v188 = vld [vmem:[%s166 + $0x70] sm:$0xff]
      %v189 = vld [vmem:[%s166 + $0x78] sm:$0xff]
      %v190 = vld [vmem:[%s166 + $0x80] sm:$0xff]
      %v191 = vld [vmem:[%s166 + $0x88] sm:$0xff]
      %v192 = vld [vmem:[%s166 + $0x90] sm:$0xff]
      %v193 = vld [vmem:[%s166 + $0x98] sm:$0xff]
      %v194 = vld [vmem:[%s166 + $0xa0] sm:$0xff]
      %v195 = vld [vmem:[%s166 + $0xa8] sm:$0xff]
      %v196 = vld [vmem:[%s166 + $0xb0] sm:$0xff]
      %v197 = vld [vmem:[%s166 + $0xb8] sm:$0xff]
      %v198 = vld [vmem:[%s166 + $0xc0] sm:$0xff]
      %v199 = vld [vmem:[%s166 + $0xc8] sm:$0xff]
      %v200 = vld [vmem:[%s166 + $0xd0] sm:$0xff]
      %v201 = vld [vmem:[%s166 + $0xd8] sm:$0xff]
      %v202 = vld [vmem:[%s166 + $0xe0] sm:$0xff]
      %v203 = vld [vmem:[%s166 + $0xe8] sm:$0xff]
      %v204 = vld [vmem:[%s166 + $0xf0] sm:$0xff]
      %v205 = vld [vmem:[%s166 + $0xf8] sm:$0xff]
      %v206 = vld [vmem:[%s166 + $0x100] sm:$0xff]
      %v207 = vld [vmem:[%s166 + $0x108] sm:$0xff]
      %v208 = vld [vmem:[%s166 + $0x110] sm:$0xff]
      %v209 = vld [vmem:[%s166 + $0x118] sm:$0xff]
      %v210 = vld [vmem:[%s166 + $0x120] sm:$0xff]
      %v211 = vld [vmem:[%s166 + $0x128] sm:$0xff]
      %v212 = vld [vmem:[%s166 + $0x130] sm:$0xff]
      %v213 = vld [vmem:[%s166 + $0x138] sm:$0xff]
      %v214 = vld [vmem:[%s166 + $0x140] sm:$0xff]
      %v215 = vld [vmem:[%s166 + $0x148] sm:$0xff]
      %v216 = vld [vmem:[%s166 + $0x150] sm:$0xff]
      %v217 = vld [vmem:[%s166 + $0x158] sm:$0xff]
      %v218 = vld [vmem:[%s166 + $0x160] sm:$0xff]
      %v219 = vld [vmem:[%s166 + $0x168] sm:$0xff]
      %v220 = vld [vmem:[%s166 + $0x170] sm:$0xff]
      %v221 = vld [vmem:[%s166 + $0x178] sm:$0xff]
      %v222 = vld [vmem:[%s166 + $0x180] sm:$0xff]
      %v223 = vld [vmem:[%s166 + $0x188] sm:$0xff]
      %v224 = vld [vmem:[%s166 + $0x190] sm:$0xff]
      %v225 = vld [vmem:[%s166 + $0x198] sm:$0xff]
      %v226 = vld [vmem:[%s166 + $0x1a0] sm:$0xff]
      %v227 = vld [vmem:[%s166 + $0x1a8] sm:$0xff]
      %v228 = vld [vmem:[%s166 + $0x1b0] sm:$0xff]
      %v229 = vld [vmem:[%s166 + $0x1b8] sm:$0xff]
      %v230 = vld [vmem:[%s166 + $0x1c0] sm:$0xff]
      %v231 = vld [vmem:[%s166 + $0x1c8] sm:$0xff]
      %v232 = vld [vmem:[%s166 + $0x1d0] sm:$0xff]
      %v233 = vld [vmem:[%s166 + $0x1d8] sm:$0xff]
      %v234 = vld [vmem:[%s166 + $0x1e0] sm:$0xff]
      %v235 = vld [vmem:[%s166 + $0x1e8] sm:$0xff]
      %v236 = vld [vmem:[%s166 + $0x1f0] sm:$0xff]
      %v237 = vld [vmem:[%s166 + $0x1f8] sm:$0xff]
      %v238 = vld [vmem:[%s1] sm:$0x1]
      %v240 = vlaneseq
      %v241 = vshrl.u32 %v240, 7
      %v242 = vsub.s32 0, %v241
      %v243 = vrot.slane %v238, %v242
      %v245 = vmul.f32 %v174, %v243
      %v246 = vmul.f32 %v175, %v243
      %v247 = vmul.f32 %v176, %v243
      %v248 = vmul.f32 %v177, %v243
      %v249 = vmul.f32 %v178, %v243
      %v250 = vmul.f32 %v179, %v243
      %v251 = vmul.f32 %v180, %v243
      %v252 = vmul.f32 %v181, %v243
      %v253 = vmul.f32 %v182, %v243
      %v254 = vmul.f32 %v183, %v243
      %v255 = vmul.f32 %v184, %v243
      %v256 = vmul.f32 %v185, %v243
      %v257 = vmul.f32 %v186, %v243
      %v258 = vmul.f32 %v187, %v243
      %v259 = vmul.f32 %v188, %v243
      %v260 = vmul.f32 %v189, %v243
      %v261 = vmul.f32 %v190, %v243
      %v262 = vmul.f32 %v191, %v243
      %v263 = vmul.f32 %v192, %v243
      %v264 = vmul.f32 %v193, %v243
      %v265 = vmul.f32 %v194, %v243
      %v266 = vmul.f32 %v195, %v243
      %v267 = vmul.f32 %v196, %v243
      %v268 = vmul.f32 %v197, %v243
      %v269 = vmul.f32 %v198, %v243
      %v270 = vmul.f32 %v199, %v243
      %v271 = vmul.f32 %v200, %v243
      %v272 = vmul.f32 %v201, %v243
      %v273 = vmul.f32 %v202, %v243
      %v274 = vmul.f32 %v203, %v243
      %v275 = vmul.f32 %v204, %v243
      %v276 = vmul.f32 %v205, %v243
      %v277 = vmul.f32 %v206, %v243
      %v278 = vmul.f32 %v207, %v243
      %v279 = vmul.f32 %v208, %v243
      %v280 = vmul.f32 %v209, %v243
      %v281 = vmul.f32 %v210, %v243
      %v282 = vmul.f32 %v211, %v243
      %v283 = vmul.f32 %v212, %v243
      %v284 = vmul.f32 %v213, %v243
      %v285 = vmul.f32 %v214, %v243
      %v286 = vmul.f32 %v215, %v243
      %v287 = vmul.f32 %v216, %v243
      %v288 = vmul.f32 %v217, %v243
      %v289 = vmul.f32 %v218, %v243
      %v290 = vmul.f32 %v219, %v243
      %v291 = vmul.f32 %v220, %v243
      %v292 = vmul.f32 %v221, %v243
      %v293 = vmul.f32 %v222, %v243
      %v294 = vmul.f32 %v223, %v243
      %v295 = vmul.f32 %v224, %v243
      %v296 = vmul.f32 %v225, %v243
      %v297 = vmul.f32 %v226, %v243
      %v298 = vmul.f32 %v227, %v243
      %v299 = vmul.f32 %v228, %v243
      %v300 = vmul.f32 %v229, %v243
      %v301 = vmul.f32 %v230, %v243
      %v302 = vmul.f32 %v231, %v243
      %v303 = vmul.f32 %v232, %v243
      %v304 = vmul.f32 %v233, %v243
      %v305 = vmul.f32 %v234, %v243
      %v306 = vmul.f32 %v235, %v243
      %v307 = vmul.f32 %v236, %v243
      %v308 = vmul.f32 %v237, %v243
      %v309 = vld [vmem:[%s2] sm:$0x1]
      %v311 = vlaneseq
      %v312 = vshrl.u32 %v311, 7
      %v313 = vsub.s32 0, %v312
      %v314 = vrot.slane %v309, %v313
      %v316 = vadd.f32 %v245, %v314
      %v317 = vadd.f32 %v246, %v314
      %v318 = vadd.f32 %v247, %v314
      %v319 = vadd.f32 %v248, %v314
      %v320 = vadd.f32 %v249, %v314
      %v321 = vadd.f32 %v250, %v314
      %v322 = vadd.f32 %v251, %v314
      %v323 = vadd.f32 %v252, %v314
      %v324 = vadd.f32 %v253, %v314
      %v325 = vadd.f32 %v254, %v314
      %v326 = vadd.f32 %v255, %v314
      %v327 = vadd.f32 %v256, %v314
      %v328 = vadd.f32 %v257, %v314
      %v329 = vadd.f32 %v258, %v314
      %v330 = vadd.f32 %v259, %v314
      %v331 = vadd.f32 %v260, %v314
      %v332 = vadd.f32 %v261, %v314
      %v333 = vadd.f32 %v262, %v314
      %v334 = vadd.f32 %v263, %v314
      %v335 = vadd.f32 %v264, %v314
      %v336 = vadd.f32 %v265, %v314
      %v337 = vadd.f32 %v266, %v314
      %v338 = vadd.f32 %v267, %v314
      %v339 = vadd.f32 %v268, %v314
      %v340 = vadd.f32 %v269, %v314
      %v341 = vadd.f32 %v270, %v314
      %v342 = vadd.f32 %v271, %v314
      %v343 = vadd.f32 %v272, %v314
      %v344 = vadd.f32 %v273, %v314
      %v345 = vadd.f32 %v274, %v314
      %v346 = vadd.f32 %v275, %v314
      %v347 = vadd.f32 %v276, %v314
      %v348 = vadd.f32 %v277, %v314
      %v349 = vadd.f32 %v278, %v314
      %v350 = vadd.f32 %v279, %v314
      %v351 = vadd.f32 %v280, %v314
      %v352 = vadd.f32 %v281, %v314
      %v353 = vadd.f32 %v282, %v314
      %v354 = vadd.f32 %v283, %v314
      %v355 = vadd.f32 %v284, %v314
      %v356 = vadd.f32 %v285, %v314
      %v357 = vadd.f32 %v286, %v314
      %v358 = vadd.f32 %v287, %v314
      %v359 = vadd.f32 %v288, %v314
      %v360 = vadd.f32 %v289, %v314
      %v361 = vadd.f32 %v290, %v314
      %v362 = vadd.f32 %v291, %v314
      %v363 = vadd.f32 %v292, %v314
      %v364 = vadd.f32 %v293, %v314
      %v365 = vadd.f32 %v294, %v314
      %v366 = vadd.f32 %v295, %v314
      %v367 = vadd.f32 %v296, %v314
      %v368 = vadd.f32 %v297, %v314
      %v369 = vadd.f32 %v298, %v314
      %v370 = vadd.f32 %v299, %v314
      %v371 = vadd.f32 %v300, %v314
      %v372 = vadd.f32 %v301, %v314
      %v373 = vadd.f32 %v302, %v314
      %v374 = vadd.f32 %v303, %v314
      %v375 = vadd.f32 %v304, %v314
      %v376 = vadd.f32 %v305, %v314
      %v377 = vadd.f32 %v306, %v314
      %v378 = vadd.f32 %v307, %v314
      %v379 = vadd.f32 %v308, %v314
      %v380 = vmax.f32 %v316, 0.0
      %v381 = vmax.f32 %v317, 0.0
      %v382 = vmax.f32 %v318, 0.0
      %v383 = vmax.f32 %v319, 0.0
      %v384 = vmax.f32 %v320, 0.0
      %v385 = vmax.f32 %v321, 0.0
      %v386 = vmax.f32 %v322, 0.0
      %v387 = vmax.f32 %v323, 0.0
      %v388 = vmax.f32 %v324, 0.0
      %v389 = vmax.f32 %v325, 0.0
      %v390 = vmax.f32 %v326, 0.0
      %v391 = vmax.f32 %v327, 0.0
      %v392 = vmax.f32 %v328, 0.0
      %v393 = vmax.f32 %v329, 0.0
      %v394 = vmax.f32 %v330, 0.0
      %v395 = vmax.f32 %v331, 0.0
      %v396 = vmax.f32 %v332, 0.0
      %v397 = vmax.f32 %v333, 0.0
      %v398 = vmax.f32 %v334, 0.0
      %v399 = vmax.f32 %v335, 0.0
      %v400 = vmax.f32 %v336, 0.0
      %v401 = vmax.f32 %v337, 0.0
      %v402 = vmax.f32 %v338, 0.0
      %v403 = vmax.f32 %v339, 0.0
      %v404 = vmax.f32 %v340, 0.0
      %v405 = vmax.f32 %v341, 0.0
      %v406 = vmax.f32 %v342, 0.0
      %v407 = vmax.f32 %v343, 0.0
      %v408 = vmax.f32 %v344, 0.0
      %v409 = vmax.f32 %v345, 0.0
      %v410 = vmax.f32 %v346, 0.0
      %v411 = vmax.f32 %v347, 0.0
      %v412 = vmax.f32 %v348, 0.0
      %v413 = vmax.f32 %v349, 0.0
      %v414 = vmax.f32 %v350, 0.0
      %v415 = vmax.f32 %v351, 0.0
      %v416 = vmax.f32 %v352, 0.0
      %v417 = vmax.f32 %v353, 0.0
      %v418 = vmax.f32 %v354, 0.0
      %v419 = vmax.f32 %v355, 0.0
      %v420 = vmax.f32 %v356, 0.0
      %v421 = vmax.f32 %v357, 0.0
      %v422 = vmax.f32 %v358, 0.0
      %v423 = vmax.f32 %v359, 0.0
      %v424 = vmax.f32 %v360, 0.0
      %v425 = vmax.f32 %v361, 0.0
      %v426 = vmax.f32 %v362, 0.0
      %v427 = vmax.f32 %v363, 0.0
      %v428 = vmax.f32 %v364, 0.0
      %v429 = vmax.f32 %v365, 0.0
      %v430 = vmax.f32 %v366, 0.0
      %v431 = vmax.f32 %v367, 0.0
      %v432 = vmax.f32 %v368, 0.0
      %v433 = vmax.f32 %v369, 0.0
      %v434 = vmax.f32 %v370, 0.0
      %v435 = vmax.f32 %v371, 0.0
      %v436 = vmax.f32 %v372, 0.0
      %v437 = vmax.f32 %v373, 0.0
      %v438 = vmax.f32 %v374, 0.0
      %v439 = vmax.f32 %v375, 0.0
      %v440 = vmax.f32 %v376, 0.0
      %v441 = vmax.f32 %v377, 0.0
      %v442 = vmax.f32 %v378, 0.0
      %v443 = vmax.f32 %v379, 0.0
      %v444 = vpack.c.bf16 %v381, %v380
      %v445 = vpack.c.bf16 %v383, %v382
      %v446 = vpack.c.bf16 %v385, %v384
      %v447 = vpack.c.bf16 %v387, %v386
      %v448 = vpack.c.bf16 %v389, %v388
      %v449 = vpack.c.bf16 %v391, %v390
      %v450 = vpack.c.bf16 %v393, %v392
      %v451 = vpack.c.bf16 %v395, %v394
      %v452 = vpack.c.bf16 %v397, %v396
      %v453 = vpack.c.bf16 %v399, %v398
      %v454 = vpack.c.bf16 %v401, %v400
      %v455 = vpack.c.bf16 %v403, %v402
      %v456 = vpack.c.bf16 %v405, %v404
      %v457 = vpack.c.bf16 %v407, %v406
      %v458 = vpack.c.bf16 %v409, %v408
      %v459 = vpack.c.bf16 %v411, %v410
      %v460 = vpack.c.bf16 %v413, %v412
      %v461 = vpack.c.bf16 %v415, %v414
      %v462 = vpack.c.bf16 %v417, %v416
      %v463 = vpack.c.bf16 %v419, %v418
      %v464 = vpack.c.bf16 %v421, %v420
      %v465 = vpack.c.bf16 %v423, %v422
      %v466 = vpack.c.bf16 %v425, %v424
      %v467 = vpack.c.bf16 %v427, %v426
      %v468 = vpack.c.bf16 %v429, %v428
      %v469 = vpack.c.bf16 %v431, %v430
      %v470 = vpack.c.bf16 %v433, %v432
      %v471 = vpack.c.bf16 %v435, %v434
      %v472 = vpack.c.bf16 %v437, %v436
      %v473 = vpack.c.bf16 %v439, %v438
      %v474 = vpack.c.bf16 %v441, %v440
      %v475 = vpack.c.bf16 %v443, %v442
      %v508 = vunpack.c.l.b16 %v444
      %v509 = vunpack.c.h.b16 %v444
      %v510 = vunpack.c.l.b16 %v445
      %v511 = vunpack.c.h.b16 %v445
      %v512 = vunpack.c.l.b16 %v446
      %v513 = vunpack.c.h.b16 %v446
      %v514 = vunpack.c.l.b16 %v447
      %v515 = vunpack.c.h.b16 %v447
      %v516 = vunpack.c.l.b16 %v448
      %v517 = vunpack.c.h.b16 %v448
      %v518 = vunpack.c.l.b16 %v449
      %v519 = vunpack.c.h.b16 %v449
      %v520 = vunpack.c.l.b16 %v450
      %v521 = vunpack.c.h.b16 %v450
      %v522 = vunpack.c.l.b16 %v451
      %v523 = vunpack.c.h.b16 %v451
      %v524 = vunpack.c.l.b16 %v452
      %v525 = vunpack.c.h.b16 %v452
      %v526 = vunpack.c.l.b16 %v453
      %v527 = vunpack.c.h.b16 %v453
      %v528 = vunpack.c.l.b16 %v454
      %v529 = vunpack.c.h.b16 %v454
      %v530 = vunpack.c.l.b16 %v455
      %v531 = vunpack.c.h.b16 %v455
      %v532 = vunpack.c.l.b16 %v456
      %v533 = vunpack.c.h.b16 %v456
      %v534 = vunpack.c.l.b16 %v457
      %v535 = vunpack.c.h.b16 %v457
      %v536 = vunpack.c.l.b16 %v458
      %v537 = vunpack.c.h.b16 %v458
      %v538 = vunpack.c.l.b16 %v459
      %v539 = vunpack.c.h.b16 %v459
      %v540 = vunpack.c.l.b16 %v460
      %v541 = vunpack.c.h.b16 %v460
      %v542 = vunpack.c.l.b16 %v461
      %v543 = vunpack.c.h.b16 %v461
      %v544 = vunpack.c.l.b16 %v462
      %v545 = vunpack.c.h.b16 %v462
      %v546 = vunpack.c.l.b16 %v463
      %v547 = vunpack.c.h.b16 %v463
      %v548 = vunpack.c.l.b16 %v464
      %v549 = vunpack.c.h.b16 %v464
      %v550 = vunpack.c.l.b16 %v465
      %v551 = vunpack.c.h.b16 %v465
      %v552 = vunpack.c.l.b16 %v466
      %v553 = vunpack.c.h.b16 %v466
      %v554 = vunpack.c.l.b16 %v467
      %v555 = vunpack.c.h.b16 %v467
      %v556 = vunpack.c.l.b16 %v468
      %v557 = vunpack.c.h.b16 %v468
      %v558 = vunpack.c.l.b16 %v469
      %v559 = vunpack.c.h.b16 %v469
      %v560 = vunpack.c.l.b16 %v470
      %v561 = vunpack.c.h.b16 %v470
      %v562 = vunpack.c.l.b16 %v471
      %v563 = vunpack.c.h.b16 %v471
      %v564 = vunpack.c.l.b16 %v472
      %v565 = vunpack.c.h.b16 %v472
      %v566 = vunpack.c.l.b16 %v473
      %v567 = vunpack.c.h.b16 %v473
      %v568 = vunpack.c.l.b16 %v474
      %v569 = vunpack.c.h.b16 %v474
      %v570 = vunpack.c.l.b16 %v475
      %v571 = vunpack.c.h.b16 %v475
      %v572 = vpack.c.b16 %v508, %v508
      %v573 = vpack.c.b16 %v509, %v509
      %v574 = vpack.c.b16 %v510, %v510
      %v575 = vpack.c.b16 %v511, %v511
      %v576 = vpack.c.b16 %v512, %v512
      %v577 = vpack.c.b16 %v513, %v513
      %v578 = vpack.c.b16 %v514, %v514
      %v579 = vpack.c.b16 %v515, %v515
      %v580 = vpack.c.b16 %v516, %v516
      %v581 = vpack.c.b16 %v517, %v517
      %v582 = vpack.c.b16 %v518, %v518
      %v583 = vpack.c.b16 %v519, %v519
      %v584 = vpack.c.b16 %v520, %v520
      %v585 = vpack.c.b16 %v521, %v521
      %v586 = vpack.c.b16 %v522, %v522
      %v587 = vpack.c.b16 %v523, %v523
      %v588 = vpack.c.b16 %v524, %v524
      %v589 = vpack.c.b16 %v525, %v525
      %v590 = vpack.c.b16 %v526, %v526
      %v591 = vpack.c.b16 %v527, %v527
      %v592 = vpack.c.b16 %v528, %v528
      %v593 = vpack.c.b16 %v529, %v529
      %v594 = vpack.c.b16 %v530, %v530
      %v595 = vpack.c.b16 %v531, %v531
      %v596 = vpack.c.b16 %v532, %v532
      %v597 = vpack.c.b16 %v533, %v533
      %v598 = vpack.c.b16 %v534, %v534
      %v599 = vpack.c.b16 %v535, %v535
      %v600 = vpack.c.b16 %v536, %v536
      %v601 = vpack.c.b16 %v537, %v537
      %v602 = vpack.c.b16 %v538, %v538
      %v603 = vpack.c.b16 %v539, %v539
      %v604 = vpack.c.b16 %v540, %v540
      %v605 = vpack.c.b16 %v541, %v541
      %v606 = vpack.c.b16 %v542, %v542
      %v607 = vpack.c.b16 %v543, %v543
      %v608 = vpack.c.b16 %v544, %v544
      %v609 = vpack.c.b16 %v545, %v545
      %v610 = vpack.c.b16 %v546, %v546
      %v611 = vpack.c.b16 %v547, %v547
      %v612 = vpack.c.b16 %v548, %v548
      %v613 = vpack.c.b16 %v549, %v549
      %v614 = vpack.c.b16 %v550, %v550
      %v615 = vpack.c.b16 %v551, %v551
      %v616 = vpack.c.b16 %v552, %v552
      %v617 = vpack.c.b16 %v553, %v553
      %v618 = vpack.c.b16 %v554, %v554
      %v619 = vpack.c.b16 %v555, %v555
      %v620 = vpack.c.b16 %v556, %v556
      %v621 = vpack.c.b16 %v557, %v557
      %v622 = vpack.c.b16 %v558, %v558
      %v623 = vpack.c.b16 %v559, %v559
      %v624 = vpack.c.b16 %v560, %v560
      %v625 = vpack.c.b16 %v561, %v561
      %v626 = vpack.c.b16 %v562, %v562
      %v627 = vpack.c.b16 %v563, %v563
      %v628 = vpack.c.b16 %v564, %v564
      %v629 = vpack.c.b16 %v565, %v565
      %v630 = vpack.c.b16 %v566, %v566
      %v631 = vpack.c.b16 %v567, %v567
      %v632 = vpack.c.b16 %v568, %v568
      %v633 = vpack.c.b16 %v569, %v569
      %v634 = vpack.c.b16 %v570, %v570
      %v635 = vpack.c.b16 %v571, %v571
      %700 = vst [vmem:[%s172] sm:$0xf] %v572
      %701 = vst [vmem:[%s172 + $0x4] sm:$0xf] %v573
      %702 = vst [vmem:[%s172 + $0x8] sm:$0xf] %v574
      %703 = vst [vmem:[%s172 + $0xc] sm:$0xf] %v575
      %704 = vst [vmem:[%s172 + $0x10] sm:$0xf] %v576
      %705 = vst [vmem:[%s172 + $0x14] sm:$0xf] %v577
      %706 = vst [vmem:[%s172 + $0x18] sm:$0xf] %v578
      %707 = vst [vmem:[%s172 + $0x1c] sm:$0xf] %v579
      %708 = vst [vmem:[%s172 + $0x20] sm:$0xf] %v580
      %709 = vst [vmem:[%s172 + $0x24] sm:$0xf] %v581
      %710 = vst [vmem:[%s172 + $0x28] sm:$0xf] %v582
      %711 = vst [vmem:[%s172 + $0x2c] sm:$0xf] %v583
      %712 = vst [vmem:[%s172 + $0x30] sm:$0xf] %v584
      %713 = vst [vmem:[%s172 + $0x34] sm:$0xf] %v585
      %714 = vst [vmem:[%s172 + $0x38] sm:$0xf] %v586
      %715 = vst [vmem:[%s172 + $0x3c] sm:$0xf] %v587
      %716 = vst [vmem:[%s172 + $0x40] sm:$0xf] %v588
      %717 = vst [vmem:[%s172 + $0x44] sm:$0xf] %v589
      %718 = vst [vmem:[%s172 + $0x48] sm:$0xf] %v590
      %719 = vst [vmem:[%s172 + $0x4c] sm:$0xf] %v591
      %720 = vst [vmem:[%s172 + $0x50] sm:$0xf] %v592
      %721 = vst [vmem:[%s172 + $0x54] sm:$0xf] %v593
      %722 = vst [vmem:[%s172 + $0x58] sm:$0xf] %v594
      %723 = vst [vmem:[%s172 + $0x5c] sm:$0xf] %v595
      %724 = vst [vmem:[%s172 + $0x60] sm:$0xf] %v596
      %725 = vst [vmem:[%s172 + $0x64] sm:$0xf] %v597
      %726 = vst [vmem:[%s172 + $0x68] sm:$0xf] %v598
      %727 = vst [vmem:[%s172 + $0x6c] sm:$0xf] %v599
      %728 = vst [vmem:[%s172 + $0x70] sm:$0xf] %v600
      %729 = vst [vmem:[%s172 + $0x74] sm:$0xf] %v601
      %730 = vst [vmem:[%s172 + $0x78] sm:$0xf] %v602
      %731 = vst [vmem:[%s172 + $0x7c] sm:$0xf] %v603
      %732 = vst [vmem:[%s172 + $0x80] sm:$0xf] %v604
      %733 = vst [vmem:[%s172 + $0x84] sm:$0xf] %v605
      %734 = vst [vmem:[%s172 + $0x88] sm:$0xf] %v606
      %735 = vst [vmem:[%s172 + $0x8c] sm:$0xf] %v607
      %736 = vst [vmem:[%s172 + $0x90] sm:$0xf] %v608
      %737 = vst [vmem:[%s172 + $0x94] sm:$0xf] %v609
      %738 = vst [vmem:[%s172 + $0x98] sm:$0xf] %v610
      %739 = vst [vmem:[%s172 + $0x9c] sm:$0xf] %v611
      %740 = vst [vmem:[%s172 + $0xa0] sm:$0xf] %v612
      %741 = vst [vmem:[%s172 + $0xa4] sm:$0xf] %v613
      %742 = vst [vmem:[%s172 + $0xa8] sm:$0xf] %v614
      %743 = vst [vmem:[%s172 + $0xac] sm:$0xf] %v615
      %744 = vst [vmem:[%s172 + $0xb0] sm:$0xf] %v616
      %745 = vst [vmem:[%s172 + $0xb4] sm:$0xf] %v617
      %746 = vst [vmem:[%s172 + $0xb8] sm:$0xf] %v618
      %747 = vst [vmem:[%s172 + $0xbc] sm:$0xf] %v619
      %748 = vst [vmem:[%s172 + $0xc0] sm:$0xf] %v620
      %749 = vst [vmem:[%s172 + $0xc4] sm:$0xf] %v621
      %750 = vst [vmem:[%s172 + $0xc8] sm:$0xf] %v622
      %751 = vst [vmem:[%s172 + $0xcc] sm:$0xf] %v623
      %752 = vst [vmem:[%s172 + $0xd0] sm:$0xf] %v624
      %753 = vst [vmem:[%s172 + $0xd4] sm:$0xf] %v625
      %754 = vst [vmem:[%s172 + $0xd8] sm:$0xf] %v626
      %755 = vst [vmem:[%s172 + $0xdc] sm:$0xf] %v627
      %756 = vst [vmem:[%s172 + $0xe0] sm:$0xf] %v628
      %757 = vst [vmem:[%s172 + $0xe4] sm:$0xf] %v629
      %758 = vst [vmem:[%s172 + $0xe8] sm:$0xf] %v630
      %759 = vst [vmem:[%s172 + $0xec] sm:$0xf] %v631
      %760 = vst [vmem:[%s172 + $0xf0] sm:$0xf] %v632
      %761 = vst [vmem:[%s172 + $0xf4] sm:$0xf] %v633
      %762 = vst [vmem:[%s172 + $0xf8] sm:$0xf] %v634
      %763 = vst [vmem:[%s172 + $0xfc] sm:$0xf] %v635
      %s764 = smul.u32 64, %s14
      %p765 = scmp.lt.s32.totalorder %s764, 255
      %s766 = scalar_select %p765, %s764, 255
      %s767 = smul.addr %s766, 4
      %s768 = scalar_lea.vmem %s3, %s767
      // Predicated region
      $region33: #{_lambda_.17} parent=31 // pred_check
        %p769 = pneg %p100
      $region34: #{_lambda_.17} parent=31 // pred_check_branch
        %771 = sbr.rel (%p769) target = $region36
      $region35: #{_lambda_.17} parent=31 // pred_region
        %s772 = smul.u32 64, %s14
      $region36: #{_lambda_.17} parent=31 // pred_fallthru
        _
    $region32: #{_lambda_.17} parent=5 // pred_fallthru
      _
    %p773 = scmp.le.s32.totalorder 2, %s9
    // Predicated region
    $region37: #{_lambda_.17} parent=5 // pred_check
      %p774 = pneg %p773
    $region38: #{_lambda_.17} parent=5 // pred_check_branch
      %776 = sbr.rel (%p774) target = $region40
    $region39: #{_lambda_.17} parent=5 // pred_region
      %s777 = ssub.s32 %s9, 2
      // Predicated region
      $region41: #{_lambda_.17} parent=39 // pred_check
        %p778 = pneg %p106
      $region42: #{_lambda_.17} parent=39 // pred_check_branch
        %780 = sbr.rel (%p778) target = $region44
      $region43: #{_lambda_.17} parent=39 // pred_region
        %s781 = smul.u32 64, %s15
        %p782 = scmp.lt.s32.totalorder %s781, 255
        %s783 = scalar_select %p782, %s781, 255
        %s784 = smul.addr %s783, 4
        %s785 = scalar_lea.vmem %s3, %s784
      $region44: #{_lambda_.17} parent=39 // pred_fallthru
        _
    $region40: #{_lambda_.17} parent=5 // pred_fallthru
      _
  $region6: #{_lambda_.17} parent=0 // loop_footer
    %s13 = sadd.s32 1, %s9
  $region7: #{_lambda_.17} parent=0 // loop_footer_branch
    %8 = sbr.rel target = $region3
  $region8: #{_lambda_.17} parent=0 // loop_exit
    _

// kernel: _lambda_.16
$region0: #{_lambda_.16}
  #allocation0 [shape = 'u32[]', space=smem, size = 0x4, offset = 0x4, fixed_abs, tag = 'smem constant byte address 0x4 - core index']
  #allocation1 [shape = 'u32[144,128]{1,0:T(1,128)}', space=vmem, size = 0x12000, scoped, tag = 'internal scratch']
  %s0 = inlined_call_operand.vmem [shape: bf16[2048,27], index: 0, kind: input, shape index: {}]
  %s1 = inlined_call_operand.vmem [shape: bf16[27,128], index: 1, kind: input, shape index: {}]
  %s2 = inlined_call_operand.vmem [shape: f32[2048,128], index: 2, kind: output, shape index: {0}]
  %s3 = inlined_call_operand.vmem [shape: f32[4,1,128], index: 3, kind: output, shape index: {1}]
  %s4 = inlined_call_operand.vmem [shape: f32[4,1,128], index: 4, kind: output, shape index: {2}]
  %5 = xla_tuple %s2, %s3, %s4
  %s6 = sld [smem:[#allocation0]]
  $region57: #{_lambda_.16} parent=0
    _
  %s8 = ssub.s32 1, %s6
  %s9 = scalar_select 0, %s8, %s6
  loop: start=0, step=1, limit=6
  $region2: #{_lambda_.16} parent=0 // loop_pre_header
    _
  $region3: #{_lambda_.16} parent=0 // loop_header
    %s11 = sphi 0, %s15
    %p12 = scmp.ge.s32.totalorder %s11, 6
    %s21 = sphi 0, %s23
    %s24 = sphi 0, %s21
    %s25 = sphi 0, %s24
    %s41 = sphi 0, %s25
    %s45 = sphi 0, %s45
    %s47 = sphi 0, %s45
    %s48 = sphi 0, %s47
    %s62 = sphi 0, %s48
    %s68 = sphi 0, %s70
    %s71 = sphi 0, %s68
    %s72 = sphi 0, %s71
    %s88 = sphi 0, %s72
    %s94 = sphi 0, %s96
    %s97 = sphi 0, %s94
    %s98 = sphi 0, %s97
    %s114 = sphi 0, %s98
    %s120 = sphi 0, %s122
    %s123 = sphi 0, %s120
    %s124 = sphi 0, %s123
    %s140 = sphi 0, %s124
  $region4: #{_lambda_.16} parent=0 // loop_header_branch
    %14 = sbr.rel (%p12) target = $region8
  $region5: #{_lambda_.16} parent=0 // loop_body
    %s16 = ssub.s32 %s11, 1
    %s17 = ssub.s32 %s11, 2
    %s18 = sadd.s32 %s11, 1
    %s19 = ssub.s32 %s11, %s18
    %p20 = scmp.eq.s32.totalorder %s19, 0
    %s22 = sadd.s32 %s21, 1
    %s23 = scalar_select %p20, %s21, %s22
    %p26 = pneg %p20
    %p27 = scmp.eq.s32.totalorder %s11, 3
    %p28 = por %p26, %p27
    %p29 = scmp.ne.s32.totalorder %s21, %s24
    %p30 = scmp.eq.s32.totalorder %s11, 0
    %p31 = por %p29, %p30
    %p32 = scmp.ne.s32.totalorder %s21, %s24
    %p33 = scmp.eq.s32.totalorder %s16, 3
    %p34 = por %p32, %p33
    %p35 = scmp.ne.s32.totalorder %s24, %s25
    %p36 = scmp.eq.s32.totalorder %s16, 0
    %p37 = por %p35, %p36
    %p38 = scmp.ne.s32.totalorder %s24, %s25
    %p39 = scmp.eq.s32.totalorder %s17, 3
    %p40 = por %p38, %p39
    %p42 = scmp.ne.s32.totalorder %s25, %s41
    %p43 = scmp.eq.s32.totalorder %s17, 0
    %p44 = por %p42, %p43
    %s46 = sadd.s32 %s45, 1
    %p49 = scmp.eq.s32.totalorder %s11, 3
    %p50 = scmp.ne.s32.totalorder %s45, %s47
    %p51 = scmp.eq.s32.totalorder %s11, 0
    %p52 = por %p50, %p51
    %p53 = scmp.ne.s32.totalorder %s45, %s47
    %p54 = scmp.eq.s32.totalorder %s16, 3
    %p55 = por %p53, %p54
    %p56 = scmp.ne.s32.totalorder %s47, %s48
    %p57 = scmp.eq.s32.totalorder %s16, 0
    %p58 = por %p56, %p57
    %p59 = scmp.ne.s32.totalorder %s47, %s48
    %p60 = scmp.eq.s32.totalorder %s17, 3
    %p61 = por %p59, %p60
    %p63 = scmp.ne.s32.totalorder %s48, %s62
    %p64 = scmp.eq.s32.totalorder %s17, 0
    %p65 = por %p63, %p64
    %s66 = ssub.s32 %s11, %s18
    %p67 = scmp.eq.s32.totalorder %s66, 0
    %s69 = sadd.s32 %s68, 1
    %s70 = scalar_select %p67, %s68, %s69
    %p73 = pneg %p67
    %p74 = scmp.eq.s32.totalorder %s11, 3
    %p75 = por %p73, %p74
    %p76 = scmp.ne.s32.totalorder %s68, %s71
    %p77 = scmp.eq.s32.totalorder %s11, 0
    %p78 = por %p76, %p77
    %p79 = scmp.ne.s32.totalorder %s68, %s71
    %p80 = scmp.eq.s32.totalorder %s16, 3
    %p81 = por %p79, %p80
    %p82 = scmp.ne.s32.totalorder %s71, %s72
    %p83 = scmp.eq.s32.totalorder %s16, 0
    %p84 = por %p82, %p83
    %p85 = scmp.ne.s32.totalorder %s71, %s72
    %p86 = scmp.eq.s32.totalorder %s17, 3
    %p87 = por %p85, %p86
    %p89 = scmp.ne.s32.totalorder %s72, %s88
    %p90 = scmp.eq.s32.totalorder %s17, 0
    %p91 = por %p89, %p90
    %s92 = ssub.s32 %s11, %s18
    %p93 = scmp.eq.s32.totalorder %s92, 0
    %s95 = sadd.s32 %s94, 1
    %s96 = scalar_select %p93, %s94, %s95
    %p99 = pneg %p93
    %p100 = scmp.eq.s32.totalorder %s11, 3
    %p101 = por %p99, %p100
    %p102 = scmp.ne.s32.totalorder %s94, %s97
    %p103 = scmp.eq.s32.totalorder %s11, 0
    %p104 = por %p102, %p103
    %p105 = scmp.ne.s32.totalorder %s94, %s97
    %p106 = scmp.eq.s32.totalorder %s16, 3
    %p107 = por %p105, %p106
    %p108 = scmp.ne.s32.totalorder %s97, %s98
    %p109 = scmp.eq.s32.totalorder %s16, 0
    %p110 = por %p108, %p109
    %p111 = scmp.ne.s32.totalorder %s97, %s98
    %p112 = scmp.eq.s32.totalorder %s17, 3
    %p113 = por %p111, %p112
    %p115 = scmp.ne.s32.totalorder %s98, %s114
    %p116 = scmp.eq.s32.totalorder %s17, 0
    %p117 = por %p115, %p116
    %s118 = ssub.s32 %s11, %s18
    %p119 = scmp.eq.s32.totalorder %s118, 0
    %s121 = sadd.s32 %s120, 1
    %s122 = scalar_select %p119, %s120, %s121
    %p125 = pneg %p119
    %p126 = scmp.eq.s32.totalorder %s11, 3
    %p127 = por %p125, %p126
    %p128 = scmp.ne.s32.totalorder %s120, %s123
    %p129 = scmp.eq.s32.totalorder %s11, 0
    %p130 = por %p128, %p129
    %p131 = scmp.ne.s32.totalorder %s120, %s123
    %p132 = scmp.eq.s32.totalorder %s16, 3
    %p133 = por %p131, %p132
    %p134 = scmp.ne.s32.totalorder %s123, %s124
    %p135 = scmp.eq.s32.totalorder %s16, 0
    %p136 = por %p134, %p135
    %p137 = scmp.ne.s32.totalorder %s123, %s124
    %p138 = scmp.eq.s32.totalorder %s17, 3
    %p139 = por %p137, %p138
    %p141 = scmp.ne.s32.totalorder %s124, %s140
    %p142 = scmp.eq.s32.totalorder %s17, 0
    %p143 = por %p141, %p142
    %p144 = scmp.le.s32.totalorder 1, %s11
    %p145 = scmp.lt.s32.totalorder %s11, 5
    %p146 = pnand %p144, %p145
    %p147 = pneg %p146
    // Predicated region
    $region9: #{_lambda_.16} parent=5 // pred_check
      _
    $region10: #{_lambda_.16} parent=5 // pred_check_branch
      %149 = sbr.rel (%p146) target = $region12
    $region11: #{_lambda_.16} parent=5 // pred_region
      %s150 = ssub.s32 %s11, 1
      // Predicated region
      $region13: #{_lambda_.16} parent=11 // pred_check
        %p151 = pneg %p58
      $region14: #{_lambda_.16} parent=11 // pred_check_branch
        %153 = sbr.rel (%p151) target = $region16
      $region15: #{_lambda_.16} parent=11 // pred_region
        _
      $region16: #{_lambda_.16} parent=11 // pred_fallthru
        _
    $region12: #{_lambda_.16} parent=5 // pred_fallthru
      _
    %p154 = scmp.lt.s32.totalorder %s11, 4
    // Predicated region
    $region17: #{_lambda_.16} parent=5 // pred_check
      %p155 = pneg %p154
    $region18: #{_lambda_.16} parent=5 // pred_check_branch
      %157 = sbr.rel (%p155) target = $region20
    $region19: #{_lambda_.16} parent=5 // pred_region
      // Predicated region
      $region21: #{_lambda_.16} parent=19 // pred_check
        %p158 = pneg %p31
      $region22: #{_lambda_.16} parent=19 // pred_check_branch
        %160 = sbr.rel (%p158) target = $region24
      $region23: #{_lambda_.16} parent=19 // pred_region
        %s161 = smul.u32 64, %s11
        %p162 = scmp.lt.s32.totalorder %s161, 255
        %s163 = scalar_select %p162, %s161, 255
        %s164 = smul.addr %s163, 4
        %s165 = scalar_lea.vmem %s0, %s164
        %s166 = smul.u32 64, %s11
      $region24: #{_lambda_.16} parent=19 // pred_fallthru
        _
    $region20: #{_lambda_.16} parent=5 // pred_fallthru
      _
    %p167 = scmp.le.s32.totalorder 1, %s11
    %p168 = scmp.lt.s32.totalorder %s11, 5
    %p169 = pnand %p167, %p168
    %p170 = pneg %p169
    // Predicated region
    $region25: #{_lambda_.16} parent=5 // pred_check
      _
    $region26: #{_lambda_.16} parent=5 // pred_check_branch
      %172 = sbr.rel (%p169) target = $region28
    $region27: #{_lambda_.16} parent=5 // pred_region
      %s173 = ssub.s32 %s11, 1
      %s174 = smul.u32 64, %s16
      %p175 = scmp.lt.s32.totalorder %s174, 255
      %s176 = scalar_select %p175, %s174, 255
      %s177 = smul.addr %s176, 4
      %s178 = scalar_lea.vmem %s0, %s177
      %p179 = pneg %p37
      %p180 = pneg %p34
      %p181 = pneg %p58
      %p182 = pneg %p55
      %p183 = pneg %p84
      %p184 = pneg %p81
      %s185 = smul.u32 64, %s16
      %p186 = scmp.lt.s32.totalorder %s185, 255
      %s187 = scalar_select %p186, %s185, 255
      %s188 = smul.addr %s187, 8
      %s189 = scalar_lea.vmem %s2, %s188
      %p190 = pneg %p110
      %p191 = pneg %p107
      %p192 = scmp.lt.s32.totalorder %s16, 3
      %s193 = scalar_select %p192, %s16, 3
      %s194 = scalar_lea.vmem %s3, %s193
      %p195 = pneg %p136
      %p196 = pneg %p133
      %p197 = scmp.lt.s32.totalorder %s16, 3
      %s198 = scalar_select %p197, %s16, 3
      %s199 = scalar_lea.vmem %s4, %s198
      %s200 = smul.u32 64, %s16
      %p201 = scmp.lt.s32.totalorder %s200, 255
      %s202 = scalar_select %p201, %s200, 255
      %s203 = smul.addr %s202, 4
      %s204 = scalar_lea.vmem %s0, %s203
      %s205 = smul.u32 64, %s16
      %s206 = smul.u32 64, %s16
      %p207 = scmp.lt.s32.totalorder %s206, 255
      %s208 = scalar_select %p207, %s206, 255
      %s209 = smul.addr %s208, 8
      %s210 = scalar_lea.vmem %s2, %s209
      %s211 = smul.u32 64, %s16
      %p212 = scmp.lt.s32.totalorder %s16, 3
      %s213 = scalar_select %p212, %s16, 3
      %s214 = scalar_lea.vmem %s3, %s213
      %p215 = scmp.lt.s32.totalorder %s16, 3
      %s216 = scalar_select %p215, %s16, 3
      %s217 = scalar_lea.vmem %s4, %s216
      %v219 = vld [vmem:[%s204] sm:$0xf]
      %v220 = vld [vmem:[%s204 + $0x4] sm:$0xf]
      %v221 = vld [vmem:[%s204 + $0x8] sm:$0xf]
      %v222 = vld [vmem:[%s204 + $0xc] sm:$0xf]
      %v223 = vld [vmem:[%s204 + $0x10] sm:$0xf]
      %v224 = vld [vmem:[%s204 + $0x14] sm:$0xf]
      %v225 = vld [vmem:[%s204 + $0x18] sm:$0xf]
      %v226 = vld [vmem:[%s204 + $0x1c] sm:$0xf]
      %v227 = vld [vmem:[%s204 + $0x20] sm:$0xf]
      %v228 = vld [vmem:[%s204 + $0x24] sm:$0xf]
      %v229 = vld [vmem:[%s204 + $0x28] sm:$0xf]
      %v230 = vld [vmem:[%s204 + $0x2c] sm:$0xf]
      %v231 = vld [vmem:[%s204 + $0x30] sm:$0xf]
      %v232 = vld [vmem:[%s204 + $0x34] sm:$0xf]
      %v233 = vld [vmem:[%s204 + $0x38] sm:$0xf]
      %v234 = vld [vmem:[%s204 + $0x3c] sm:$0xf]
      %v235 = vld [vmem:[%s204 + $0x40] sm:$0xf]
      %v236 = vld [vmem:[%s204 + $0x44] sm:$0xf]
      %v237 = vld [vmem:[%s204 + $0x48] sm:$0xf]
      %v238 = vld [vmem:[%s204 + $0x4c] sm:$0xf]
      %v239 = vld [vmem:[%s204 + $0x50] sm:$0xf]
      %v240 = vld [vmem:[%s204 + $0x54] sm:$0xf]
      %v241 = vld [vmem:[%s204 + $0x58] sm:$0xf]
      %v242 = vld [vmem:[%s204 + $0x5c] sm:$0xf]
      %v243 = vld [vmem:[%s204 + $0x60] sm:$0xf]
      %v244 = vld [vmem:[%s204 + $0x64] sm:$0xf]
      %v245 = vld [vmem:[%s204 + $0x68] sm:$0xf]
      %v246 = vld [vmem:[%s204 + $0x6c] sm:$0xf]
      %v247 = vld [vmem:[%s204 + $0x70] sm:$0xf]
      %v248 = vld [vmem:[%s204 + $0x74] sm:$0xf]
      %v249 = vld [vmem:[%s204 + $0x78] sm:$0xf]
      %v250 = vld [vmem:[%s204 + $0x7c] sm:$0xf]
      %v251 = vld [vmem:[%s204 + $0x80] sm:$0xf]
      %v252 = vld [vmem:[%s204 + $0x84] sm:$0xf]
      %v253 = vld [vmem:[%s204 + $0x88] sm:$0xf]
      %v254 = vld [vmem:[%s204 + $0x8c] sm:$0xf]
      %v255 = vld [vmem:[%s204 + $0x90] sm:$0xf]
      %v256 = vld [vmem:[%s204 + $0x94] sm:$0xf]
      %v257 = vld [vmem:[%s204 + $0x98] sm:$0xf]
      %v258 = vld [vmem:[%s204 + $0x9c] sm:$0xf]
      %v259 = vld [vmem:[%s204 + $0xa0] sm:$0xf]
      %v260 = vld [vmem:[%s204 + $0xa4] sm:$0xf]
      %v261 = vld [vmem:[%s204 + $0xa8] sm:$0xf]
      %v262 = vld [vmem:[%s204 + $0xac] sm:$0xf]
      %v263 = vld [vmem:[%s204 + $0xb0] sm:$0xf]
      %v264 = vld [vmem:[%s204 + $0xb4] sm:$0xf]
      %v265 = vld [vmem:[%s204 + $0xb8] sm:$0xf]
      %v266 = vld [vmem:[%s204 + $0xbc] sm:$0xf]
      %v267 = vld [vmem:[%s204 + $0xc0] sm:$0xf]
      %v268 = vld [vmem:[%s204 + $0xc4] sm:$0xf]
      %v269 = vld [vmem:[%s204 + $0xc8] sm:$0xf]
      %v270 = vld [vmem:[%s204 + $0xcc] sm:$0xf]
      %v271 = vld [vmem:[%s204 + $0xd0] sm:$0xf]
      %v272 = vld [vmem:[%s204 + $0xd4] sm:$0xf]
      %v273 = vld [vmem:[%s204 + $0xd8] sm:$0xf]
      %v274 = vld [vmem:[%s204 + $0xdc] sm:$0xf]
      %v275 = vld [vmem:[%s204 + $0xe0] sm:$0xf]
      %v276 = vld [vmem:[%s204 + $0xe4] sm:$0xf]
      %v277 = vld [vmem:[%s204 + $0xe8] sm:$0xf]
      %v278 = vld [vmem:[%s204 + $0xec] sm:$0xf]
      %v279 = vld [vmem:[%s204 + $0xf0] sm:$0xf]
      %v280 = vld [vmem:[%s204 + $0xf4] sm:$0xf]
      %v281 = vld [vmem:[%s204 + $0xf8] sm:$0xf]
      %v282 = vld [vmem:[%s204 + $0xfc] sm:$0xf]
      %v283 = vld [vmem:[%s1] sm:$0xf]
      %v284 = vld [vmem:[%s1 + $0x4] sm:$0xf]
      %v285 = vld [vmem:[%s1 + $0x8] sm:$0xf]
      %v286 = vld [vmem:[%s1 + $0xc] sm:$0x3]
      %v351 = vunpack.c.l.b16 %v219
      %v352 = vunpack.c.l.b16 %v220
      %v353 = vunpack.c.l.b16 %v221
      %v354 = vunpack.c.l.b16 %v222
      %v355 = vunpack.c.l.b16 %v223
      %v356 = vunpack.c.l.b16 %v224
      %v357 = vunpack.c.l.b16 %v225
      %v358 = vunpack.c.l.b16 %v226
      %v359 = vunpack.c.l.b16 %v227
      %v360 = vunpack.c.l.b16 %v228
      %v361 = vunpack.c.l.b16 %v229
      %v362 = vunpack.c.l.b16 %v230
      %v363 = vunpack.c.l.b16 %v231
      %v364 = vunpack.c.l.b16 %v232
      %v365 = vunpack.c.l.b16 %v233
      %v366 = vunpack.c.l.b16 %v234
      %v367 = vunpack.c.l.b16 %v235
      %v368 = vunpack.c.l.b16 %v236
      %v369 = vunpack.c.l.b16 %v237
      %v370 = vunpack.c.l.b16 %v238
      %v371 = vunpack.c.l.b16 %v239
      %v372 = vunpack.c.l.b16 %v240
      %v373 = vunpack.c.l.b16 %v241
      %v374 = vunpack.c.l.b16 %v242
      %v375 = vunpack.c.l.b16 %v243
      %v376 = vunpack.c.l.b16 %v244
      %v377 = vunpack.c.l.b16 %v245
      %v378 = vunpack.c.l.b16 %v246
      %v379 = vunpack.c.l.b16 %v247
      %v380 = vunpack.c.l.b16 %v248
      %v381 = vunpack.c.l.b16 %v249
      %v382 = vunpack.c.l.b16 %v250
      %v383 = vunpack.c.l.b16 %v251
      %v384 = vunpack.c.l.b16 %v252
      %v385 = vunpack.c.l.b16 %v253
      %v386 = vunpack.c.l.b16 %v254
      %v387 = vunpack.c.l.b16 %v255
      %v388 = vunpack.c.l.b16 %v256
      %v389 = vunpack.c.l.b16 %v257
      %v390 = vunpack.c.l.b16 %v258
      %v391 = vunpack.c.l.b16 %v259
      %v392 = vunpack.c.l.b16 %v260
      %v393 = vunpack.c.l.b16 %v261
      %v394 = vunpack.c.l.b16 %v262
      %v395 = vunpack.c.l.b16 %v263
      %v396 = vunpack.c.l.b16 %v264
      %v397 = vunpack.c.l.b16 %v265
      %v398 = vunpack.c.l.b16 %v266
      %v399 = vunpack.c.l.b16 %v267
      %v400 = vunpack.c.l.b16 %v268
      %v401 = vunpack.c.l.b16 %v269
      %v402 = vunpack.c.l.b16 %v270
      %v403 = vunpack.c.l.b16 %v271
      %v404 = vunpack.c.l.b16 %v272
      %v405 = vunpack.c.l.b16 %v273
      %v406 = vunpack.c.l.b16 %v274
      %v407 = vunpack.c.l.b16 %v275
      %v408 = vunpack.c.l.b16 %v276
      %v409 = vunpack.c.l.b16 %v277
      %v410 = vunpack.c.l.b16 %v278
      %v411 = vunpack.c.l.b16 %v279
      %v412 = vunpack.c.l.b16 %v280
      %v413 = vunpack.c.l.b16 %v281
      %v414 = vunpack.c.l.b16 %v282
      %v415 = vpack.c.b16 %v352, %v351
      %v416 = vpack.c.b16 %v354, %v353
      %v417 = vpack.c.b16 %v356, %v355
      %v418 = vpack.c.b16 %v358, %v357
      %v419 = vpack.c.b16 %v360, %v359
      %v420 = vpack.c.b16 %v362, %v361
      %v421 = vpack.c.b16 %v364, %v363
      %v422 = vpack.c.b16 %v366, %v365
      %v423 = vpack.c.b16 %v368, %v367
      %v424 = vpack.c.b16 %v370, %v369
      %v425 = vpack.c.b16 %v372, %v371
      %v426 = vpack.c.b16 %v374, %v373
      %v427 = vpack.c.b16 %v376, %v375
      %v428 = vpack.c.b16 %v378, %v377
      %v429 = vpack.c.b16 %v380, %v379
      %v430 = vpack.c.b16 %v382, %v381
      %v431 = vpack.c.b16 %v384, %v383
      %v432 = vpack.c.b16 %v386, %v385
      %v433 = vpack.c.b16 %v388, %v387
      %v434 = vpack.c.b16 %v390, %v389
      %v435 = vpack.c.b16 %v392, %v391
      %v436 = vpack.c.b16 %v394, %v393
      %v437 = vpack.c.b16 %v396, %v395
      %v438 = vpack.c.b16 %v398, %v397
      %v439 = vpack.c.b16 %v400, %v399
      %v440 = vpack.c.b16 %v402, %v401
      %v441 = vpack.c.b16 %v404, %v403
      %v442 = vpack.c.b16 %v406, %v405
      %v443 = vpack.c.b16 %v408, %v407
      %v444 = vpack.c.b16 %v410, %v409
      %v445 = vpack.c.b16 %v412, %v411
      %v446 = vpack.c.b16 %v414, %v413
      %v451 = vunpack.c.l.b16 %v283
      %v452 = vunpack.c.l.b16 %v284
      %v453 = vunpack.c.l.b16 %v285
      %v454 = vunpack.c.l.b16 %v286
      %v455 = vpack.c.b16 %v452, %v451
      %v456 = vpack.c.b16 %v454, %v453
      %vm458 = vcmask 220160
      %v460 = vsel %vm458, %v415, 0
      %v463 = vsel %vm458, %v416, 0
      %v466 = vsel %vm458, %v417, 0
      %v469 = vsel %vm458, %v418, 0
      %v472 = vsel %vm458, %v419, 0
      %v475 = vsel %vm458, %v420, 0
      %v478 = vsel %vm458, %v421, 0
      %v481 = vsel %vm458, %v422, 0
      %v484 = vsel %vm458, %v423, 0
      %v487 = vsel %vm458, %v424, 0
      %v490 = vsel %vm458, %v425, 0
      %v493 = vsel %vm458, %v426, 0
      %v496 = vsel %vm458, %v427, 0
      %v499 = vsel %vm458, %v428, 0
      %v502 = vsel %vm458, %v429, 0
      %v505 = vsel %vm458, %v430, 0
      %v508 = vsel %vm458, %v431, 0
      %v511 = vsel %vm458, %v432, 0
      %v514 = vsel %vm458, %v433, 0
      %v517 = vsel %vm458, %v434, 0
      %v520 = vsel %vm458, %v435, 0
      %v523 = vsel %vm458, %v436, 0
      %v526 = vsel %vm458, %v437, 0
      %v529 = vsel %vm458, %v438, 0
      %v532 = vsel %vm458, %v439, 0
      %v535 = vsel %vm458, %v440, 0
      %v538 = vsel %vm458, %v441, 0
      %v541 = vsel %vm458, %v442, 0
      %v544 = vsel %vm458, %v443, 0
      %v547 = vsel %vm458, %v444, 0
      %v550 = vsel %vm458, %v445, 0
      %v553 = vsel %vm458, %v446, 0
      %vm555 = vcmask 1044480
      %vm556 = vcmask 1045504
      %v557 = vsel %vm555, 4294967295, 65535
      %v558 = vsel %vm556, %v557, 0
      %v560 = vand.u32 %v456, %v558
      %562 = vmatprep.subr.bf16.mxu0 0
      %563 = vmatpush1.bf16.msra.mxu0 %v455
      %564 = vmatprep.subr.bf16.mxu0 0
      %565 = vmatpush1.bf16.msra.mxu0 %v560
      %566 = vmatprep.subr.bf16.mxu0 0
      %567 = vmatpush1.bf16.msra.mxu0 0
      %568 = vmatprep.subr.bf16.mxu0 0
      %569 = vmatpush1.bf16.msra.mxu0 0
      %570 = vmatprep.subr.bf16.mxu0 0
      %571 = vmatpush1.bf16.msra.mxu0 0
      %572 = vmatprep.subr.bf16.mxu0 0
      %573 = vmatpush1.bf16.msra.mxu0 0
      %574 = vmatprep.subr.bf16.mxu0 0
      %575 = vmatpush1.bf16.msra.mxu0 0
      %576 = vmatprep.subr.bf16.mxu0 0
      %577 = vmatpush1.bf16.msra.mxu0 0
      %578 = vmatprep.subr.bf16.mxu0 0
      %579 = vmatpush1.bf16.msra.mxu0 0
      %580 = vmatprep.subr.bf16.mxu0 0
      %581 = vmatpush1.bf16.msra.mxu0 0
      %582 = vmatprep.subr.bf16.mxu0 0
      %583 = vmatpush1.bf16.msra.mxu0 0
      %584 = vmatprep.subr.bf16.mxu0 0
      %585 = vmatpush1.bf16.msra.mxu0 0
      %586 = vmatprep.subr.bf16.mxu0 0
      %587 = vmatpush1.bf16.msra.mxu0 0
      %588 = vmatprep.subr.bf16.mxu0 0
      %589 = vmatpush1.bf16.msra.mxu0 0
      %590 = vmatprep.subr.bf16.mxu0 0
      %591 = vmatpush1.bf16.msra.mxu0 0
      %592 = vmatprep.subr.bf16.mxu0 0
      %593 = vmatpush1.bf16.msra.mxu0 0
      %594 = vmatprep.mubr.bf16.mxu0 0
      %595 = vmatmul.mubr.bf16.gmra.mrb[0].mxu0 %v460
      %v596 = vpop.f32.mrb[0].mxu0
      %v597 = vadd.f32 0.0, %v596
      %v598 = vpop.f32.mrb[0].mxu0
      %v599 = vpop.f32.mrb[0].mxu0
      %v600 = vadd.f32 0.0, %v599
      %v601 = vpop.f32.mrb[0].mxu0
      %602 = vmatprep.mubr.bf16.mxu0 0
      %603 = vmatmul.mubr.bf16.gmra.mrb[0].mxu0 %v463
      %v604 = vpop.f32.mrb[0].mxu0
      %v605 = vadd.f32 0.0, %v604
      %v606 = vpop.f32.mrb[0].mxu0
      %v607 = vpop.f32.mrb[0].mxu0
      %v608 = vadd.f32 0.0, %v607
      %v609 = vpop.f32.mrb[0].mxu0
      %610 = vmatprep.mubr.bf16.mxu0 0
      %611 = vmatmul.mubr.bf16.gmra.mrb[0].mxu0 %v466
      %v612 = vpop.f32.mrb[0].mxu0
      %v613 = vadd.f32 0.0, %v612
      %v614 = vpop.f32.mrb[0].mxu0
      %v615 = vpop.f32.mrb[0].mxu0
      %v616 = vadd.f32 0.0, %v615
      %v617 = vpop.f32.mrb[0].mxu0
      %618 = vmatprep.mubr.bf16.mxu0 0
      %619 = vmatmul.mubr.bf16.gmra.mrb[0].mxu0 %v469
      %v620 = vpop.f32.mrb[0].mxu0
      %v621 = vadd.f32 0.0, %v620
      %v622 = vpop.f32.mrb[0].mxu0
      %v623 = vpop.f32.mrb[0].mxu0
      %v624 = vadd.f32 0.0, %v623
      %v625 = vpop.f32.mrb[0].mxu0
      %626 = vmatprep.mubr.bf16.mxu0 0
      %627 = vmatmul.mubr.bf16.gmra.mrb[0].mxu0 %v472
      %v628 = vpop.f32.mrb[0].mxu0
      %v629 = vadd.f32 0.0, %v628
      %v630 = vpop.f32.mrb[0].mxu0
      %v631 = vpop.f32.mrb[0].mxu0
      %v632 = vadd.f32 0.0, %v631
      %v633 = vpop.f32.mrb[0].mxu0
      %634 = vmatprep.mubr.bf16.mxu0 0
      %635 = vmatmul.mubr.bf16.gmra.mrb[0].mxu0 %v475
      %v636 = vpop.f32.mrb[0].mxu0
      %v637 = vadd.f32 0.0, %v636
      %v638 = vpop.f32.mrb[0].mxu0
      %v639 = vpop.f32.mrb[0].mxu0
      %v640 = vadd.f32 0.0, %v639
      %v641 = vpop.f32.mrb[0].mxu0
      %642 = vmatprep.mubr.bf16.mxu0 0
      %643 = vmatmul.mubr.bf16.gmra.mrb[0].mxu0 %v478
      %v644 = vpop.f32.mrb[0].mxu0
      %v645 = vadd.f32 0.0, %v644
      %v646 = vpop.f32.mrb[0].mxu0
      %v647 = vpop.f32.mrb[0].mxu0
      %v648 = vadd.f32 0.0, %v647
      %v649 = vpop.f32.mrb[0].mxu0
      %650 = vmatprep.mubr.bf16.mxu0 0
      %651 = vmatmul.mubr.bf16.gmra.mrb[0].mxu0 %v481
      %v652 = vpop.f32.mrb[0].mxu0
      %v653 = vadd.f32 0.0, %v652
      %v654 = vpop.f32.mrb[0].mxu0
      %v655 = vpop.f32.mrb[0].mxu0
      %v656 = vadd.f32 0.0, %v655
      %v657 = vpop.f32.mrb[0].mxu0
      %658 = vmatprep.mubr.bf16.mxu0 0
      %659 = vmatmul.mubr.bf16.gmra.mrb[0].mxu0 %v484
      %v660 = vpop.f32.mrb[0].mxu0
      %v661 = vadd.f32 0.0, %v660
      %v662 = vpop.f32.mrb[0].mxu0
      %v663 = vpop.f32.mrb[0].mxu0
      %v664 = vadd.f32 0.0, %v663
      %v665 = vpop.f32.mrb[0].mxu0
      %666 = vmatprep.mubr.bf16.mxu0 0
      %667 = vmatmul.mubr.bf16.gmra.mrb[0].mxu0 %v487
      %v668 = vpop.f32.mrb[0].mxu0
      %v669 = vadd.f32 0.0, %v668
      %v670 = vpop.f32.mrb[0].mxu0
      %v671 = vpop.f32.mrb[0].mxu0
      %v672 = vadd.f32 0.0, %v671
      %v673 = vpop.f32.mrb[0].mxu0
      %674 = vmatprep.mubr.bf16.mxu0 0
      %675 = vmatmul.mubr.bf16.gmra.mrb[0].mxu0 %v490
      %v676 = vpop.f32.mrb[0].mxu0
      %v677 = vadd.f32 0.0, %v676
      %v678 = vpop.f32.mrb[0].mxu0
      %v679 = vpop.f32.mrb[0].mxu0
      %v680 = vadd.f32 0.0, %v679
      %v681 = vpop.f32.mrb[0].mxu0
      %682 = vmatprep.mubr.bf16.mxu0 0
      %683 = vmatmul.mubr.bf16.gmra.mrb[0].mxu0 %v493
      %v684 = vpop.f32.mrb[0].mxu0
      %v685 = vadd.f32 0.0, %v684
      %v686 = vpop.f32.mrb[0].mxu0
      %v687 = vpop.f32.mrb[0].mxu0
      %v688 = vadd.f32 0.0, %v687
      %v689 = vpop.f32.mrb[0].mxu0
      %690 = vmatprep.mubr.bf16.mxu0 0
      %691 = vmatmul.mubr.bf16.gmra.mrb[0].mxu0 %v496
      %v692 = vpop.f32.mrb[0].mxu0
      %v693 = vadd.f32 0.0, %v692
      %v694 = vpop.f32.mrb[0].mxu0
      %v695 = vpop.f32.mrb[0].mxu0
      %v696 = vadd.f32 0.0, %v695
      %v697 = vpop.f32.mrb[0].mxu0
      %698 = vmatprep.mubr.bf16.mxu0 0
      %699 = vmatmul.mubr.bf16.gmra.mrb[0].mxu0 %v499
      %v700 = vpop.f32.mrb[0].mxu0
      %v701 = vadd.f32 0.0, %v700
      %v702 = vpop.f32.mrb[0].mxu0
      %v703 = vpop.f32.mrb[0].mxu0
      %v704 = vadd.f32 0.0, %v703
      %v705 = vpop.f32.mrb[0].mxu0
      %706 = vmatprep.mubr.bf16.mxu0 0
      %707 = vmatmul.mubr.bf16.gmra.mrb[0].mxu0 %v502
      %v708 = vpop.f32.mrb[0].mxu0
      %v709 = vadd.f32 0.0, %v708
      %v710 = vpop.f32.mrb[0].mxu0
      %v711 = vpop.f32.mrb[0].mxu0
      %v712 = vadd.f32 0.0, %v711
      %v713 = vpop.f32.mrb[0].mxu0
      %714 = vmatprep.mubr.bf16.mxu0 0
      %715 = vmatmul.mubr.bf16.gmra.mrb[0].mxu0 %v505
      %v716 = vpop.f32.mrb[0].mxu0
      %v717 = vadd.f32 0.0, %v716
      %v718 = vpop.f32.mrb[0].mxu0
      %v719 = vpop.f32.mrb[0].mxu0
      %v720 = vadd.f32 0.0, %v719
      %v721 = vpop.f32.mrb[0].mxu0
      %722 = vmatprep.mubr.bf16.mxu0 0
      %723 = vmatmul.mubr.bf16.gmra.mrb[0].mxu0 %v508
      %v724 = vpop.f32.mrb[0].mxu0
      %v725 = vadd.f32 0.0, %v724
      %v726 = vpop.f32.mrb[0].mxu0
      %v727 = vpop.f32.mrb[0].mxu0
      %v728 = vadd.f32 0.0, %v727
      %v729 = vpop.f32.mrb[0].mxu0
      %730 = vmatprep.mubr.bf16.mxu0 0
      %731 = vmatmul.mubr.bf16.gmra.mrb[0].mxu0 %v511
      %v732 = vpop.f32.mrb[0].mxu0
      %v733 = vadd.f32 0.0, %v732
      %v734 = vpop.f32.mrb[0].mxu0
      %v735 = vpop.f32.mrb[0].mxu0
      %v736 = vadd.f32 0.0, %v735
      %v737 = vpop.f32.mrb[0].mxu0
      %738 = vmatprep.mubr.bf16.mxu0 0
      %739 = vmatmul.mubr.bf16.gmra.mrb[0].mxu0 %v514
      %v740 = vpop.f32.mrb[0].mxu0
      %v741 = vadd.f32 0.0, %v740
      %v742 = vpop.f32.mrb[0].mxu0
      %v743 = vpop.f32.mrb[0].mxu0
      %v744 = vadd.f32 0.0, %v743
      %v745 = vpop.f32.mrb[0].mxu0
      %746 = vmatprep.mubr.bf16.mxu0 0
      %747 = vmatmul.mubr.bf16.gmra.mrb[0].mxu0 %v517
      %v748 = vpop.f32.mrb[0].mxu0
      %v749 = vadd.f32 0.0, %v748
      %v750 = vpop.f32.mrb[0].mxu0
      %v751 = vpop.f32.mrb[0].mxu0
      %v752 = vadd.f32 0.0, %v751
      %v753 = vpop.f32.mrb[0].mxu0
      %754 = vmatprep.mubr.bf16.mxu0 0
      %755 = vmatmul.mubr.bf16.gmra.mrb[0].mxu0 %v520
      %v756 = vpop.f32.mrb[0].mxu0
      %v757 = vadd.f32 0.0, %v756
      %v758 = vpop.f32.mrb[0].mxu0
      %v759 = vpop.f32.mrb[0].mxu0
      %v760 = vadd.f32 0.0, %v759
      %v761 = vpop.f32.mrb[0].mxu0
      %762 = vmatprep.mubr.bf16.mxu0 0
      %763 = vmatmul.mubr.bf16.gmra.mrb[0].mxu0 %v523
      %v764 = vpop.f32.mrb[0].mxu0
      %v765 = vadd.f32 0.0, %v764
      %v766 = vpop.f32.mrb[0].mxu0
      %v767 = vpop.f32.mrb[0].mxu0
      %v768 = vadd.f32 0.0, %v767
      %v769 = vpop.f32.mrb[0].mxu0
      %770 = vmatprep.mubr.bf16.mxu0 0
      %771 = vmatmul.mubr.bf16.gmra.mrb[0].mxu0 %v526
      %v772 = vpop.f32.mrb[0].mxu0
      %v773 = vadd.f32 0.0, %v772
      %v774 = vpop.f32.mrb[0].mxu0
      %v775 = vpop.f32.mrb[0].mxu0
      %v776 = vadd.f32 0.0, %v775
      %v777 = vpop.f32.mrb[0].mxu0
      %778 = vmatprep.mubr.bf16.mxu0 0
      %779 = vmatmul.mubr.bf16.gmra.mrb[0].mxu0 %v529
      %v780 = vpop.f32.mrb[0].mxu0
      %v781 = vadd.f32 0.0, %v780
      %v782 = vpop.f32.mrb[0].mxu0
      %v783 = vpop.f32.mrb[0].mxu0
      %v784 = vadd.f32 0.0, %v783
      %v785 = vpop.f32.mrb[0].mxu0
      %786 = vmatprep.mubr.bf16.mxu0 0
      %787 = vmatmul.mubr.bf16.gmra.mrb[0].mxu0 %v532
      %v788 = vpop.f32.mrb[0].mxu0
      %v789 = vadd.f32 0.0, %v788
      %v790 = vpop.f32.mrb[0].mxu0
      %v791 = vpop.f32.mrb[0].mxu0
      %v792 = vadd.f32 0.0, %v791
      %v793 = vpop.f32.mrb[0].mxu0
      %794 = vmatprep.mubr.bf16.mxu0 0
      %795 = vmatmul.mubr.bf16.gmra.mrb[0].mxu0 %v535
      %v796 = vpop.f32.mrb[0].mxu0
      %v797 = vadd.f32 0.0, %v796
      %v798 = vpop.f32.mrb[0].mxu0
      %v799 = vpop.f32.mrb[0].mxu0
      %v800 = vadd.f32 0.0, %v799
      %v801 = vpop.f32.mrb[0].mxu0
      %802 = vmatprep.mubr.bf16.mxu0 0
      %803 = vmatmul.mubr.bf16.gmra.mrb[0].mxu0 %v538
      %v804 = vpop.f32.mrb[0].mxu0
      %v805 = vadd.f32 0.0, %v804
      %v806 = vpop.f32.mrb[0].mxu0
      %v807 = vpop.f32.mrb[0].mxu0
      %v808 = vadd.f32 0.0, %v807
      %v809 = vpop.f32.mrb[0].mxu0
      %810 = vmatprep.mubr.bf16.mxu0 0
      %811 = vmatmul.mubr.bf16.gmra.mrb[0].mxu0 %v541
      %v812 = vpop.f32.mrb[0].mxu0
      %v813 = vadd.f32 0.0, %v812
      %v814 = vpop.f32.mrb[0].mxu0
      %v815 = vpop.f32.mrb[0].mxu0
      %v816 = vadd.f32 0.0, %v815
      %v817 = vpop.f32.mrb[0].mxu0
      %818 = vmatprep.mubr.bf16.mxu0 0
      %819 = vmatmul.mubr.bf16.gmra.mrb[0].mxu0 %v544
      %v820 = vpop.f32.mrb[0].mxu0
      %v821 = vadd.f32 0.0, %v820
      %v822 = vpop.f32.mrb[0].mxu0
      %v823 = vpop.f32.mrb[0].mxu0
      %v824 = vadd.f32 0.0, %v823
      %v825 = vpop.f32.mrb[0].mxu0
      %826 = vmatprep.mubr.bf16.mxu0 0
      %827 = vmatmul.mubr.bf16.gmra.mrb[0].mxu0 %v547
      %v828 = vpop.f32.mrb[0].mxu0
      %v829 = vadd.f32 0.0, %v828
      %v830 = vpop.f32.mrb[0].mxu0
      %v831 = vpop.f32.mrb[0].mxu0
      %v832 = vadd.f32 0.0, %v831
      %v833 = vpop.f32.mrb[0].mxu0
      %834 = vmatprep.mubr.bf16.mxu0 0
      %835 = vmatmul.mubr.bf16.gmra.mrb[0].mxu0 %v550
      %v836 = vpop.f32.mrb[0].mxu0
      %v837 = vadd.f32 0.0, %v836
      %v838 = vpop.f32.mrb[0].mxu0
      %v839 = vpop.f32.mrb[0].mxu0
      %v840 = vadd.f32 0.0, %v839
      %v841 = vpop.f32.mrb[0].mxu0
      %842 = vmatprep.mubr.bf16.mxu0 0
      %843 = vmatmul.mubr.bf16.gmra.mrb[0].mxu0 %v553
      %v844 = vpop.f32.mrb[0].mxu0
      %v845 = vadd.f32 0.0, %v844
      %v846 = vpop.f32.mrb[0].mxu0
      %v847 = vpop.f32.mrb[0].mxu0
      %v848 = vadd.f32 0.0, %v847
      %v849 = vpop.f32.mrb[0].mxu0
      %850 = vdwg.mxu0
      %v851 = vmax.f32 %v597, 0.0
      %v852 = vmax.f32 %v600, 0.0
      %v853 = vmax.f32 %v605, 0.0
      %v854 = vmax.f32 %v608, 0.0
      %v855 = vmax.f32 %v613, 0.0
      %v856 = vmax.f32 %v616, 0.0
      %v857 = vmax.f32 %v621, 0.0
      %v858 = vmax.f32 %v624, 0.0
      %v859 = vmax.f32 %v629, 0.0
      %v860 = vmax.f32 %v632, 0.0
      %v861 = vmax.f32 %v637, 0.0
      %v862 = vmax.f32 %v640, 0.0
      %v863 = vmax.f32 %v645, 0.0
      %v864 = vmax.f32 %v648, 0.0
      %v865 = vmax.f32 %v653, 0.0
      %v866 = vmax.f32 %v656, 0.0
      %v867 = vmax.f32 %v661, 0.0
      %v868 = vmax.f32 %v664, 0.0
      %v869 = vmax.f32 %v669, 0.0
      %v870 = vmax.f32 %v672, 0.0
      %v871 = vmax.f32 %v677, 0.0
      %v872 = vmax.f32 %v680, 0.0
      %v873 = vmax.f32 %v685, 0.0
      %v874 = vmax.f32 %v688, 0.0
      %v875 = vmax.f32 %v693, 0.0
      %v876 = vmax.f32 %v696, 0.0
      %v877 = vmax.f32 %v701, 0.0
      %v878 = vmax.f32 %v704, 0.0
      %v879 = vmax.f32 %v709, 0.0
      %v880 = vmax.f32 %v712, 0.0
      %v881 = vmax.f32 %v717, 0.0
      %v882 = vmax.f32 %v720, 0.0
      %v883 = vmax.f32 %v725, 0.0
      %v884 = vmax.f32 %v728, 0.0
      %v885 = vmax.f32 %v733, 0.0
      %v886 = vmax.f32 %v736, 0.0
      %v887 = vmax.f32 %v741, 0.0
      %v888 = vmax.f32 %v744, 0.0
      %v889 = vmax.f32 %v749, 0.0
      %v890 = vmax.f32 %v752, 0.0
      %v891 = vmax.f32 %v757, 0.0
      %v892 = vmax.f32 %v760, 0.0
      %v893 = vmax.f32 %v765, 0.0
      %v894 = vmax.f32 %v768, 0.0
      %v895 = vmax.f32 %v773, 0.0
      %v896 = vmax.f32 %v776, 0.0
      %v897 = vmax.f32 %v781, 0.0
      %v898 = vmax.f32 %v784, 0.0
      %v899 = vmax.f32 %v789, 0.0
      %v900 = vmax.f32 %v792, 0.0
      %v901 = vmax.f32 %v797, 0.0
      %v902 = vmax.f32 %v800, 0.0
      %v903 = vmax.f32 %v805, 0.0
      %v904 = vmax.f32 %v808, 0.0
      %v905 = vmax.f32 %v813, 0.0
      %v906 = vmax.f32 %v816, 0.0
      %v907 = vmax.f32 %v821, 0.0
      %v908 = vmax.f32 %v824, 0.0
      %v909 = vmax.f32 %v829, 0.0
      %v910 = vmax.f32 %v832, 0.0
      %v911 = vmax.f32 %v837, 0.0
      %v912 = vmax.f32 %v840, 0.0
      %v913 = vmax.f32 %v845, 0.0
      %v914 = vmax.f32 %v848, 0.0
      %915 = vst [vmem:[%s210] sm:$0xff] %v851
      %916 = vst [vmem:[%s210 + $0x8] sm:$0xff] %v852
      %917 = vst [vmem:[%s210 + $0x10] sm:$0xff] %v853
      %918 = vst [vmem:[%s210 + $0x18] sm:$0xff] %v854
      %919 = vst [vmem:[%s210 + $0x20] sm:$0xff] %v855
      %920 = vst [vmem:[%s210 + $0x28] sm:$0xff] %v856
      %921 = vst [vmem:[%s210 + $0x30] sm:$0xff] %v857
      %922 = vst [vmem:[%s210 + $0x38] sm:$0xff] %v858
      %923 = vst [vmem:[%s210 + $0x40] sm:$0xff] %v859
      %924 = vst [vmem:[%s210 + $0x48] sm:$0xff] %v860
      %925 = vst [vmem:[%s210 + $0x50] sm:$0xff] %v861
      %926 = vst [vmem:[%s210 + $0x58] sm:$0xff] %v862
      %927 = vst [vmem:[%s210 + $0x60] sm:$0xff] %v863
      %928 = vst [vmem:[%s210 + $0x68] sm:$0xff] %v864
      %929 = vst [vmem:[%s210 + $0x70] sm:$0xff] %v865
      %930 = vst [vmem:[%s210 + $0x78] sm:$0xff] %v866
      %931 = vst [vmem:[%s210 + $0x80] sm:$0xff] %v867
      %932 = vst [vmem:[%s210 + $0x88] sm:$0xff] %v868
      %933 = vst [vmem:[%s210 + $0x90] sm:$0xff] %v869
      %934 = vst [vmem:[%s210 + $0x98] sm:$0xff] %v870
      %935 = vst [vmem:[%s210 + $0xa0] sm:$0xff] %v871
      %936 = vst [vmem:[%s210 + $0xa8] sm:$0xff] %v872
      %937 = vst [vmem:[%s210 + $0xb0] sm:$0xff] %v873
      %938 = vst [vmem:[%s210 + $0xb8] sm:$0xff] %v874
      %939 = vst [vmem:[%s210 + $0xc0] sm:$0xff] %v875
      %940 = vst [vmem:[%s210 + $0xc8] sm:$0xff] %v876
      %941 = vst [vmem:[%s210 + $0xd0] sm:$0xff] %v877
      %942 = vst [vmem:[%s210 + $0xd8] sm:$0xff] %v878
      %943 = vst [vmem:[%s210 + $0xe0] sm:$0xff] %v879
      %944 = vst [vmem:[%s210 + $0xe8] sm:$0xff] %v880
      %945 = vst [vmem:[%s210 + $0xf0] sm:$0xff] %v881
      %946 = vst [vmem:[%s210 + $0xf8] sm:$0xff] %v882
      %947 = vst [vmem:[%s210 + $0x100] sm:$0xff] %v883
      %948 = vst [vmem:[%s210 + $0x108] sm:$0xff] %v884
      %949 = vst [vmem:[%s210 + $0x110] sm:$0xff] %v885
      %950 = vst [vmem:[%s210 + $0x118] sm:$0xff] %v886
      %951 = vst [vmem:[%s210 + $0x120] sm:$0xff] %v887
      %952 = vst [vmem:[%s210 + $0x128] sm:$0xff] %v888
      %953 = vst [vmem:[%s210 + $0x130] sm:$0xff] %v889
      %954 = vst [vmem:[%s210 + $0x138] sm:$0xff] %v890
      %955 = vst [vmem:[%s210 + $0x140] sm:$0xff] %v891
      %956 = vst [vmem:[%s210 + $0x148] sm:$0xff] %v892
      %957 = vst [vmem:[%s210 + $0x150] sm:$0xff] %v893
      %958 = vst [vmem:[%s210 + $0x158] sm:$0xff] %v894
      %959 = vst [vmem:[%s210 + $0x160] sm:$0xff] %v895
      %960 = vst [vmem:[%s210 + $0x168] sm:$0xff] %v896
      %961 = vst [vmem:[%s210 + $0x170] sm:$0xff] %v897
      %962 = vst [vmem:[%s210 + $0x178] sm:$0xff] %v898
      %963 = vst [vmem:[%s210 + $0x180] sm:$0xff] %v899
      %964 = vst [vmem:[%s210 + $0x188] sm:$0xff] %v900
      %965 = vst [vmem:[%s210 + $0x190] sm:$0xff] %v901
      %966 = vst [vmem:[%s210 + $0x198] sm:$0xff] %v902
      %967 = vst [vmem:[%s210 + $0x1a0] sm:$0xff] %v903
      %968 = vst [vmem:[%s210 + $0x1a8] sm:$0xff] %v904
      %969 = vst [vmem:[%s210 + $0x1b0] sm:$0xff] %v905
      %970 = vst [vmem:[%s210 + $0x1b8] sm:$0xff] %v906
      %971 = vst [vmem:[%s210 + $0x1c0] sm:$0xff] %v907
      %972 = vst [vmem:[%s210 + $0x1c8] sm:$0xff] %v908
      %973 = vst [vmem:[%s210 + $0x1d0] sm:$0xff] %v909
      %974 = vst [vmem:[%s210 + $0x1d8] sm:$0xff] %v910
      %975 = vst [vmem:[%s210 + $0x1e0] sm:$0xff] %v911
      %976 = vst [vmem:[%s210 + $0x1e8] sm:$0xff] %v912
      %977 = vst [vmem:[%s210 + $0x1f0] sm:$0xff] %v913
      %978 = vst [vmem:[%s210 + $0x1f8] sm:$0xff] %v914
      %v979 = vadd.f32 %v851, %v852
      %v980 = vadd.f32 %v979, %v853
      %v981 = vadd.f32 %v980, %v854
      %v982 = vadd.f32 %v981, %v855
      %v983 = vadd.f32 %v982, %v856
      %v984 = vadd.f32 %v983, %v857
      %v985 = vadd.f32 %v984, %v858
      %v986 = vadd.f32 %v985, %v859
      %v987 = vadd.f32 %v986, %v860
      %v988 = vadd.f32 %v987, %v861
      %v989 = vadd.f32 %v988, %v862
      %v990 = vadd.f32 %v989, %v863
      %v991 = vadd.f32 %v990, %v864
      %v992 = vadd.f32 %v991, %v865
      %v993 = vadd.f32 %v992, %v866
      %v994 = vadd.f32 %v993, %v867
      %v995 = vadd.f32 %v994, %v868
      %v996 = vadd.f32 %v995, %v869
      %v997 = vadd.f32 %v996, %v870
      %v998 = vadd.f32 %v997, %v871
      %v999 = vadd.f32 %v998, %v872
      %v1000 = vadd.f32 %v999, %v873
      %v1001 = vadd.f32 %v1000, %v874
      %v1002 = vadd.f32 %v1001, %v875
      %v1003 = vadd.f32 %v1002, %v876
      %v1004 = vadd.f32 %v1003, %v877
      %v1005 = vadd.f32 %v1004, %v878
      %v1006 = vadd.f32 %v1005, %v879
      %v1007 = vadd.f32 %v1006, %v880
      %v1008 = vadd.f32 %v1007, %v881
      %v1009 = vadd.f32 %v1008, %v882
      %v1010 = vadd.f32 %v1009, %v883
      %v1011 = vadd.f32 %v1010, %v884
      %v1012 = vadd.f32 %v1011, %v885
      %v1013 = vadd.f32 %v1012, %v886
      %v1014 = vadd.f32 %v1013, %v887
      %v1015 = vadd.f32 %v1014, %v888
      %v1016 = vadd.f32 %v1015, %v889
      %v1017 = vadd.f32 %v1016, %v890
      %v1018 = vadd.f32 %v1017, %v891
      %v1019 = vadd.f32 %v1018, %v892
      %v1020 = vadd.f32 %v1019, %v893
      %v1021 = vadd.f32 %v1020, %v894
      %v1022 = vadd.f32 %v1021, %v895
      %v1023 = vadd.f32 %v1022, %v896
      %v1024 = vadd.f32 %v1023, %v897
      %v1025 = vadd.f32 %v1024, %v898
      %v1026 = vadd.f32 %v1025, %v899
      %v1027 = vadd.f32 %v1026, %v900
      %v1028 = vadd.f32 %v1027, %v901
      %v1029 = vadd.f32 %v1028, %v902
      %v1030 = vadd.f32 %v1029, %v903
      %v1031 = vadd.f32 %v1030, %v904
      %v1032 = vadd.f32 %v1031, %v905
      %v1033 = vadd.f32 %v1032, %v906
      %v1034 = vadd.f32 %v1033, %v907
      %v1035 = vadd.f32 %v1034, %v908
      %v1036 = vadd.f32 %v1035, %v909
      %v1037 = vadd.f32 %v1036, %v910
      %v1038 = vadd.f32 %v1037, %v911
      %v1039 = vadd.f32 %v1038, %v912
      %v1040 = vadd.f32 %v1039, %v913
      %v1041 = vadd.f32 %v1040, %v914
      %v1042 = vrot.slane %v1041, 4
      %v1043 = vadd.f32 %v1041, %v1042
      %v1044 = vrot.slane %v1043, 2
      %v1045 = vadd.f32 %v1043, %v1044
      %v1046 = vrot.slane %v1045, 1
      %v1047 = vadd.f32 %v1045, %v1046
      %1048 = vst [vmem:[%s214] sm:$0x1] %v1047
      %v1049 = vmul.f32 %v851, %v851
      %v1050 = vmul.f32 %v852, %v852
      %v1051 = vmul.f32 %v853, %v853
      %v1052 = vmul.f32 %v854, %v854
      %v1053 = vmul.f32 %v855, %v855
      %v1054 = vmul.f32 %v856, %v856
      %v1055 = vmul.f32 %v857, %v857
      %v1056 = vmul.f32 %v858, %v858
      %v1057 = vmul.f32 %v859, %v859
      %v1058 = vmul.f32 %v860, %v860
      %v1059 = vmul.f32 %v861, %v861
      %v1060 = vmul.f32 %v862, %v862
      %v1061 = vmul.f32 %v863, %v863
      %v1062 = vmul.f32 %v864, %v864
      %v1063 = vmul.f32 %v865, %v865
      %v1064 = vmul.f32 %v866, %v866
      %v1065 = vmul.f32 %v867, %v867
      %v1066 = vmul.f32 %v868, %v868
      %v1067 = vmul.f32 %v869, %v869
      %v1068 = vmul.f32 %v870, %v870
      %v1069 = vmul.f32 %v871, %v871
      %v1070 = vmul.f32 %v872, %v872
      %v1071 = vmul.f32 %v873, %v873
      %v1072 = vmul.f32 %v874, %v874
      %v1073 = vmul.f32 %v875, %v875
      %v1074 = vmul.f32 %v876, %v876
      %v1075 = vmul.f32 %v877, %v877
      %v1076 = vmul.f32 %v878, %v878
      %v1077 = vmul.f32 %v879, %v879
      %v1078 = vmul.f32 %v880, %v880
      %v1079 = vmul.f32 %v881, %v881
      %v1080 = vmul.f32 %v882, %v882
      %v1081 = vmul.f32 %v883, %v883
      %v1082 = vmul.f32 %v884, %v884
      %v1083 = vmul.f32 %v885, %v885
      %v1084 = vmul.f32 %v886, %v886
      %v1085 = vmul.f32 %v887, %v887
      %v1086 = vmul.f32 %v888, %v888
      %v1087 = vmul.f32 %v889, %v889
      %v1088 = vmul.f32 %v890, %v890
      %v1089 = vmul.f32 %v891, %v891
      %v1090 = vmul.f32 %v892, %v892
      %v1091 = vmul.f32 %v893, %v893
      %v1092 = vmul.f32 %v894, %v894
      %v1093 = vmul.f32 %v895, %v895
      %v1094 = vmul.f32 %v896, %v896
      %v1095 = vmul.f32 %v897, %v897
      %v1096 = vmul.f32 %v898, %v898
      %v1097 = vmul.f32 %v899, %v899
      %v1098 = vmul.f32 %v900, %v900
      %v1099 = vmul.f32 %v901, %v901
      %v1100 = vmul.f32 %v902, %v902
      %v1101 = vmul.f32 %v903, %v903
      %v1102 = vmul.f32 %v904, %v904
      %v1103 = vmul.f32 %v905, %v905
      %v1104 = vmul.f32 %v906, %v906
      %v1105 = vmul.f32 %v907, %v907
      %v1106 = vmul.f32 %v908, %v908
      %v1107 = vmul.f32 %v909, %v909
      %v1108 = vmul.f32 %v910, %v910
      %v1109 = vmul.f32 %v911, %v911
      %v1110 = vmul.f32 %v912, %v912
      %v1111 = vmul.f32 %v913, %v913
      %v1112 = vmul.f32 %v914, %v914
      %v1113 = vadd.f32 %v1049, %v1050
      %v1114 = vadd.f32 %v1113, %v1051
      %v1115 = vadd.f32 %v1114, %v1052
      %v1116 = vadd.f32 %v1115, %v1053
      %v1117 = vadd.f32 %v1116, %v1054
      %v1118 = vadd.f32 %v1117, %v1055
      %v1119 = vadd.f32 %v1118, %v1056
      %v1120 = vadd.f32 %v1119, %v1057
      %v1121 = vadd.f32 %v1120, %v1058
      %v1122 = vadd.f32 %v1121, %v1059
      %v1123 = vadd.f32 %v1122, %v1060
      %v1124 = vadd.f32 %v1123, %v1061
      %v1125 = vadd.f32 %v1124, %v1062
      %v1126 = vadd.f32 %v1125, %v1063
      %v1127 = vadd.f32 %v1126, %v1064
      %v1128 = vadd.f32 %v1127, %v1065
      %v1129 = vadd.f32 %v1128, %v1066
      %v1130 = vadd.f32 %v1129, %v1067
      %v1131 = vadd.f32 %v1130, %v1068
      %v1132 = vadd.f32 %v1131, %v1069
      %v1133 = vadd.f32 %v1132, %v1070
      %v1134 = vadd.f32 %v1133, %v1071
      %v1135 = vadd.f32 %v1134, %v1072
      %v1136 = vadd.f32 %v1135, %v1073
      %v1137 = vadd.f32 %v1136, %v1074
      %v1138 = vadd.f32 %v1137, %v1075
      %v1139 = vadd.f32 %v1138, %v1076
      %v1140 = vadd.f32 %v1139, %v1077
      %v1141 = vadd.f32 %v1140, %v1078
      %v1142 = vadd.f32 %v1141, %v1079
      %v1143 = vadd.f32 %v1142, %v1080
      %v1144 = vadd.f32 %v1143, %v1081
      %v1145 = vadd.f32 %v1144, %v1082
      %v1146 = vadd.f32 %v1145, %v1083
      %v1147 = vadd.f32 %v1146, %v1084
      %v1148 = vadd.f32 %v1147, %v1085
      %v1149 = vadd.f32 %v1148, %v1086
      %v1150 = vadd.f32 %v1149, %v1087
      %v1151 = vadd.f32 %v1150, %v1088
      %v1152 = vadd.f32 %v1151, %v1089
      %v1153 = vadd.f32 %v1152, %v1090
      %v1154 = vadd.f32 %v1153, %v1091
      %v1155 = vadd.f32 %v1154, %v1092
      %v1156 = vadd.f32 %v1155, %v1093
      %v1157 = vadd.f32 %v1156, %v1094
      %v1158 = vadd.f32 %v1157, %v1095
      %v1159 = vadd.f32 %v1158, %v1096
      %v1160 = vadd.f32 %v1159, %v1097
      %v1161 = vadd.f32 %v1160, %v1098
      %v1162 = vadd.f32 %v1161, %v1099
      %v1163 = vadd.f32 %v1162, %v1100
      %v1164 = vadd.f32 %v1163, %v1101
      %v1165 = vadd.f32 %v1164, %v1102
      %v1166 = vadd.f32 %v1165, %v1103
      %v1167 = vadd.f32 %v1166, %v1104
      %v1168 = vadd.f32 %v1167, %v1105
      %v1169 = vadd.f32 %v1168, %v1106
      %v1170 = vadd.f32 %v1169, %v1107
      %v1171 = vadd.f32 %v1170, %v1108
      %v1172 = vadd.f32 %v1171, %v1109
      %v1173 = vadd.f32 %v1172, %v1110
      %v1174 = vadd.f32 %v1173, %v1111
      %v1175 = vadd.f32 %v1174, %v1112
      %v1176 = vrot.slane %v1175, 4
      %v1177 = vadd.f32 %v1175, %v1176
      %v1178 = vrot.slane %v1177, 2
      %v1179 = vadd.f32 %v1177, %v1178
      %v1180 = vrot.slane %v1179, 1
      %v1181 = vadd.f32 %v1179, %v1180
      %1182 = vst [vmem:[%s217] sm:$0x1] %v1181
      %s1183 = smul.u32 64, %s16
      %p1184 = scmp.lt.s32.totalorder %s1183, 255
      %s1185 = scalar_select %p1184, %s1183, 255
      %s1186 = smul.addr %s1185, 8
      %s1187 = scalar_lea.vmem %s2, %s1186
      %p1188 = scmp.lt.s32.totalorder %s16, 3
      %s1189 = scalar_select %p1188, %s16, 3
      %s1190 = scalar_lea.vmem %s3, %s1189
      %p1191 = scmp.lt.s32.totalorder %s16, 3
      %s1192 = scalar_select %p1191, %s16, 3
      %s1193 = scalar_lea.vmem %s4, %s1192
      // Predicated region
      $region29: #{_lambda_.16} parent=27 // pred_check
        %p1194 = pneg %p81
      $region30: #{_lambda_.16} parent=27 // pred_check_branch
        %1196 = sbr.rel (%p1194) target = $region32
      $region31: #{_lambda_.16} parent=27 // pred_region
        %s1197 = smul.u32 64, %s16
      $region32: #{_lambda_.16} parent=27 // pred_fallthru
        _
      // Predicated region
      $region33: #{_lambda_.16} parent=27 // pred_check
        %p1198 = pneg %p107
      $region34: #{_lambda_.16} parent=27 // pred_check_branch
        %1200 = sbr.rel (%p1198) target = $region36
      $region35: #{_lambda_.16} parent=27 // pred_region
        _
      $region36: #{_lambda_.16} parent=27 // pred_fallthru
        _
      // Predicated region
      $region37: #{_lambda_.16} parent=27 // pred_check
        %p1201 = pneg %p133
      $region38: #{_lambda_.16} parent=27 // pred_check_branch
        %1203 = sbr.rel (%p1201) target = $region40
      $region39: #{_lambda_.16} parent=27 // pred_region
        _
      $region40: #{_lambda_.16} parent=27 // pred_fallthru
        _
    $region28: #{_lambda_.16} parent=5 // pred_fallthru
      _
    %p1204 = scmp.le.s32.totalorder 2, %s11
    // Predicated region
    $region41: #{_lambda_.16} parent=5 // pred_check
      %p1205 = pneg %p1204
    $region42: #{_lambda_.16} parent=5 // pred_check_branch
      %1207 = sbr.rel (%p1205) target = $region44
    $region43: #{_lambda_.16} parent=5 // pred_region
      %s1208 = ssub.s32 %s11, 2
      // Predicated region
      $region45: #{_lambda_.16} parent=43 // pred_check
        %p1209 = pneg %p87
      $region46: #{_lambda_.16} parent=43 // pred_check_branch
        %1211 = sbr.rel (%p1209) target = $region48
      $region47: #{_lambda_.16} parent=43 // pred_region
        %s1212 = smul.u32 64, %s17
        %p1213 = scmp.lt.s32.totalorder %s1212, 255
        %s1214 = scalar_select %p1213, %s1212, 255
        %s1215 = smul.addr %s1214, 8
        %s1216 = scalar_lea.vmem %s2, %s1215
      $region48: #{_lambda_.16} parent=43 // pred_fallthru
        _
      // Predicated region
      $region49: #{_lambda_.16} parent=43 // pred_check
        %p1217 = pneg %p113
      $region50: #{_lambda_.16} parent=43 // pred_check_branch
        %1219 = sbr.rel (%p1217) target = $region52
      $region51: #{_lambda_.16} parent=43 // pred_region
        %p1220 = scmp.lt.s32.totalorder %s17, 3
        %s1221 = scalar_select %p1220, %s17, 3
        %s1222 = scalar_lea.vmem %s3, %s1221
      $region52: #{_lambda_.16} parent=43 // pred_fallthru
        _
      // Predicated region
      $region53: #{_lambda_.16} parent=43 // pred_check
        %p1223 = pneg %p139
      $region54: #{_lambda_.16} parent=43 // pred_check_branch
        %1225 = sbr.rel (%p1223) target = $region56
      $region55: #{_lambda_.16} parent=43 // pred_region
        %p1226 = scmp.lt.s32.totalorder %s17, 3
        %s1227 = scalar_select %p1226, %s17, 3
        %s1228 = scalar_lea.vmem %s4, %s1227
      $region56: #{_lambda_.16} parent=43 // pred_fallthru
        _
    $region44: #{_lambda_.16} parent=5 // pred_fallthru
      _
  $region6: #{_lambda_.16} parent=0 // loop_footer
    %s15 = sadd.s32 1, %s11
  $region7: #{_lambda_.16} parent=0 // loop_footer_branch
    %10 = sbr.rel target = $region3
  $region8: #{_lambda_.16} parent=0 // loop_exit
    _

// kernel: _lambda_.18
$region0: #{_lambda_.18}
  #allocation0 [shape = 'u32[]', space=smem, size = 0x4, offset = 0x4, fixed_abs, tag = 'smem constant byte address 0x4 - core index']
  #allocation1 [shape = 'u32[144,128]{1,0:T(1,128)}', space=vmem, size = 0x12000, scoped, tag = 'internal scratch']
  %s0 = inlined_call_operand.vmem [shape: bf16[2048,144], index: 0, kind: input, shape index: {}]
  %s1 = inlined_call_operand.vmem [shape: bf16[144,128], index: 1, kind: input, shape index: {}]
  %s2 = inlined_call_operand.vmem [shape: f32[2048,128], index: 2, kind: output, shape index: {0}]
  %s3 = inlined_call_operand.vmem [shape: f32[4,1,128], index: 3, kind: output, shape index: {1}]
  %s4 = inlined_call_operand.vmem [shape: f32[4,1,128], index: 4, kind: output, shape index: {2}]
  %5 = xla_tuple %s2, %s3, %s4
  %s6 = sld [smem:[#allocation0]]
  $region57: #{_lambda_.18} parent=0
    _
  %s8 = ssub.s32 1, %s6
  %s9 = scalar_select 0, %s8, %s6
  loop: start=0, step=1, limit=6
  $region2: #{_lambda_.18} parent=0 // loop_pre_header
    _
  $region3: #{_lambda_.18} parent=0 // loop_header
    %s11 = sphi 0, %s15
    %p12 = scmp.ge.s32.totalorder %s11, 6
    %s21 = sphi 0, %s23
    %s24 = sphi 0, %s21
    %s25 = sphi 0, %s24
    %s41 = sphi 0, %s25
    %s45 = sphi 0, %s45
    %s47 = sphi 0, %s45
    %s48 = sphi 0, %s47
    %s62 = sphi 0, %s48
    %s68 = sphi 0, %s70
    %s71 = sphi 0, %s68
    %s72 = sphi 0, %s71
    %s88 = sphi 0, %s72
    %s94 = sphi 0, %s96
    %s97 = sphi 0, %s94
    %s98 = sphi 0, %s97
    %s114 = sphi 0, %s98
    %s120 = sphi 0, %s122
    %s123 = sphi 0, %s120
    %s124 = sphi 0, %s123
    %s140 = sphi 0, %s124
  $region4: #{_lambda_.18} parent=0 // loop_header_branch
    %14 = sbr.rel (%p12) target = $region8
  $region5: #{_lambda_.18} parent=0 // loop_body
    %s16 = ssub.s32 %s11, 1
    %s17 = ssub.s32 %s11, 2
    %s18 = sadd.s32 %s11, 1
    %s19 = ssub.s32 %s11, %s18
    %p20 = scmp.eq.s32.totalorder %s19, 0
    %s22 = sadd.s32 %s21, 1
    %s23 = scalar_select %p20, %s21, %s22
    %p26 = pneg %p20
    %p27 = scmp.eq.s32.totalorder %s11, 3
    %p28 = por %p26, %p27
    %p29 = scmp.ne.s32.totalorder %s21, %s24
    %p30 = scmp.eq.s32.totalorder %s11, 0
    %p31 = por %p29, %p30
    %p32 = scmp.ne.s32.totalorder %s21, %s24
    %p33 = scmp.eq.s32.totalorder %s16, 3
    %p34 = por %p32, %p33
    %p35 = scmp.ne.s32.totalorder %s24, %s25
    %p36 = scmp.eq.s32.totalorder %s16, 0
    %p37 = por %p35, %p36
    %p38 = scmp.ne.s32.totalorder %s24, %s25
    %p39 = scmp.eq.s32.totalorder %s17, 3
    %p40 = por %p38, %p39
    %p42 = scmp.ne.s32.totalorder %s25, %s41
    %p43 = scmp.eq.s32.totalorder %s17, 0
    %p44 = por %p42, %p43
    %s46 = sadd.s32 %s45, 1
    %p49 = scmp.eq.s32.totalorder %s11, 3
    %p50 = scmp.ne.s32.totalorder %s45, %s47
    %p51 = scmp.eq.s32.totalorder %s11, 0
    %p52 = por %p50, %p51
    %p53 = scmp.ne.s32.totalorder %s45, %s47
    %p54 = scmp.eq.s32.totalorder %s16, 3
    %p55 = por %p53, %p54
    %p56 = scmp.ne.s32.totalorder %s47, %s48
    %p57 = scmp.eq.s32.totalorder %s16, 0
    %p58 = por %p56, %p57
    %p59 = scmp.ne.s32.totalorder %s47, %s48
    %p60 = scmp.eq.s32.totalorder %s17, 3
    %p61 = por %p59, %p60
    %p63 = scmp.ne.s32.totalorder %s48, %s62
    %p64 = scmp.eq.s32.totalorder %s17, 0
    %p65 = por %p63, %p64
    %s66 = ssub.s32 %s11, %s18
    %p67 = scmp.eq.s32.totalorder %s66, 0
    %s69 = sadd.s32 %s68, 1
    %s70 = scalar_select %p67, %s68, %s69
    %p73 = pneg %p67
    %p74 = scmp.eq.s32.totalorder %s11, 3
    %p75 = por %p73, %p74
    %p76 = scmp.ne.s32.totalorder %s68, %s71
    %p77 = scmp.eq.s32.totalorder %s11, 0
    %p78 = por %p76, %p77
    %p79 = scmp.ne.s32.totalorder %s68, %s71
    %p80 = scmp.eq.s32.totalorder %s16, 3
    %p81 = por %p79, %p80
    %p82 = scmp.ne.s32.totalorder %s71, %s72
    %p83 = scmp.eq.s32.totalorder %s16, 0
    %p84 = por %p82, %p83
    %p85 = scmp.ne.s32.totalorder %s71, %s72
    %p86 = scmp.eq.s32.totalorder %s17, 3
    %p87 = por %p85, %p86
    %p89 = scmp.ne.s32.totalorder %s72, %s88
    %p90 = scmp.eq.s32.totalorder %s17, 0
    %p91 = por %p89, %p90
    %s92 = ssub.s32 %s11, %s18
    %p93 = scmp.eq.s32.totalorder %s92, 0
    %s95 = sadd.s32 %s94, 1
    %s96 = scalar_select %p93, %s94, %s95
    %p99 = pneg %p93
    %p100 = scmp.eq.s32.totalorder %s11, 3
    %p101 = por %p99, %p100
    %p102 = scmp.ne.s32.totalorder %s94, %s97
    %p103 = scmp.eq.s32.totalorder %s11, 0
    %p104 = por %p102, %p103
    %p105 = scmp.ne.s32.totalorder %s94, %s97
    %p106 = scmp.eq.s32.totalorder %s16, 3
    %p107 = por %p105, %p106
    %p108 = scmp.ne.s32.totalorder %s97, %s98
    %p109 = scmp.eq.s32.totalorder %s16, 0
    %p110 = por %p108, %p109
    %p111 = scmp.ne.s32.totalorder %s97, %s98
    %p112 = scmp.eq.s32.totalorder %s17, 3
    %p113 = por %p111, %p112
    %p115 = scmp.ne.s32.totalorder %s98, %s114
    %p116 = scmp.eq.s32.totalorder %s17, 0
    %p117 = por %p115, %p116
    %s118 = ssub.s32 %s11, %s18
    %p119 = scmp.eq.s32.totalorder %s118, 0
    %s121 = sadd.s32 %s120, 1
    %s122 = scalar_select %p119, %s120, %s121
    %p125 = pneg %p119
    %p126 = scmp.eq.s32.totalorder %s11, 3
    %p127 = por %p125, %p126
    %p128 = scmp.ne.s32.totalorder %s120, %s123
    %p129 = scmp.eq.s32.totalorder %s11, 0
    %p130 = por %p128, %p129
    %p131 = scmp.ne.s32.totalorder %s120, %s123
    %p132 = scmp.eq.s32.totalorder %s16, 3
    %p133 = por %p131, %p132
    %p134 = scmp.ne.s32.totalorder %s123, %s124
    %p135 = scmp.eq.s32.totalorder %s16, 0
    %p136 = por %p134, %p135
    %p137 = scmp.ne.s32.totalorder %s123, %s124
    %p138 = scmp.eq.s32.totalorder %s17, 3
    %p139 = por %p137, %p138
    %p141 = scmp.ne.s32.totalorder %s124, %s140
    %p142 = scmp.eq.s32.totalorder %s17, 0
    %p143 = por %p141, %p142
    %p144 = scmp.le.s32.totalorder 1, %s11
    %p145 = scmp.lt.s32.totalorder %s11, 5
    %p146 = pnand %p144, %p145
    %p147 = pneg %p146
    // Predicated region
    $region9: #{_lambda_.18} parent=5 // pred_check
      _
    $region10: #{_lambda_.18} parent=5 // pred_check_branch
      %149 = sbr.rel (%p146) target = $region12
    $region11: #{_lambda_.18} parent=5 // pred_region
      %s150 = ssub.s32 %s11, 1
      // Predicated region
      $region13: #{_lambda_.18} parent=11 // pred_check
        %p151 = pneg %p58
      $region14: #{_lambda_.18} parent=11 // pred_check_branch
        %153 = sbr.rel (%p151) target = $region16
      $region15: #{_lambda_.18} parent=11 // pred_region
        _
      $region16: #{_lambda_.18} parent=11 // pred_fallthru
        _
    $region12: #{_lambda_.18} parent=5 // pred_fallthru
      _
    %p154 = scmp.lt.s32.totalorder %s11, 4
    // Predicated region
    $region17: #{_lambda_.18} parent=5 // pred_check
      %p155 = pneg %p154
    $region18: #{_lambda_.18} parent=5 // pred_check_branch
      %157 = sbr.rel (%p155) target = $region20
    $region19: #{_lambda_.18} parent=5 // pred_region
      // Predicated region
      $region21: #{_lambda_.18} parent=19 // pred_check
        %p158 = pneg %p31
      $region22: #{_lambda_.18} parent=19 // pred_check_branch
        %160 = sbr.rel (%p158) target = $region24
      $region23: #{_lambda_.18} parent=19 // pred_region
        %s161 = smul.u32 64, %s11
        %p162 = scmp.lt.s32.totalorder %s161, 255
        %s163 = scalar_select %p162, %s161, 255
        %s164 = smul.addr %s163, 2
        %s165 = smul.addr %s164, 4
        %s166 = scalar_lea.vmem %s0, %s165
        %s167 = smul.u32 64, %s11
      $region24: #{_lambda_.18} parent=19 // pred_fallthru
        _
    $region20: #{_lambda_.18} parent=5 // pred_fallthru
      _
    %p168 = scmp.le.s32.totalorder 1, %s11
    %p169 = scmp.lt.s32.totalorder %s11, 5
    %p170 = pnand %p168, %p169
    %p171 = pneg %p170
    // Predicated region
    $region25: #{_lambda_.18} parent=5 // pred_check
      _
    $region26: #{_lambda_.18} parent=5 // pred_check_branch
      %173 = sbr.rel (%p170) target = $region28
    $region27: #{_lambda_.18} parent=5 // pred_region
      %s174 = ssub.s32 %s11, 1
      %s175 = smul.u32 64, %s16
      %p176 = scmp.lt.s32.totalorder %s175, 255
      %s177 = scalar_select %p176, %s175, 255
      %s178 = smul.addr %s177, 2
      %s179 = smul.addr %s178, 4
      %s180 = scalar_lea.vmem %s0, %s179
      %p181 = pneg %p37
      %p182 = pneg %p34
      %p183 = pneg %p58
      %p184 = pneg %p55
      %p185 = pneg %p84
      %p186 = pneg %p81
      %s187 = smul.u32 64, %s16
      %p188 = scmp.lt.s32.totalorder %s187, 255
      %s189 = scalar_select %p188, %s187, 255
      %s190 = smul.addr %s189, 8
      %s191 = scalar_lea.vmem %s2, %s190
      %p192 = pneg %p110
      %p193 = pneg %p107
      %p194 = scmp.lt.s32.totalorder %s16, 3
      %s195 = scalar_select %p194, %s16, 3
      %s196 = scalar_lea.vmem %s3, %s195
      %p197 = pneg %p136
      %p198 = pneg %p133
      %p199 = scmp.lt.s32.totalorder %s16, 3
      %s200 = scalar_select %p199, %s16, 3
      %s201 = scalar_lea.vmem %s4, %s200
      %s202 = smul.u32 64, %s16
      %p203 = scmp.lt.s32.totalorder %s202, 255
      %s204 = scalar_select %p203, %s202, 255
      %s205 = smul.addr %s204, 2
      %s206 = smul.addr %s205, 4
      %s207 = scalar_lea.vmem %s0, %s206
      %s208 = smul.u32 64, %s16
      %s209 = smul.u32 64, %s16
      %p210 = scmp.lt.s32.totalorder %s209, 255
      %s211 = scalar_select %p210, %s209, 255
      %s212 = smul.addr %s211, 8
      %s213 = scalar_lea.vmem %s2, %s212
      %s214 = smul.u32 64, %s16
      %p215 = scmp.lt.s32.totalorder %s16, 3
      %s216 = scalar_select %p215, %s16, 3
      %s217 = scalar_lea.vmem %s3, %s216
      %p218 = scmp.lt.s32.totalorder %s16, 3
      %s219 = scalar_select %p218, %s16, 3
      %s220 = scalar_lea.vmem %s4, %s219
      %v222 = vld [vmem:[%s207] sm:$0xff]
      %v223 = vld [vmem:[%s207 + $0x8] sm:$0xff]
      %v224 = vld [vmem:[%s207 + $0x10] sm:$0xff]
      %v225 = vld [vmem:[%s207 + $0x18] sm:$0xff]
      %v226 = vld [vmem:[%s207 + $0x20] sm:$0xff]
      %v227 = vld [vmem:[%s207 + $0x28] sm:$0xff]
      %v228 = vld [vmem:[%s207 + $0x30] sm:$0xff]
      %v229 = vld [vmem:[%s207 + $0x38] sm:$0xff]
      %v230 = vld [vmem:[%s207 + $0x40] sm:$0xff]
      %v231 = vld [vmem:[%s207 + $0x48] sm:$0xff]
      %v232 = vld [vmem:[%s207 + $0x50] sm:$0xff]
      %v233 = vld [vmem:[%s207 + $0x58] sm:$0xff]
      %v234 = vld [vmem:[%s207 + $0x60] sm:$0xff]
      %v235 = vld [vmem:[%s207 + $0x68] sm:$0xff]
      %v236 = vld [vmem:[%s207 + $0x70] sm:$0xff]
      %v237 = vld [vmem:[%s207 + $0x78] sm:$0xff]
      %v238 = vld [vmem:[%s207 + $0x80] sm:$0xff]
      %v239 = vld [vmem:[%s207 + $0x88] sm:$0xff]
      %v240 = vld [vmem:[%s207 + $0x90] sm:$0xff]
      %v241 = vld [vmem:[%s207 + $0x98] sm:$0xff]
      %v242 = vld [vmem:[%s207 + $0xa0] sm:$0xff]
      %v243 = vld [vmem:[%s207 + $0xa8] sm:$0xff]
      %v244 = vld [vmem:[%s207 + $0xb0] sm:$0xff]
      %v245 = vld [vmem:[%s207 + $0xb8] sm:$0xff]
      %v246 = vld [vmem:[%s207 + $0xc0] sm:$0xff]
      %v247 = vld [vmem:[%s207 + $0xc8] sm:$0xff]
      %v248 = vld [vmem:[%s207 + $0xd0] sm:$0xff]
      %v249 = vld [vmem:[%s207 + $0xd8] sm:$0xff]
      %v250 = vld [vmem:[%s207 + $0xe0] sm:$0xff]
      %v251 = vld [vmem:[%s207 + $0xe8] sm:$0xff]
      %v252 = vld [vmem:[%s207 + $0xf0] sm:$0xff]
      %v253 = vld [vmem:[%s207 + $0xf8] sm:$0xff]
      %v254 = vld [vmem:[%s207 + $0x100] sm:$0xff]
      %v255 = vld [vmem:[%s207 + $0x108] sm:$0xff]
      %v256 = vld [vmem:[%s207 + $0x110] sm:$0xff]
      %v257 = vld [vmem:[%s207 + $0x118] sm:$0xff]
      %v258 = vld [vmem:[%s207 + $0x120] sm:$0xff]
      %v259 = vld [vmem:[%s207 + $0x128] sm:$0xff]
      %v260 = vld [vmem:[%s207 + $0x130] sm:$0xff]
      %v261 = vld [vmem:[%s207 + $0x138] sm:$0xff]
      %v262 = vld [vmem:[%s207 + $0x140] sm:$0xff]
      %v263 = vld [vmem:[%s207 + $0x148] sm:$0xff]
      %v264 = vld [vmem:[%s207 + $0x150] sm:$0xff]
      %v265 = vld [vmem:[%s207 + $0x158] sm:$0xff]
      %v266 = vld [vmem:[%s207 + $0x160] sm:$0xff]
      %v267 = vld [vmem:[%s207 + $0x168] sm:$0xff]
      %v268 = vld [vmem:[%s207 + $0x170] sm:$0xff]
      %v269 = vld [vmem:[%s207 + $0x178] sm:$0xff]
      %v270 = vld [vmem:[%s207 + $0x180] sm:$0xff]
      %v271 = vld [vmem:[%s207 + $0x188] sm:$0xff]
      %v272 = vld [vmem:[%s207 + $0x190] sm:$0xff]
      %v273 = vld [vmem:[%s207 + $0x198] sm:$0xff]
      %v274 = vld [vmem:[%s207 + $0x1a0] sm:$0xff]
      %v275 = vld [vmem:[%s207 + $0x1a8] sm:$0xff]
      %v276 = vld [vmem:[%s207 + $0x1b0] sm:$0xff]
      %v277 = vld [vmem:[%s207 + $0x1b8] sm:$0xff]
      %v278 = vld [vmem:[%s207 + $0x1c0] sm:$0xff]
      %v279 = vld [vmem:[%s207 + $0x1c8] sm:$0xff]
      %v280 = vld [vmem:[%s207 + $0x1d0] sm:$0xff]
      %v281 = vld [vmem:[%s207 + $0x1d8] sm:$0xff]
      %v282 = vld [vmem:[%s207 + $0x1e0] sm:$0xff]
      %v283 = vld [vmem:[%s207 + $0x1e8] sm:$0xff]
      %v284 = vld [vmem:[%s207 + $0x1f0] sm:$0xff]
      %v285 = vld [vmem:[%s207 + $0x1f8] sm:$0xff]
      %v286 = vld [vmem:[%s1] sm:$0xf]
      %v287 = vld [vmem:[%s1 + $0x4] sm:$0xf]
      %v288 = vld [vmem:[%s1 + $0x8] sm:$0xf]
      %v289 = vld [vmem:[%s1 + $0xc] sm:$0xf]
      %v290 = vld [vmem:[%s1 + $0x10] sm:$0xf]
      %v291 = vld [vmem:[%s1 + $0x14] sm:$0xf]
      %v292 = vld [vmem:[%s1 + $0x18] sm:$0xf]
      %v293 = vld [vmem:[%s1 + $0x1c] sm:$0xf]
      %v294 = vld [vmem:[%s1 + $0x20] sm:$0xf]
      %v295 = vld [vmem:[%s1 + $0x24] sm:$0xf]
      %v296 = vld [vmem:[%s1 + $0x28] sm:$0xf]
      %v297 = vld [vmem:[%s1 + $0x2c] sm:$0xf]
      %v298 = vld [vmem:[%s1 + $0x30] sm:$0xf]
      %v299 = vld [vmem:[%s1 + $0x34] sm:$0xf]
      %v300 = vld [vmem:[%s1 + $0x38] sm:$0xf]
      %v301 = vld [vmem:[%s1 + $0x3c] sm:$0xf]
      %v302 = vld [vmem:[%s1 + $0x40] sm:$0xf]
      %v303 = vld [vmem:[%s1 + $0x44] sm:$0xf]
      %v368 = vunpack.c.l.b16 %v222
      %v369 = vunpack.c.h.b16 %v222
      %v370 = vunpack.c.l.b16 %v223
      %v371 = vunpack.c.h.b16 %v223
      %v372 = vunpack.c.l.b16 %v224
      %v373 = vunpack.c.h.b16 %v224
      %v374 = vunpack.c.l.b16 %v225
      %v375 = vunpack.c.h.b16 %v225
      %v376 = vunpack.c.l.b16 %v226
      %v377 = vunpack.c.h.b16 %v226
      %v378 = vunpack.c.l.b16 %v227
      %v379 = vunpack.c.h.b16 %v227
      %v380 = vunpack.c.l.b16 %v228
      %v381 = vunpack.c.h.b16 %v228
      %v382 = vunpack.c.l.b16 %v229
      %v383 = vunpack.c.h.b16 %v229
      %v384 = vunpack.c.l.b16 %v230
      %v385 = vunpack.c.h.b16 %v230
      %v386 = vunpack.c.l.b16 %v231
      %v387 = vunpack.c.h.b16 %v231
      %v388 = vunpack.c.l.b16 %v232
      %v389 = vunpack.c.h.b16 %v232
      %v390 = vunpack.c.l.b16 %v233
      %v391 = vunpack.c.h.b16 %v233
      %v392 = vunpack.c.l.b16 %v234
      %v393 = vunpack.c.h.b16 %v234
      %v394 = vunpack.c.l.b16 %v235
      %v395 = vunpack.c.h.b16 %v235
      %v396 = vunpack.c.l.b16 %v236
      %v397 = vunpack.c.h.b16 %v236
      %v398 = vunpack.c.l.b16 %v237
      %v399 = vunpack.c.h.b16 %v237
      %v400 = vunpack.c.l.b16 %v238
      %v401 = vunpack.c.h.b16 %v238
      %v402 = vunpack.c.l.b16 %v239
      %v403 = vunpack.c.h.b16 %v239
      %v404 = vunpack.c.l.b16 %v240
      %v405 = vunpack.c.h.b16 %v240
      %v406 = vunpack.c.l.b16 %v241
      %v407 = vunpack.c.h.b16 %v241
      %v408 = vunpack.c.l.b16 %v242
      %v409 = vunpack.c.h.b16 %v242
      %v410 = vunpack.c.l.b16 %v243
      %v411 = vunpack.c.h.b16 %v243
      %v412 = vunpack.c.l.b16 %v244
      %v413 = vunpack.c.h.b16 %v244
      %v414 = vunpack.c.l.b16 %v245
      %v415 = vunpack.c.h.b16 %v245
      %v416 = vunpack.c.l.b16 %v246
      %v417 = vunpack.c.h.b16 %v246
      %v418 = vunpack.c.l.b16 %v247
      %v419 = vunpack.c.h.b16 %v247
      %v420 = vunpack.c.l.b16 %v248
      %v421 = vunpack.c.h.b16 %v248
      %v422 = vunpack.c.l.b16 %v249
      %v423 = vunpack.c.h.b16 %v249
      %v424 = vunpack.c.l.b16 %v250
      %v425 = vunpack.c.h.b16 %v250
      %v426 = vunpack.c.l.b16 %v251
      %v427 = vunpack.c.h.b16 %v251
      %v428 = vunpack.c.l.b16 %v252
      %v429 = vunpack.c.h.b16 %v252
      %v430 = vunpack.c.l.b16 %v253
      %v431 = vunpack.c.h.b16 %v253
      %v432 = vunpack.c.l.b16 %v254
      %v433 = vunpack.c.h.b16 %v254
      %v434 = vunpack.c.l.b16 %v255
      %v435 = vunpack.c.h.b16 %v255
      %v436 = vunpack.c.l.b16 %v256
      %v437 = vunpack.c.h.b16 %v256
      %v438 = vunpack.c.l.b16 %v257
      %v439 = vunpack.c.h.b16 %v257
      %v440 = vunpack.c.l.b16 %v258
      %v441 = vunpack.c.h.b16 %v258
      %v442 = vunpack.c.l.b16 %v259
      %v443 = vunpack.c.h.b16 %v259
      %v444 = vunpack.c.l.b16 %v260
      %v445 = vunpack.c.h.b16 %v260
      %v446 = vunpack.c.l.b16 %v261
      %v447 = vunpack.c.h.b16 %v261
      %v448 = vunpack.c.l.b16 %v262
      %v449 = vunpack.c.h.b16 %v262
      %v450 = vunpack.c.l.b16 %v263
      %v451 = vunpack.c.h.b16 %v263
      %v452 = vunpack.c.l.b16 %v264
      %v453 = vunpack.c.h.b16 %v264
      %v454 = vunpack.c.l.b16 %v265
      %v455 = vunpack.c.h.b16 %v265
      %v456 = vunpack.c.l.b16 %v266
      %v457 = vunpack.c.h.b16 %v266
      %v458 = vunpack.c.l.b16 %v267
      %v459 = vunpack.c.h.b16 %v267
      %v460 = vunpack.c.l.b16 %v268
      %v461 = vunpack.c.h.b16 %v268
      %v462 = vunpack.c.l.b16 %v269
      %v463 = vunpack.c.h.b16 %v269
      %v464 = vunpack.c.l.b16 %v270
      %v465 = vunpack.c.h.b16 %v270
      %v466 = vunpack.c.l.b16 %v271
      %v467 = vunpack.c.h.b16 %v271
      %v468 = vunpack.c.l.b16 %v272
      %v469 = vunpack.c.h.b16 %v272
      %v470 = vunpack.c.l.b16 %v273
      %v471 = vunpack.c.h.b16 %v273
      %v472 = vunpack.c.l.b16 %v274
      %v473 = vunpack.c.h.b16 %v274
      %v474 = vunpack.c.l.b16 %v275
      %v475 = vunpack.c.h.b16 %v275
      %v476 = vunpack.c.l.b16 %v276
      %v477 = vunpack.c.h.b16 %v276
      %v478 = vunpack.c.l.b16 %v277
      %v479 = vunpack.c.h.b16 %v277
      %v480 = vunpack.c.l.b16 %v278
      %v481 = vunpack.c.h.b16 %v278
      %v482 = vunpack.c.l.b16 %v279
      %v483 = vunpack.c.h.b16 %v279
      %v484 = vunpack.c.l.b16 %v280
      %v485 = vunpack.c.h.b16 %v280
      %v486 = vunpack.c.l.b16 %v281
      %v487 = vunpack.c.h.b16 %v281
      %v488 = vunpack.c.l.b16 %v282
      %v489 = vunpack.c.h.b16 %v282
      %v490 = vunpack.c.l.b16 %v283
      %v491 = vunpack.c.h.b16 %v283
      %v492 = vunpack.c.l.b16 %v284
      %v493 = vunpack.c.h.b16 %v284
      %v494 = vunpack.c.l.b16 %v285
      %v495 = vunpack.c.h.b16 %v285
      %v496 = vpack.c.b16 %v370, %v368
      %v497 = vpack.c.b16 %v371, %v369
      %v498 = vpack.c.b16 %v374, %v372
      %v499 = vpack.c.b16 %v375, %v373
      %v500 = vpack.c.b16 %v378, %v376
      %v501 = vpack.c.b16 %v379, %v377
      %v502 = vpack.c.b16 %v382, %v380
      %v503 = vpack.c.b16 %v383, %v381
      %v504 = vpack.c.b16 %v386, %v384
      %v505 = vpack.c.b16 %v387, %v385
      %v506 = vpack.c.b16 %v390, %v388
      %v507 = vpack.c.b16 %v391, %v389
      %v508 = vpack.c.b16 %v394, %v392
      %v509 = vpack.c.b16 %v395, %v393
      %v510 = vpack.c.b16 %v398, %v396
      %v511 = vpack.c.b16 %v399, %v397
      %v512 = vpack.c.b16 %v402, %v400
      %v513 = vpack.c.b16 %v403, %v401
      %v514 = vpack.c.b16 %v406, %v404
      %v515 = vpack.c.b16 %v407, %v405
      %v516 = vpack.c.b16 %v410, %v408
      %v517 = vpack.c.b16 %v411, %v409
      %v518 = vpack.c.b16 %v414, %v412
      %v519 = vpack.c.b16 %v415, %v413
      %v520 = vpack.c.b16 %v418, %v416
      %v521 = vpack.c.b16 %v419, %v417
      %v522 = vpack.c.b16 %v422, %v420
      %v523 = vpack.c.b16 %v423, %v421
      %v524 = vpack.c.b16 %v426, %v424
      %v525 = vpack.c.b16 %v427, %v425
      %v526 = vpack.c.b16 %v430, %v428
      %v527 = vpack.c.b16 %v431, %v429
      %v528 = vpack.c.b16 %v434, %v432
      %v529 = vpack.c.b16 %v435, %v433
      %v530 = vpack.c.b16 %v438, %v436
      %v531 = vpack.c.b16 %v439, %v437
      %v532 = vpack.c.b16 %v442, %v440
      %v533 = vpack.c.b16 %v443, %v441
      %v534 = vpack.c.b16 %v446, %v444
      %v535 = vpack.c.b16 %v447, %v445
      %v536 = vpack.c.b16 %v450, %v448
      %v537 = vpack.c.b16 %v451, %v449
      %v538 = vpack.c.b16 %v454, %v452
      %v539 = vpack.c.b16 %v455, %v453
      %v540 = vpack.c.b16 %v458, %v456
      %v541 = vpack.c.b16 %v459, %v457
      %v542 = vpack.c.b16 %v462, %v460
      %v543 = vpack.c.b16 %v463, %v461
      %v544 = vpack.c.b16 %v466, %v464
      %v545 = vpack.c.b16 %v467, %v465
      %v546 = vpack.c.b16 %v470, %v468
      %v547 = vpack.c.b16 %v471, %v469
      %v548 = vpack.c.b16 %v474, %v472
      %v549 = vpack.c.b16 %v475, %v473
      %v550 = vpack.c.b16 %v478, %v476
      %v551 = vpack.c.b16 %v479, %v477
      %v552 = vpack.c.b16 %v482, %v480
      %v553 = vpack.c.b16 %v483, %v481
      %v554 = vpack.c.b16 %v486, %v484
      %v555 = vpack.c.b16 %v487, %v485
      %v556 = vpack.c.b16 %v490, %v488
      %v557 = vpack.c.b16 %v491, %v489
      %v558 = vpack.c.b16 %v494, %v492
      %v559 = vpack.c.b16 %v495, %v493
      %v610 = vunpack.c.l.b16 %v286
      %v611 = vunpack.c.l.b16 %v287
      %v612 = vunpack.c.l.b16 %v288
      %v613 = vunpack.c.l.b16 %v289
      %v614 = vunpack.c.l.b16 %v290
      %v615 = vunpack.c.l.b16 %v291
      %v616 = vunpack.c.l.b16 %v292
      %v617 = vunpack.c.l.b16 %v293
      %v618 = vunpack.c.l.b16 %v294
      %v619 = vunpack.c.l.b16 %v295
      %v620 = vunpack.c.l.b16 %v296
      %v621 = vunpack.c.l.b16 %v297
      %v622 = vunpack.c.l.b16 %v298
      %v623 = vunpack.c.l.b16 %v299
      %v624 = vunpack.c.l.b16 %v300
      %v625 = vunpack.c.l.b16 %v301
      %v626 = vunpack.c.l.b16 %v302
      %v627 = vunpack.c.l.b16 %v303
      %v628 = vpack.c.b16 %v611, %v610
      %v629 = vpack.c.b16 %v613, %v612
      %v630 = vpack.c.b16 %v615, %v614
      %v631 = vpack.c.b16 %v617, %v616
      %v632 = vpack.c.b16 %v619, %v618
      %v633 = vpack.c.b16 %v621, %v620
      %v634 = vpack.c.b16 %v623, %v622
      %v635 = vpack.c.b16 %v625, %v624
      %v636 = vpack.c.b16 %v627, %v626
      %vm646 = vcmask 130048
      %v648 = vsel %vm646, %v497, 0
      %v651 = vsel %vm646, %v499, 0
      %v654 = vsel %vm646, %v501, 0
      %v657 = vsel %vm646, %v503, 0
      %v660 = vsel %vm646, %v505, 0
      %v663 = vsel %vm646, %v507, 0
      %v666 = vsel %vm646, %v509, 0
      %v669 = vsel %vm646, %v511, 0
      %v672 = vsel %vm646, %v513, 0
      %v675 = vsel %vm646, %v515, 0
      %v678 = vsel %vm646, %v517, 0
      %v681 = vsel %vm646, %v519, 0
      %v684 = vsel %vm646, %v521, 0
      %v687 = vsel %vm646, %v523, 0
      %v690 = vsel %vm646, %v525, 0
      %v693 = vsel %vm646, %v527, 0
      %v696 = vsel %vm646, %v529, 0
      %v699 = vsel %vm646, %v531, 0
      %v702 = vsel %vm646, %v533, 0
      %v705 = vsel %vm646, %v535, 0
      %v708 = vsel %vm646, %v537, 0
      %v711 = vsel %vm646, %v539, 0
      %v714 = vsel %vm646, %v541, 0
      %v717 = vsel %vm646, %v543, 0
      %v720 = vsel %vm646, %v545, 0
      %v723 = vsel %vm646, %v547, 0
      %v726 = vsel %vm646, %v549, 0
      %v729 = vsel %vm646, %v551, 0
      %v732 = vsel %vm646, %v553, 0
      %v735 = vsel %vm646, %v555, 0
      %v738 = vsel %vm646, %v557, 0
      %v741 = vsel %vm646, %v559, 0
      %743 = vmatprep.subr.bf16.mxu0 0
      %744 = vmatpush1.bf16.msra.mxu0 %v628
      %745 = vmatprep.subr.bf16.mxu0 0
      %746 = vmatpush1.bf16.msra.mxu0 %v629
      %747 = vmatprep.subr.bf16.mxu0 0
      %748 = vmatpush1.bf16.msra.mxu0 %v630
      %749 = vmatprep.subr.bf16.mxu0 0
      %750 = vmatpush1.bf16.msra.mxu0 %v631
      %751 = vmatprep.subr.bf16.mxu0 0
      %752 = vmatpush1.bf16.msra.mxu0 %v632
      %753 = vmatprep.subr.bf16.mxu0 0
      %754 = vmatpush1.bf16.msra.mxu0 %v633
      %755 = vmatprep.subr.bf16.mxu0 0
      %756 = vmatpush1.bf16.msra.mxu0 %v634
      %757 = vmatprep.subr.bf16.mxu0 0
      %758 = vmatpush1.bf16.msra.mxu0 %v635
      %759 = vmatprep.subr.bf16.mxu0 0
      %760 = vmatpush1.bf16.msra.mxu0 %v636
      %761 = vmatprep.subr.bf16.mxu0 0
      %762 = vmatpush1.bf16.msra.mxu0 0
      %763 = vmatprep.subr.bf16.mxu0 0
      %764 = vmatpush1.bf16.msra.mxu0 0
      %765 = vmatprep.subr.bf16.mxu0 0
      %766 = vmatpush1.bf16.msra.mxu0 0
      %767 = vmatprep.subr.bf16.mxu0 0
      %768 = vmatpush1.bf16.msra.mxu0 0
      %769 = vmatprep.subr.bf16.mxu0 0
      %770 = vmatpush1.bf16.msra.mxu0 0
      %771 = vmatprep.subr.bf16.mxu0 0
      %772 = vmatpush1.bf16.msra.mxu0 0
      %773 = vmatprep.subr.bf16.mxu0 0
      %774 = vmatpush1.bf16.msra.mxu0 0
      %775 = vmatprep.mubr.bf16.mxu0 %v648
      %776 = vmatmul.mubr.bf16.gmra.mrb[0].mxu0 %v496
      %v777 = vpop.f32.mrb[0].mxu0
      %v778 = vadd.f32 0.0, %v777
      %v779 = vpop.f32.mrb[0].mxu0
      %v780 = vpop.f32.mrb[0].mxu0
      %v781 = vadd.f32 0.0, %v780
      %v782 = vpop.f32.mrb[0].mxu0
      %783 = vmatprep.mubr.bf16.mxu0 %v651
      %784 = vmatmul.mubr.bf16.gmra.mrb[0].mxu0 %v498
      %v785 = vpop.f32.mrb[0].mxu0
      %v786 = vadd.f32 0.0, %v785
      %v787 = vpop.f32.mrb[0].mxu0
      %v788 = vpop.f32.mrb[0].mxu0
      %v789 = vadd.f32 0.0, %v788
      %v790 = vpop.f32.mrb[0].mxu0
      %791 = vmatprep.mubr.bf16.mxu0 %v654
      %792 = vmatmul.mubr.bf16.gmra.mrb[0].mxu0 %v500
      %v793 = vpop.f32.mrb[0].mxu0
      %v794 = vadd.f32 0.0, %v793
      %v795 = vpop.f32.mrb[0].mxu0
      %v796 = vpop.f32.mrb[0].mxu0
      %v797 = vadd.f32 0.0, %v796
      %v798 = vpop.f32.mrb[0].mxu0
      %799 = vmatprep.mubr.bf16.mxu0 %v657
      %800 = vmatmul.mubr.bf16.gmra.mrb[0].mxu0 %v502
      %v801 = vpop.f32.mrb[0].mxu0
      %v802 = vadd.f32 0.0, %v801
      %v803 = vpop.f32.mrb[0].mxu0
      %v804 = vpop.f32.mrb[0].mxu0
      %v805 = vadd.f32 0.0, %v804
      %v806 = vpop.f32.mrb[0].mxu0
      %807 = vmatprep.mubr.bf16.mxu0 %v660
      %808 = vmatmul.mubr.bf16.gmra.mrb[0].mxu0 %v504
      %v809 = vpop.f32.mrb[0].mxu0
      %v810 = vadd.f32 0.0, %v809
      %v811 = vpop.f32.mrb[0].mxu0
      %v812 = vpop.f32.mrb[0].mxu0
      %v813 = vadd.f32 0.0, %v812
      %v814 = vpop.f32.mrb[0].mxu0
      %815 = vmatprep.mubr.bf16.mxu0 %v663
      %816 = vmatmul.mubr.bf16.gmra.mrb[0].mxu0 %v506
      %v817 = vpop.f32.mrb[0].mxu0
      %v818 = vadd.f32 0.0, %v817
      %v819 = vpop.f32.mrb[0].mxu0
      %v820 = vpop.f32.mrb[0].mxu0
      %v821 = vadd.f32 0.0, %v820
      %v822 = vpop.f32.mrb[0].mxu0
      %823 = vmatprep.mubr.bf16.mxu0 %v666
      %824 = vmatmul.mubr.bf16.gmra.mrb[0].mxu0 %v508
      %v825 = vpop.f32.mrb[0].mxu0
      %v826 = vadd.f32 0.0, %v825
      %v827 = vpop.f32.mrb[0].mxu0
      %v828 = vpop.f32.mrb[0].mxu0
      %v829 = vadd.f32 0.0, %v828
      %v830 = vpop.f32.mrb[0].mxu0
      %831 = vmatprep.mubr.bf16.mxu0 %v669
      %832 = vmatmul.mubr.bf16.gmra.mrb[0].mxu0 %v510
      %v833 = vpop.f32.mrb[0].mxu0
      %v834 = vadd.f32 0.0, %v833
      %v835 = vpop.f32.mrb[0].mxu0
      %v836 = vpop.f32.mrb[0].mxu0
      %v837 = vadd.f32 0.0, %v836
      %v838 = vpop.f32.mrb[0].mxu0
      %839 = vmatprep.mubr.bf16.mxu0 %v672
      %840 = vmatmul.mubr.bf16.gmra.mrb[0].mxu0 %v512
      %v841 = vpop.f32.mrb[0].mxu0
      %v842 = vadd.f32 0.0, %v841
      %v843 = vpop.f32.mrb[0].mxu0
      %v844 = vpop.f32.mrb[0].mxu0
      %v845 = vadd.f32 0.0, %v844
      %v846 = vpop.f32.mrb[0].mxu0
      %847 = vmatprep.mubr.bf16.mxu0 %v675
      %848 = vmatmul.mubr.bf16.gmra.mrb[0].mxu0 %v514
      %v849 = vpop.f32.mrb[0].mxu0
      %v850 = vadd.f32 0.0, %v849
      %v851 = vpop.f32.mrb[0].mxu0
      %v852 = vpop.f32.mrb[0].mxu0
      %v853 = vadd.f32 0.0, %v852
      %v854 = vpop.f32.mrb[0].mxu0
      %855 = vmatprep.mubr.bf16.mxu0 %v678
      %856 = vmatmul.mubr.bf16.gmra.mrb[0].mxu0 %v516
      %v857 = vpop.f32.mrb[0].mxu0
      %v858 = vadd.f32 0.0, %v857
      %v859 = vpop.f32.mrb[0].mxu0
      %v860 = vpop.f32.mrb[0].mxu0
      %v861 = vadd.f32 0.0, %v860
      %v862 = vpop.f32.mrb[0].mxu0
      %863 = vmatprep.mubr.bf16.mxu0 %v681
      %864 = vmatmul.mubr.bf16.gmra.mrb[0].mxu0 %v518
      %v865 = vpop.f32.mrb[0].mxu0
      %v866 = vadd.f32 0.0, %v865
      %v867 = vpop.f32.mrb[0].mxu0
      %v868 = vpop.f32.mrb[0].mxu0
      %v869 = vadd.f32 0.0, %v868
      %v870 = vpop.f32.mrb[0].mxu0
      %871 = vmatprep.mubr.bf16.mxu0 %v684
      %872 = vmatmul.mubr.bf16.gmra.mrb[0].mxu0 %v520
      %v873 = vpop.f32.mrb[0].mxu0
      %v874 = vadd.f32 0.0, %v873
      %v875 = vpop.f32.mrb[0].mxu0
      %v876 = vpop.f32.mrb[0].mxu0
      %v877 = vadd.f32 0.0, %v876
      %v878 = vpop.f32.mrb[0].mxu0
      %879 = vmatprep.mubr.bf16.mxu0 %v687
      %880 = vmatmul.mubr.bf16.gmra.mrb[0].mxu0 %v522
      %v881 = vpop.f32.mrb[0].mxu0
      %v882 = vadd.f32 0.0, %v881
      %v883 = vpop.f32.mrb[0].mxu0
      %v884 = vpop.f32.mrb[0].mxu0
      %v885 = vadd.f32 0.0, %v884
      %v886 = vpop.f32.mrb[0].mxu0
      %887 = vmatprep.mubr.bf16.mxu0 %v690
      %888 = vmatmul.mubr.bf16.gmra.mrb[0].mxu0 %v524
      %v889 = vpop.f32.mrb[0].mxu0
      %v890 = vadd.f32 0.0, %v889
      %v891 = vpop.f32.mrb[0].mxu0
      %v892 = vpop.f32.mrb[0].mxu0
      %v893 = vadd.f32 0.0, %v892
      %v894 = vpop.f32.mrb[0].mxu0
      %895 = vmatprep.mubr.bf16.mxu0 %v693
      %896 = vmatmul.mubr.bf16.gmra.mrb[0].mxu0 %v526
      %v897 = vpop.f32.mrb[0].mxu0
      %v898 = vadd.f32 0.0, %v897
      %v899 = vpop.f32.mrb[0].mxu0
      %v900 = vpop.f32.mrb[0].mxu0
      %v901 = vadd.f32 0.0, %v900
      %v902 = vpop.f32.mrb[0].mxu0
      %903 = vmatprep.mubr.bf16.mxu0 %v696
      %904 = vmatmul.mubr.bf16.gmra.mrb[0].mxu0 %v528
      %v905 = vpop.f32.mrb[0].mxu0
      %v906 = vadd.f32 0.0, %v905
      %v907 = vpop.f32.mrb[0].mxu0
      %v908 = vpop.f32.mrb[0].mxu0
      %v909 = vadd.f32 0.0, %v908
      %v910 = vpop.f32.mrb[0].mxu0
      %911 = vmatprep.mubr.bf16.mxu0 %v699
      %912 = vmatmul.mubr.bf16.gmra.mrb[0].mxu0 %v530
      %v913 = vpop.f32.mrb[0].mxu0
      %v914 = vadd.f32 0.0, %v913
      %v915 = vpop.f32.mrb[0].mxu0
      %v916 = vpop.f32.mrb[0].mxu0
      %v917 = vadd.f32 0.0, %v916
      %v918 = vpop.f32.mrb[0].mxu0
      %919 = vmatprep.mubr.bf16.mxu0 %v702
      %920 = vmatmul.mubr.bf16.gmra.mrb[0].mxu0 %v532
      %v921 = vpop.f32.mrb[0].mxu0
      %v922 = vadd.f32 0.0, %v921
      %v923 = vpop.f32.mrb[0].mxu0
      %v924 = vpop.f32.mrb[0].mxu0
      %v925 = vadd.f32 0.0, %v924
      %v926 = vpop.f32.mrb[0].mxu0
      %927 = vmatprep.mubr.bf16.mxu0 %v705
      %928 = vmatmul.mubr.bf16.gmra.mrb[0].mxu0 %v534
      %v929 = vpop.f32.mrb[0].mxu0
      %v930 = vadd.f32 0.0, %v929
      %v931 = vpop.f32.mrb[0].mxu0
      %v932 = vpop.f32.mrb[0].mxu0
      %v933 = vadd.f32 0.0, %v932
      %v934 = vpop.f32.mrb[0].mxu0
      %935 = vmatprep.mubr.bf16.mxu0 %v708
      %936 = vmatmul.mubr.bf16.gmra.mrb[0].mxu0 %v536
      %v937 = vpop.f32.mrb[0].mxu0
      %v938 = vadd.f32 0.0, %v937
      %v939 = vpop.f32.mrb[0].mxu0
      %v940 = vpop.f32.mrb[0].mxu0
      %v941 = vadd.f32 0.0, %v940
      %v942 = vpop.f32.mrb[0].mxu0
      %943 = vmatprep.mubr.bf16.mxu0 %v711
      %944 = vmatmul.mubr.bf16.gmra.mrb[0].mxu0 %v538
      %v945 = vpop.f32.mrb[0].mxu0
      %v946 = vadd.f32 0.0, %v945
      %v947 = vpop.f32.mrb[0].mxu0
      %v948 = vpop.f32.mrb[0].mxu0
      %v949 = vadd.f32 0.0, %v948
      %v950 = vpop.f32.mrb[0].mxu0
      %951 = vmatprep.mubr.bf16.mxu0 %v714
      %952 = vmatmul.mubr.bf16.gmra.mrb[0].mxu0 %v540
      %v953 = vpop.f32.mrb[0].mxu0
      %v954 = vadd.f32 0.0, %v953
      %v955 = vpop.f32.mrb[0].mxu0
      %v956 = vpop.f32.mrb[0].mxu0
      %v957 = vadd.f32 0.0, %v956
      %v958 = vpop.f32.mrb[0].mxu0
      %959 = vmatprep.mubr.bf16.mxu0 %v717
      %960 = vmatmul.mubr.bf16.gmra.mrb[0].mxu0 %v542
      %v961 = vpop.f32.mrb[0].mxu0
      %v962 = vadd.f32 0.0, %v961
      %v963 = vpop.f32.mrb[0].mxu0
      %v964 = vpop.f32.mrb[0].mxu0
      %v965 = vadd.f32 0.0, %v964
      %v966 = vpop.f32.mrb[0].mxu0
      %967 = vmatprep.mubr.bf16.mxu0 %v720
      %968 = vmatmul.mubr.bf16.gmra.mrb[0].mxu0 %v544
      %v969 = vpop.f32.mrb[0].mxu0
      %v970 = vadd.f32 0.0, %v969
      %v971 = vpop.f32.mrb[0].mxu0
      %v972 = vpop.f32.mrb[0].mxu0
      %v973 = vadd.f32 0.0, %v972
      %v974 = vpop.f32.mrb[0].mxu0
      %975 = vmatprep.mubr.bf16.mxu0 %v723
      %976 = vmatmul.mubr.bf16.gmra.mrb[0].mxu0 %v546
      %v977 = vpop.f32.mrb[0].mxu0
      %v978 = vadd.f32 0.0, %v977
      %v979 = vpop.f32.mrb[0].mxu0
      %v980 = vpop.f32.mrb[0].mxu0
      %v981 = vadd.f32 0.0, %v980
      %v982 = vpop.f32.mrb[0].mxu0
      %983 = vmatprep.mubr.bf16.mxu0 %v726
      %984 = vmatmul.mubr.bf16.gmra.mrb[0].mxu0 %v548
      %v985 = vpop.f32.mrb[0].mxu0
      %v986 = vadd.f32 0.0, %v985
      %v987 = vpop.f32.mrb[0].mxu0
      %v988 = vpop.f32.mrb[0].mxu0
      %v989 = vadd.f32 0.0, %v988
      %v990 = vpop.f32.mrb[0].mxu0
      %991 = vmatprep.mubr.bf16.mxu0 %v729
      %992 = vmatmul.mubr.bf16.gmra.mrb[0].mxu0 %v550
      %v993 = vpop.f32.mrb[0].mxu0
      %v994 = vadd.f32 0.0, %v993
      %v995 = vpop.f32.mrb[0].mxu0
      %v996 = vpop.f32.mrb[0].mxu0
      %v997 = vadd.f32 0.0, %v996
      %v998 = vpop.f32.mrb[0].mxu0
      %999 = vmatprep.mubr.bf16.mxu0 %v732
      %1000 = vmatmul.mubr.bf16.gmra.mrb[0].mxu0 %v552
      %v1001 = vpop.f32.mrb[0].mxu0
      %v1002 = vadd.f32 0.0, %v1001
      %v1003 = vpop.f32.mrb[0].mxu0
      %v1004 = vpop.f32.mrb[0].mxu0
      %v1005 = vadd.f32 0.0, %v1004
      %v1006 = vpop.f32.mrb[0].mxu0
      %1007 = vmatprep.mubr.bf16.mxu0 %v735
      %1008 = vmatmul.mubr.bf16.gmra.mrb[0].mxu0 %v554
      %v1009 = vpop.f32.mrb[0].mxu0
      %v1010 = vadd.f32 0.0, %v1009
      %v1011 = vpop.f32.mrb[0].mxu0
      %v1012 = vpop.f32.mrb[0].mxu0
      %v1013 = vadd.f32 0.0, %v1012
      %v1014 = vpop.f32.mrb[0].mxu0
      %1015 = vmatprep.mubr.bf16.mxu0 %v738
      %1016 = vmatmul.mubr.bf16.gmra.mrb[0].mxu0 %v556
      %v1017 = vpop.f32.mrb[0].mxu0
      %v1018 = vadd.f32 0.0, %v1017
      %v1019 = vpop.f32.mrb[0].mxu0
      %v1020 = vpop.f32.mrb[0].mxu0
      %v1021 = vadd.f32 0.0, %v1020
      %v1022 = vpop.f32.mrb[0].mxu0
      %1023 = vmatprep.mubr.bf16.mxu0 %v741
      %1024 = vmatmul.mubr.bf16.gmra.mrb[0].mxu0 %v558
      %v1025 = vpop.f32.mrb[0].mxu0
      %v1026 = vadd.f32 0.0, %v1025
      %v1027 = vpop.f32.mrb[0].mxu0
      %v1028 = vpop.f32.mrb[0].mxu0
      %v1029 = vadd.f32 0.0, %v1028
      %v1030 = vpop.f32.mrb[0].mxu0
      %1031 = vdwg.mxu0
      %1032 = vst [vmem:[%s213] sm:$0xff] %v778
      %1033 = vst [vmem:[%s213 + $0x8] sm:$0xff] %v781
      %1034 = vst [vmem:[%s213 + $0x10] sm:$0xff] %v786
      %1035 = vst [vmem:[%s213 + $0x18] sm:$0xff] %v789
      %1036 = vst [vmem:[%s213 + $0x20] sm:$0xff] %v794
      %1037 = vst [vmem:[%s213 + $0x28] sm:$0xff] %v797
      %1038 = vst [vmem:[%s213 + $0x30] sm:$0xff] %v802
      %1039 = vst [vmem:[%s213 + $0x38] sm:$0xff] %v805
      %1040 = vst [vmem:[%s213 + $0x40] sm:$0xff] %v810
      %1041 = vst [vmem:[%s213 + $0x48] sm:$0xff] %v813
      %1042 = vst [vmem:[%s213 + $0x50] sm:$0xff] %v818
      %1043 = vst [vmem:[%s213 + $0x58] sm:$0xff] %v821
      %1044 = vst [vmem:[%s213 + $0x60] sm:$0xff] %v826
      %1045 = vst [vmem:[%s213 + $0x68] sm:$0xff] %v829
      %1046 = vst [vmem:[%s213 + $0x70] sm:$0xff] %v834
      %1047 = vst [vmem:[%s213 + $0x78] sm:$0xff] %v837
      %1048 = vst [vmem:[%s213 + $0x80] sm:$0xff] %v842
      %1049 = vst [vmem:[%s213 + $0x88] sm:$0xff] %v845
      %1050 = vst [vmem:[%s213 + $0x90] sm:$0xff] %v850
      %1051 = vst [vmem:[%s213 + $0x98] sm:$0xff] %v853
      %1052 = vst [vmem:[%s213 + $0xa0] sm:$0xff] %v858
      %1053 = vst [vmem:[%s213 + $0xa8] sm:$0xff] %v861
      %1054 = vst [vmem:[%s213 + $0xb0] sm:$0xff] %v866
      %1055 = vst [vmem:[%s213 + $0xb8] sm:$0xff] %v869
      %1056 = vst [vmem:[%s213 + $0xc0] sm:$0xff] %v874
      %1057 = vst [vmem:[%s213 + $0xc8] sm:$0xff] %v877
      %1058 = vst [vmem:[%s213 + $0xd0] sm:$0xff] %v882
      %1059 = vst [vmem:[%s213 + $0xd8] sm:$0xff] %v885
      %1060 = vst [vmem:[%s213 + $0xe0] sm:$0xff] %v890
      %1061 = vst [vmem:[%s213 + $0xe8] sm:$0xff] %v893
      %1062 = vst [vmem:[%s213 + $0xf0] sm:$0xff] %v898
      %1063 = vst [vmem:[%s213 + $0xf8] sm:$0xff] %v901
      %1064 = vst [vmem:[%s213 + $0x100] sm:$0xff] %v906
      %1065 = vst [vmem:[%s213 + $0x108] sm:$0xff] %v909
      %1066 = vst [vmem:[%s213 + $0x110] sm:$0xff] %v914
      %1067 = vst [vmem:[%s213 + $0x118] sm:$0xff] %v917
      %1068 = vst [vmem:[%s213 + $0x120] sm:$0xff] %v922
      %1069 = vst [vmem:[%s213 + $0x128] sm:$0xff] %v925
      %1070 = vst [vmem:[%s213 + $0x130] sm:$0xff] %v930
      %1071 = vst [vmem:[%s213 + $0x138] sm:$0xff] %v933
      %1072 = vst [vmem:[%s213 + $0x140] sm:$0xff] %v938
      %1073 = vst [vmem:[%s213 + $0x148] sm:$0xff] %v941
      %1074 = vst [vmem:[%s213 + $0x150] sm:$0xff] %v946
      %1075 = vst [vmem:[%s213 + $0x158] sm:$0xff] %v949
      %1076 = vst [vmem:[%s213 + $0x160] sm:$0xff] %v954
      %1077 = vst [vmem:[%s213 + $0x168] sm:$0xff] %v957
      %1078 = vst [vmem:[%s213 + $0x170] sm:$0xff] %v962
      %1079 = vst [vmem:[%s213 + $0x178] sm:$0xff] %v965
      %1080 = vst [vmem:[%s213 + $0x180] sm:$0xff] %v970
      %1081 = vst [vmem:[%s213 + $0x188] sm:$0xff] %v973
      %1082 = vst [vmem:[%s213 + $0x190] sm:$0xff] %v978
      %1083 = vst [vmem:[%s213 + $0x198] sm:$0xff] %v981
      %1084 = vst [vmem:[%s213 + $0x1a0] sm:$0xff] %v986
      %1085 = vst [vmem:[%s213 + $0x1a8] sm:$0xff] %v989
      %1086 = vst [vmem:[%s213 + $0x1b0] sm:$0xff] %v994
      %1087 = vst [vmem:[%s213 + $0x1b8] sm:$0xff] %v997
      %1088 = vst [vmem:[%s213 + $0x1c0] sm:$0xff] %v1002
      %1089 = vst [vmem:[%s213 + $0x1c8] sm:$0xff] %v1005
      %1090 = vst [vmem:[%s213 + $0x1d0] sm:$0xff] %v1010
      %1091 = vst [vmem:[%s213 + $0x1d8] sm:$0xff] %v1013
      %1092 = vst [vmem:[%s213 + $0x1e0] sm:$0xff] %v1018
      %1093 = vst [vmem:[%s213 + $0x1e8] sm:$0xff] %v1021
      %1094 = vst [vmem:[%s213 + $0x1f0] sm:$0xff] %v1026
      %1095 = vst [vmem:[%s213 + $0x1f8] sm:$0xff] %v1029
      %v1096 = vadd.f32 %v778, %v781
      %v1097 = vadd.f32 %v1096, %v786
      %v1098 = vadd.f32 %v1097, %v789
      %v1099 = vadd.f32 %v1098, %v794
      %v1100 = vadd.f32 %v1099, %v797
      %v1101 = vadd.f32 %v1100, %v802
      %v1102 = vadd.f32 %v1101, %v805
      %v1103 = vadd.f32 %v1102, %v810
      %v1104 = vadd.f32 %v1103, %v813
      %v1105 = vadd.f32 %v1104, %v818
      %v1106 = vadd.f32 %v1105, %v821
      %v1107 = vadd.f32 %v1106, %v826
      %v1108 = vadd.f32 %v1107, %v829
      %v1109 = vadd.f32 %v1108, %v834
      %v1110 = vadd.f32 %v1109, %v837
      %v1111 = vadd.f32 %v1110, %v842
      %v1112 = vadd.f32 %v1111, %v845
      %v1113 = vadd.f32 %v1112, %v850
      %v1114 = vadd.f32 %v1113, %v853
      %v1115 = vadd.f32 %v1114, %v858
      %v1116 = vadd.f32 %v1115, %v861
      %v1117 = vadd.f32 %v1116, %v866
      %v1118 = vadd.f32 %v1117, %v869
      %v1119 = vadd.f32 %v1118, %v874
      %v1120 = vadd.f32 %v1119, %v877
      %v1121 = vadd.f32 %v1120, %v882
      %v1122 = vadd.f32 %v1121, %v885
      %v1123 = vadd.f32 %v1122, %v890
      %v1124 = vadd.f32 %v1123, %v893
      %v1125 = vadd.f32 %v1124, %v898
      %v1126 = vadd.f32 %v1125, %v901
      %v1127 = vadd.f32 %v1126, %v906
      %v1128 = vadd.f32 %v1127, %v909
      %v1129 = vadd.f32 %v1128, %v914
      %v1130 = vadd.f32 %v1129, %v917
      %v1131 = vadd.f32 %v1130, %v922
      %v1132 = vadd.f32 %v1131, %v925
      %v1133 = vadd.f32 %v1132, %v930
      %v1134 = vadd.f32 %v1133, %v933
      %v1135 = vadd.f32 %v1134, %v938
      %v1136 = vadd.f32 %v1135, %v941
      %v1137 = vadd.f32 %v1136, %v946
      %v1138 = vadd.f32 %v1137, %v949
      %v1139 = vadd.f32 %v1138, %v954
      %v1140 = vadd.f32 %v1139, %v957
      %v1141 = vadd.f32 %v1140, %v962
      %v1142 = vadd.f32 %v1141, %v965
      %v1143 = vadd.f32 %v1142, %v970
      %v1144 = vadd.f32 %v1143, %v973
      %v1145 = vadd.f32 %v1144, %v978
      %v1146 = vadd.f32 %v1145, %v981
      %v1147 = vadd.f32 %v1146, %v986
      %v1148 = vadd.f32 %v1147, %v989
      %v1149 = vadd.f32 %v1148, %v994
      %v1150 = vadd.f32 %v1149, %v997
      %v1151 = vadd.f32 %v1150, %v1002
      %v1152 = vadd.f32 %v1151, %v1005
      %v1153 = vadd.f32 %v1152, %v1010
      %v1154 = vadd.f32 %v1153, %v1013
      %v1155 = vadd.f32 %v1154, %v1018
      %v1156 = vadd.f32 %v1155, %v1021
      %v1157 = vadd.f32 %v1156, %v1026
      %v1158 = vadd.f32 %v1157, %v1029
      %v1159 = vrot.slane %v1158, 4
      %v1160 = vadd.f32 %v1158, %v1159
      %v1161 = vrot.slane %v1160, 2
      %v1162 = vadd.f32 %v1160, %v1161
      %v1163 = vrot.slane %v1162, 1
      %v1164 = vadd.f32 %v1162, %v1163
      %1165 = vst [vmem:[%s217] sm:$0x1] %v1164
      %v1166 = vmul.f32 %v778, %v778
      %v1167 = vmul.f32 %v781, %v781
      %v1168 = vmul.f32 %v786, %v786
      %v1169 = vmul.f32 %v789, %v789
      %v1170 = vmul.f32 %v794, %v794
      %v1171 = vmul.f32 %v797, %v797
      %v1172 = vmul.f32 %v802, %v802
      %v1173 = vmul.f32 %v805, %v805
      %v1174 = vmul.f32 %v810, %v810
      %v1175 = vmul.f32 %v813, %v813
      %v1176 = vmul.f32 %v818, %v818
      %v1177 = vmul.f32 %v821, %v821
      %v1178 = vmul.f32 %v826, %v826
      %v1179 = vmul.f32 %v829, %v829
      %v1180 = vmul.f32 %v834, %v834
      %v1181 = vmul.f32 %v837, %v837
      %v1182 = vmul.f32 %v842, %v842
      %v1183 = vmul.f32 %v845, %v845
      %v1184 = vmul.f32 %v850, %v850
      %v1185 = vmul.f32 %v853, %v853
      %v1186 = vmul.f32 %v858, %v858
      %v1187 = vmul.f32 %v861, %v861
      %v1188 = vmul.f32 %v866, %v866
      %v1189 = vmul.f32 %v869, %v869
      %v1190 = vmul.f32 %v874, %v874
      %v1191 = vmul.f32 %v877, %v877
      %v1192 = vmul.f32 %v882, %v882
      %v1193 = vmul.f32 %v885, %v885
      %v1194 = vmul.f32 %v890, %v890
      %v1195 = vmul.f32 %v893, %v893
      %v1196 = vmul.f32 %v898, %v898
      %v1197 = vmul.f32 %v901, %v901
      %v1198 = vmul.f32 %v906, %v906
      %v1199 = vmul.f32 %v909, %v909
      %v1200 = vmul.f32 %v914, %v914
      %v1201 = vmul.f32 %v917, %v917
      %v1202 = vmul.f32 %v922, %v922
      %v1203 = vmul.f32 %v925, %v925
      %v1204 = vmul.f32 %v930, %v930
      %v1205 = vmul.f32 %v933, %v933
      %v1206 = vmul.f32 %v938, %v938
      %v1207 = vmul.f32 %v941, %v941
      %v1208 = vmul.f32 %v946, %v946
      %v1209 = vmul.f32 %v949, %v949
      %v1210 = vmul.f32 %v954, %v954
      %v1211 = vmul.f32 %v957, %v957
      %v1212 = vmul.f32 %v962, %v962
      %v1213 = vmul.f32 %v965, %v965
      %v1214 = vmul.f32 %v970, %v970
      %v1215 = vmul.f32 %v973, %v973
      %v1216 = vmul.f32 %v978, %v978
      %v1217 = vmul.f32 %v981, %v981
      %v1218 = vmul.f32 %v986, %v986
      %v1219 = vmul.f32 %v989, %v989
      %v1220 = vmul.f32 %v994, %v994
      %v1221 = vmul.f32 %v997, %v997
      %v1222 = vmul.f32 %v1002, %v1002
      %v1223 = vmul.f32 %v1005, %v1005
      %v1224 = vmul.f32 %v1010, %v1010
      %v1225 = vmul.f32 %v1013, %v1013
      %v1226 = vmul.f32 %v1018, %v1018
      %v1227 = vmul.f32 %v1021, %v1021
      %v1228 = vmul.f32 %v1026, %v1026
      %v1229 = vmul.f32 %v1029, %v1029
      %v1230 = vadd.f32 %v1166, %v1167
      %v1231 = vadd.f32 %v1230, %v1168
      %v1232 = vadd.f32 %v1231, %v1169
      %v1233 = vadd.f32 %v1232, %v1170
      %v1234 = vadd.f32 %v1233, %v1171
      %v1235 = vadd.f32 %v1234, %v1172
      %v1236 = vadd.f32 %v1235, %v1173
      %v1237 = vadd.f32 %v1236, %v1174
      %v1238 = vadd.f32 %v1237, %v1175
      %v1239 = vadd.f32 %v1238, %v1176
      %v1240 = vadd.f32 %v1239, %v1177
      %v1241 = vadd.f32 %v1240, %v1178
      %v1242 = vadd.f32 %v1241, %v1179
      %v1243 = vadd.f32 %v1242, %v1180
      %v1244 = vadd.f32 %v1243, %v1181
      %v1245 = vadd.f32 %v1244, %v1182
      %v1246 = vadd.f32 %v1245, %v1183
      %v1247 = vadd.f32 %v1246, %v1184
      %v1248 = vadd.f32 %v1247, %v1185
      %v1249 = vadd.f32 %v1248, %v1186
      %v1250 = vadd.f32 %v1249, %v1187
      %v1251 = vadd.f32 %v1250, %v1188
      %v1252 = vadd.f32 %v1251, %v1189
      %v1253 = vadd.f32 %v1252, %v1190
      %v1254 = vadd.f32 %v1253, %v1191
      %v1255 = vadd.f32 %v1254, %v1192
      %v1256 = vadd.f32 %v1255, %v1193
      %v1257 = vadd.f32 %v1256, %v1194
      %v1258 = vadd.f32 %v1257, %v1195
      %v1259 = vadd.f32 %v1258, %v1196
      %v1260 = vadd.f32 %v1259, %v1197
      %v1261 = vadd.f32 %v1260, %v1198
      %v1262 = vadd.f32 %v1261, %v1199
      %v1263 = vadd.f32 %v1262, %v1200
      %v1264 = vadd.f32 %v1263, %v1201
      %v1265 = vadd.f32 %v1264, %v1202
      %v1266 = vadd.f32 %v1265, %v1203
      %v1267 = vadd.f32 %v1266, %v1204
      %v1268 = vadd.f32 %v1267, %v1205
      %v1269 = vadd.f32 %v1268, %v1206
      %v1270 = vadd.f32 %v1269, %v1207
      %v1271 = vadd.f32 %v1270, %v1208
      %v1272 = vadd.f32 %v1271, %v1209
      %v1273 = vadd.f32 %v1272, %v1210
      %v1274 = vadd.f32 %v1273, %v1211
      %v1275 = vadd.f32 %v1274, %v1212
      %v1276 = vadd.f32 %v1275, %v1213
      %v1277 = vadd.f32 %v1276, %v1214
      %v1278 = vadd.f32 %v1277, %v1215
      %v1279 = vadd.f32 %v1278, %v1216
      %v1280 = vadd.f32 %v1279, %v1217
      %v1281 = vadd.f32 %v1280, %v1218
      %v1282 = vadd.f32 %v1281, %v1219
      %v1283 = vadd.f32 %v1282, %v1220
      %v1284 = vadd.f32 %v1283, %v1221
      %v1285 = vadd.f32 %v1284, %v1222
      %v1286 = vadd.f32 %v1285, %v1223
      %v1287 = vadd.f32 %v1286, %v1224
      %v1288 = vadd.f32 %v1287, %v1225
      %v1289 = vadd.f32 %v1288, %v1226
      %v1290 = vadd.f32 %v1289, %v1227
      %v1291 = vadd.f32 %v1290, %v1228
      %v1292 = vadd.f32 %v1291, %v1229
      %v1293 = vrot.slane %v1292, 4
      %v1294 = vadd.f32 %v1292, %v1293
      %v1295 = vrot.slane %v1294, 2
      %v1296 = vadd.f32 %v1294, %v1295
      %v1297 = vrot.slane %v1296, 1
      %v1298 = vadd.f32 %v1296, %v1297
      %1299 = vst [vmem:[%s220] sm:$0x1] %v1298
      %s1300 = smul.u32 64, %s16
      %p1301 = scmp.lt.s32.totalorder %s1300, 255
      %s1302 = scalar_select %p1301, %s1300, 255
      %s1303 = smul.addr %s1302, 8
      %s1304 = scalar_lea.vmem %s2, %s1303
      %p1305 = scmp.lt.s32.totalorder %s16, 3
      %s1306 = scalar_select %p1305, %s16, 3
      %s1307 = scalar_lea.vmem %s3, %s1306
      %p1308 = scmp.lt.s32.totalorder %s16, 3
      %s1309 = scalar_select %p1308, %s16, 3
      %s1310 = scalar_lea.vmem %s4, %s1309
      // Predicated region
      $region29: #{_lambda_.18} parent=27 // pred_check
        %p1311 = pneg %p81
      $region30: #{_lambda_.18} parent=27 // pred_check_branch
        %1313 = sbr.rel (%p1311) target = $region32
      $region31: #{_lambda_.18} parent=27 // pred_region
        %s1314 = smul.u32 64, %s16
      $region32: #{_lambda_.18} parent=27 // pred_fallthru
        _
      // Predicated region
      $region33: #{_lambda_.18} parent=27 // pred_check
        %p1315 = pneg %p107
      $region34: #{_lambda_.18} parent=27 // pred_check_branch
        %1317 = sbr.rel (%p1315) target = $region36
      $region35: #{_lambda_.18} parent=27 // pred_region
        _
      $region36: #{_lambda_.18} parent=27 // pred_fallthru
        _
      // Predicated region
      $region37: #{_lambda_.18} parent=27 // pred_check
        %p1318 = pneg %p133
      $region38: #{_lambda_.18} parent=27 // pred_check_branch
        %1320 = sbr.rel (%p1318) target = $region40
      $region39: #{_lambda_.18} parent=27 // pred_region
        _
      $region40: #{_lambda_.18} parent=27 // pred_fallthru
        _
    $region28: #{_lambda_.18} parent=5 // pred_fallthru
      _
    %p1321 = scmp.le.s32.totalorder 2, %s11
    // Predicated region
    $region41: #{_lambda_.18} parent=5 // pred_check
      %p1322 = pneg %p1321
    $region42: #{_lambda_.18} parent=5 // pred_check_branch
      %1324 = sbr.rel (%p1322) target = $region44
    $region43: #{_lambda_.18} parent=5 // pred_region
      %s1325 = ssub.s32 %s11, 2
      // Predicated region
      $region45: #{_lambda_.18} parent=43 // pred_check
        %p1326 = pneg %p87
      $region46: #{_lambda_.18} parent=43 // pred_check_branch
        %1328 = sbr.rel (%p1326) target = $region48
      $region47: #{_lambda_.18} parent=43 // pred_region
        %s1329 = smul.u32 64, %s17
        %p1330 = scmp.lt.s32.totalorder %s1329, 255
        %s1331 = scalar_select %p1330, %s1329, 255
        %s1332 = smul.addr %s1331, 8
        %s1333 = scalar_lea.vmem %s2, %s1332
      $region48: #{_lambda_.18} parent=43 // pred_fallthru
        _
      // Predicated region
      $region49: #{_lambda_.18} parent=43 // pred_check
        %p1334 = pneg %p113
      $region50: #{_lambda_.18} parent=43 // pred_check_branch
        %1336 = sbr.rel (%p1334) target = $region52
      $region51: #{_lambda_.18} parent=43 // pred_region
        %p1337 = scmp.lt.s32.totalorder %s17, 3
        %s1338 = scalar_select %p1337, %s17, 3
        %s1339 = scalar_lea.vmem %s3, %s1338
      $region52: #{_lambda_.18} parent=43 // pred_fallthru
        _
      // Predicated region
      $region53: #{_lambda_.18} parent=43 // pred_check
        %p1340 = pneg %p139
      $region54: #{_lambda_.18} parent=43 // pred_check_branch
        %1342 = sbr.rel (%p1340) target = $region56
      $region55: #{_lambda_.18} parent=43 // pred_region
        %p1343 = scmp.lt.s32.totalorder %s17, 3
        %s1344 = scalar_select %p1343, %s17, 3
        %s1345 = scalar_lea.vmem %s4, %s1344
      $region56: #{_lambda_.18} parent=43 // pred_fallthru
        _
    $region44: #{_lambda_.18} parent=5 // pred_fallthru
      _
  $region6: #{_lambda_.18} parent=0 // loop_footer
    %s15 = sadd.s32 1, %s11
  $region7: #{_lambda_.18} parent=0 // loop_footer_branch
    %10 = sbr.rel target = $region3
  $region8: #{_lambda_.18} parent=0 // loop_exit
    _

// kernel: _lambda_.20
$region0: #{_lambda_.20}
  #allocation0 [shape = 'u32[]', space=smem, size = 0x4, offset = 0x4, fixed_abs, tag = 'smem constant byte address 0x4 - core index']
  #allocation1 [shape = 'u32[144,128]{1,0:T(1,128)}', space=vmem, size = 0x12000, scoped, tag = 'internal scratch']
  %s0 = inlined_call_operand.vmem [shape: bf16[2048,144], index: 0, kind: input, shape index: {}]
  %s1 = inlined_call_operand.vmem [shape: bf16[144,128], index: 1, kind: input, shape index: {}]
  %s2 = inlined_call_operand.vmem [shape: f32[2048,128], index: 2, kind: input, shape index: {}]
  %s3 = inlined_call_operand.vmem [shape: f32[1,128], index: 3, kind: input, shape index: {}]
  %s4 = inlined_call_operand.vmem [shape: f32[1,128], index: 4, kind: input, shape index: {}]
  %s5 = inlined_call_operand.vmem [shape: f32[2048,128], index: 5, kind: output, shape index: {0}]
  %s6 = inlined_call_operand.vmem [shape: f32[4,1,128], index: 6, kind: output, shape index: {1}]
  %s7 = inlined_call_operand.vmem [shape: f32[4,1,128], index: 7, kind: output, shape index: {2}]
  %8 = xla_tuple %s5, %s6, %s7
  %s9 = sld [smem:[#allocation0]]
  $region69: #{_lambda_.20} parent=0
    _
  %s11 = ssub.s32 1, %s9
  %s12 = scalar_select 0, %s11, %s9
  loop: start=0, step=1, limit=6
  $region2: #{_lambda_.20} parent=0 // loop_pre_header
    _
  $region3: #{_lambda_.20} parent=0 // loop_header
    %s14 = sphi 0, %s18
    %p15 = scmp.ge.s32.totalorder %s14, 6
    %s24 = sphi 0, %s26
    %s27 = sphi 0, %s24
    %s28 = sphi 0, %s27
    %s44 = sphi 0, %s28
    %s48 = sphi 0, %s48
    %s50 = sphi 0, %s48
    %s51 = sphi 0, %s50
    %s65 = sphi 0, %s51
    %s71 = sphi 0, %s73
    %s74 = sphi 0, %s71
    %s75 = sphi 0, %s74
    %s91 = sphi 0, %s75
    %s95 = sphi 0, %s95
    %s97 = sphi 0, %s95
    %s98 = sphi 0, %s97
    %s112 = sphi 0, %s98
    %s116 = sphi 0, %s116
    %s118 = sphi 0, %s116
    %s119 = sphi 0, %s118
    %s133 = sphi 0, %s119
    %s139 = sphi 0, %s141
    %s142 = sphi 0, %s139
    %s143 = sphi 0, %s142
    %s159 = sphi 0, %s143
    %s165 = sphi 0, %s167
    %s168 = sphi 0, %s165
    %s169 = sphi 0, %s168
    %s185 = sphi 0, %s169
    %s191 = sphi 0, %s193
    %s194 = sphi 0, %s191
    %s195 = sphi 0, %s194
    %s211 = sphi 0, %s195
  $region4: #{_lambda_.20} parent=0 // loop_header_branch
    %17 = sbr.rel (%p15) target = $region8
  $region5: #{_lambda_.20} parent=0 // loop_body
    %s19 = ssub.s32 %s14, 1
    %s20 = ssub.s32 %s14, 2
    %s21 = sadd.s32 %s14, 1
    %s22 = ssub.s32 %s14, %s21
    %p23 = scmp.eq.s32.totalorder %s22, 0
    %s25 = sadd.s32 %s24, 1
    %s26 = scalar_select %p23, %s24, %s25
    %p29 = pneg %p23
    %p30 = scmp.eq.s32.totalorder %s14, 3
    %p31 = por %p29, %p30
    %p32 = scmp.ne.s32.totalorder %s24, %s27
    %p33 = scmp.eq.s32.totalorder %s14, 0
    %p34 = por %p32, %p33
    %p35 = scmp.ne.s32.totalorder %s24, %s27
    %p36 = scmp.eq.s32.totalorder %s19, 3
    %p37 = por %p35, %p36
    %p38 = scmp.ne.s32.totalorder %s27, %s28
    %p39 = scmp.eq.s32.totalorder %s19, 0
    %p40 = por %p38, %p39
    %p41 = scmp.ne.s32.totalorder %s27, %s28
    %p42 = scmp.eq.s32.totalorder %s20, 3
    %p43 = por %p41, %p42
    %p45 = scmp.ne.s32.totalorder %s28, %s44
    %p46 = scmp.eq.s32.totalorder %s20, 0
    %p47 = por %p45, %p46
    %s49 = sadd.s32 %s48, 1
    %p52 = scmp.eq.s32.totalorder %s14, 3
    %p53 = scmp.ne.s32.totalorder %s48, %s50
    %p54 = scmp.eq.s32.totalorder %s14, 0
    %p55 = por %p53, %p54
    %p56 = scmp.ne.s32.totalorder %s48, %s50
    %p57 = scmp.eq.s32.totalorder %s19, 3
    %p58 = por %p56, %p57
    %p59 = scmp.ne.s32.totalorder %s50, %s51
    %p60 = scmp.eq.s32.totalorder %s19, 0
    %p61 = por %p59, %p60
    %p62 = scmp.ne.s32.totalorder %s50, %s51
    %p63 = scmp.eq.s32.totalorder %s20, 3
    %p64 = por %p62, %p63
    %p66 = scmp.ne.s32.totalorder %s51, %s65
    %p67 = scmp.eq.s32.totalorder %s20, 0
    %p68 = por %p66, %p67
    %s69 = ssub.s32 %s14, %s21
    %p70 = scmp.eq.s32.totalorder %s69, 0
    %s72 = sadd.s32 %s71, 1
    %s73 = scalar_select %p70, %s71, %s72
    %p76 = pneg %p70
    %p77 = scmp.eq.s32.totalorder %s14, 3
    %p78 = por %p76, %p77
    %p79 = scmp.ne.s32.totalorder %s71, %s74
    %p80 = scmp.eq.s32.totalorder %s14, 0
    %p81 = por %p79, %p80
    %p82 = scmp.ne.s32.totalorder %s71, %s74
    %p83 = scmp.eq.s32.totalorder %s19, 3
    %p84 = por %p82, %p83
    %p85 = scmp.ne.s32.totalorder %s74, %s75
    %p86 = scmp.eq.s32.totalorder %s19, 0
    %p87 = por %p85, %p86
    %p88 = scmp.ne.s32.totalorder %s74, %s75
    %p89 = scmp.eq.s32.totalorder %s20, 3
    %p90 = por %p88, %p89
    %p92 = scmp.ne.s32.totalorder %s75, %s91
    %p93 = scmp.eq.s32.totalorder %s20, 0
    %p94 = por %p92, %p93
    %s96 = sadd.s32 %s95, 1
    %p99 = scmp.eq.s32.totalorder %s14, 3
    %p100 = scmp.ne.s32.totalorder %s95, %s97
    %p101 = scmp.eq.s32.totalorder %s14, 0
    %p102 = por %p100, %p101
    %p103 = scmp.ne.s32.totalorder %s95, %s97
    %p104 = scmp.eq.s32.totalorder %s19, 3
    %p105 = por %p103, %p104
    %p106 = scmp.ne.s32.totalorder %s97, %s98
    %p107 = scmp.eq.s32.totalorder %s19, 0
    %p108 = por %p106, %p107
    %p109 = scmp.ne.s32.totalorder %s97, %s98
    %p110 = scmp.eq.s32.totalorder %s20, 3
    %p111 = por %p109, %p110
    %p113 = scmp.ne.s32.totalorder %s98, %s112
    %p114 = scmp.eq.s32.totalorder %s20, 0
    %p115 = por %p113, %p114
    %s117 = sadd.s32 %s116, 1
    %p120 = scmp.eq.s32.totalorder %s14, 3
    %p121 = scmp.ne.s32.totalorder %s116, %s118
    %p122 = scmp.eq.s32.totalorder %s14, 0
    %p123 = por %p121, %p122
    %p124 = scmp.ne.s32.totalorder %s116, %s118
    %p125 = scmp.eq.s32.totalorder %s19, 3
    %p126 = por %p124, %p125
    %p127 = scmp.ne.s32.totalorder %s118, %s119
    %p128 = scmp.eq.s32.totalorder %s19, 0
    %p129 = por %p127, %p128
    %p130 = scmp.ne.s32.totalorder %s118, %s119
    %p131 = scmp.eq.s32.totalorder %s20, 3
    %p132 = por %p130, %p131
    %p134 = scmp.ne.s32.totalorder %s119, %s133
    %p135 = scmp.eq.s32.totalorder %s20, 0
    %p136 = por %p134, %p135
    %s137 = ssub.s32 %s14, %s21
    %p138 = scmp.eq.s32.totalorder %s137, 0
    %s140 = sadd.s32 %s139, 1
    %s141 = scalar_select %p138, %s139, %s140
    %p144 = pneg %p138
    %p145 = scmp.eq.s32.totalorder %s14, 3
    %p146 = por %p144, %p145
    %p147 = scmp.ne.s32.totalorder %s139, %s142
    %p148 = scmp.eq.s32.totalorder %s14, 0
    %p149 = por %p147, %p148
    %p150 = scmp.ne.s32.totalorder %s139, %s142
    %p151 = scmp.eq.s32.totalorder %s19, 3
    %p152 = por %p150, %p151
    %p153 = scmp.ne.s32.totalorder %s142, %s143
    %p154 = scmp.eq.s32.totalorder %s19, 0
    %p155 = por %p153, %p154
    %p156 = scmp.ne.s32.totalorder %s142, %s143
    %p157 = scmp.eq.s32.totalorder %s20, 3
    %p158 = por %p156, %p157
    %p160 = scmp.ne.s32.totalorder %s143, %s159
    %p161 = scmp.eq.s32.totalorder %s20, 0
    %p162 = por %p160, %p161
    %s163 = ssub.s32 %s14, %s21
    %p164 = scmp.eq.s32.totalorder %s163, 0
    %s166 = sadd.s32 %s165, 1
    %s167 = scalar_select %p164, %s165, %s166
    %p170 = pneg %p164
    %p171 = scmp.eq.s32.totalorder %s14, 3
    %p172 = por %p170, %p171
    %p173 = scmp.ne.s32.totalorder %s165, %s168
    %p174 = scmp.eq.s32.totalorder %s14, 0
    %p175 = por %p173, %p174
    %p176 = scmp.ne.s32.totalorder %s165, %s168
    %p177 = scmp.eq.s32.totalorder %s19, 3
    %p178 = por %p176, %p177
    %p179 = scmp.ne.s32.totalorder %s168, %s169
    %p180 = scmp.eq.s32.totalorder %s19, 0
    %p181 = por %p179, %p180
    %p182 = scmp.ne.s32.totalorder %s168, %s169
    %p183 = scmp.eq.s32.totalorder %s20, 3
    %p184 = por %p182, %p183
    %p186 = scmp.ne.s32.totalorder %s169, %s185
    %p187 = scmp.eq.s32.totalorder %s20, 0
    %p188 = por %p186, %p187
    %s189 = ssub.s32 %s14, %s21
    %p190 = scmp.eq.s32.totalorder %s189, 0
    %s192 = sadd.s32 %s191, 1
    %s193 = scalar_select %p190, %s191, %s192
    %p196 = pneg %p190
    %p197 = scmp.eq.s32.totalorder %s14, 3
    %p198 = por %p196, %p197
    %p199 = scmp.ne.s32.totalorder %s191, %s194
    %p200 = scmp.eq.s32.totalorder %s14, 0
    %p201 = por %p199, %p200
    %p202 = scmp.ne.s32.totalorder %s191, %s194
    %p203 = scmp.eq.s32.totalorder %s19, 3
    %p204 = por %p202, %p203
    %p205 = scmp.ne.s32.totalorder %s194, %s195
    %p206 = scmp.eq.s32.totalorder %s19, 0
    %p207 = por %p205, %p206
    %p208 = scmp.ne.s32.totalorder %s194, %s195
    %p209 = scmp.eq.s32.totalorder %s20, 3
    %p210 = por %p208, %p209
    %p212 = scmp.ne.s32.totalorder %s195, %s211
    %p213 = scmp.eq.s32.totalorder %s20, 0
    %p214 = por %p212, %p213
    %p215 = scmp.le.s32.totalorder 1, %s14
    %p216 = scmp.lt.s32.totalorder %s14, 5
    %p217 = pnand %p215, %p216
    %p218 = pneg %p217
    // Predicated region
    $region9: #{_lambda_.20} parent=5 // pred_check
      _
    $region10: #{_lambda_.20} parent=5 // pred_check_branch
      %220 = sbr.rel (%p217) target = $region12
    $region11: #{_lambda_.20} parent=5 // pred_region
      %s221 = ssub.s32 %s14, 1
      // Predicated region
      $region13: #{_lambda_.20} parent=11 // pred_check
        %p222 = pneg %p61
      $region14: #{_lambda_.20} parent=11 // pred_check_branch
        %224 = sbr.rel (%p222) target = $region16
      $region15: #{_lambda_.20} parent=11 // pred_region
        _
      $region16: #{_lambda_.20} parent=11 // pred_fallthru
        _
      // Predicated region
      $region17: #{_lambda_.20} parent=11 // pred_check
        %p225 = pneg %p108
      $region18: #{_lambda_.20} parent=11 // pred_check_branch
        %227 = sbr.rel (%p225) target = $region20
      $region19: #{_lambda_.20} parent=11 // pred_region
        _
      $region20: #{_lambda_.20} parent=11 // pred_fallthru
        _
      // Predicated region
      $region21: #{_lambda_.20} parent=11 // pred_check
        %p228 = pneg %p129
      $region22: #{_lambda_.20} parent=11 // pred_check_branch
        %230 = sbr.rel (%p228) target = $region24
      $region23: #{_lambda_.20} parent=11 // pred_region
        _
      $region24: #{_lambda_.20} parent=11 // pred_fallthru
        _
    $region12: #{_lambda_.20} parent=5 // pred_fallthru
      _
    %p231 = scmp.lt.s32.totalorder %s14, 4
    // Predicated region
    $region25: #{_lambda_.20} parent=5 // pred_check
      %p232 = pneg %p231
    $region26: #{_lambda_.20} parent=5 // pred_check_branch
      %234 = sbr.rel (%p232) target = $region28
    $region27: #{_lambda_.20} parent=5 // pred_region
      // Predicated region
      $region29: #{_lambda_.20} parent=27 // pred_check
        %p235 = pneg %p34
      $region30: #{_lambda_.20} parent=27 // pred_check_branch
        %237 = sbr.rel (%p235) target = $region32
      $region31: #{_lambda_.20} parent=27 // pred_region
        %s238 = smul.u32 64, %s14
        %p239 = scmp.lt.s32.totalorder %s238, 255
        %s240 = scalar_select %p239, %s238, 255
        %s241 = smul.addr %s240, 2
        %s242 = smul.addr %s241, 4
        %s243 = scalar_lea.vmem %s0, %s242
        %s244 = smul.u32 64, %s14
      $region32: #{_lambda_.20} parent=27 // pred_fallthru
        _
      // Predicated region
      $region33: #{_lambda_.20} parent=27 // pred_check
        %p245 = pneg %p81
      $region34: #{_lambda_.20} parent=27 // pred_check_branch
        %247 = sbr.rel (%p245) target = $region36
      $region35: #{_lambda_.20} parent=27 // pred_region
        %s248 = smul.u32 64, %s14
        %p249 = scmp.lt.s32.totalorder %s248, 255
        %s250 = scalar_select %p249, %s248, 255
        %s251 = smul.addr %s250, 8
        %s252 = scalar_lea.vmem %s2, %s251
        %s253 = smul.u32 64, %s14
      $region36: #{_lambda_.20} parent=27 // pred_fallthru
        _
    $region28: #{_lambda_.20} parent=5 // pred_fallthru
      _
    %p254 = scmp.le.s32.totalorder 1, %s14
    %p255 = scmp.lt.s32.totalorder %s14, 5
    %p256 = pnand %p254, %p255
    %p257 = pneg %p256
    // Predicated region
    $region37: #{_lambda_.20} parent=5 // pred_check
      _
    $region38: #{_lambda_.20} parent=5 // pred_check_branch
      %259 = sbr.rel (%p256) target = $region40
    $region39: #{_lambda_.20} parent=5 // pred_region
      %s260 = ssub.s32 %s14, 1
      %s261 = smul.u32 64, %s19
      %p262 = scmp.lt.s32.totalorder %s261, 255
      %s263 = scalar_select %p262, %s261, 255
      %s264 = smul.addr %s263, 2
      %s265 = smul.addr %s264, 4
      %s266 = scalar_lea.vmem %s0, %s265
      %p267 = pneg %p40
      %p268 = pneg %p37
      %p269 = pneg %p61
      %p270 = pneg %p58
      %s271 = smul.u32 64, %s19
      %p272 = scmp.lt.s32.totalorder %s271, 255
      %s273 = scalar_select %p272, %s271, 255
      %s274 = smul.addr %s273, 8
      %s275 = scalar_lea.vmem %s2, %s274
      %p276 = pneg %p87
      %p277 = pneg %p84
      %p278 = pneg %p108
      %p279 = pneg %p105
      %p280 = pneg %p129
      %p281 = pneg %p126
      %p282 = pneg %p155
      %p283 = pneg %p152
      %s284 = smul.u32 64, %s19
      %p285 = scmp.lt.s32.totalorder %s284, 255
      %s286 = scalar_select %p285, %s284, 255
      %s287 = smul.addr %s286, 8
      %s288 = scalar_lea.vmem %s5, %s287
      %p289 = pneg %p181
      %p290 = pneg %p178
      %p291 = scmp.lt.s32.totalorder %s19, 3
      %s292 = scalar_select %p291, %s19, 3
      %s293 = scalar_lea.vmem %s6, %s292
      %p294 = pneg %p207
      %p295 = pneg %p204
      %p296 = scmp.lt.s32.totalorder %s19, 3
      %s297 = scalar_select %p296, %s19, 3
      %s298 = scalar_lea.vmem %s7, %s297
      %s299 = smul.u32 64, %s19
      %p300 = scmp.lt.s32.totalorder %s299, 255
      %s301 = scalar_select %p300, %s299, 255
      %s302 = smul.addr %s301, 2
      %s303 = smul.addr %s302, 4
      %s304 = scalar_lea.vmem %s0, %s303
      %s305 = smul.u32 64, %s19
      %s306 = smul.u32 64, %s19
      %p307 = scmp.lt.s32.totalorder %s306, 255
      %s308 = scalar_select %p307, %s306, 255
      %s309 = smul.addr %s308, 8
      %s310 = scalar_lea.vmem %s2, %s309
      %s311 = smul.u32 64, %s19
      %s312 = smul.u32 64, %s19
      %p313 = scmp.lt.s32.totalorder %s312, 255
      %s314 = scalar_select %p313, %s312, 255
      %s315 = smul.addr %s314, 8
      %s316 = scalar_lea.vmem %s5, %s315
      %s317 = smul.u32 64, %s19
      %p318 = scmp.lt.s32.totalorder %s19, 3
      %s319 = scalar_select %p318, %s19, 3
      %s320 = scalar_lea.vmem %s6, %s319
      %p321 = scmp.lt.s32.totalorder %s19, 3
      %s322 = scalar_select %p321, %s19, 3
      %s323 = scalar_lea.vmem %s7, %s322
      %v325 = vld [vmem:[%s304] sm:$0xff]
      %v326 = vld [vmem:[%s304 + $0x8] sm:$0xff]
      %v327 = vld [vmem:[%s304 + $0x10] sm:$0xff]
      %v328 = vld [vmem:[%s304 + $0x18] sm:$0xff]
      %v329 = vld [vmem:[%s304 + $0x20] sm:$0xff]
      %v330 = vld [vmem:[%s304 + $0x28] sm:$0xff]
      %v331 = vld [vmem:[%s304 + $0x30] sm:$0xff]
      %v332 = vld [vmem:[%s304 + $0x38] sm:$0xff]
      %v333 = vld [vmem:[%s304 + $0x40] sm:$0xff]
      %v334 = vld [vmem:[%s304 + $0x48] sm:$0xff]
      %v335 = vld [vmem:[%s304 + $0x50] sm:$0xff]
      %v336 = vld [vmem:[%s304 + $0x58] sm:$0xff]
      %v337 = vld [vmem:[%s304 + $0x60] sm:$0xff]
      %v338 = vld [vmem:[%s304 + $0x68] sm:$0xff]
      %v339 = vld [vmem:[%s304 + $0x70] sm:$0xff]
      %v340 = vld [vmem:[%s304 + $0x78] sm:$0xff]
      %v341 = vld [vmem:[%s304 + $0x80] sm:$0xff]
      %v342 = vld [vmem:[%s304 + $0x88] sm:$0xff]
      %v343 = vld [vmem:[%s304 + $0x90] sm:$0xff]
      %v344 = vld [vmem:[%s304 + $0x98] sm:$0xff]
      %v345 = vld [vmem:[%s304 + $0xa0] sm:$0xff]
      %v346 = vld [vmem:[%s304 + $0xa8] sm:$0xff]
      %v347 = vld [vmem:[%s304 + $0xb0] sm:$0xff]
      %v348 = vld [vmem:[%s304 + $0xb8] sm:$0xff]
      %v349 = vld [vmem:[%s304 + $0xc0] sm:$0xff]
      %v350 = vld [vmem:[%s304 + $0xc8] sm:$0xff]
      %v351 = vld [vmem:[%s304 + $0xd0] sm:$0xff]
      %v352 = vld [vmem:[%s304 + $0xd8] sm:$0xff]
      %v353 = vld [vmem:[%s304 + $0xe0] sm:$0xff]
      %v354 = vld [vmem:[%s304 + $0xe8] sm:$0xff]
      %v355 = vld [vmem:[%s304 + $0xf0] sm:$0xff]
      %v356 = vld [vmem:[%s304 + $0xf8] sm:$0xff]
      %v357 = vld [vmem:[%s304 + $0x100] sm:$0xff]
      %v358 = vld [vmem:[%s304 + $0x108] sm:$0xff]
      %v359 = vld [vmem:[%s304 + $0x110] sm:$0xff]
      %v360 = vld [vmem:[%s304 + $0x118] sm:$0xff]
      %v361 = vld [vmem:[%s304 + $0x120] sm:$0xff]
      %v362 = vld [vmem:[%s304 + $0x128] sm:$0xff]
      %v363 = vld [vmem:[%s304 + $0x130] sm:$0xff]
      %v364 = vld [vmem:[%s304 + $0x138] sm:$0xff]
      %v365 = vld [vmem:[%s304 + $0x140] sm:$0xff]
      %v366 = vld [vmem:[%s304 + $0x148] sm:$0xff]
      %v367 = vld [vmem:[%s304 + $0x150] sm:$0xff]
      %v368 = vld [vmem:[%s304 + $0x158] sm:$0xff]
      %v369 = vld [vmem:[%s304 + $0x160] sm:$0xff]
      %v370 = vld [vmem:[%s304 + $0x168] sm:$0xff]
      %v371 = vld [vmem:[%s304 + $0x170] sm:$0xff]
      %v372 = vld [vmem:[%s304 + $0x178] sm:$0xff]
      %v373 = vld [vmem:[%s304 + $0x180] sm:$0xff]
      %v374 = vld [vmem:[%s304 + $0x188] sm:$0xff]
      %v375 = vld [vmem:[%s304 + $0x190] sm:$0xff]
      %v376 = vld [vmem:[%s304 + $0x198] sm:$0xff]
      %v377 = vld [vmem:[%s304 + $0x1a0] sm:$0xff]
      %v378 = vld [vmem:[%s304 + $0x1a8] sm:$0xff]
      %v379 = vld [vmem:[%s304 + $0x1b0] sm:$0xff]
      %v380 = vld [vmem:[%s304 + $0x1b8] sm:$0xff]
      %v381 = vld [vmem:[%s304 + $0x1c0] sm:$0xff]
      %v382 = vld [vmem:[%s304 + $0x1c8] sm:$0xff]
      %v383 = vld [vmem:[%s304 + $0x1d0] sm:$0xff]
      %v384 = vld [vmem:[%s304 + $0x1d8] sm:$0xff]
      %v385 = vld [vmem:[%s304 + $0x1e0] sm:$0xff]
      %v386 = vld [vmem:[%s304 + $0x1e8] sm:$0xff]
      %v387 = vld [vmem:[%s304 + $0x1f0] sm:$0xff]
      %v388 = vld [vmem:[%s304 + $0x1f8] sm:$0xff]
      %v389 = vld [vmem:[%s1] sm:$0xf]
      %v390 = vld [vmem:[%s1 + $0x4] sm:$0xf]
      %v391 = vld [vmem:[%s1 + $0x8] sm:$0xf]
      %v392 = vld [vmem:[%s1 + $0xc] sm:$0xf]
      %v393 = vld [vmem:[%s1 + $0x10] sm:$0xf]
      %v394 = vld [vmem:[%s1 + $0x14] sm:$0xf]
      %v395 = vld [vmem:[%s1 + $0x18] sm:$0xf]
      %v396 = vld [vmem:[%s1 + $0x1c] sm:$0xf]
      %v397 = vld [vmem:[%s1 + $0x20] sm:$0xf]
      %v398 = vld [vmem:[%s1 + $0x24] sm:$0xf]
      %v399 = vld [vmem:[%s1 + $0x28] sm:$0xf]
      %v400 = vld [vmem:[%s1 + $0x2c] sm:$0xf]
      %v401 = vld [vmem:[%s1 + $0x30] sm:$0xf]
      %v402 = vld [vmem:[%s1 + $0x34] sm:$0xf]
      %v403 = vld [vmem:[%s1 + $0x38] sm:$0xf]
      %v404 = vld [vmem:[%s1 + $0x3c] sm:$0xf]
      %v405 = vld [vmem:[%s1 + $0x40] sm:$0xf]
      %v406 = vld [vmem:[%s1 + $0x44] sm:$0xf]
      %v407 = vld [vmem:[%s310] sm:$0xff]
      %v408 = vld [vmem:[%s310 + $0x8] sm:$0xff]
      %v409 = vld [vmem:[%s310 + $0x10] sm:$0xff]
      %v410 = vld [vmem:[%s310 + $0x18] sm:$0xff]
      %v411 = vld [vmem:[%s310 + $0x20] sm:$0xff]
      %v412 = vld [vmem:[%s310 + $0x28] sm:$0xff]
      %v413 = vld [vmem:[%s310 + $0x30] sm:$0xff]
      %v414 = vld [vmem:[%s310 + $0x38] sm:$0xff]
      %v415 = vld [vmem:[%s310 + $0x40] sm:$0xff]
      %v416 = vld [vmem:[%s310 + $0x48] sm:$0xff]
      %v417 = vld [vmem:[%s310 + $0x50] sm:$0xff]
      %v418 = vld [vmem:[%s310 + $0x58] sm:$0xff]
      %v419 = vld [vmem:[%s310 + $0x60] sm:$0xff]
      %v420 = vld [vmem:[%s310 + $0x68] sm:$0xff]
      %v421 = vld [vmem:[%s310 + $0x70] sm:$0xff]
      %v422 = vld [vmem:[%s310 + $0x78] sm:$0xff]
      %v423 = vld [vmem:[%s310 + $0x80] sm:$0xff]
      %v424 = vld [vmem:[%s310 + $0x88] sm:$0xff]
      %v425 = vld [vmem:[%s310 + $0x90] sm:$0xff]
      %v426 = vld [vmem:[%s310 + $0x98] sm:$0xff]
      %v427 = vld [vmem:[%s310 + $0xa0] sm:$0xff]
      %v428 = vld [vmem:[%s310 + $0xa8] sm:$0xff]
      %v429 = vld [vmem:[%s310 + $0xb0] sm:$0xff]
      %v430 = vld [vmem:[%s310 + $0xb8] sm:$0xff]
      %v431 = vld [vmem:[%s310 + $0xc0] sm:$0xff]
      %v432 = vld [vmem:[%s310 + $0xc8] sm:$0xff]
      %v433 = vld [vmem:[%s310 + $0xd0] sm:$0xff]
      %v434 = vld [vmem:[%s310 + $0xd8] sm:$0xff]
      %v435 = vld [vmem:[%s310 + $0xe0] sm:$0xff]
      %v436 = vld [vmem:[%s310 + $0xe8] sm:$0xff]
      %v437 = vld [vmem:[%s310 + $0xf0] sm:$0xff]
      %v438 = vld [vmem:[%s310 + $0xf8] sm:$0xff]
      %v439 = vld [vmem:[%s310 + $0x100] sm:$0xff]
      %v440 = vld [vmem:[%s310 + $0x108] sm:$0xff]
      %v441 = vld [vmem:[%s310 + $0x110] sm:$0xff]
      %v442 = vld [vmem:[%s310 + $0x118] sm:$0xff]
      %v443 = vld [vmem:[%s310 + $0x120] sm:$0xff]
      %v444 = vld [vmem:[%s310 + $0x128] sm:$0xff]
      %v445 = vld [vmem:[%s310 + $0x130] sm:$0xff]
      %v446 = vld [vmem:[%s310 + $0x138] sm:$0xff]
      %v447 = vld [vmem:[%s310 + $0x140] sm:$0xff]
      %v448 = vld [vmem:[%s310 + $0x148] sm:$0xff]
      %v449 = vld [vmem:[%s310 + $0x150] sm:$0xff]
      %v450 = vld [vmem:[%s310 + $0x158] sm:$0xff]
      %v451 = vld [vmem:[%s310 + $0x160] sm:$0xff]
      %v452 = vld [vmem:[%s310 + $0x168] sm:$0xff]
      %v453 = vld [vmem:[%s310 + $0x170] sm:$0xff]
      %v454 = vld [vmem:[%s310 + $0x178] sm:$0xff]
      %v455 = vld [vmem:[%s310 + $0x180] sm:$0xff]
      %v456 = vld [vmem:[%s310 + $0x188] sm:$0xff]
      %v457 = vld [vmem:[%s310 + $0x190] sm:$0xff]
      %v458 = vld [vmem:[%s310 + $0x198] sm:$0xff]
      %v459 = vld [vmem:[%s310 + $0x1a0] sm:$0xff]
      %v460 = vld [vmem:[%s310 + $0x1a8] sm:$0xff]
      %v461 = vld [vmem:[%s310 + $0x1b0] sm:$0xff]
      %v462 = vld [vmem:[%s310 + $0x1b8] sm:$0xff]
      %v463 = vld [vmem:[%s310 + $0x1c0] sm:$0xff]
      %v464 = vld [vmem:[%s310 + $0x1c8] sm:$0xff]
      %v465 = vld [vmem:[%s310 + $0x1d0] sm:$0xff]
      %v466 = vld [vmem:[%s310 + $0x1d8] sm:$0xff]
      %v467 = vld [vmem:[%s310 + $0x1e0] sm:$0xff]
      %v468 = vld [vmem:[%s310 + $0x1e8] sm:$0xff]
      %v469 = vld [vmem:[%s310 + $0x1f0] sm:$0xff]
      %v470 = vld [vmem:[%s310 + $0x1f8] sm:$0xff]
      %v471 = vld [vmem:[%s3] sm:$0x1]
      %v473 = vlaneseq
      %v474 = vshrl.u32 %v473, 7
      %v475 = vsub.s32 0, %v474
      %v476 = vrot.slane %v471, %v475
      %v478 = vmul.f32 %v407, %v476
      %v479 = vmul.f32 %v408, %v476
      %v480 = vmul.f32 %v409, %v476
      %v481 = vmul.f32 %v410, %v476
      %v482 = vmul.f32 %v411, %v476
      %v483 = vmul.f32 %v412, %v476
      %v484 = vmul.f32 %v413, %v476
      %v485 = vmul.f32 %v414, %v476
      %v486 = vmul.f32 %v415, %v476
      %v487 = vmul.f32 %v416, %v476
      %v488 = vmul.f32 %v417, %v476
      %v489 = vmul.f32 %v418, %v476
      %v490 = vmul.f32 %v419, %v476
      %v491 = vmul.f32 %v420, %v476
      %v492 = vmul.f32 %v421, %v476
      %v493 = vmul.f32 %v422, %v476
      %v494 = vmul.f32 %v423, %v476
      %v495 = vmul.f32 %v424, %v476
      %v496 = vmul.f32 %v425, %v476
      %v497 = vmul.f32 %v426, %v476
      %v498 = vmul.f32 %v427, %v476
      %v499 = vmul.f32 %v428, %v476
      %v500 = vmul.f32 %v429, %v476
      %v501 = vmul.f32 %v430, %v476
      %v502 = vmul.f32 %v431, %v476
      %v503 = vmul.f32 %v432, %v476
      %v504 = vmul.f32 %v433, %v476
      %v505 = vmul.f32 %v434, %v476
      %v506 = vmul.f32 %v435, %v476
      %v507 = vmul.f32 %v436, %v476
      %v508 = vmul.f32 %v437, %v476
      %v509 = vmul.f32 %v438, %v476
      %v510 = vmul.f32 %v439, %v476
      %v511 = vmul.f32 %v440, %v476
      %v512 = vmul.f32 %v441, %v476
      %v513 = vmul.f32 %v442, %v476
      %v514 = vmul.f32 %v443, %v476
      %v515 = vmul.f32 %v444, %v476
      %v516 = vmul.f32 %v445, %v476
      %v517 = vmul.f32 %v446, %v476
      %v518 = vmul.f32 %v447, %v476
      %v519 = vmul.f32 %v448, %v476
      %v520 = vmul.f32 %v449, %v476
      %v521 = vmul.f32 %v450, %v476
      %v522 = vmul.f32 %v451, %v476
      %v523 = vmul.f32 %v452, %v476
      %v524 = vmul.f32 %v453, %v476
      %v525 = vmul.f32 %v454, %v476
      %v526 = vmul.f32 %v455, %v476
      %v527 = vmul.f32 %v456, %v476
      %v528 = vmul.f32 %v457, %v476
      %v529 = vmul.f32 %v458, %v476
      %v530 = vmul.f32 %v459, %v476
      %v531 = vmul.f32 %v460, %v476
      %v532 = vmul.f32 %v461, %v476
      %v533 = vmul.f32 %v462, %v476
      %v534 = vmul.f32 %v463, %v476
      %v535 = vmul.f32 %v464, %v476
      %v536 = vmul.f32 %v465, %v476
      %v537 = vmul.f32 %v466, %v476
      %v538 = vmul.f32 %v467, %v476
      %v539 = vmul.f32 %v468, %v476
      %v540 = vmul.f32 %v469, %v476
      %v541 = vmul.f32 %v470, %v476
      %v606 = vunpack.c.l.b16 %v325
      %v607 = vunpack.c.h.b16 %v325
      %v608 = vunpack.c.l.b16 %v326
      %v609 = vunpack.c.h.b16 %v326
      %v610 = vunpack.c.l.b16 %v327
      %v611 = vunpack.c.h.b16 %v327
      %v612 = vunpack.c.l.b16 %v328
      %v613 = vunpack.c.h.b16 %v328
      %v614 = vunpack.c.l.b16 %v329
      %v615 = vunpack.c.h.b16 %v329
      %v616 = vunpack.c.l.b16 %v330
      %v617 = vunpack.c.h.b16 %v330
      %v618 = vunpack.c.l.b16 %v331
      %v619 = vunpack.c.h.b16 %v331
      %v620 = vunpack.c.l.b16 %v332
      %v621 = vunpack.c.h.b16 %v332
      %v622 = vunpack.c.l.b16 %v333
      %v623 = vunpack.c.h.b16 %v333
      %v624 = vunpack.c.l.b16 %v334
      %v625 = vunpack.c.h.b16 %v334
      %v626 = vunpack.c.l.b16 %v335
      %v627 = vunpack.c.h.b16 %v335
      %v628 = vunpack.c.l.b16 %v336
      %v629 = vunpack.c.h.b16 %v336
      %v630 = vunpack.c.l.b16 %v337
      %v631 = vunpack.c.h.b16 %v337
      %v632 = vunpack.c.l.b16 %v338
      %v633 = vunpack.c.h.b16 %v338
      %v634 = vunpack.c.l.b16 %v339
      %v635 = vunpack.c.h.b16 %v339
      %v636 = vunpack.c.l.b16 %v340
      %v637 = vunpack.c.h.b16 %v340
      %v638 = vunpack.c.l.b16 %v341
      %v639 = vunpack.c.h.b16 %v341
      %v640 = vunpack.c.l.b16 %v342
      %v641 = vunpack.c.h.b16 %v342
      %v642 = vunpack.c.l.b16 %v343
      %v643 = vunpack.c.h.b16 %v343
      %v644 = vunpack.c.l.b16 %v344
      %v645 = vunpack.c.h.b16 %v344
      %v646 = vunpack.c.l.b16 %v345
      %v647 = vunpack.c.h.b16 %v345
      %v648 = vunpack.c.l.b16 %v346
      %v649 = vunpack.c.h.b16 %v346
      %v650 = vunpack.c.l.b16 %v347
      %v651 = vunpack.c.h.b16 %v347
      %v652 = vunpack.c.l.b16 %v348
      %v653 = vunpack.c.h.b16 %v348
      %v654 = vunpack.c.l.b16 %v349
      %v655 = vunpack.c.h.b16 %v349
      %v656 = vunpack.c.l.b16 %v350
      %v657 = vunpack.c.h.b16 %v350
      %v658 = vunpack.c.l.b16 %v351
      %v659 = vunpack.c.h.b16 %v351
      %v660 = vunpack.c.l.b16 %v352
      %v661 = vunpack.c.h.b16 %v352
      %v662 = vunpack.c.l.b16 %v353
      %v663 = vunpack.c.h.b16 %v353
      %v664 = vunpack.c.l.b16 %v354
      %v665 = vunpack.c.h.b16 %v354
      %v666 = vunpack.c.l.b16 %v355
      %v667 = vunpack.c.h.b16 %v355
      %v668 = vunpack.c.l.b16 %v356
      %v669 = vunpack.c.h.b16 %v356
      %v670 = vunpack.c.l.b16 %v357
      %v671 = vunpack.c.h.b16 %v357
      %v672 = vunpack.c.l.b16 %v358
      %v673 = vunpack.c.h.b16 %v358
      %v674 = vunpack.c.l.b16 %v359
      %v675 = vunpack.c.h.b16 %v359
      %v676 = vunpack.c.l.b16 %v360
      %v677 = vunpack.c.h.b16 %v360
      %v678 = vunpack.c.l.b16 %v361
      %v679 = vunpack.c.h.b16 %v361
      %v680 = vunpack.c.l.b16 %v362
      %v681 = vunpack.c.h.b16 %v362
      %v682 = vunpack.c.l.b16 %v363
      %v683 = vunpack.c.h.b16 %v363
      %v684 = vunpack.c.l.b16 %v364
      %v685 = vunpack.c.h.b16 %v364
      %v686 = vunpack.c.l.b16 %v365
      %v687 = vunpack.c.h.b16 %v365
      %v688 = vunpack.c.l.b16 %v366
      %v689 = vunpack.c.h.b16 %v366
      %v690 = vunpack.c.l.b16 %v367
      %v691 = vunpack.c.h.b16 %v367
      %v692 = vunpack.c.l.b16 %v368
      %v693 = vunpack.c.h.b16 %v368
      %v694 = vunpack.c.l.b16 %v369
      %v695 = vunpack.c.h.b16 %v369
      %v696 = vunpack.c.l.b16 %v370
      %v697 = vunpack.c.h.b16 %v370
      %v698 = vunpack.c.l.b16 %v371
      %v699 = vunpack.c.h.b16 %v371
      %v700 = vunpack.c.l.b16 %v372
      %v701 = vunpack.c.h.b16 %v372
      %v702 = vunpack.c.l.b16 %v373
      %v703 = vunpack.c.h.b16 %v373
      %v704 = vunpack.c.l.b16 %v374
      %v705 = vunpack.c.h.b16 %v374
      %v706 = vunpack.c.l.b16 %v375
      %v707 = vunpack.c.h.b16 %v375
      %v708 = vunpack.c.l.b16 %v376
      %v709 = vunpack.c.h.b16 %v376
      %v710 = vunpack.c.l.b16 %v377
      %v711 = vunpack.c.h.b16 %v377
      %v712 = vunpack.c.l.b16 %v378
      %v713 = vunpack.c.h.b16 %v378
      %v714 = vunpack.c.l.b16 %v379
      %v715 = vunpack.c.h.b16 %v379
      %v716 = vunpack.c.l.b16 %v380
      %v717 = vunpack.c.h.b16 %v380
      %v718 = vunpack.c.l.b16 %v381
      %v719 = vunpack.c.h.b16 %v381
      %v720 = vunpack.c.l.b16 %v382
      %v721 = vunpack.c.h.b16 %v382
      %v722 = vunpack.c.l.b16 %v383
      %v723 = vunpack.c.h.b16 %v383
      %v724 = vunpack.c.l.b16 %v384
      %v725 = vunpack.c.h.b16 %v384
      %v726 = vunpack.c.l.b16 %v385
      %v727 = vunpack.c.h.b16 %v385
      %v728 = vunpack.c.l.b16 %v386
      %v729 = vunpack.c.h.b16 %v386
      %v730 = vunpack.c.l.b16 %v387
      %v731 = vunpack.c.h.b16 %v387
      %v732 = vunpack.c.l.b16 %v388
      %v733 = vunpack.c.h.b16 %v388
      %v734 = vpack.c.b16 %v608, %v606
      %v735 = vpack.c.b16 %v609, %v607
      %v736 = vpack.c.b16 %v612, %v610
      %v737 = vpack.c.b16 %v613, %v611
      %v738 = vpack.c.b16 %v616, %v614
      %v739 = vpack.c.b16 %v617, %v615
      %v740 = vpack.c.b16 %v620, %v618
      %v741 = vpack.c.b16 %v621, %v619
      %v742 = vpack.c.b16 %v624, %v622
      %v743 = vpack.c.b16 %v625, %v623
      %v744 = vpack.c.b16 %v628, %v626
      %v745 = vpack.c.b16 %v629, %v627
      %v746 = vpack.c.b16 %v632, %v630
      %v747 = vpack.c.b16 %v633, %v631
      %v748 = vpack.c.b16 %v636, %v634
      %v749 = vpack.c.b16 %v637, %v635
      %v750 = vpack.c.b16 %v640, %v638
      %v751 = vpack.c.b16 %v641, %v639
      %v752 = vpack.c.b16 %v644, %v642
      %v753 = vpack.c.b16 %v645, %v643
      %v754 = vpack.c.b16 %v648, %v646
      %v755 = vpack.c.b16 %v649, %v647
      %v756 = vpack.c.b16 %v652, %v650
      %v757 = vpack.c.b16 %v653, %v651
      %v758 = vpack.c.b16 %v656, %v654
      %v759 = vpack.c.b16 %v657, %v655
      %v760 = vpack.c.b16 %v660, %v658
      %v761 = vpack.c.b16 %v661, %v659
      %v762 = vpack.c.b16 %v664, %v662
      %v763 = vpack.c.b16 %v665, %v663
      %v764 = vpack.c.b16 %v668, %v666
      %v765 = vpack.c.b16 %v669, %v667
      %v766 = vpack.c.b16 %v672, %v670
      %v767 = vpack.c.b16 %v673, %v671
      %v768 = vpack.c.b16 %v676, %v674
      %v769 = vpack.c.b16 %v677, %v675
      %v770 = vpack.c.b16 %v680, %v678
      %v771 = vpack.c.b16 %v681, %v679
      %v772 = vpack.c.b16 %v684, %v682
      %v773 = vpack.c.b16 %v685, %v683
      %v774 = vpack.c.b16 %v688, %v686
      %v775 = vpack.c.b16 %v689, %v687
      %v776 = vpack.c.b16 %v692, %v690
      %v777 = vpack.c.b16 %v693, %v691
      %v778 = vpack.c.b16 %v696, %v694
      %v779 = vpack.c.b16 %v697, %v695
      %v780 = vpack.c.b16 %v700, %v698
      %v781 = vpack.c.b16 %v701, %v699
      %v782 = vpack.c.b16 %v704, %v702
      %v783 = vpack.c.b16 %v705, %v703
      %v784 = vpack.c.b16 %v708, %v706
      %v785 = vpack.c.b16 %v709, %v707
      %v786 = vpack.c.b16 %v712, %v710
      %v787 = vpack.c.b16 %v713, %v711
      %v788 = vpack.c.b16 %v716, %v714
      %v789 = vpack.c.b16 %v717, %v715
      %v790 = vpack.c.b16 %v720, %v718
      %v791 = vpack.c.b16 %v721, %v719
      %v792 = vpack.c.b16 %v724, %v722
      %v793 = vpack.c.b16 %v725, %v723
      %v794 = vpack.c.b16 %v728, %v726
      %v795 = vpack.c.b16 %v729, %v727
      %v796 = vpack.c.b16 %v732, %v730
      %v797 = vpack.c.b16 %v733, %v731
      %v848 = vunpack.c.l.b16 %v389
      %v849 = vunpack.c.l.b16 %v390
      %v850 = vunpack.c.l.b16 %v391
      %v851 = vunpack.c.l.b16 %v392
      %v852 = vunpack.c.l.b16 %v393
      %v853 = vunpack.c.l.b16 %v394
      %v854 = vunpack.c.l.b16 %v395
      %v855 = vunpack.c.l.b16 %v396
      %v856 = vunpack.c.l.b16 %v397
      %v857 = vunpack.c.l.b16 %v398
      %v858 = vunpack.c.l.b16 %v399
      %v859 = vunpack.c.l.b16 %v400
      %v860 = vunpack.c.l.b16 %v401
      %v861 = vunpack.c.l.b16 %v402
      %v862 = vunpack.c.l.b16 %v403
      %v863 = vunpack.c.l.b16 %v404
      %v864 = vunpack.c.l.b16 %v405
      %v865 = vunpack.c.l.b16 %v406
      %v866 = vpack.c.b16 %v849, %v848
      %v867 = vpack.c.b16 %v851, %v850
      %v868 = vpack.c.b16 %v853, %v852
      %v869 = vpack.c.b16 %v855, %v854
      %v870 = vpack.c.b16 %v857, %v856
      %v871 = vpack.c.b16 %v859, %v858
      %v872 = vpack.c.b16 %v861, %v860
      %v873 = vpack.c.b16 %v863, %v862
      %v874 = vpack.c.b16 %v865, %v864
      %vm884 = vcmask 130048
      %v886 = vsel %vm884, %v735, 0
      %v889 = vsel %vm884, %v737, 0
      %v892 = vsel %vm884, %v739, 0
      %v895 = vsel %vm884, %v741, 0
      %v898 = vsel %vm884, %v743, 0
      %v901 = vsel %vm884, %v745, 0
      %v904 = vsel %vm884, %v747, 0
      %v907 = vsel %vm884, %v749, 0
      %v910 = vsel %vm884, %v751, 0
      %v913 = vsel %vm884, %v753, 0
      %v916 = vsel %vm884, %v755, 0
      %v919 = vsel %vm884, %v757, 0
      %v922 = vsel %vm884, %v759, 0
      %v925 = vsel %vm884, %v761, 0
      %v928 = vsel %vm884, %v763, 0
      %v931 = vsel %vm884, %v765, 0
      %v934 = vsel %vm884, %v767, 0
      %v937 = vsel %vm884, %v769, 0
      %v940 = vsel %vm884, %v771, 0
      %v943 = vsel %vm884, %v773, 0
      %v946 = vsel %vm884, %v775, 0
      %v949 = vsel %vm884, %v777, 0
      %v952 = vsel %vm884, %v779, 0
      %v955 = vsel %vm884, %v781, 0
      %v958 = vsel %vm884, %v783, 0
      %v961 = vsel %vm884, %v785, 0
      %v964 = vsel %vm884, %v787, 0
      %v967 = vsel %vm884, %v789, 0
      %v970 = vsel %vm884, %v791, 0
      %v973 = vsel %vm884, %v793, 0
      %v976 = vsel %vm884, %v795, 0
      %v979 = vsel %vm884, %v797, 0
      %981 = vmatprep.subr.bf16.mxu0 0
      %982 = vmatpush1.bf16.msra.mxu0 %v866
      %983 = vmatprep.subr.bf16.mxu0 0
      %984 = vmatpush1.bf16.msra.mxu0 %v867
      %985 = vmatprep.subr.bf16.mxu0 0
      %986 = vmatpush1.bf16.msra.mxu0 %v868
      %987 = vmatprep.subr.bf16.mxu0 0
      %988 = vmatpush1.bf16.msra.mxu0 %v869
      %989 = vmatprep.subr.bf16.mxu0 0
      %990 = vmatpush1.bf16.msra.mxu0 %v870
      %991 = vmatprep.subr.bf16.mxu0 0
      %992 = vmatpush1.bf16.msra.mxu0 %v871
      %993 = vmatprep.subr.bf16.mxu0 0
      %994 = vmatpush1.bf16.msra.mxu0 %v872
      %995 = vmatprep.subr.bf16.mxu0 0
      %996 = vmatpush1.bf16.msra.mxu0 %v873
      %997 = vmatprep.subr.bf16.mxu0 0
      %998 = vmatpush1.bf16.msra.mxu0 %v874
      %999 = vmatprep.subr.bf16.mxu0 0
      %1000 = vmatpush1.bf16.msra.mxu0 0
      %1001 = vmatprep.subr.bf16.mxu0 0
      %1002 = vmatpush1.bf16.msra.mxu0 0
      %1003 = vmatprep.subr.bf16.mxu0 0
      %1004 = vmatpush1.bf16.msra.mxu0 0
      %1005 = vmatprep.subr.bf16.mxu0 0
      %1006 = vmatpush1.bf16.msra.mxu0 0
      %1007 = vmatprep.subr.bf16.mxu0 0
      %1008 = vmatpush1.bf16.msra.mxu0 0
      %1009 = vmatprep.subr.bf16.mxu0 0
      %1010 = vmatpush1.bf16.msra.mxu0 0
      %1011 = vmatprep.subr.bf16.mxu0 0
      %1012 = vmatpush1.bf16.msra.mxu0 0
      %1013 = vmatprep.mubr.bf16.mxu0 %v886
      %1014 = vmatmul.mubr.bf16.gmra.mrb[0].mxu0 %v734
      %v1015 = vpop.f32.mrb[0].mxu0
      %v1016 = vadd.f32 %v478, %v1015
      %v1017 = vpop.f32.mrb[0].mxu0
      %v1018 = vpop.f32.mrb[0].mxu0
      %v1019 = vadd.f32 %v479, %v1018
      %v1020 = vpop.f32.mrb[0].mxu0
      %1021 = vmatprep.mubr.bf16.mxu0 %v889
      %1022 = vmatmul.mubr.bf16.gmra.mrb[0].mxu0 %v736
      %v1023 = vpop.f32.mrb[0].mxu0
      %v1024 = vadd.f32 %v480, %v1023
      %v1025 = vpop.f32.mrb[0].mxu0
      %v1026 = vpop.f32.mrb[0].mxu0
      %v1027 = vadd.f32 %v481, %v1026
      %v1028 = vpop.f32.mrb[0].mxu0
      %1029 = vmatprep.mubr.bf16.mxu0 %v892
      %1030 = vmatmul.mubr.bf16.gmra.mrb[0].mxu0 %v738
      %v1031 = vpop.f32.mrb[0].mxu0
      %v1032 = vadd.f32 %v482, %v1031
      %v1033 = vpop.f32.mrb[0].mxu0
      %v1034 = vpop.f32.mrb[0].mxu0
      %v1035 = vadd.f32 %v483, %v1034
      %v1036 = vpop.f32.mrb[0].mxu0
      %1037 = vmatprep.mubr.bf16.mxu0 %v895
      %1038 = vmatmul.mubr.bf16.gmra.mrb[0].mxu0 %v740
      %v1039 = vpop.f32.mrb[0].mxu0
      %v1040 = vadd.f32 %v484, %v1039
      %v1041 = vpop.f32.mrb[0].mxu0
      %v1042 = vpop.f32.mrb[0].mxu0
      %v1043 = vadd.f32 %v485, %v1042
      %v1044 = vpop.f32.mrb[0].mxu0
      %1045 = vmatprep.mubr.bf16.mxu0 %v898
      %1046 = vmatmul.mubr.bf16.gmra.mrb[0].mxu0 %v742
      %v1047 = vpop.f32.mrb[0].mxu0
      %v1048 = vadd.f32 %v486, %v1047
      %v1049 = vpop.f32.mrb[0].mxu0
      %v1050 = vpop.f32.mrb[0].mxu0
      %v1051 = vadd.f32 %v487, %v1050
      %v1052 = vpop.f32.mrb[0].mxu0
      %1053 = vmatprep.mubr.bf16.mxu0 %v901
      %1054 = vmatmul.mubr.bf16.gmra.mrb[0].mxu0 %v744
      %v1055 = vpop.f32.mrb[0].mxu0
      %v1056 = vadd.f32 %v488, %v1055
      %v1057 = vpop.f32.mrb[0].mxu0
      %v1058 = vpop.f32.mrb[0].mxu0
      %v1059 = vadd.f32 %v489, %v1058
      %v1060 = vpop.f32.mrb[0].mxu0
      %1061 = vmatprep.mubr.bf16.mxu0 %v904
      %1062 = vmatmul.mubr.bf16.gmra.mrb[0].mxu0 %v746
      %v1063 = vpop.f32.mrb[0].mxu0
      %v1064 = vadd.f32 %v490, %v1063
      %v1065 = vpop.f32.mrb[0].mxu0
      %v1066 = vpop.f32.mrb[0].mxu0
      %v1067 = vadd.f32 %v491, %v1066
      %v1068 = vpop.f32.mrb[0].mxu0
      %1069 = vmatprep.mubr.bf16.mxu0 %v907
      %1070 = vmatmul.mubr.bf16.gmra.mrb[0].mxu0 %v748
      %v1071 = vpop.f32.mrb[0].mxu0
      %v1072 = vadd.f32 %v492, %v1071
      %v1073 = vpop.f32.mrb[0].mxu0
      %v1074 = vpop.f32.mrb[0].mxu0
      %v1075 = vadd.f32 %v493, %v1074
      %v1076 = vpop.f32.mrb[0].mxu0
      %1077 = vmatprep.mubr.bf16.mxu0 %v910
      %1078 = vmatmul.mubr.bf16.gmra.mrb[0].mxu0 %v750
      %v1079 = vpop.f32.mrb[0].mxu0
      %v1080 = vadd.f32 %v494, %v1079
      %v1081 = vpop.f32.mrb[0].mxu0
      %v1082 = vpop.f32.mrb[0].mxu0
      %v1083 = vadd.f32 %v495, %v1082
      %v1084 = vpop.f32.mrb[0].mxu0
      %1085 = vmatprep.mubr.bf16.mxu0 %v913
      %1086 = vmatmul.mubr.bf16.gmra.mrb[0].mxu0 %v752
      %v1087 = vpop.f32.mrb[0].mxu0
      %v1088 = vadd.f32 %v496, %v1087
      %v1089 = vpop.f32.mrb[0].mxu0
      %v1090 = vpop.f32.mrb[0].mxu0
      %v1091 = vadd.f32 %v497, %v1090
      %v1092 = vpop.f32.mrb[0].mxu0
      %1093 = vmatprep.mubr.bf16.mxu0 %v916
      %1094 = vmatmul.mubr.bf16.gmra.mrb[0].mxu0 %v754
      %v1095 = vpop.f32.mrb[0].mxu0
      %v1096 = vadd.f32 %v498, %v1095
      %v1097 = vpop.f32.mrb[0].mxu0
      %v1098 = vpop.f32.mrb[0].mxu0
      %v1099 = vadd.f32 %v499, %v1098
      %v1100 = vpop.f32.mrb[0].mxu0
      %1101 = vmatprep.mubr.bf16.mxu0 %v919
      %1102 = vmatmul.mubr.bf16.gmra.mrb[0].mxu0 %v756
      %v1103 = vpop.f32.mrb[0].mxu0
      %v1104 = vadd.f32 %v500, %v1103
      %v1105 = vpop.f32.mrb[0].mxu0
      %v1106 = vpop.f32.mrb[0].mxu0
      %v1107 = vadd.f32 %v501, %v1106
      %v1108 = vpop.f32.mrb[0].mxu0
      %1109 = vmatprep.mubr.bf16.mxu0 %v922
      %1110 = vmatmul.mubr.bf16.gmra.mrb[0].mxu0 %v758
      %v1111 = vpop.f32.mrb[0].mxu0
      %v1112 = vadd.f32 %v502, %v1111
      %v1113 = vpop.f32.mrb[0].mxu0
      %v1114 = vpop.f32.mrb[0].mxu0
      %v1115 = vadd.f32 %v503, %v1114
      %v1116 = vpop.f32.mrb[0].mxu0
      %1117 = vmatprep.mubr.bf16.mxu0 %v925
      %1118 = vmatmul.mubr.bf16.gmra.mrb[0].mxu0 %v760
      %v1119 = vpop.f32.mrb[0].mxu0
      %v1120 = vadd.f32 %v504, %v1119
      %v1121 = vpop.f32.mrb[0].mxu0
      %v1122 = vpop.f32.mrb[0].mxu0
      %v1123 = vadd.f32 %v505, %v1122
      %v1124 = vpop.f32.mrb[0].mxu0
      %1125 = vmatprep.mubr.bf16.mxu0 %v928
      %1126 = vmatmul.mubr.bf16.gmra.mrb[0].mxu0 %v762
      %v1127 = vpop.f32.mrb[0].mxu0
      %v1128 = vadd.f32 %v506, %v1127
      %v1129 = vpop.f32.mrb[0].mxu0
      %v1130 = vpop.f32.mrb[0].mxu0
      %v1131 = vadd.f32 %v507, %v1130
      %v1132 = vpop.f32.mrb[0].mxu0
      %1133 = vmatprep.mubr.bf16.mxu0 %v931
      %1134 = vmatmul.mubr.bf16.gmra.mrb[0].mxu0 %v764
      %v1135 = vpop.f32.mrb[0].mxu0
      %v1136 = vadd.f32 %v508, %v1135
      %v1137 = vpop.f32.mrb[0].mxu0
      %v1138 = vpop.f32.mrb[0].mxu0
      %v1139 = vadd.f32 %v509, %v1138
      %v1140 = vpop.f32.mrb[0].mxu0
      %1141 = vmatprep.mubr.bf16.mxu0 %v934
      %1142 = vmatmul.mubr.bf16.gmra.mrb[0].mxu0 %v766
      %v1143 = vpop.f32.mrb[0].mxu0
      %v1144 = vadd.f32 %v510, %v1143
      %v1145 = vpop.f32.mrb[0].mxu0
      %v1146 = vpop.f32.mrb[0].mxu0
      %v1147 = vadd.f32 %v511, %v1146
      %v1148 = vpop.f32.mrb[0].mxu0
      %1149 = vmatprep.mubr.bf16.mxu0 %v937
      %1150 = vmatmul.mubr.bf16.gmra.mrb[0].mxu0 %v768
      %v1151 = vpop.f32.mrb[0].mxu0
      %v1152 = vadd.f32 %v512, %v1151
      %v1153 = vpop.f32.mrb[0].mxu0
      %v1154 = vpop.f32.mrb[0].mxu0
      %v1155 = vadd.f32 %v513, %v1154
      %v1156 = vpop.f32.mrb[0].mxu0
      %1157 = vmatprep.mubr.bf16.mxu0 %v940
      %1158 = vmatmul.mubr.bf16.gmra.mrb[0].mxu0 %v770
      %v1159 = vpop.f32.mrb[0].mxu0
      %v1160 = vadd.f32 %v514, %v1159
      %v1161 = vpop.f32.mrb[0].mxu0
      %v1162 = vpop.f32.mrb[0].mxu0
      %v1163 = vadd.f32 %v515, %v1162
      %v1164 = vpop.f32.mrb[0].mxu0
      %1165 = vmatprep.mubr.bf16.mxu0 %v943
      %1166 = vmatmul.mubr.bf16.gmra.mrb[0].mxu0 %v772
      %v1167 = vpop.f32.mrb[0].mxu0
      %v1168 = vadd.f32 %v516, %v1167
      %v1169 = vpop.f32.mrb[0].mxu0
      %v1170 = vpop.f32.mrb[0].mxu0
      %v1171 = vadd.f32 %v517, %v1170
      %v1172 = vpop.f32.mrb[0].mxu0
      %1173 = vmatprep.mubr.bf16.mxu0 %v946
      %1174 = vmatmul.mubr.bf16.gmra.mrb[0].mxu0 %v774
      %v1175 = vpop.f32.mrb[0].mxu0
      %v1176 = vadd.f32 %v518, %v1175
      %v1177 = vpop.f32.mrb[0].mxu0
      %v1178 = vpop.f32.mrb[0].mxu0
      %v1179 = vadd.f32 %v519, %v1178
      %v1180 = vpop.f32.mrb[0].mxu0
      %1181 = vmatprep.mubr.bf16.mxu0 %v949
      %1182 = vmatmul.mubr.bf16.gmra.mrb[0].mxu0 %v776
      %v1183 = vpop.f32.mrb[0].mxu0
      %v1184 = vadd.f32 %v520, %v1183
      %v1185 = vpop.f32.mrb[0].mxu0
      %v1186 = vpop.f32.mrb[0].mxu0
      %v1187 = vadd.f32 %v521, %v1186
      %v1188 = vpop.f32.mrb[0].mxu0
      %1189 = vmatprep.mubr.bf16.mxu0 %v952
      %1190 = vmatmul.mubr.bf16.gmra.mrb[0].mxu0 %v778
      %v1191 = vpop.f32.mrb[0].mxu0
      %v1192 = vadd.f32 %v522, %v1191
      %v1193 = vpop.f32.mrb[0].mxu0
      %v1194 = vpop.f32.mrb[0].mxu0
      %v1195 = vadd.f32 %v523, %v1194
      %v1196 = vpop.f32.mrb[0].mxu0
      %1197 = vmatprep.mubr.bf16.mxu0 %v955
      %1198 = vmatmul.mubr.bf16.gmra.mrb[0].mxu0 %v780
      %v1199 = vpop.f32.mrb[0].mxu0
      %v1200 = vadd.f32 %v524, %v1199
      %v1201 = vpop.f32.mrb[0].mxu0
      %v1202 = vpop.f32.mrb[0].mxu0
      %v1203 = vadd.f32 %v525, %v1202
      %v1204 = vpop.f32.mrb[0].mxu0
      %1205 = vmatprep.mubr.bf16.mxu0 %v958
      %1206 = vmatmul.mubr.bf16.gmra.mrb[0].mxu0 %v782
      %v1207 = vpop.f32.mrb[0].mxu0
      %v1208 = vadd.f32 %v526, %v1207
      %v1209 = vpop.f32.mrb[0].mxu0
      %v1210 = vpop.f32.mrb[0].mxu0
      %v1211 = vadd.f32 %v527, %v1210
      %v1212 = vpop.f32.mrb[0].mxu0
      %1213 = vmatprep.mubr.bf16.mxu0 %v961
      %1214 = vmatmul.mubr.bf16.gmra.mrb[0].mxu0 %v784
      %v1215 = vpop.f32.mrb[0].mxu0
      %v1216 = vadd.f32 %v528, %v1215
      %v1217 = vpop.f32.mrb[0].mxu0
      %v1218 = vpop.f32.mrb[0].mxu0
      %v1219 = vadd.f32 %v529, %v1218
      %v1220 = vpop.f32.mrb[0].mxu0
      %1221 = vmatprep.mubr.bf16.mxu0 %v964
      %1222 = vmatmul.mubr.bf16.gmra.mrb[0].mxu0 %v786
      %v1223 = vpop.f32.mrb[0].mxu0
      %v1224 = vadd.f32 %v530, %v1223
      %v1225 = vpop.f32.mrb[0].mxu0
      %v1226 = vpop.f32.mrb[0].mxu0
      %v1227 = vadd.f32 %v531, %v1226
      %v1228 = vpop.f32.mrb[0].mxu0
      %1229 = vmatprep.mubr.bf16.mxu0 %v967
      %1230 = vmatmul.mubr.bf16.gmra.mrb[0].mxu0 %v788
      %v1231 = vpop.f32.mrb[0].mxu0
      %v1232 = vadd.f32 %v532, %v1231
      %v1233 = vpop.f32.mrb[0].mxu0
      %v1234 = vpop.f32.mrb[0].mxu0
      %v1235 = vadd.f32 %v533, %v1234
      %v1236 = vpop.f32.mrb[0].mxu0
      %1237 = vmatprep.mubr.bf16.mxu0 %v970
      %1238 = vmatmul.mubr.bf16.gmra.mrb[0].mxu0 %v790
      %v1239 = vpop.f32.mrb[0].mxu0
      %v1240 = vadd.f32 %v534, %v1239
      %v1241 = vpop.f32.mrb[0].mxu0
      %v1242 = vpop.f32.mrb[0].mxu0
      %v1243 = vadd.f32 %v535, %v1242
      %v1244 = vpop.f32.mrb[0].mxu0
      %1245 = vmatprep.mubr.bf16.mxu0 %v973
      %1246 = vmatmul.mubr.bf16.gmra.mrb[0].mxu0 %v792
      %v1247 = vpop.f32.mrb[0].mxu0
      %v1248 = vadd.f32 %v536, %v1247
      %v1249 = vpop.f32.mrb[0].mxu0
      %v1250 = vpop.f32.mrb[0].mxu0
      %v1251 = vadd.f32 %v537, %v1250
      %v1252 = vpop.f32.mrb[0].mxu0
      %1253 = vmatprep.mubr.bf16.mxu0 %v976
      %1254 = vmatmul.mubr.bf16.gmra.mrb[0].mxu0 %v794
      %v1255 = vpop.f32.mrb[0].mxu0
      %v1256 = vadd.f32 %v538, %v1255
      %v1257 = vpop.f32.mrb[0].mxu0
      %v1258 = vpop.f32.mrb[0].mxu0
      %v1259 = vadd.f32 %v539, %v1258
      %v1260 = vpop.f32.mrb[0].mxu0
      %1261 = vmatprep.mubr.bf16.mxu0 %v979
      %1262 = vmatmul.mubr.bf16.gmra.mrb[0].mxu0 %v796
      %v1263 = vpop.f32.mrb[0].mxu0
      %v1264 = vadd.f32 %v540, %v1263
      %v1265 = vpop.f32.mrb[0].mxu0
      %v1266 = vpop.f32.mrb[0].mxu0
      %v1267 = vadd.f32 %v541, %v1266
      %v1268 = vpop.f32.mrb[0].mxu0
      %1269 = vdwg.mxu0
      %v1270 = vld [vmem:[%s4] sm:$0x1]
      %v1272 = vlaneseq
      %v1273 = vshrl.u32 %v1272, 7
      %v1274 = vsub.s32 0, %v1273
      %v1275 = vrot.slane %v1270, %v1274
      %v1277 = vadd.f32 %v1016, %v1275
      %v1278 = vadd.f32 %v1019, %v1275
      %v1279 = vadd.f32 %v1024, %v1275
      %v1280 = vadd.f32 %v1027, %v1275
      %v1281 = vadd.f32 %v1032, %v1275
      %v1282 = vadd.f32 %v1035, %v1275
      %v1283 = vadd.f32 %v1040, %v1275
      %v1284 = vadd.f32 %v1043, %v1275
      %v1285 = vadd.f32 %v1048, %v1275
      %v1286 = vadd.f32 %v1051, %v1275
      %v1287 = vadd.f32 %v1056, %v1275
      %v1288 = vadd.f32 %v1059, %v1275
      %v1289 = vadd.f32 %v1064, %v1275
      %v1290 = vadd.f32 %v1067, %v1275
      %v1291 = vadd.f32 %v1072, %v1275
      %v1292 = vadd.f32 %v1075, %v1275
      %v1293 = vadd.f32 %v1080, %v1275
      %v1294 = vadd.f32 %v1083, %v1275
      %v1295 = vadd.f32 %v1088, %v1275
      %v1296 = vadd.f32 %v1091, %v1275
      %v1297 = vadd.f32 %v1096, %v1275
      %v1298 = vadd.f32 %v1099, %v1275
      %v1299 = vadd.f32 %v1104, %v1275
      %v1300 = vadd.f32 %v1107, %v1275
      %v1301 = vadd.f32 %v1112, %v1275
      %v1302 = vadd.f32 %v1115, %v1275
      %v1303 = vadd.f32 %v1120, %v1275
      %v1304 = vadd.f32 %v1123, %v1275
      %v1305 = vadd.f32 %v1128, %v1275
      %v1306 = vadd.f32 %v1131, %v1275
      %v1307 = vadd.f32 %v1136, %v1275
      %v1308 = vadd.f32 %v1139, %v1275
      %v1309 = vadd.f32 %v1144, %v1275
      %v1310 = vadd.f32 %v1147, %v1275
      %v1311 = vadd.f32 %v1152, %v1275
      %v1312 = vadd.f32 %v1155, %v1275
      %v1313 = vadd.f32 %v1160, %v1275
      %v1314 = vadd.f32 %v1163, %v1275
      %v1315 = vadd.f32 %v1168, %v1275
      %v1316 = vadd.f32 %v1171, %v1275
      %v1317 = vadd.f32 %v1176, %v1275
      %v1318 = vadd.f32 %v1179, %v1275
      %v1319 = vadd.f32 %v1184, %v1275
      %v1320 = vadd.f32 %v1187, %v1275
      %v1321 = vadd.f32 %v1192, %v1275
      %v1322 = vadd.f32 %v1195, %v1275
      %v1323 = vadd.f32 %v1200, %v1275
      %v1324 = vadd.f32 %v1203, %v1275
      %v1325 = vadd.f32 %v1208, %v1275
      %v1326 = vadd.f32 %v1211, %v1275
      %v1327 = vadd.f32 %v1216, %v1275
      %v1328 = vadd.f32 %v1219, %v1275
      %v1329 = vadd.f32 %v1224, %v1275
      %v1330 = vadd.f32 %v1227, %v1275
      %v1331 = vadd.f32 %v1232, %v1275
      %v1332 = vadd.f32 %v1235, %v1275
      %v1333 = vadd.f32 %v1240, %v1275
      %v1334 = vadd.f32 %v1243, %v1275
      %v1335 = vadd.f32 %v1248, %v1275
      %v1336 = vadd.f32 %v1251, %v1275
      %v1337 = vadd.f32 %v1256, %v1275
      %v1338 = vadd.f32 %v1259, %v1275
      %v1339 = vadd.f32 %v1264, %v1275
      %v1340 = vadd.f32 %v1267, %v1275
      %1341 = vst [vmem:[%s316] sm:$0xff] %v1277
      %1342 = vst [vmem:[%s316 + $0x8] sm:$0xff] %v1278
      %1343 = vst [vmem:[%s316 + $0x10] sm:$0xff] %v1279
      %1344 = vst [vmem:[%s316 + $0x18] sm:$0xff] %v1280
      %1345 = vst [vmem:[%s316 + $0x20] sm:$0xff] %v1281
      %1346 = vst [vmem:[%s316 + $0x28] sm:$0xff] %v1282
      %1347 = vst [vmem:[%s316 + $0x30] sm:$0xff] %v1283
      %1348 = vst [vmem:[%s316 + $0x38] sm:$0xff] %v1284
      %1349 = vst [vmem:[%s316 + $0x40] sm:$0xff] %v1285
      %1350 = vst [vmem:[%s316 + $0x48] sm:$0xff] %v1286
      %1351 = vst [vmem:[%s316 + $0x50] sm:$0xff] %v1287
      %1352 = vst [vmem:[%s316 + $0x58] sm:$0xff] %v1288
      %1353 = vst [vmem:[%s316 + $0x60] sm:$0xff] %v1289
      %1354 = vst [vmem:[%s316 + $0x68] sm:$0xff] %v1290
      %1355 = vst [vmem:[%s316 + $0x70] sm:$0xff] %v1291
      %1356 = vst [vmem:[%s316 + $0x78] sm:$0xff] %v1292
      %1357 = vst [vmem:[%s316 + $0x80] sm:$0xff] %v1293
      %1358 = vst [vmem:[%s316 + $0x88] sm:$0xff] %v1294
      %1359 = vst [vmem:[%s316 + $0x90] sm:$0xff] %v1295
      %1360 = vst [vmem:[%s316 + $0x98] sm:$0xff] %v1296
      %1361 = vst [vmem:[%s316 + $0xa0] sm:$0xff] %v1297
      %1362 = vst [vmem:[%s316 + $0xa8] sm:$0xff] %v1298
      %1363 = vst [vmem:[%s316 + $0xb0] sm:$0xff] %v1299
      %1364 = vst [vmem:[%s316 + $0xb8] sm:$0xff] %v1300
      %1365 = vst [vmem:[%s316 + $0xc0] sm:$0xff] %v1301
      %1366 = vst [vmem:[%s316 + $0xc8] sm:$0xff] %v1302
      %1367 = vst [vmem:[%s316 + $0xd0] sm:$0xff] %v1303
      %1368 = vst [vmem:[%s316 + $0xd8] sm:$0xff] %v1304
      %1369 = vst [vmem:[%s316 + $0xe0] sm:$0xff] %v1305
      %1370 = vst [vmem:[%s316 + $0xe8] sm:$0xff] %v1306
      %1371 = vst [vmem:[%s316 + $0xf0] sm:$0xff] %v1307
      %1372 = vst [vmem:[%s316 + $0xf8] sm:$0xff] %v1308
      %1373 = vst [vmem:[%s316 + $0x100] sm:$0xff] %v1309
      %1374 = vst [vmem:[%s316 + $0x108] sm:$0xff] %v1310
      %1375 = vst [vmem:[%s316 + $0x110] sm:$0xff] %v1311
      %1376 = vst [vmem:[%s316 + $0x118] sm:$0xff] %v1312
      %1377 = vst [vmem:[%s316 + $0x120] sm:$0xff] %v1313
      %1378 = vst [vmem:[%s316 + $0x128] sm:$0xff] %v1314
      %1379 = vst [vmem:[%s316 + $0x130] sm:$0xff] %v1315
      %1380 = vst [vmem:[%s316 + $0x138] sm:$0xff] %v1316
      %1381 = vst [vmem:[%s316 + $0x140] sm:$0xff] %v1317
      %1382 = vst [vmem:[%s316 + $0x148] sm:$0xff] %v1318
      %1383 = vst [vmem:[%s316 + $0x150] sm:$0xff] %v1319
      %1384 = vst [vmem:[%s316 + $0x158] sm:$0xff] %v1320
      %1385 = vst [vmem:[%s316 + $0x160] sm:$0xff] %v1321
      %1386 = vst [vmem:[%s316 + $0x168] sm:$0xff] %v1322
      %1387 = vst [vmem:[%s316 + $0x170] sm:$0xff] %v1323
      %1388 = vst [vmem:[%s316 + $0x178] sm:$0xff] %v1324
      %1389 = vst [vmem:[%s316 + $0x180] sm:$0xff] %v1325
      %1390 = vst [vmem:[%s316 + $0x188] sm:$0xff] %v1326
      %1391 = vst [vmem:[%s316 + $0x190] sm:$0xff] %v1327
      %1392 = vst [vmem:[%s316 + $0x198] sm:$0xff] %v1328
      %1393 = vst [vmem:[%s316 + $0x1a0] sm:$0xff] %v1329
      %1394 = vst [vmem:[%s316 + $0x1a8] sm:$0xff] %v1330
      %1395 = vst [vmem:[%s316 + $0x1b0] sm:$0xff] %v1331
      %1396 = vst [vmem:[%s316 + $0x1b8] sm:$0xff] %v1332
      %1397 = vst [vmem:[%s316 + $0x1c0] sm:$0xff] %v1333
      %1398 = vst [vmem:[%s316 + $0x1c8] sm:$0xff] %v1334
      %1399 = vst [vmem:[%s316 + $0x1d0] sm:$0xff] %v1335
      %1400 = vst [vmem:[%s316 + $0x1d8] sm:$0xff] %v1336
      %1401 = vst [vmem:[%s316 + $0x1e0] sm:$0xff] %v1337
      %1402 = vst [vmem:[%s316 + $0x1e8] sm:$0xff] %v1338
      %1403 = vst [vmem:[%s316 + $0x1f0] sm:$0xff] %v1339
      %1404 = vst [vmem:[%s316 + $0x1f8] sm:$0xff] %v1340
      %v1405 = vadd.f32 %v1277, %v1278
      %v1406 = vadd.f32 %v1405, %v1279
      %v1407 = vadd.f32 %v1406, %v1280
      %v1408 = vadd.f32 %v1407, %v1281
      %v1409 = vadd.f32 %v1408, %v1282
      %v1410 = vadd.f32 %v1409, %v1283
      %v1411 = vadd.f32 %v1410, %v1284
      %v1412 = vadd.f32 %v1411, %v1285
      %v1413 = vadd.f32 %v1412, %v1286
      %v1414 = vadd.f32 %v1413, %v1287
      %v1415 = vadd.f32 %v1414, %v1288
      %v1416 = vadd.f32 %v1415, %v1289
      %v1417 = vadd.f32 %v1416, %v1290
      %v1418 = vadd.f32 %v1417, %v1291
      %v1419 = vadd.f32 %v1418, %v1292
      %v1420 = vadd.f32 %v1419, %v1293
      %v1421 = vadd.f32 %v1420, %v1294
      %v1422 = vadd.f32 %v1421, %v1295
      %v1423 = vadd.f32 %v1422, %v1296
      %v1424 = vadd.f32 %v1423, %v1297
      %v1425 = vadd.f32 %v1424, %v1298
      %v1426 = vadd.f32 %v1425, %v1299
      %v1427 = vadd.f32 %v1426, %v1300
      %v1428 = vadd.f32 %v1427, %v1301
      %v1429 = vadd.f32 %v1428, %v1302
      %v1430 = vadd.f32 %v1429, %v1303
      %v1431 = vadd.f32 %v1430, %v1304
      %v1432 = vadd.f32 %v1431, %v1305
      %v1433 = vadd.f32 %v1432, %v1306
      %v1434 = vadd.f32 %v1433, %v1307
      %v1435 = vadd.f32 %v1434, %v1308
      %v1436 = vadd.f32 %v1435, %v1309
      %v1437 = vadd.f32 %v1436, %v1310
      %v1438 = vadd.f32 %v1437, %v1311
      %v1439 = vadd.f32 %v1438, %v1312
      %v1440 = vadd.f32 %v1439, %v1313
      %v1441 = vadd.f32 %v1440, %v1314
      %v1442 = vadd.f32 %v1441, %v1315
      %v1443 = vadd.f32 %v1442, %v1316
      %v1444 = vadd.f32 %v1443, %v1317
      %v1445 = vadd.f32 %v1444, %v1318
      %v1446 = vadd.f32 %v1445, %v1319
      %v1447 = vadd.f32 %v1446, %v1320
      %v1448 = vadd.f32 %v1447, %v1321
      %v1449 = vadd.f32 %v1448, %v1322
      %v1450 = vadd.f32 %v1449, %v1323
      %v1451 = vadd.f32 %v1450, %v1324
      %v1452 = vadd.f32 %v1451, %v1325
      %v1453 = vadd.f32 %v1452, %v1326
      %v1454 = vadd.f32 %v1453, %v1327
      %v1455 = vadd.f32 %v1454, %v1328
      %v1456 = vadd.f32 %v1455, %v1329
      %v1457 = vadd.f32 %v1456, %v1330
      %v1458 = vadd.f32 %v1457, %v1331
      %v1459 = vadd.f32 %v1458, %v1332
      %v1460 = vadd.f32 %v1459, %v1333
      %v1461 = vadd.f32 %v1460, %v1334
      %v1462 = vadd.f32 %v1461, %v1335
      %v1463 = vadd.f32 %v1462, %v1336
      %v1464 = vadd.f32 %v1463, %v1337
      %v1465 = vadd.f32 %v1464, %v1338
      %v1466 = vadd.f32 %v1465, %v1339
      %v1467 = vadd.f32 %v1466, %v1340
      %v1468 = vrot.slane %v1467, 4
      %v1469 = vadd.f32 %v1467, %v1468
      %v1470 = vrot.slane %v1469, 2
      %v1471 = vadd.f32 %v1469, %v1470
      %v1472 = vrot.slane %v1471, 1
      %v1473 = vadd.f32 %v1471, %v1472
      %1474 = vst [vmem:[%s320] sm:$0x1] %v1473
      %v1475 = vmul.f32 %v1277, %v1277
      %v1476 = vmul.f32 %v1278, %v1278
      %v1477 = vmul.f32 %v1279, %v1279
      %v1478 = vmul.f32 %v1280, %v1280
      %v1479 = vmul.f32 %v1281, %v1281
      %v1480 = vmul.f32 %v1282, %v1282
      %v1481 = vmul.f32 %v1283, %v1283
      %v1482 = vmul.f32 %v1284, %v1284
      %v1483 = vmul.f32 %v1285, %v1285
      %v1484 = vmul.f32 %v1286, %v1286
      %v1485 = vmul.f32 %v1287, %v1287
      %v1486 = vmul.f32 %v1288, %v1288
      %v1487 = vmul.f32 %v1289, %v1289
      %v1488 = vmul.f32 %v1290, %v1290
      %v1489 = vmul.f32 %v1291, %v1291
      %v1490 = vmul.f32 %v1292, %v1292
      %v1491 = vmul.f32 %v1293, %v1293
      %v1492 = vmul.f32 %v1294, %v1294
      %v1493 = vmul.f32 %v1295, %v1295
      %v1494 = vmul.f32 %v1296, %v1296
      %v1495 = vmul.f32 %v1297, %v1297
      %v1496 = vmul.f32 %v1298, %v1298
      %v1497 = vmul.f32 %v1299, %v1299
      %v1498 = vmul.f32 %v1300, %v1300
      %v1499 = vmul.f32 %v1301, %v1301
      %v1500 = vmul.f32 %v1302, %v1302
      %v1501 = vmul.f32 %v1303, %v1303
      %v1502 = vmul.f32 %v1304, %v1304
      %v1503 = vmul.f32 %v1305, %v1305
      %v1504 = vmul.f32 %v1306, %v1306
      %v1505 = vmul.f32 %v1307, %v1307
      %v1506 = vmul.f32 %v1308, %v1308
      %v1507 = vmul.f32 %v1309, %v1309
      %v1508 = vmul.f32 %v1310, %v1310
      %v1509 = vmul.f32 %v1311, %v1311
      %v1510 = vmul.f32 %v1312, %v1312
      %v1511 = vmul.f32 %v1313, %v1313
      %v1512 = vmul.f32 %v1314, %v1314
      %v1513 = vmul.f32 %v1315, %v1315
      %v1514 = vmul.f32 %v1316, %v1316
      %v1515 = vmul.f32 %v1317, %v1317
      %v1516 = vmul.f32 %v1318, %v1318
      %v1517 = vmul.f32 %v1319, %v1319
      %v1518 = vmul.f32 %v1320, %v1320
      %v1519 = vmul.f32 %v1321, %v1321
      %v1520 = vmul.f32 %v1322, %v1322
      %v1521 = vmul.f32 %v1323, %v1323
      %v1522 = vmul.f32 %v1324, %v1324
      %v1523 = vmul.f32 %v1325, %v1325
      %v1524 = vmul.f32 %v1326, %v1326
      %v1525 = vmul.f32 %v1327, %v1327
      %v1526 = vmul.f32 %v1328, %v1328
      %v1527 = vmul.f32 %v1329, %v1329
      %v1528 = vmul.f32 %v1330, %v1330
      %v1529 = vmul.f32 %v1331, %v1331
      %v1530 = vmul.f32 %v1332, %v1332
      %v1531 = vmul.f32 %v1333, %v1333
      %v1532 = vmul.f32 %v1334, %v1334
      %v1533 = vmul.f32 %v1335, %v1335
      %v1534 = vmul.f32 %v1336, %v1336
      %v1535 = vmul.f32 %v1337, %v1337
      %v1536 = vmul.f32 %v1338, %v1338
      %v1537 = vmul.f32 %v1339, %v1339
      %v1538 = vmul.f32 %v1340, %v1340
      %v1539 = vadd.f32 %v1475, %v1476
      %v1540 = vadd.f32 %v1539, %v1477
      %v1541 = vadd.f32 %v1540, %v1478
      %v1542 = vadd.f32 %v1541, %v1479
      %v1543 = vadd.f32 %v1542, %v1480
      %v1544 = vadd.f32 %v1543, %v1481
      %v1545 = vadd.f32 %v1544, %v1482
      %v1546 = vadd.f32 %v1545, %v1483
      %v1547 = vadd.f32 %v1546, %v1484
      %v1548 = vadd.f32 %v1547, %v1485
      %v1549 = vadd.f32 %v1548, %v1486
      %v1550 = vadd.f32 %v1549, %v1487
      %v1551 = vadd.f32 %v1550, %v1488
      %v1552 = vadd.f32 %v1551, %v1489
      %v1553 = vadd.f32 %v1552, %v1490
      %v1554 = vadd.f32 %v1553, %v1491
      %v1555 = vadd.f32 %v1554, %v1492
      %v1556 = vadd.f32 %v1555, %v1493
      %v1557 = vadd.f32 %v1556, %v1494
      %v1558 = vadd.f32 %v1557, %v1495
      %v1559 = vadd.f32 %v1558, %v1496
      %v1560 = vadd.f32 %v1559, %v1497
      %v1561 = vadd.f32 %v1560, %v1498
      %v1562 = vadd.f32 %v1561, %v1499
      %v1563 = vadd.f32 %v1562, %v1500
      %v1564 = vadd.f32 %v1563, %v1501
      %v1565 = vadd.f32 %v1564, %v1502
      %v1566 = vadd.f32 %v1565, %v1503
      %v1567 = vadd.f32 %v1566, %v1504
      %v1568 = vadd.f32 %v1567, %v1505
      %v1569 = vadd.f32 %v1568, %v1506
      %v1570 = vadd.f32 %v1569, %v1507
      %v1571 = vadd.f32 %v1570, %v1508
      %v1572 = vadd.f32 %v1571, %v1509
      %v1573 = vadd.f32 %v1572, %v1510
      %v1574 = vadd.f32 %v1573, %v1511
      %v1575 = vadd.f32 %v1574, %v1512
      %v1576 = vadd.f32 %v1575, %v1513
      %v1577 = vadd.f32 %v1576, %v1514
      %v1578 = vadd.f32 %v1577, %v1515
      %v1579 = vadd.f32 %v1578, %v1516
      %v1580 = vadd.f32 %v1579, %v1517
      %v1581 = vadd.f32 %v1580, %v1518
      %v1582 = vadd.f32 %v1581, %v1519
      %v1583 = vadd.f32 %v1582, %v1520
      %v1584 = vadd.f32 %v1583, %v1521
      %v1585 = vadd.f32 %v1584, %v1522
      %v1586 = vadd.f32 %v1585, %v1523
      %v1587 = vadd.f32 %v1586, %v1524
      %v1588 = vadd.f32 %v1587, %v1525
      %v1589 = vadd.f32 %v1588, %v1526
      %v1590 = vadd.f32 %v1589, %v1527
      %v1591 = vadd.f32 %v1590, %v1528
      %v1592 = vadd.f32 %v1591, %v1529
      %v1593 = vadd.f32 %v1592, %v1530
      %v1594 = vadd.f32 %v1593, %v1531
      %v1595 = vadd.f32 %v1594, %v1532
      %v1596 = vadd.f32 %v1595, %v1533
      %v1597 = vadd.f32 %v1596, %v1534
      %v1598 = vadd.f32 %v1597, %v1535
      %v1599 = vadd.f32 %v1598, %v1536
      %v1600 = vadd.f32 %v1599, %v1537
      %v1601 = vadd.f32 %v1600, %v1538
      %v1602 = vrot.slane %v1601, 4
      %v1603 = vadd.f32 %v1601, %v1602
      %v1604 = vrot.slane %v1603, 2
      %v1605 = vadd.f32 %v1603, %v1604
      %v1606 = vrot.slane %v1605, 1
      %v1607 = vadd.f32 %v1605, %v1606
      %1608 = vst [vmem:[%s323] sm:$0x1] %v1607
      %s1609 = smul.u32 64, %s19
      %p1610 = scmp.lt.s32.totalorder %s1609, 255
      %s1611 = scalar_select %p1610, %s1609, 255
      %s1612 = smul.addr %s1611, 8
      %s1613 = scalar_lea.vmem %s5, %s1612
      %p1614 = scmp.lt.s32.totalorder %s19, 3
      %s1615 = scalar_select %p1614, %s19, 3
      %s1616 = scalar_lea.vmem %s6, %s1615
      %p1617 = scmp.lt.s32.totalorder %s19, 3
      %s1618 = scalar_select %p1617, %s19, 3
      %s1619 = scalar_lea.vmem %s7, %s1618
      // Predicated region
      $region41: #{_lambda_.20} parent=39 // pred_check
        %p1620 = pneg %p152
      $region42: #{_lambda_.20} parent=39 // pred_check_branch
        %1622 = sbr.rel (%p1620) target = $region44
      $region43: #{_lambda_.20} parent=39 // pred_region
        %s1623 = smul.u32 64, %s19
      $region44: #{_lambda_.20} parent=39 // pred_fallthru
        _
      // Predicated region
      $region45: #{_lambda_.20} parent=39 // pred_check
        %p1624 = pneg %p178
      $region46: #{_lambda_.20} parent=39 // pred_check_branch
        %1626 = sbr.rel (%p1624) target = $region48
      $region47: #{_lambda_.20} parent=39 // pred_region
        _
      $region48: #{_lambda_.20} parent=39 // pred_fallthru
        _
      // Predicated region
      $region49: #{_lambda_.20} parent=39 // pred_check
        %p1627 = pneg %p204
      $region50: #{_lambda_.20} parent=39 // pred_check_branch
        %1629 = sbr.rel (%p1627) target = $region52
      $region51: #{_lambda_.20} parent=39 // pred_region
        _
      $region52: #{_lambda_.20} parent=39 // pred_fallthru
        _
    $region40: #{_lambda_.20} parent=5 // pred_fallthru
      _
    %p1630 = scmp.le.s32.totalorder 2, %s14
    // Predicated region
    $region53: #{_lambda_.20} parent=5 // pred_check
      %p1631 = pneg %p1630
    $region54: #{_lambda_.20} parent=5 // pred_check_branch
      %1633 = sbr.rel (%p1631) target = $region56
    $region55: #{_lambda_.20} parent=5 // pred_region
      %s1634 = ssub.s32 %s14, 2
      // Predicated region
      $region57: #{_lambda_.20} parent=55 // pred_check
        %p1635 = pneg %p158
      $region58: #{_lambda_.20} parent=55 // pred_check_branch
        %1637 = sbr.rel (%p1635) target = $region60
      $region59: #{_lambda_.20} parent=55 // pred_region
        %s1638 = smul.u32 64, %s20
        %p1639 = scmp.lt.s32.totalorder %s1638, 255
        %s1640 = scalar_select %p1639, %s1638, 255
        %s1641 = smul.addr %s1640, 8
        %s1642 = scalar_lea.vmem %s5, %s1641
      $region60: #{_lambda_.20} parent=55 // pred_fallthru
        _
      // Predicated region
      $region61: #{_lambda_.20} parent=55 // pred_check
        %p1643 = pneg %p184
      $region62: #{_lambda_.20} parent=55 // pred_check_branch
        %1645 = sbr.rel (%p1643) target = $region64
      $region63: #{_lambda_.20} parent=55 // pred_region
        %p1646 = scmp.lt.s32.totalorder %s20, 3
        %s1647 = scalar_select %p1646, %s20, 3
        %s1648 = scalar_lea.vmem %s6, %s1647
      $region64: #{_lambda_.20} parent=55 // pred_fallthru
        _
      // Predicated region
      $region65: #{_lambda_.20} parent=55 // pred_check
        %p1649 = pneg %p210
      $region66: #{_lambda_.20} parent=55 // pred_check_branch
        %1651 = sbr.rel (%p1649) target = $region68
      $region67: #{_lambda_.20} parent=55 // pred_region
        %p1652 = scmp.lt.s32.totalorder %s20, 3
        %s1653 = scalar_select %p1652, %s20, 3
        %s1654 = scalar_lea.vmem %s7, %s1653
      $region68: #{_lambda_.20} parent=55 // pred_fallthru
        _
    $region56: #{_lambda_.20} parent=5 // pred_fallthru
      _
  $region6: #{_lambda_.20} parent=0 // loop_footer
    %s18 = sadd.s32 1, %s14
  $region7: #{_lambda_.20} parent=0 // loop_footer_branch
    %13 = sbr.rel target = $region3
  $region8: #{_lambda_.20} parent=0 // loop_exit
    _

// kernel: _lambda_.24
$region0: #{_lambda_.24}
  #allocation0 [shape = 'u32[]', space=smem, size = 0x4, offset = 0x4, fixed_abs, tag = 'smem constant byte address 0x4 - core index']
  #allocation1 [shape = 'u32[144,128]{1,0:T(1,128)}', space=vmem, size = 0x12000, scoped, tag = 'internal scratch']
  %s0 = inlined_call_operand.vmem [shape: bf16[512,16], index: 0, kind: input, shape index: {}]
  %s1 = inlined_call_operand.vmem [shape: bf16[16,128], index: 1, kind: input, shape index: {}]
  %s2 = inlined_call_operand.vmem [shape: f32[512,128], index: 2, kind: output, shape index: {0}]
  %s3 = inlined_call_operand.vmem [shape: f32[1,1,128], index: 3, kind: output, shape index: {1}]
  %s4 = inlined_call_operand.vmem [shape: f32[1,1,128], index: 4, kind: output, shape index: {2}]
  %5 = xla_tuple %s2, %s3, %s4
  %s6 = sld [smem:[#allocation0]]
  $region34: #{_lambda_.24} parent=0
    _
  %s8 = ssub.s32 1, %s6
  %s9 = scalar_select 0, %s8, %s6
  // Predicated region
  $region2: #{_lambda_.24} parent=0 // pred_check
    _
  $region3: #{_lambda_.24} parent=0 // pred_check_branch
    %11 = sbr.rel (0) target = $region5
  $region4: #{_lambda_.24} parent=0 // pred_region
    _
  $region5: #{_lambda_.24} parent=0 // pred_fallthru
    _
  // Predicated region
  $region6: #{_lambda_.24} parent=0 // pred_check
    _
  $region7: #{_lambda_.24} parent=0 // pred_check_branch
    %13 = sbr.rel (0) target = $region9
  $region8: #{_lambda_.24} parent=0 // pred_region
    _
  $region9: #{_lambda_.24} parent=0 // pred_fallthru
    _
  %v15 = vld [vmem:[%s0] sm:$0xf]
  %v16 = vld [vmem:[%s0 + $0x4] sm:$0xf]
  %v17 = vld [vmem:[%s0 + $0x8] sm:$0xf]
  %v18 = vld [vmem:[%s0 + $0xc] sm:$0xf]
  %v19 = vld [vmem:[%s0 + $0x10] sm:$0xf]
  %v20 = vld [vmem:[%s0 + $0x14] sm:$0xf]
  %v21 = vld [vmem:[%s0 + $0x18] sm:$0xf]
  %v22 = vld [vmem:[%s0 + $0x1c] sm:$0xf]
  %v23 = vld [vmem:[%s0 + $0x20] sm:$0xf]
  %v24 = vld [vmem:[%s0 + $0x24] sm:$0xf]
  %v25 = vld [vmem:[%s0 + $0x28] sm:$0xf]
  %v26 = vld [vmem:[%s0 + $0x2c] sm:$0xf]
  %v27 = vld [vmem:[%s0 + $0x30] sm:$0xf]
  %v28 = vld [vmem:[%s0 + $0x34] sm:$0xf]
  %v29 = vld [vmem:[%s0 + $0x38] sm:$0xf]
  %v30 = vld [vmem:[%s0 + $0x3c] sm:$0xf]
  %v31 = vld [vmem:[%s0 + $0x40] sm:$0xf]
  %v32 = vld [vmem:[%s0 + $0x44] sm:$0xf]
  %v33 = vld [vmem:[%s0 + $0x48] sm:$0xf]
  %v34 = vld [vmem:[%s0 + $0x4c] sm:$0xf]
  %v35 = vld [vmem:[%s0 + $0x50] sm:$0xf]
  %v36 = vld [vmem:[%s0 + $0x54] sm:$0xf]
  %v37 = vld [vmem:[%s0 + $0x58] sm:$0xf]
  %v38 = vld [vmem:[%s0 + $0x5c] sm:$0xf]
  %v39 = vld [vmem:[%s0 + $0x60] sm:$0xf]
  %v40 = vld [vmem:[%s0 + $0x64] sm:$0xf]
  %v41 = vld [vmem:[%s0 + $0x68] sm:$0xf]
  %v42 = vld [vmem:[%s0 + $0x6c] sm:$0xf]
  %v43 = vld [vmem:[%s0 + $0x70] sm:$0xf]
  %v44 = vld [vmem:[%s0 + $0x74] sm:$0xf]
  %v45 = vld [vmem:[%s0 + $0x78] sm:$0xf]
  %v46 = vld [vmem:[%s0 + $0x7c] sm:$0xf]
  %v47 = vld [vmem:[%s0 + $0x80] sm:$0xf]
  %v48 = vld [vmem:[%s0 + $0x84] sm:$0xf]
  %v49 = vld [vmem:[%s0 + $0x88] sm:$0xf]
  %v50 = vld [vmem:[%s0 + $0x8c] sm:$0xf]
  %v51 = vld [vmem:[%s0 + $0x90] sm:$0xf]
  %v52 = vld [vmem:[%s0 + $0x94] sm:$0xf]
  %v53 = vld [vmem:[%s0 + $0x98] sm:$0xf]
  %v54 = vld [vmem:[%s0 + $0x9c] sm:$0xf]
  %v55 = vld [vmem:[%s0 + $0xa0] sm:$0xf]
  %v56 = vld [vmem:[%s0 + $0xa4] sm:$0xf]
  %v57 = vld [vmem:[%s0 + $0xa8] sm:$0xf]
  %v58 = vld [vmem:[%s0 + $0xac] sm:$0xf]
  %v59 = vld [vmem:[%s0 + $0xb0] sm:$0xf]
  %v60 = vld [vmem:[%s0 + $0xb4] sm:$0xf]
  %v61 = vld [vmem:[%s0 + $0xb8] sm:$0xf]
  %v62 = vld [vmem:[%s0 + $0xbc] sm:$0xf]
  %v63 = vld [vmem:[%s0 + $0xc0] sm:$0xf]
  %v64 = vld [vmem:[%s0 + $0xc4] sm:$0xf]
  %v65 = vld [vmem:[%s0 + $0xc8] sm:$0xf]
  %v66 = vld [vmem:[%s0 + $0xcc] sm:$0xf]
  %v67 = vld [vmem:[%s0 + $0xd0] sm:$0xf]
  %v68 = vld [vmem:[%s0 + $0xd4] sm:$0xf]
  %v69 = vld [vmem:[%s0 + $0xd8] sm:$0xf]
  %v70 = vld [vmem:[%s0 + $0xdc] sm:$0xf]
  %v71 = vld [vmem:[%s0 + $0xe0] sm:$0xf]
  %v72 = vld [vmem:[%s0 + $0xe4] sm:$0xf]
  %v73 = vld [vmem:[%s0 + $0xe8] sm:$0xf]
  %v74 = vld [vmem:[%s0 + $0xec] sm:$0xf]
  %v75 = vld [vmem:[%s0 + $0xf0] sm:$0xf]
  %v76 = vld [vmem:[%s0 + $0xf4] sm:$0xf]
  %v77 = vld [vmem:[%s0 + $0xf8] sm:$0xf]
  %v78 = vld [vmem:[%s0 + $0xfc] sm:$0xf]
  %v79 = vld [vmem:[%s1] sm:$0xf]
  %v80 = vld [vmem:[%s1 + $0x4] sm:$0xf]
  %v145 = vunpack.c.l.b16 %v15
  %v146 = vunpack.c.l.b16 %v16
  %v147 = vunpack.c.l.b16 %v17
  %v148 = vunpack.c.l.b16 %v18
  %v149 = vunpack.c.l.b16 %v19
  %v150 = vunpack.c.l.b16 %v20
  %v151 = vunpack.c.l.b16 %v21
  %v152 = vunpack.c.l.b16 %v22
  %v153 = vunpack.c.l.b16 %v23
  %v154 = vunpack.c.l.b16 %v24
  %v155 = vunpack.c.l.b16 %v25
  %v156 = vunpack.c.l.b16 %v26
  %v157 = vunpack.c.l.b16 %v27
  %v158 = vunpack.c.l.b16 %v28
  %v159 = vunpack.c.l.b16 %v29
  %v160 = vunpack.c.l.b16 %v30
  %v161 = vunpack.c.l.b16 %v31
  %v162 = vunpack.c.l.b16 %v32
  %v163 = vunpack.c.l.b16 %v33
  %v164 = vunpack.c.l.b16 %v34
  %v165 = vunpack.c.l.b16 %v35
  %v166 = vunpack.c.l.b16 %v36
  %v167 = vunpack.c.l.b16 %v37
  %v168 = vunpack.c.l.b16 %v38
  %v169 = vunpack.c.l.b16 %v39
  %v170 = vunpack.c.l.b16 %v40
  %v171 = vunpack.c.l.b16 %v41
  %v172 = vunpack.c.l.b16 %v42
  %v173 = vunpack.c.l.b16 %v43
  %v174 = vunpack.c.l.b16 %v44
  %v175 = vunpack.c.l.b16 %v45
  %v176 = vunpack.c.l.b16 %v46
  %v177 = vunpack.c.l.b16 %v47
  %v178 = vunpack.c.l.b16 %v48
  %v179 = vunpack.c.l.b16 %v49
  %v180 = vunpack.c.l.b16 %v50
  %v181 = vunpack.c.l.b16 %v51
  %v182 = vunpack.c.l.b16 %v52
  %v183 = vunpack.c.l.b16 %v53
  %v184 = vunpack.c.l.b16 %v54
  %v185 = vunpack.c.l.b16 %v55
  %v186 = vunpack.c.l.b16 %v56
  %v187 = vunpack.c.l.b16 %v57
  %v188 = vunpack.c.l.b16 %v58
  %v189 = vunpack.c.l.b16 %v59
  %v190 = vunpack.c.l.b16 %v60
  %v191 = vunpack.c.l.b16 %v61
  %v192 = vunpack.c.l.b16 %v62
  %v193 = vunpack.c.l.b16 %v63
  %v194 = vunpack.c.l.b16 %v64
  %v195 = vunpack.c.l.b16 %v65
  %v196 = vunpack.c.l.b16 %v66
  %v197 = vunpack.c.l.b16 %v67
  %v198 = vunpack.c.l.b16 %v68
  %v199 = vunpack.c.l.b16 %v69
  %v200 = vunpack.c.l.b16 %v70
  %v201 = vunpack.c.l.b16 %v71
  %v202 = vunpack.c.l.b16 %v72
  %v203 = vunpack.c.l.b16 %v73
  %v204 = vunpack.c.l.b16 %v74
  %v205 = vunpack.c.l.b16 %v75
  %v206 = vunpack.c.l.b16 %v76
  %v207 = vunpack.c.l.b16 %v77
  %v208 = vunpack.c.l.b16 %v78
  %v209 = vpack.c.b16 %v146, %v145
  %v210 = vpack.c.b16 %v148, %v147
  %v211 = vpack.c.b16 %v150, %v149
  %v212 = vpack.c.b16 %v152, %v151
  %v213 = vpack.c.b16 %v154, %v153
  %v214 = vpack.c.b16 %v156, %v155
  %v215 = vpack.c.b16 %v158, %v157
  %v216 = vpack.c.b16 %v160, %v159
  %v217 = vpack.c.b16 %v162, %v161
  %v218 = vpack.c.b16 %v164, %v163
  %v219 = vpack.c.b16 %v166, %v165
  %v220 = vpack.c.b16 %v168, %v167
  %v221 = vpack.c.b16 %v170, %v169
  %v222 = vpack.c.b16 %v172, %v171
  %v223 = vpack.c.b16 %v174, %v173
  %v224 = vpack.c.b16 %v176, %v175
  %v225 = vpack.c.b16 %v178, %v177
  %v226 = vpack.c.b16 %v180, %v179
  %v227 = vpack.c.b16 %v182, %v181
  %v228 = vpack.c.b16 %v184, %v183
  %v229 = vpack.c.b16 %v186, %v185
  %v230 = vpack.c.b16 %v188, %v187
  %v231 = vpack.c.b16 %v190, %v189
  %v232 = vpack.c.b16 %v192, %v191
  %v233 = vpack.c.b16 %v194, %v193
  %v234 = vpack.c.b16 %v196, %v195
  %v235 = vpack.c.b16 %v198, %v197
  %v236 = vpack.c.b16 %v200, %v199
  %v237 = vpack.c.b16 %v202, %v201
  %v238 = vpack.c.b16 %v204, %v203
  %v239 = vpack.c.b16 %v206, %v205
  %v240 = vpack.c.b16 %v208, %v207
  %v243 = vunpack.c.l.b16 %v79
  %v244 = vunpack.c.l.b16 %v80
  %v245 = vpack.c.b16 %v244, %v243
  %vm247 = vcmask 130048
  %v249 = vsel %vm247, %v209, 0
  %v252 = vsel %vm247, %v210, 0
  %v255 = vsel %vm247, %v211, 0
  %v258 = vsel %vm247, %v212, 0
  %v261 = vsel %vm247, %v213, 0
  %v264 = vsel %vm247, %v214, 0
  %v267 = vsel %vm247, %v215, 0
  %v270 = vsel %vm247, %v216, 0
  %v273 = vsel %vm247, %v217, 0
  %v276 = vsel %vm247, %v218, 0
  %v279 = vsel %vm247, %v219, 0
  %v282 = vsel %vm247, %v220, 0
  %v285 = vsel %vm247, %v221, 0
  %v288 = vsel %vm247, %v222, 0
  %v291 = vsel %vm247, %v223, 0
  %v294 = vsel %vm247, %v224, 0
  %v297 = vsel %vm247, %v225, 0
  %v300 = vsel %vm247, %v226, 0
  %v303 = vsel %vm247, %v227, 0
  %v306 = vsel %vm247, %v228, 0
  %v309 = vsel %vm247, %v229, 0
  %v312 = vsel %vm247, %v230, 0
  %v315 = vsel %vm247, %v231, 0
  %v318 = vsel %vm247, %v232, 0
  %v321 = vsel %vm247, %v233, 0
  %v324 = vsel %vm247, %v234, 0
  %v327 = vsel %vm247, %v235, 0
  %v330 = vsel %vm247, %v236, 0
  %v333 = vsel %vm247, %v237, 0
  %v336 = vsel %vm247, %v238, 0
  %v339 = vsel %vm247, %v239, 0
  %v342 = vsel %vm247, %v240, 0
  %344 = vmatprep.subr.bf16.mxu0 0
  %345 = vmatpush1.bf16.msra.mxu0 %v245
  %346 = vmatprep.subr.bf16.mxu0 0
  %347 = vmatpush1.bf16.msra.mxu0 0
  %348 = vmatprep.subr.bf16.mxu0 0
  %349 = vmatpush1.bf16.msra.mxu0 0
  %350 = vmatprep.subr.bf16.mxu0 0
  %351 = vmatpush1.bf16.msra.mxu0 0
  %352 = vmatprep.subr.bf16.mxu0 0
  %353 = vmatpush1.bf16.msra.mxu0 0
  %354 = vmatprep.subr.bf16.mxu0 0
  %355 = vmatpush1.bf16.msra.mxu0 0
  %356 = vmatprep.subr.bf16.mxu0 0
  %357 = vmatpush1.bf16.msra.mxu0 0
  %358 = vmatprep.subr.bf16.mxu0 0
  %359 = vmatpush1.bf16.msra.mxu0 0
  %360 = vmatprep.subr.bf16.mxu0 0
  %361 = vmatpush1.bf16.msra.mxu0 0
  %362 = vmatprep.subr.bf16.mxu0 0
  %363 = vmatpush1.bf16.msra.mxu0 0
  %364 = vmatprep.subr.bf16.mxu0 0
  %365 = vmatpush1.bf16.msra.mxu0 0
  %366 = vmatprep.subr.bf16.mxu0 0
  %367 = vmatpush1.bf16.msra.mxu0 0
  %368 = vmatprep.subr.bf16.mxu0 0
  %369 = vmatpush1.bf16.msra.mxu0 0
  %370 = vmatprep.subr.bf16.mxu0 0
  %371 = vmatpush1.bf16.msra.mxu0 0
  %372 = vmatprep.subr.bf16.mxu0 0
  %373 = vmatpush1.bf16.msra.mxu0 0
  %374 = vmatprep.subr.bf16.mxu0 0
  %375 = vmatpush1.bf16.msra.mxu0 0
  %376 = vmatprep.mubr.bf16.mxu0 0
  %377 = vmatmul.mubr.bf16.gmra.mrb[0].mxu0 %v249
  %v378 = vpop.f32.mrb[0].mxu0
  %v379 = vadd.f32 0.0, %v378
  %v380 = vpop.f32.mrb[0].mxu0
  %v381 = vpop.f32.mrb[0].mxu0
  %v382 = vadd.f32 0.0, %v381
  %v383 = vpop.f32.mrb[0].mxu0
  %384 = vmatprep.mubr.bf16.mxu0 0
  %385 = vmatmul.mubr.bf16.gmra.mrb[0].mxu0 %v252
  %v386 = vpop.f32.mrb[0].mxu0
  %v387 = vadd.f32 0.0, %v386
  %v388 = vpop.f32.mrb[0].mxu0
  %v389 = vpop.f32.mrb[0].mxu0
  %v390 = vadd.f32 0.0, %v389
  %v391 = vpop.f32.mrb[0].mxu0
  %392 = vmatprep.mubr.bf16.mxu0 0
  %393 = vmatmul.mubr.bf16.gmra.mrb[0].mxu0 %v255
  %v394 = vpop.f32.mrb[0].mxu0
  %v395 = vadd.f32 0.0, %v394
  %v396 = vpop.f32.mrb[0].mxu0
  %v397 = vpop.f32.mrb[0].mxu0
  %v398 = vadd.f32 0.0, %v397
  %v399 = vpop.f32.mrb[0].mxu0
  %400 = vmatprep.mubr.bf16.mxu0 0
  %401 = vmatmul.mubr.bf16.gmra.mrb[0].mxu0 %v258
  %v402 = vpop.f32.mrb[0].mxu0
  %v403 = vadd.f32 0.0, %v402
  %v404 = vpop.f32.mrb[0].mxu0
  %v405 = vpop.f32.mrb[0].mxu0
  %v406 = vadd.f32 0.0, %v405
  %v407 = vpop.f32.mrb[0].mxu0
  %408 = vmatprep.mubr.bf16.mxu0 0
  %409 = vmatmul.mubr.bf16.gmra.mrb[0].mxu0 %v261
  %v410 = vpop.f32.mrb[0].mxu0
  %v411 = vadd.f32 0.0, %v410
  %v412 = vpop.f32.mrb[0].mxu0
  %v413 = vpop.f32.mrb[0].mxu0
  %v414 = vadd.f32 0.0, %v413
  %v415 = vpop.f32.mrb[0].mxu0
  %416 = vmatprep.mubr.bf16.mxu0 0
  %417 = vmatmul.mubr.bf16.gmra.mrb[0].mxu0 %v264
  %v418 = vpop.f32.mrb[0].mxu0
  %v419 = vadd.f32 0.0, %v418
  %v420 = vpop.f32.mrb[0].mxu0
  %v421 = vpop.f32.mrb[0].mxu0
  %v422 = vadd.f32 0.0, %v421
  %v423 = vpop.f32.mrb[0].mxu0
  %424 = vmatprep.mubr.bf16.mxu0 0
  %425 = vmatmul.mubr.bf16.gmra.mrb[0].mxu0 %v267
  %v426 = vpop.f32.mrb[0].mxu0
  %v427 = vadd.f32 0.0, %v426
  %v428 = vpop.f32.mrb[0].mxu0
  %v429 = vpop.f32.mrb[0].mxu0
  %v430 = vadd.f32 0.0, %v429
  %v431 = vpop.f32.mrb[0].mxu0
  %432 = vmatprep.mubr.bf16.mxu0 0
  %433 = vmatmul.mubr.bf16.gmra.mrb[0].mxu0 %v270
  %v434 = vpop.f32.mrb[0].mxu0
  %v435 = vadd.f32 0.0, %v434
  %v436 = vpop.f32.mrb[0].mxu0
  %v437 = vpop.f32.mrb[0].mxu0
  %v438 = vadd.f32 0.0, %v437
  %v439 = vpop.f32.mrb[0].mxu0
  %440 = vmatprep.mubr.bf16.mxu0 0
  %441 = vmatmul.mubr.bf16.gmra.mrb[0].mxu0 %v273
  %v442 = vpop.f32.mrb[0].mxu0
  %v443 = vadd.f32 0.0, %v442
  %v444 = vpop.f32.mrb[0].mxu0
  %v445 = vpop.f32.mrb[0].mxu0
  %v446 = vadd.f32 0.0, %v445
  %v447 = vpop.f32.mrb[0].mxu0
  %448 = vmatprep.mubr.bf16.mxu0 0
  %449 = vmatmul.mubr.bf16.gmra.mrb[0].mxu0 %v276
  %v450 = vpop.f32.mrb[0].mxu0
  %v451 = vadd.f32 0.0, %v450
  %v452 = vpop.f32.mrb[0].mxu0
  %v453 = vpop.f32.mrb[0].mxu0
  %v454 = vadd.f32 0.0, %v453
  %v455 = vpop.f32.mrb[0].mxu0
  %456 = vmatprep.mubr.bf16.mxu0 0
  %457 = vmatmul.mubr.bf16.gmra.mrb[0].mxu0 %v279
  %v458 = vpop.f32.mrb[0].mxu0
  %v459 = vadd.f32 0.0, %v458
  %v460 = vpop.f32.mrb[0].mxu0
  %v461 = vpop.f32.mrb[0].mxu0
  %v462 = vadd.f32 0.0, %v461
  %v463 = vpop.f32.mrb[0].mxu0
  %464 = vmatprep.mubr.bf16.mxu0 0
  %465 = vmatmul.mubr.bf16.gmra.mrb[0].mxu0 %v282
  %v466 = vpop.f32.mrb[0].mxu0
  %v467 = vadd.f32 0.0, %v466
  %v468 = vpop.f32.mrb[0].mxu0
  %v469 = vpop.f32.mrb[0].mxu0
  %v470 = vadd.f32 0.0, %v469
  %v471 = vpop.f32.mrb[0].mxu0
  %472 = vmatprep.mubr.bf16.mxu0 0
  %473 = vmatmul.mubr.bf16.gmra.mrb[0].mxu0 %v285
  %v474 = vpop.f32.mrb[0].mxu0
  %v475 = vadd.f32 0.0, %v474
  %v476 = vpop.f32.mrb[0].mxu0
  %v477 = vpop.f32.mrb[0].mxu0
  %v478 = vadd.f32 0.0, %v477
  %v479 = vpop.f32.mrb[0].mxu0
  %480 = vmatprep.mubr.bf16.mxu0 0
  %481 = vmatmul.mubr.bf16.gmra.mrb[0].mxu0 %v288
  %v482 = vpop.f32.mrb[0].mxu0
  %v483 = vadd.f32 0.0, %v482
  %v484 = vpop.f32.mrb[0].mxu0
  %v485 = vpop.f32.mrb[0].mxu0
  %v486 = vadd.f32 0.0, %v485
  %v487 = vpop.f32.mrb[0].mxu0
  %488 = vmatprep.mubr.bf16.mxu0 0
  %489 = vmatmul.mubr.bf16.gmra.mrb[0].mxu0 %v291
  %v490 = vpop.f32.mrb[0].mxu0
  %v491 = vadd.f32 0.0, %v490
  %v492 = vpop.f32.mrb[0].mxu0
  %v493 = vpop.f32.mrb[0].mxu0
  %v494 = vadd.f32 0.0, %v493
  %v495 = vpop.f32.mrb[0].mxu0
  %496 = vmatprep.mubr.bf16.mxu0 0
  %497 = vmatmul.mubr.bf16.gmra.mrb[0].mxu0 %v294
  %v498 = vpop.f32.mrb[0].mxu0
  %v499 = vadd.f32 0.0, %v498
  %v500 = vpop.f32.mrb[0].mxu0
  %v501 = vpop.f32.mrb[0].mxu0
  %v502 = vadd.f32 0.0, %v501
  %v503 = vpop.f32.mrb[0].mxu0
  %504 = vmatprep.mubr.bf16.mxu0 0
  %505 = vmatmul.mubr.bf16.gmra.mrb[0].mxu0 %v297
  %v506 = vpop.f32.mrb[0].mxu0
  %v507 = vadd.f32 0.0, %v506
  %v508 = vpop.f32.mrb[0].mxu0
  %v509 = vpop.f32.mrb[0].mxu0
  %v510 = vadd.f32 0.0, %v509
  %v511 = vpop.f32.mrb[0].mxu0
  %512 = vmatprep.mubr.bf16.mxu0 0
  %513 = vmatmul.mubr.bf16.gmra.mrb[0].mxu0 %v300
  %v514 = vpop.f32.mrb[0].mxu0
  %v515 = vadd.f32 0.0, %v514
  %v516 = vpop.f32.mrb[0].mxu0
  %v517 = vpop.f32.mrb[0].mxu0
  %v518 = vadd.f32 0.0, %v517
  %v519 = vpop.f32.mrb[0].mxu0
  %520 = vmatprep.mubr.bf16.mxu0 0
  %521 = vmatmul.mubr.bf16.gmra.mrb[0].mxu0 %v303
  %v522 = vpop.f32.mrb[0].mxu0
  %v523 = vadd.f32 0.0, %v522
  %v524 = vpop.f32.mrb[0].mxu0
  %v525 = vpop.f32.mrb[0].mxu0
  %v526 = vadd.f32 0.0, %v525
  %v527 = vpop.f32.mrb[0].mxu0
  %528 = vmatprep.mubr.bf16.mxu0 0
  %529 = vmatmul.mubr.bf16.gmra.mrb[0].mxu0 %v306
  %v530 = vpop.f32.mrb[0].mxu0
  %v531 = vadd.f32 0.0, %v530
  %v532 = vpop.f32.mrb[0].mxu0
  %v533 = vpop.f32.mrb[0].mxu0
  %v534 = vadd.f32 0.0, %v533
  %v535 = vpop.f32.mrb[0].mxu0
  %536 = vmatprep.mubr.bf16.mxu0 0
  %537 = vmatmul.mubr.bf16.gmra.mrb[0].mxu0 %v309
  %v538 = vpop.f32.mrb[0].mxu0
  %v539 = vadd.f32 0.0, %v538
  %v540 = vpop.f32.mrb[0].mxu0
  %v541 = vpop.f32.mrb[0].mxu0
  %v542 = vadd.f32 0.0, %v541
  %v543 = vpop.f32.mrb[0].mxu0
  %544 = vmatprep.mubr.bf16.mxu0 0
  %545 = vmatmul.mubr.bf16.gmra.mrb[0].mxu0 %v312
  %v546 = vpop.f32.mrb[0].mxu0
  %v547 = vadd.f32 0.0, %v546
  %v548 = vpop.f32.mrb[0].mxu0
  %v549 = vpop.f32.mrb[0].mxu0
  %v550 = vadd.f32 0.0, %v549
  %v551 = vpop.f32.mrb[0].mxu0
  %552 = vmatprep.mubr.bf16.mxu0 0
  %553 = vmatmul.mubr.bf16.gmra.mrb[0].mxu0 %v315
  %v554 = vpop.f32.mrb[0].mxu0
  %v555 = vadd.f32 0.0, %v554
  %v556 = vpop.f32.mrb[0].mxu0
  %v557 = vpop.f32.mrb[0].mxu0
  %v558 = vadd.f32 0.0, %v557
  %v559 = vpop.f32.mrb[0].mxu0
  %560 = vmatprep.mubr.bf16.mxu0 0
  %561 = vmatmul.mubr.bf16.gmra.mrb[0].mxu0 %v318
  %v562 = vpop.f32.mrb[0].mxu0
  %v563 = vadd.f32 0.0, %v562
  %v564 = vpop.f32.mrb[0].mxu0
  %v565 = vpop.f32.mrb[0].mxu0
  %v566 = vadd.f32 0.0, %v565
  %v567 = vpop.f32.mrb[0].mxu0
  %568 = vmatprep.mubr.bf16.mxu0 0
  %569 = vmatmul.mubr.bf16.gmra.mrb[0].mxu0 %v321
  %v570 = vpop.f32.mrb[0].mxu0
  %v571 = vadd.f32 0.0, %v570
  %v572 = vpop.f32.mrb[0].mxu0
  %v573 = vpop.f32.mrb[0].mxu0
  %v574 = vadd.f32 0.0, %v573
  %v575 = vpop.f32.mrb[0].mxu0
  %576 = vmatprep.mubr.bf16.mxu0 0
  %577 = vmatmul.mubr.bf16.gmra.mrb[0].mxu0 %v324
  %v578 = vpop.f32.mrb[0].mxu0
  %v579 = vadd.f32 0.0, %v578
  %v580 = vpop.f32.mrb[0].mxu0
  %v581 = vpop.f32.mrb[0].mxu0
  %v582 = vadd.f32 0.0, %v581
  %v583 = vpop.f32.mrb[0].mxu0
  %584 = vmatprep.mubr.bf16.mxu0 0
  %585 = vmatmul.mubr.bf16.gmra.mrb[0].mxu0 %v327
  %v586 = vpop.f32.mrb[0].mxu0
  %v587 = vadd.f32 0.0, %v586
  %v588 = vpop.f32.mrb[0].mxu0
  %v589 = vpop.f32.mrb[0].mxu0
  %v590 = vadd.f32 0.0, %v589
  %v591 = vpop.f32.mrb[0].mxu0
  %592 = vmatprep.mubr.bf16.mxu0 0
  %593 = vmatmul.mubr.bf16.gmra.mrb[0].mxu0 %v330
  %v594 = vpop.f32.mrb[0].mxu0
  %v595 = vadd.f32 0.0, %v594
  %v596 = vpop.f32.mrb[0].mxu0
  %v597 = vpop.f32.mrb[0].mxu0
  %v598 = vadd.f32 0.0, %v597
  %v599 = vpop.f32.mrb[0].mxu0
  %600 = vmatprep.mubr.bf16.mxu0 0
  %601 = vmatmul.mubr.bf16.gmra.mrb[0].mxu0 %v333
  %v602 = vpop.f32.mrb[0].mxu0
  %v603 = vadd.f32 0.0, %v602
  %v604 = vpop.f32.mrb[0].mxu0
  %v605 = vpop.f32.mrb[0].mxu0
  %v606 = vadd.f32 0.0, %v605
  %v607 = vpop.f32.mrb[0].mxu0
  %608 = vmatprep.mubr.bf16.mxu0 0
  %609 = vmatmul.mubr.bf16.gmra.mrb[0].mxu0 %v336
  %v610 = vpop.f32.mrb[0].mxu0
  %v611 = vadd.f32 0.0, %v610
  %v612 = vpop.f32.mrb[0].mxu0
  %v613 = vpop.f32.mrb[0].mxu0
  %v614 = vadd.f32 0.0, %v613
  %v615 = vpop.f32.mrb[0].mxu0
  %616 = vmatprep.mubr.bf16.mxu0 0
  %617 = vmatmul.mubr.bf16.gmra.mrb[0].mxu0 %v339
  %v618 = vpop.f32.mrb[0].mxu0
  %v619 = vadd.f32 0.0, %v618
  %v620 = vpop.f32.mrb[0].mxu0
  %v621 = vpop.f32.mrb[0].mxu0
  %v622 = vadd.f32 0.0, %v621
  %v623 = vpop.f32.mrb[0].mxu0
  %624 = vmatprep.mubr.bf16.mxu0 0
  %625 = vmatmul.mubr.bf16.gmra.mrb[0].mxu0 %v342
  %v626 = vpop.f32.mrb[0].mxu0
  %v627 = vadd.f32 0.0, %v626
  %v628 = vpop.f32.mrb[0].mxu0
  %v629 = vpop.f32.mrb[0].mxu0
  %v630 = vadd.f32 0.0, %v629
  %v631 = vpop.f32.mrb[0].mxu0
  %632 = vdwg.mxu0
  %633 = vst [vmem:[%s2] sm:$0xff] %v379
  %634 = vst [vmem:[%s2 + $0x8] sm:$0xff] %v382
  %635 = vst [vmem:[%s2 + $0x10] sm:$0xff] %v387
  %636 = vst [vmem:[%s2 + $0x18] sm:$0xff] %v390
  %637 = vst [vmem:[%s2 + $0x20] sm:$0xff] %v395
  %638 = vst [vmem:[%s2 + $0x28] sm:$0xff] %v398
  %639 = vst [vmem:[%s2 + $0x30] sm:$0xff] %v403
  %640 = vst [vmem:[%s2 + $0x38] sm:$0xff] %v406
  %641 = vst [vmem:[%s2 + $0x40] sm:$0xff] %v411
  %642 = vst [vmem:[%s2 + $0x48] sm:$0xff] %v414
  %643 = vst [vmem:[%s2 + $0x50] sm:$0xff] %v419
  %644 = vst [vmem:[%s2 + $0x58] sm:$0xff] %v422
  %645 = vst [vmem:[%s2 + $0x60] sm:$0xff] %v427
  %646 = vst [vmem:[%s2 + $0x68] sm:$0xff] %v430
  %647 = vst [vmem:[%s2 + $0x70] sm:$0xff] %v435
  %648 = vst [vmem:[%s2 + $0x78] sm:$0xff] %v438
  %649 = vst [vmem:[%s2 + $0x80] sm:$0xff] %v443
  %650 = vst [vmem:[%s2 + $0x88] sm:$0xff] %v446
  %651 = vst [vmem:[%s2 + $0x90] sm:$0xff] %v451
  %652 = vst [vmem:[%s2 + $0x98] sm:$0xff] %v454
  %653 = vst [vmem:[%s2 + $0xa0] sm:$0xff] %v459
  %654 = vst [vmem:[%s2 + $0xa8] sm:$0xff] %v462
  %655 = vst [vmem:[%s2 + $0xb0] sm:$0xff] %v467
  %656 = vst [vmem:[%s2 + $0xb8] sm:$0xff] %v470
  %657 = vst [vmem:[%s2 + $0xc0] sm:$0xff] %v475
  %658 = vst [vmem:[%s2 + $0xc8] sm:$0xff] %v478
  %659 = vst [vmem:[%s2 + $0xd0] sm:$0xff] %v483
  %660 = vst [vmem:[%s2 + $0xd8] sm:$0xff] %v486
  %661 = vst [vmem:[%s2 + $0xe0] sm:$0xff] %v491
  %662 = vst [vmem:[%s2 + $0xe8] sm:$0xff] %v494
  %663 = vst [vmem:[%s2 + $0xf0] sm:$0xff] %v499
  %664 = vst [vmem:[%s2 + $0xf8] sm:$0xff] %v502
  %665 = vst [vmem:[%s2 + $0x100] sm:$0xff] %v507
  %666 = vst [vmem:[%s2 + $0x108] sm:$0xff] %v510
  %667 = vst [vmem:[%s2 + $0x110] sm:$0xff] %v515
  %668 = vst [vmem:[%s2 + $0x118] sm:$0xff] %v518
  %669 = vst [vmem:[%s2 + $0x120] sm:$0xff] %v523
  %670 = vst [vmem:[%s2 + $0x128] sm:$0xff] %v526
  %671 = vst [vmem:[%s2 + $0x130] sm:$0xff] %v531
  %672 = vst [vmem:[%s2 + $0x138] sm:$0xff] %v534
  %673 = vst [vmem:[%s2 + $0x140] sm:$0xff] %v539
  %674 = vst [vmem:[%s2 + $0x148] sm:$0xff] %v542
  %675 = vst [vmem:[%s2 + $0x150] sm:$0xff] %v547
  %676 = vst [vmem:[%s2 + $0x158] sm:$0xff] %v550
  %677 = vst [vmem:[%s2 + $0x160] sm:$0xff] %v555
  %678 = vst [vmem:[%s2 + $0x168] sm:$0xff] %v558
  %679 = vst [vmem:[%s2 + $0x170] sm:$0xff] %v563
  %680 = vst [vmem:[%s2 + $0x178] sm:$0xff] %v566
  %681 = vst [vmem:[%s2 + $0x180] sm:$0xff] %v571
  %682 = vst [vmem:[%s2 + $0x188] sm:$0xff] %v574
  %683 = vst [vmem:[%s2 + $0x190] sm:$0xff] %v579
  %684 = vst [vmem:[%s2 + $0x198] sm:$0xff] %v582
  %685 = vst [vmem:[%s2 + $0x1a0] sm:$0xff] %v587
  %686 = vst [vmem:[%s2 + $0x1a8] sm:$0xff] %v590
  %687 = vst [vmem:[%s2 + $0x1b0] sm:$0xff] %v595
  %688 = vst [vmem:[%s2 + $0x1b8] sm:$0xff] %v598
  %689 = vst [vmem:[%s2 + $0x1c0] sm:$0xff] %v603
  %690 = vst [vmem:[%s2 + $0x1c8] sm:$0xff] %v606
  %691 = vst [vmem:[%s2 + $0x1d0] sm:$0xff] %v611
  %692 = vst [vmem:[%s2 + $0x1d8] sm:$0xff] %v614
  %693 = vst [vmem:[%s2 + $0x1e0] sm:$0xff] %v619
  %694 = vst [vmem:[%s2 + $0x1e8] sm:$0xff] %v622
  %695 = vst [vmem:[%s2 + $0x1f0] sm:$0xff] %v627
  %696 = vst [vmem:[%s2 + $0x1f8] sm:$0xff] %v630
  %v697 = vadd.f32 %v379, %v382
  %v698 = vadd.f32 %v697, %v387
  %v699 = vadd.f32 %v698, %v390
  %v700 = vadd.f32 %v699, %v395
  %v701 = vadd.f32 %v700, %v398
  %v702 = vadd.f32 %v701, %v403
  %v703 = vadd.f32 %v702, %v406
  %v704 = vadd.f32 %v703, %v411
  %v705 = vadd.f32 %v704, %v414
  %v706 = vadd.f32 %v705, %v419
  %v707 = vadd.f32 %v706, %v422
  %v708 = vadd.f32 %v707, %v427
  %v709 = vadd.f32 %v708, %v430
  %v710 = vadd.f32 %v709, %v435
  %v711 = vadd.f32 %v710, %v438
  %v712 = vadd.f32 %v711, %v443
  %v713 = vadd.f32 %v712, %v446
  %v714 = vadd.f32 %v713, %v451
  %v715 = vadd.f32 %v714, %v454
  %v716 = vadd.f32 %v715, %v459
  %v717 = vadd.f32 %v716, %v462
  %v718 = vadd.f32 %v717, %v467
  %v719 = vadd.f32 %v718, %v470
  %v720 = vadd.f32 %v719, %v475
  %v721 = vadd.f32 %v720, %v478
  %v722 = vadd.f32 %v721, %v483
  %v723 = vadd.f32 %v722, %v486
  %v724 = vadd.f32 %v723, %v491
  %v725 = vadd.f32 %v724, %v494
  %v726 = vadd.f32 %v725, %v499
  %v727 = vadd.f32 %v726, %v502
  %v728 = vadd.f32 %v727, %v507
  %v729 = vadd.f32 %v728, %v510
  %v730 = vadd.f32 %v729, %v515
  %v731 = vadd.f32 %v730, %v518
  %v732 = vadd.f32 %v731, %v523
  %v733 = vadd.f32 %v732, %v526
  %v734 = vadd.f32 %v733, %v531
  %v735 = vadd.f32 %v734, %v534
  %v736 = vadd.f32 %v735, %v539
  %v737 = vadd.f32 %v736, %v542
  %v738 = vadd.f32 %v737, %v547
  %v739 = vadd.f32 %v738, %v550
  %v740 = vadd.f32 %v739, %v555
  %v741 = vadd.f32 %v740, %v558
  %v742 = vadd.f32 %v741, %v563
  %v743 = vadd.f32 %v742, %v566
  %v744 = vadd.f32 %v743, %v571
  %v745 = vadd.f32 %v744, %v574
  %v746 = vadd.f32 %v745, %v579
  %v747 = vadd.f32 %v746, %v582
  %v748 = vadd.f32 %v747, %v587
  %v749 = vadd.f32 %v748, %v590
  %v750 = vadd.f32 %v749, %v595
  %v751 = vadd.f32 %v750, %v598
  %v752 = vadd.f32 %v751, %v603
  %v753 = vadd.f32 %v752, %v606
  %v754 = vadd.f32 %v753, %v611
  %v755 = vadd.f32 %v754, %v614
  %v756 = vadd.f32 %v755, %v619
  %v757 = vadd.f32 %v756, %v622
  %v758 = vadd.f32 %v757, %v627
  %v759 = vadd.f32 %v758, %v630
  %v760 = vrot.slane %v759, 4
  %v761 = vadd.f32 %v759, %v760
  %v762 = vrot.slane %v761, 2
  %v763 = vadd.f32 %v761, %v762
  %v764 = vrot.slane %v763, 1
  %v765 = vadd.f32 %v763, %v764
  %766 = vst [vmem:[%s3] sm:$0x1] %v765
  %v767 = vmul.f32 %v379, %v379
  %v768 = vmul.f32 %v382, %v382
  %v769 = vmul.f32 %v387, %v387
  %v770 = vmul.f32 %v390, %v390
  %v771 = vmul.f32 %v395, %v395
  %v772 = vmul.f32 %v398, %v398
  %v773 = vmul.f32 %v403, %v403
  %v774 = vmul.f32 %v406, %v406
  %v775 = vmul.f32 %v411, %v411
  %v776 = vmul.f32 %v414, %v414
  %v777 = vmul.f32 %v419, %v419
  %v778 = vmul.f32 %v422, %v422
  %v779 = vmul.f32 %v427, %v427
  %v780 = vmul.f32 %v430, %v430
  %v781 = vmul.f32 %v435, %v435
  %v782 = vmul.f32 %v438, %v438
  %v783 = vmul.f32 %v443, %v443
  %v784 = vmul.f32 %v446, %v446
  %v785 = vmul.f32 %v451, %v451
  %v786 = vmul.f32 %v454, %v454
  %v787 = vmul.f32 %v459, %v459
  %v788 = vmul.f32 %v462, %v462
  %v789 = vmul.f32 %v467, %v467
  %v790 = vmul.f32 %v470, %v470
  %v791 = vmul.f32 %v475, %v475
  %v792 = vmul.f32 %v478, %v478
  %v793 = vmul.f32 %v483, %v483
  %v794 = vmul.f32 %v486, %v486
  %v795 = vmul.f32 %v491, %v491
  %v796 = vmul.f32 %v494, %v494
  %v797 = vmul.f32 %v499, %v499
  %v798 = vmul.f32 %v502, %v502
  %v799 = vmul.f32 %v507, %v507
  %v800 = vmul.f32 %v510, %v510
  %v801 = vmul.f32 %v515, %v515
  %v802 = vmul.f32 %v518, %v518
  %v803 = vmul.f32 %v523, %v523
  %v804 = vmul.f32 %v526, %v526
  %v805 = vmul.f32 %v531, %v531
  %v806 = vmul.f32 %v534, %v534
  %v807 = vmul.f32 %v539, %v539
  %v808 = vmul.f32 %v542, %v542
  %v809 = vmul.f32 %v547, %v547
  %v810 = vmul.f32 %v550, %v550
  %v811 = vmul.f32 %v555, %v555
  %v812 = vmul.f32 %v558, %v558
  %v813 = vmul.f32 %v563, %v563
  %v814 = vmul.f32 %v566, %v566
  %v815 = vmul.f32 %v571, %v571
  %v816 = vmul.f32 %v574, %v574
  %v817 = vmul.f32 %v579, %v579
  %v818 = vmul.f32 %v582, %v582
  %v819 = vmul.f32 %v587, %v587
  %v820 = vmul.f32 %v590, %v590
  %v821 = vmul.f32 %v595, %v595
  %v822 = vmul.f32 %v598, %v598
  %v823 = vmul.f32 %v603, %v603
  %v824 = vmul.f32 %v606, %v606
  %v825 = vmul.f32 %v611, %v611
  %v826 = vmul.f32 %v614, %v614
  %v827 = vmul.f32 %v619, %v619
  %v828 = vmul.f32 %v622, %v622
  %v829 = vmul.f32 %v627, %v627
  %v830 = vmul.f32 %v630, %v630
  %v831 = vadd.f32 %v767, %v768
  %v832 = vadd.f32 %v831, %v769
  %v833 = vadd.f32 %v832, %v770
  %v834 = vadd.f32 %v833, %v771
  %v835 = vadd.f32 %v834, %v772
  %v836 = vadd.f32 %v835, %v773
  %v837 = vadd.f32 %v836, %v774
  %v838 = vadd.f32 %v837, %v775
  %v839 = vadd.f32 %v838, %v776
  %v840 = vadd.f32 %v839, %v777
  %v841 = vadd.f32 %v840, %v778
  %v842 = vadd.f32 %v841, %v779
  %v843 = vadd.f32 %v842, %v780
  %v844 = vadd.f32 %v843, %v781
  %v845 = vadd.f32 %v844, %v782
  %v846 = vadd.f32 %v845, %v783
  %v847 = vadd.f32 %v846, %v784
  %v848 = vadd.f32 %v847, %v785
  %v849 = vadd.f32 %v848, %v786
  %v850 = vadd.f32 %v849, %v787
  %v851 = vadd.f32 %v850, %v788
  %v852 = vadd.f32 %v851, %v789
  %v853 = vadd.f32 %v852, %v790
  %v854 = vadd.f32 %v853, %v791
  %v855 = vadd.f32 %v854, %v792
  %v856 = vadd.f32 %v855, %v793
  %v857 = vadd.f32 %v856, %v794
  %v858 = vadd.f32 %v857, %v795
  %v859 = vadd.f32 %v858, %v796
  %v860 = vadd.f32 %v859, %v797
  %v861 = vadd.f32 %v860, %v798
  %v862 = vadd.f32 %v861, %v799
  %v863 = vadd.f32 %v862, %v800
  %v864 = vadd.f32 %v863, %v801
  %v865 = vadd.f32 %v864, %v802
  %v866 = vadd.f32 %v865, %v803
  %v867 = vadd.f32 %v866, %v804
  %v868 = vadd.f32 %v867, %v805
  %v869 = vadd.f32 %v868, %v806
  %v870 = vadd.f32 %v869, %v807
  %v871 = vadd.f32 %v870, %v808
  %v872 = vadd.f32 %v871, %v809
  %v873 = vadd.f32 %v872, %v810
  %v874 = vadd.f32 %v873, %v811
  %v875 = vadd.f32 %v874, %v812
  %v876 = vadd.f32 %v875, %v813
  %v877 = vadd.f32 %v876, %v814
  %v878 = vadd.f32 %v877, %v815
  %v879 = vadd.f32 %v878, %v816
  %v880 = vadd.f32 %v879, %v817
  %v881 = vadd.f32 %v880, %v818
  %v882 = vadd.f32 %v881, %v819
  %v883 = vadd.f32 %v882, %v820
  %v884 = vadd.f32 %v883, %v821
  %v885 = vadd.f32 %v884, %v822
  %v886 = vadd.f32 %v885, %v823
  %v887 = vadd.f32 %v886, %v824
  %v888 = vadd.f32 %v887, %v825
  %v889 = vadd.f32 %v888, %v826
  %v890 = vadd.f32 %v889, %v827
  %v891 = vadd.f32 %v890, %v828
  %v892 = vadd.f32 %v891, %v829
  %v893 = vadd.f32 %v892, %v830
  %v894 = vrot.slane %v893, 4
  %v895 = vadd.f32 %v893, %v894
  %v896 = vrot.slane %v895, 2
  %v897 = vadd.f32 %v895, %v896
  %v898 = vrot.slane %v897, 1
  %v899 = vadd.f32 %v897, %v898
  %900 = vst [vmem:[%s4] sm:$0x1] %v899
  // Predicated region
  $region10: #{_lambda_.24} parent=0 // pred_check
    _
  $region11: #{_lambda_.24} parent=0 // pred_check_branch
    %902 = sbr.rel (0) target = $region13
  $region12: #{_lambda_.24} parent=0 // pred_region
    _
  $region13: #{_lambda_.24} parent=0 // pred_fallthru
    _
  // Predicated region
  $region14: #{_lambda_.24} parent=0 // pred_check
    _
  $region15: #{_lambda_.24} parent=0 // pred_check_branch
    %904 = sbr.rel (0) target = $region17
  $region16: #{_lambda_.24} parent=0 // pred_region
    _
  $region17: #{_lambda_.24} parent=0 // pred_fallthru
    _
  // Predicated region
  $region18: #{_lambda_.24} parent=0 // pred_check
    _
  $region19: #{_lambda_.24} parent=0 // pred_check_branch
    %906 = sbr.rel (0) target = $region21
  $region20: #{_lambda_.24} parent=0 // pred_region
    _
  $region21: #{_lambda_.24} parent=0 // pred_fallthru
    _
  // Predicated region
  $region22: #{_lambda_.24} parent=0 // pred_check
    _
  $region23: #{_lambda_.24} parent=0 // pred_check_branch
    %908 = sbr.rel (0) target = $region25
  $region24: #{_lambda_.24} parent=0 // pred_region
    _
  $region25: #{_lambda_.24} parent=0 // pred_fallthru
    _
  // Predicated region
  $region26: #{_lambda_.24} parent=0 // pred_check
    _
  $region27: #{_lambda_.24} parent=0 // pred_check_branch
    %910 = sbr.rel (0) target = $region29
  $region28: #{_lambda_.24} parent=0 // pred_region
    _
  $region29: #{_lambda_.24} parent=0 // pred_fallthru
    _
  // Predicated region
  $region30: #{_lambda_.24} parent=0 // pred_check
    _
  $region31: #{_lambda_.24} parent=0 // pred_check_branch
    %912 = sbr.rel (0) target = $region33
  $region32: #{_lambda_.24} parent=0 // pred_region
    _
  $region33: #{_lambda_.24} parent=0 // pred_fallthru
    _

// kernel: _lambda_.22
$region0: #{_lambda_.22}
  #allocation0 [shape = 'u32[]', space=smem, size = 0x4, offset = 0x4, fixed_abs, tag = 'smem constant byte address 0x4 - core index']
  #allocation1 [shape = 'u32[144,128]{1,0:T(1,128)}', space=vmem, size = 0x12000, scoped, tag = 'internal scratch']
  %s0 = inlined_call_operand.vmem [shape: bf16[512,144], index: 0, kind: input, shape index: {}]
  %s1 = inlined_call_operand.vmem [shape: bf16[144,128], index: 1, kind: input, shape index: {}]
  %s2 = inlined_call_operand.vmem [shape: f32[512,128], index: 2, kind: output, shape index: {0}]
  %s3 = inlined_call_operand.vmem [shape: f32[1,1,128], index: 3, kind: output, shape index: {1}]
  %s4 = inlined_call_operand.vmem [shape: f32[1,1,128], index: 4, kind: output, shape index: {2}]
  %5 = xla_tuple %s2, %s3, %s4
  %s6 = sld [smem:[#allocation0]]
  $region34: #{_lambda_.22} parent=0
    _
  %s8 = ssub.s32 1, %s6
  %s9 = scalar_select 0, %s8, %s6
  // Predicated region
  $region2: #{_lambda_.22} parent=0 // pred_check
    _
  $region3: #{_lambda_.22} parent=0 // pred_check_branch
    %11 = sbr.rel (0) target = $region5
  $region4: #{_lambda_.22} parent=0 // pred_region
    _
  $region5: #{_lambda_.22} parent=0 // pred_fallthru
    _
  // Predicated region
  $region6: #{_lambda_.22} parent=0 // pred_check
    _
  $region7: #{_lambda_.22} parent=0 // pred_check_branch
    %13 = sbr.rel (0) target = $region9
  $region8: #{_lambda_.22} parent=0 // pred_region
    _
  $region9: #{_lambda_.22} parent=0 // pred_fallthru
    _
  %v15 = vld [vmem:[%s0] sm:$0xff]
  %v16 = vld [vmem:[%s0 + $0x8] sm:$0xff]
  %v17 = vld [vmem:[%s0 + $0x10] sm:$0xff]
  %v18 = vld [vmem:[%s0 + $0x18] sm:$0xff]
  %v19 = vld [vmem:[%s0 + $0x20] sm:$0xff]
  %v20 = vld [vmem:[%s0 + $0x28] sm:$0xff]
  %v21 = vld [vmem:[%s0 + $0x30] sm:$0xff]
  %v22 = vld [vmem:[%s0 + $0x38] sm:$0xff]
  %v23 = vld [vmem:[%s0 + $0x40] sm:$0xff]
  %v24 = vld [vmem:[%s0 + $0x48] sm:$0xff]
  %v25 = vld [vmem:[%s0 + $0x50] sm:$0xff]
  %v26 = vld [vmem:[%s0 + $0x58] sm:$0xff]
  %v27 = vld [vmem:[%s0 + $0x60] sm:$0xff]
  %v28 = vld [vmem:[%s0 + $0x68] sm:$0xff]
  %v29 = vld [vmem:[%s0 + $0x70] sm:$0xff]
  %v30 = vld [vmem:[%s0 + $0x78] sm:$0xff]
  %v31 = vld [vmem:[%s0 + $0x80] sm:$0xff]
  %v32 = vld [vmem:[%s0 + $0x88] sm:$0xff]
  %v33 = vld [vmem:[%s0 + $0x90] sm:$0xff]
  %v34 = vld [vmem:[%s0 + $0x98] sm:$0xff]
  %v35 = vld [vmem:[%s0 + $0xa0] sm:$0xff]
  %v36 = vld [vmem:[%s0 + $0xa8] sm:$0xff]
  %v37 = vld [vmem:[%s0 + $0xb0] sm:$0xff]
  %v38 = vld [vmem:[%s0 + $0xb8] sm:$0xff]
  %v39 = vld [vmem:[%s0 + $0xc0] sm:$0xff]
  %v40 = vld [vmem:[%s0 + $0xc8] sm:$0xff]
  %v41 = vld [vmem:[%s0 + $0xd0] sm:$0xff]
  %v42 = vld [vmem:[%s0 + $0xd8] sm:$0xff]
  %v43 = vld [vmem:[%s0 + $0xe0] sm:$0xff]
  %v44 = vld [vmem:[%s0 + $0xe8] sm:$0xff]
  %v45 = vld [vmem:[%s0 + $0xf0] sm:$0xff]
  %v46 = vld [vmem:[%s0 + $0xf8] sm:$0xff]
  %v47 = vld [vmem:[%s0 + $0x100] sm:$0xff]
  %v48 = vld [vmem:[%s0 + $0x108] sm:$0xff]
  %v49 = vld [vmem:[%s0 + $0x110] sm:$0xff]
  %v50 = vld [vmem:[%s0 + $0x118] sm:$0xff]
  %v51 = vld [vmem:[%s0 + $0x120] sm:$0xff]
  %v52 = vld [vmem:[%s0 + $0x128] sm:$0xff]
  %v53 = vld [vmem:[%s0 + $0x130] sm:$0xff]
  %v54 = vld [vmem:[%s0 + $0x138] sm:$0xff]
  %v55 = vld [vmem:[%s0 + $0x140] sm:$0xff]
  %v56 = vld [vmem:[%s0 + $0x148] sm:$0xff]
  %v57 = vld [vmem:[%s0 + $0x150] sm:$0xff]
  %v58 = vld [vmem:[%s0 + $0x158] sm:$0xff]
  %v59 = vld [vmem:[%s0 + $0x160] sm:$0xff]
  %v60 = vld [vmem:[%s0 + $0x168] sm:$0xff]
  %v61 = vld [vmem:[%s0 + $0x170] sm:$0xff]
  %v62 = vld [vmem:[%s0 + $0x178] sm:$0xff]
  %v63 = vld [vmem:[%s0 + $0x180] sm:$0xff]
  %v64 = vld [vmem:[%s0 + $0x188] sm:$0xff]
  %v65 = vld [vmem:[%s0 + $0x190] sm:$0xff]
  %v66 = vld [vmem:[%s0 + $0x198] sm:$0xff]
  %v67 = vld [vmem:[%s0 + $0x1a0] sm:$0xff]
  %v68 = vld [vmem:[%s0 + $0x1a8] sm:$0xff]
  %v69 = vld [vmem:[%s0 + $0x1b0] sm:$0xff]
  %v70 = vld [vmem:[%s0 + $0x1b8] sm:$0xff]
  %v71 = vld [vmem:[%s0 + $0x1c0] sm:$0xff]
  %v72 = vld [vmem:[%s0 + $0x1c8] sm:$0xff]
  %v73 = vld [vmem:[%s0 + $0x1d0] sm:$0xff]
  %v74 = vld [vmem:[%s0 + $0x1d8] sm:$0xff]
  %v75 = vld [vmem:[%s0 + $0x1e0] sm:$0xff]
  %v76 = vld [vmem:[%s0 + $0x1e8] sm:$0xff]
  %v77 = vld [vmem:[%s0 + $0x1f0] sm:$0xff]
  %v78 = vld [vmem:[%s0 + $0x1f8] sm:$0xff]
  %v79 = vld [vmem:[%s1] sm:$0xf]
  %v80 = vld [vmem:[%s1 + $0x4] sm:$0xf]
  %v81 = vld [vmem:[%s1 + $0x8] sm:$0xf]
  %v82 = vld [vmem:[%s1 + $0xc] sm:$0xf]
  %v83 = vld [vmem:[%s1 + $0x10] sm:$0xf]
  %v84 = vld [vmem:[%s1 + $0x14] sm:$0xf]
  %v85 = vld [vmem:[%s1 + $0x18] sm:$0xf]
  %v86 = vld [vmem:[%s1 + $0x1c] sm:$0xf]
  %v87 = vld [vmem:[%s1 + $0x20] sm:$0xf]
  %v88 = vld [vmem:[%s1 + $0x24] sm:$0xf]
  %v89 = vld [vmem:[%s1 + $0x28] sm:$0xf]
  %v90 = vld [vmem:[%s1 + $0x2c] sm:$0xf]
  %v91 = vld [vmem:[%s1 + $0x30] sm:$0xf]
  %v92 = vld [vmem:[%s1 + $0x34] sm:$0xf]
  %v93 = vld [vmem:[%s1 + $0x38] sm:$0xf]
  %v94 = vld [vmem:[%s1 + $0x3c] sm:$0xf]
  %v95 = vld [vmem:[%s1 + $0x40] sm:$0xf]
  %v96 = vld [vmem:[%s1 + $0x44] sm:$0xf]
  %v161 = vunpack.c.l.b16 %v15
  %v162 = vunpack.c.h.b16 %v15
  %v163 = vunpack.c.l.b16 %v16
  %v164 = vunpack.c.h.b16 %v16
  %v165 = vunpack.c.l.b16 %v17
  %v166 = vunpack.c.h.b16 %v17
  %v167 = vunpack.c.l.b16 %v18
  %v168 = vunpack.c.h.b16 %v18
  %v169 = vunpack.c.l.b16 %v19
  %v170 = vunpack.c.h.b16 %v19
  %v171 = vunpack.c.l.b16 %v20
  %v172 = vunpack.c.h.b16 %v20
  %v173 = vunpack.c.l.b16 %v21
  %v174 = vunpack.c.h.b16 %v21
  %v175 = vunpack.c.l.b16 %v22
  %v176 = vunpack.c.h.b16 %v22
  %v177 = vunpack.c.l.b16 %v23
  %v178 = vunpack.c.h.b16 %v23
  %v179 = vunpack.c.l.b16 %v24
  %v180 = vunpack.c.h.b16 %v24
  %v181 = vunpack.c.l.b16 %v25
  %v182 = vunpack.c.h.b16 %v25
  %v183 = vunpack.c.l.b16 %v26
  %v184 = vunpack.c.h.b16 %v26
  %v185 = vunpack.c.l.b16 %v27
  %v186 = vunpack.c.h.b16 %v27
  %v187 = vunpack.c.l.b16 %v28
  %v188 = vunpack.c.h.b16 %v28
  %v189 = vunpack.c.l.b16 %v29
  %v190 = vunpack.c.h.b16 %v29
  %v191 = vunpack.c.l.b16 %v30
  %v192 = vunpack.c.h.b16 %v30
  %v193 = vunpack.c.l.b16 %v31
  %v194 = vunpack.c.h.b16 %v31
  %v195 = vunpack.c.l.b16 %v32
  %v196 = vunpack.c.h.b16 %v32
  %v197 = vunpack.c.l.b16 %v33
  %v198 = vunpack.c.h.b16 %v33
  %v199 = vunpack.c.l.b16 %v34
  %v200 = vunpack.c.h.b16 %v34
  %v201 = vunpack.c.l.b16 %v35
  %v202 = vunpack.c.h.b16 %v35
  %v203 = vunpack.c.l.b16 %v36
  %v204 = vunpack.c.h.b16 %v36
  %v205 = vunpack.c.l.b16 %v37
  %v206 = vunpack.c.h.b16 %v37
  %v207 = vunpack.c.l.b16 %v38
  %v208 = vunpack.c.h.b16 %v38
  %v209 = vunpack.c.l.b16 %v39
  %v210 = vunpack.c.h.b16 %v39
  %v211 = vunpack.c.l.b16 %v40
  %v212 = vunpack.c.h.b16 %v40
  %v213 = vunpack.c.l.b16 %v41
  %v214 = vunpack.c.h.b16 %v41
  %v215 = vunpack.c.l.b16 %v42
  %v216 = vunpack.c.h.b16 %v42
  %v217 = vunpack.c.l.b16 %v43
  %v218 = vunpack.c.h.b16 %v43
  %v219 = vunpack.c.l.b16 %v44
  %v220 = vunpack.c.h.b16 %v44
  %v221 = vunpack.c.l.b16 %v45
  %v222 = vunpack.c.h.b16 %v45
  %v223 = vunpack.c.l.b16 %v46
  %v224 = vunpack.c.h.b16 %v46
  %v225 = vunpack.c.l.b16 %v47
  %v226 = vunpack.c.h.b16 %v47
  %v227 = vunpack.c.l.b16 %v48
  %v228 = vunpack.c.h.b16 %v48
  %v229 = vunpack.c.l.b16 %v49
  %v230 = vunpack.c.h.b16 %v49
  %v231 = vunpack.c.l.b16 %v50
  %v232 = vunpack.c.h.b16 %v50
  %v233 = vunpack.c.l.b16 %v51
  %v234 = vunpack.c.h.b16 %v51
  %v235 = vunpack.c.l.b16 %v52
  %v236 = vunpack.c.h.b16 %v52
  %v237 = vunpack.c.l.b16 %v53
  %v238 = vunpack.c.h.b16 %v53
  %v239 = vunpack.c.l.b16 %v54
  %v240 = vunpack.c.h.b16 %v54
  %v241 = vunpack.c.l.b16 %v55
  %v242 = vunpack.c.h.b16 %v55
  %v243 = vunpack.c.l.b16 %v56
  %v244 = vunpack.c.h.b16 %v56
  %v245 = vunpack.c.l.b16 %v57
  %v246 = vunpack.c.h.b16 %v57
  %v247 = vunpack.c.l.b16 %v58
  %v248 = vunpack.c.h.b16 %v58
  %v249 = vunpack.c.l.b16 %v59
  %v250 = vunpack.c.h.b16 %v59
  %v251 = vunpack.c.l.b16 %v60
  %v252 = vunpack.c.h.b16 %v60
  %v253 = vunpack.c.l.b16 %v61
  %v254 = vunpack.c.h.b16 %v61
  %v255 = vunpack.c.l.b16 %v62
  %v256 = vunpack.c.h.b16 %v62
  %v257 = vunpack.c.l.b16 %v63
  %v258 = vunpack.c.h.b16 %v63
  %v259 = vunpack.c.l.b16 %v64
  %v260 = vunpack.c.h.b16 %v64
  %v261 = vunpack.c.l.b16 %v65
  %v262 = vunpack.c.h.b16 %v65
  %v263 = vunpack.c.l.b16 %v66
  %v264 = vunpack.c.h.b16 %v66
  %v265 = vunpack.c.l.b16 %v67
  %v266 = vunpack.c.h.b16 %v67
  %v267 = vunpack.c.l.b16 %v68
  %v268 = vunpack.c.h.b16 %v68
  %v269 = vunpack.c.l.b16 %v69
  %v270 = vunpack.c.h.b16 %v69
  %v271 = vunpack.c.l.b16 %v70
  %v272 = vunpack.c.h.b16 %v70
  %v273 = vunpack.c.l.b16 %v71
  %v274 = vunpack.c.h.b16 %v71
  %v275 = vunpack.c.l.b16 %v72
  %v276 = vunpack.c.h.b16 %v72
  %v277 = vunpack.c.l.b16 %v73
  %v278 = vunpack.c.h.b16 %v73
  %v279 = vunpack.c.l.b16 %v74
  %v280 = vunpack.c.h.b16 %v74
  %v281 = vunpack.c.l.b16 %v75
  %v282 = vunpack.c.h.b16 %v75
  %v283 = vunpack.c.l.b16 %v76
  %v284 = vunpack.c.h.b16 %v76
  %v285 = vunpack.c.l.b16 %v77
  %v286 = vunpack.c.h.b16 %v77
  %v287 = vunpack.c.l.b16 %v78
  %v288 = vunpack.c.h.b16 %v78
  %v289 = vpack.c.b16 %v163, %v161
  %v290 = vpack.c.b16 %v164, %v162
  %v291 = vpack.c.b16 %v167, %v165
  %v292 = vpack.c.b16 %v168, %v166
  %v293 = vpack.c.b16 %v171, %v169
  %v294 = vpack.c.b16 %v172, %v170
  %v295 = vpack.c.b16 %v175, %v173
  %v296 = vpack.c.b16 %v176, %v174
  %v297 = vpack.c.b16 %v179, %v177
  %v298 = vpack.c.b16 %v180, %v178
  %v299 = vpack.c.b16 %v183, %v181
  %v300 = vpack.c.b16 %v184, %v182
  %v301 = vpack.c.b16 %v187, %v185
  %v302 = vpack.c.b16 %v188, %v186
  %v303 = vpack.c.b16 %v191, %v189
  %v304 = vpack.c.b16 %v192, %v190
  %v305 = vpack.c.b16 %v195, %v193
  %v306 = vpack.c.b16 %v196, %v194
  %v307 = vpack.c.b16 %v199, %v197
  %v308 = vpack.c.b16 %v200, %v198
  %v309 = vpack.c.b16 %v203, %v201
  %v310 = vpack.c.b16 %v204, %v202
  %v311 = vpack.c.b16 %v207, %v205
  %v312 = vpack.c.b16 %v208, %v206
  %v313 = vpack.c.b16 %v211, %v209
  %v314 = vpack.c.b16 %v212, %v210
  %v315 = vpack.c.b16 %v215, %v213
  %v316 = vpack.c.b16 %v216, %v214
  %v317 = vpack.c.b16 %v219, %v217
  %v318 = vpack.c.b16 %v220, %v218
  %v319 = vpack.c.b16 %v223, %v221
  %v320 = vpack.c.b16 %v224, %v222
  %v321 = vpack.c.b16 %v227, %v225
  %v322 = vpack.c.b16 %v228, %v226
  %v323 = vpack.c.b16 %v231, %v229
  %v324 = vpack.c.b16 %v232, %v230
  %v325 = vpack.c.b16 %v235, %v233
  %v326 = vpack.c.b16 %v236, %v234
  %v327 = vpack.c.b16 %v239, %v237
  %v328 = vpack.c.b16 %v240, %v238
  %v329 = vpack.c.b16 %v243, %v241
  %v330 = vpack.c.b16 %v244, %v242
  %v331 = vpack.c.b16 %v247, %v245
  %v332 = vpack.c.b16 %v248, %v246
  %v333 = vpack.c.b16 %v251, %v249
  %v334 = vpack.c.b16 %v252, %v250
  %v335 = vpack.c.b16 %v255, %v253
  %v336 = vpack.c.b16 %v256, %v254
  %v337 = vpack.c.b16 %v259, %v257
  %v338 = vpack.c.b16 %v260, %v258
  %v339 = vpack.c.b16 %v263, %v261
  %v340 = vpack.c.b16 %v264, %v262
  %v341 = vpack.c.b16 %v267, %v265
  %v342 = vpack.c.b16 %v268, %v266
  %v343 = vpack.c.b16 %v271, %v269
  %v344 = vpack.c.b16 %v272, %v270
  %v345 = vpack.c.b16 %v275, %v273
  %v346 = vpack.c.b16 %v276, %v274
  %v347 = vpack.c.b16 %v279, %v277
  %v348 = vpack.c.b16 %v280, %v278
  %v349 = vpack.c.b16 %v283, %v281
  %v350 = vpack.c.b16 %v284, %v282
  %v351 = vpack.c.b16 %v287, %v285
  %v352 = vpack.c.b16 %v288, %v286
  %v403 = vunpack.c.l.b16 %v79
  %v404 = vunpack.c.l.b16 %v80
  %v405 = vunpack.c.l.b16 %v81
  %v406 = vunpack.c.l.b16 %v82
  %v407 = vunpack.c.l.b16 %v83
  %v408 = vunpack.c.l.b16 %v84
  %v409 = vunpack.c.l.b16 %v85
  %v410 = vunpack.c.l.b16 %v86
  %v411 = vunpack.c.l.b16 %v87
  %v412 = vunpack.c.l.b16 %v88
  %v413 = vunpack.c.l.b16 %v89
  %v414 = vunpack.c.l.b16 %v90
  %v415 = vunpack.c.l.b16 %v91
  %v416 = vunpack.c.l.b16 %v92
  %v417 = vunpack.c.l.b16 %v93
  %v418 = vunpack.c.l.b16 %v94
  %v419 = vunpack.c.l.b16 %v95
  %v420 = vunpack.c.l.b16 %v96
  %v421 = vpack.c.b16 %v404, %v403
  %v422 = vpack.c.b16 %v406, %v405
  %v423 = vpack.c.b16 %v408, %v407
  %v424 = vpack.c.b16 %v410, %v409
  %v425 = vpack.c.b16 %v412, %v411
  %v426 = vpack.c.b16 %v414, %v413
  %v427 = vpack.c.b16 %v416, %v415
  %v428 = vpack.c.b16 %v418, %v417
  %v429 = vpack.c.b16 %v420, %v419
  %vm439 = vcmask 130048
  %v441 = vsel %vm439, %v290, 0
  %v444 = vsel %vm439, %v292, 0
  %v447 = vsel %vm439, %v294, 0
  %v450 = vsel %vm439, %v296, 0
  %v453 = vsel %vm439, %v298, 0
  %v456 = vsel %vm439, %v300, 0
  %v459 = vsel %vm439, %v302, 0
  %v462 = vsel %vm439, %v304, 0
  %v465 = vsel %vm439, %v306, 0
  %v468 = vsel %vm439, %v308, 0
  %v471 = vsel %vm439, %v310, 0
  %v474 = vsel %vm439, %v312, 0
  %v477 = vsel %vm439, %v314, 0
  %v480 = vsel %vm439, %v316, 0
  %v483 = vsel %vm439, %v318, 0
  %v486 = vsel %vm439, %v320, 0
  %v489 = vsel %vm439, %v322, 0
  %v492 = vsel %vm439, %v324, 0
  %v495 = vsel %vm439, %v326, 0
  %v498 = vsel %vm439, %v328, 0
  %v501 = vsel %vm439, %v330, 0
  %v504 = vsel %vm439, %v332, 0
  %v507 = vsel %vm439, %v334, 0
  %v510 = vsel %vm439, %v336, 0
  %v513 = vsel %vm439, %v338, 0
  %v516 = vsel %vm439, %v340, 0
  %v519 = vsel %vm439, %v342, 0
  %v522 = vsel %vm439, %v344, 0
  %v525 = vsel %vm439, %v346, 0
  %v528 = vsel %vm439, %v348, 0
  %v531 = vsel %vm439, %v350, 0
  %v534 = vsel %vm439, %v352, 0
  %536 = vmatprep.subr.bf16.mxu0 0
  %537 = vmatpush1.bf16.msra.mxu0 %v421
  %538 = vmatprep.subr.bf16.mxu0 0
  %539 = vmatpush1.bf16.msra.mxu0 %v422
  %540 = vmatprep.subr.bf16.mxu0 0
  %541 = vmatpush1.bf16.msra.mxu0 %v423
  %542 = vmatprep.subr.bf16.mxu0 0
  %543 = vmatpush1.bf16.msra.mxu0 %v424
  %544 = vmatprep.subr.bf16.mxu0 0
  %545 = vmatpush1.bf16.msra.mxu0 %v425
  %546 = vmatprep.subr.bf16.mxu0 0
  %547 = vmatpush1.bf16.msra.mxu0 %v426
  %548 = vmatprep.subr.bf16.mxu0 0
  %549 = vmatpush1.bf16.msra.mxu0 %v427
  %550 = vmatprep.subr.bf16.mxu0 0
  %551 = vmatpush1.bf16.msra.mxu0 %v428
  %552 = vmatprep.subr.bf16.mxu0 0
  %553 = vmatpush1.bf16.msra.mxu0 %v429
  %554 = vmatprep.subr.bf16.mxu0 0
  %555 = vmatpush1.bf16.msra.mxu0 0
  %556 = vmatprep.subr.bf16.mxu0 0
  %557 = vmatpush1.bf16.msra.mxu0 0
  %558 = vmatprep.subr.bf16.mxu0 0
  %559 = vmatpush1.bf16.msra.mxu0 0
  %560 = vmatprep.subr.bf16.mxu0 0
  %561 = vmatpush1.bf16.msra.mxu0 0
  %562 = vmatprep.subr.bf16.mxu0 0
  %563 = vmatpush1.bf16.msra.mxu0 0
  %564 = vmatprep.subr.bf16.mxu0 0
  %565 = vmatpush1.bf16.msra.mxu0 0
  %566 = vmatprep.subr.bf16.mxu0 0
  %567 = vmatpush1.bf16.msra.mxu0 0
  %568 = vmatprep.mubr.bf16.mxu0 %v441
  %569 = vmatmul.mubr.bf16.gmra.mrb[0].mxu0 %v289
  %v570 = vpop.f32.mrb[0].mxu0
  %v571 = vadd.f32 0.0, %v570
  %v572 = vpop.f32.mrb[0].mxu0
  %v573 = vpop.f32.mrb[0].mxu0
  %v574 = vadd.f32 0.0, %v573
  %v575 = vpop.f32.mrb[0].mxu0
  %576 = vmatprep.mubr.bf16.mxu0 %v444
  %577 = vmatmul.mubr.bf16.gmra.mrb[0].mxu0 %v291
  %v578 = vpop.f32.mrb[0].mxu0
  %v579 = vadd.f32 0.0, %v578
  %v580 = vpop.f32.mrb[0].mxu0
  %v581 = vpop.f32.mrb[0].mxu0
  %v582 = vadd.f32 0.0, %v581
  %v583 = vpop.f32.mrb[0].mxu0
  %584 = vmatprep.mubr.bf16.mxu0 %v447
  %585 = vmatmul.mubr.bf16.gmra.mrb[0].mxu0 %v293
  %v586 = vpop.f32.mrb[0].mxu0
  %v587 = vadd.f32 0.0, %v586
  %v588 = vpop.f32.mrb[0].mxu0
  %v589 = vpop.f32.mrb[0].mxu0
  %v590 = vadd.f32 0.0, %v589
  %v591 = vpop.f32.mrb[0].mxu0
  %592 = vmatprep.mubr.bf16.mxu0 %v450
  %593 = vmatmul.mubr.bf16.gmra.mrb[0].mxu0 %v295
  %v594 = vpop.f32.mrb[0].mxu0
  %v595 = vadd.f32 0.0, %v594
  %v596 = vpop.f32.mrb[0].mxu0
  %v597 = vpop.f32.mrb[0].mxu0
  %v598 = vadd.f32 0.0, %v597
  %v599 = vpop.f32.mrb[0].mxu0
  %600 = vmatprep.mubr.bf16.mxu0 %v453
  %601 = vmatmul.mubr.bf16.gmra.mrb[0].mxu0 %v297
  %v602 = vpop.f32.mrb[0].mxu0
  %v603 = vadd.f32 0.0, %v602
  %v604 = vpop.f32.mrb[0].mxu0
  %v605 = vpop.f32.mrb[0].mxu0
  %v606 = vadd.f32 0.0, %v605
  %v607 = vpop.f32.mrb[0].mxu0
  %608 = vmatprep.mubr.bf16.mxu0 %v456
  %609 = vmatmul.mubr.bf16.gmra.mrb[0].mxu0 %v299
  %v610 = vpop.f32.mrb[0].mxu0
  %v611 = vadd.f32 0.0, %v610
  %v612 = vpop.f32.mrb[0].mxu0
  %v613 = vpop.f32.mrb[0].mxu0
  %v614 = vadd.f32 0.0, %v613
  %v615 = vpop.f32.mrb[0].mxu0
  %616 = vmatprep.mubr.bf16.mxu0 %v459
  %617 = vmatmul.mubr.bf16.gmra.mrb[0].mxu0 %v301
  %v618 = vpop.f32.mrb[0].mxu0
  %v619 = vadd.f32 0.0, %v618
  %v620 = vpop.f32.mrb[0].mxu0
  %v621 = vpop.f32.mrb[0].mxu0
  %v622 = vadd.f32 0.0, %v621
  %v623 = vpop.f32.mrb[0].mxu0
  %624 = vmatprep.mubr.bf16.mxu0 %v462
  %625 = vmatmul.mubr.bf16.gmra.mrb[0].mxu0 %v303
  %v626 = vpop.f32.mrb[0].mxu0
  %v627 = vadd.f32 0.0, %v626
  %v628 = vpop.f32.mrb[0].mxu0
  %v629 = vpop.f32.mrb[0].mxu0
  %v630 = vadd.f32 0.0, %v629
  %v631 = vpop.f32.mrb[0].mxu0
  %632 = vmatprep.mubr.bf16.mxu0 %v465
  %633 = vmatmul.mubr.bf16.gmra.mrb[0].mxu0 %v305
  %v634 = vpop.f32.mrb[0].mxu0
  %v635 = vadd.f32 0.0, %v634
  %v636 = vpop.f32.mrb[0].mxu0
  %v637 = vpop.f32.mrb[0].mxu0
  %v638 = vadd.f32 0.0, %v637
  %v639 = vpop.f32.mrb[0].mxu0
  %640 = vmatprep.mubr.bf16.mxu0 %v468
  %641 = vmatmul.mubr.bf16.gmra.mrb[0].mxu0 %v307
  %v642 = vpop.f32.mrb[0].mxu0
  %v643 = vadd.f32 0.0, %v642
  %v644 = vpop.f32.mrb[0].mxu0
  %v645 = vpop.f32.mrb[0].mxu0
  %v646 = vadd.f32 0.0, %v645
  %v647 = vpop.f32.mrb[0].mxu0
  %648 = vmatprep.mubr.bf16.mxu0 %v471
  %649 = vmatmul.mubr.bf16.gmra.mrb[0].mxu0 %v309
  %v650 = vpop.f32.mrb[0].mxu0
  %v651 = vadd.f32 0.0, %v650
  %v652 = vpop.f32.mrb[0].mxu0
  %v653 = vpop.f32.mrb[0].mxu0
  %v654 = vadd.f32 0.0, %v653
  %v655 = vpop.f32.mrb[0].mxu0
  %656 = vmatprep.mubr.bf16.mxu0 %v474
  %657 = vmatmul.mubr.bf16.gmra.mrb[0].mxu0 %v311
  %v658 = vpop.f32.mrb[0].mxu0
  %v659 = vadd.f32 0.0, %v658
  %v660 = vpop.f32.mrb[0].mxu0
  %v661 = vpop.f32.mrb[0].mxu0
  %v662 = vadd.f32 0.0, %v661
  %v663 = vpop.f32.mrb[0].mxu0
  %664 = vmatprep.mubr.bf16.mxu0 %v477
  %665 = vmatmul.mubr.bf16.gmra.mrb[0].mxu0 %v313
  %v666 = vpop.f32.mrb[0].mxu0
  %v667 = vadd.f32 0.0, %v666
  %v668 = vpop.f32.mrb[0].mxu0
  %v669 = vpop.f32.mrb[0].mxu0
  %v670 = vadd.f32 0.0, %v669
  %v671 = vpop.f32.mrb[0].mxu0
  %672 = vmatprep.mubr.bf16.mxu0 %v480
  %673 = vmatmul.mubr.bf16.gmra.mrb[0].mxu0 %v315
  %v674 = vpop.f32.mrb[0].mxu0
  %v675 = vadd.f32 0.0, %v674
  %v676 = vpop.f32.mrb[0].mxu0
  %v677 = vpop.f32.mrb[0].mxu0
  %v678 = vadd.f32 0.0, %v677
  %v679 = vpop.f32.mrb[0].mxu0
  %680 = vmatprep.mubr.bf16.mxu0 %v483
  %681 = vmatmul.mubr.bf16.gmra.mrb[0].mxu0 %v317
  %v682 = vpop.f32.mrb[0].mxu0
  %v683 = vadd.f32 0.0, %v682
  %v684 = vpop.f32.mrb[0].mxu0
  %v685 = vpop.f32.mrb[0].mxu0
  %v686 = vadd.f32 0.0, %v685
  %v687 = vpop.f32.mrb[0].mxu0
  %688 = vmatprep.mubr.bf16.mxu0 %v486
  %689 = vmatmul.mubr.bf16.gmra.mrb[0].mxu0 %v319
  %v690 = vpop.f32.mrb[0].mxu0
  %v691 = vadd.f32 0.0, %v690
  %v692 = vpop.f32.mrb[0].mxu0
  %v693 = vpop.f32.mrb[0].mxu0
  %v694 = vadd.f32 0.0, %v693
  %v695 = vpop.f32.mrb[0].mxu0
  %696 = vmatprep.mubr.bf16.mxu0 %v489
  %697 = vmatmul.mubr.bf16.gmra.mrb[0].mxu0 %v321
  %v698 = vpop.f32.mrb[0].mxu0
  %v699 = vadd.f32 0.0, %v698
  %v700 = vpop.f32.mrb[0].mxu0
  %v701 = vpop.f32.mrb[0].mxu0
  %v702 = vadd.f32 0.0, %v701
  %v703 = vpop.f32.mrb[0].mxu0
  %704 = vmatprep.mubr.bf16.mxu0 %v492
  %705 = vmatmul.mubr.bf16.gmra.mrb[0].mxu0 %v323
  %v706 = vpop.f32.mrb[0].mxu0
  %v707 = vadd.f32 0.0, %v706
  %v708 = vpop.f32.mrb[0].mxu0
  %v709 = vpop.f32.mrb[0].mxu0
  %v710 = vadd.f32 0.0, %v709
  %v711 = vpop.f32.mrb[0].mxu0
  %712 = vmatprep.mubr.bf16.mxu0 %v495
  %713 = vmatmul.mubr.bf16.gmra.mrb[0].mxu0 %v325
  %v714 = vpop.f32.mrb[0].mxu0
  %v715 = vadd.f32 0.0, %v714
  %v716 = vpop.f32.mrb[0].mxu0
  %v717 = vpop.f32.mrb[0].mxu0
  %v718 = vadd.f32 0.0, %v717
  %v719 = vpop.f32.mrb[0].mxu0
  %720 = vmatprep.mubr.bf16.mxu0 %v498
  %721 = vmatmul.mubr.bf16.gmra.mrb[0].mxu0 %v327
  %v722 = vpop.f32.mrb[0].mxu0
  %v723 = vadd.f32 0.0, %v722
  %v724 = vpop.f32.mrb[0].mxu0
  %v725 = vpop.f32.mrb[0].mxu0
  %v726 = vadd.f32 0.0, %v725
  %v727 = vpop.f32.mrb[0].mxu0
  %728 = vmatprep.mubr.bf16.mxu0 %v501
  %729 = vmatmul.mubr.bf16.gmra.mrb[0].mxu0 %v329
  %v730 = vpop.f32.mrb[0].mxu0
  %v731 = vadd.f32 0.0, %v730
  %v732 = vpop.f32.mrb[0].mxu0
  %v733 = vpop.f32.mrb[0].mxu0
  %v734 = vadd.f32 0.0, %v733
  %v735 = vpop.f32.mrb[0].mxu0
  %736 = vmatprep.mubr.bf16.mxu0 %v504
  %737 = vmatmul.mubr.bf16.gmra.mrb[0].mxu0 %v331
  %v738 = vpop.f32.mrb[0].mxu0
  %v739 = vadd.f32 0.0, %v738
  %v740 = vpop.f32.mrb[0].mxu0
  %v741 = vpop.f32.mrb[0].mxu0
  %v742 = vadd.f32 0.0, %v741
  %v743 = vpop.f32.mrb[0].mxu0
  %744 = vmatprep.mubr.bf16.mxu0 %v507
  %745 = vmatmul.mubr.bf16.gmra.mrb[0].mxu0 %v333
  %v746 = vpop.f32.mrb[0].mxu0
  %v747 = vadd.f32 0.0, %v746
  %v748 = vpop.f32.mrb[0].mxu0
  %v749 = vpop.f32.mrb[0].mxu0
  %v750 = vadd.f32 0.0, %v749
  %v751 = vpop.f32.mrb[0].mxu0
  %752 = vmatprep.mubr.bf16.mxu0 %v510
  %753 = vmatmul.mubr.bf16.gmra.mrb[0].mxu0 %v335
  %v754 = vpop.f32.mrb[0].mxu0
  %v755 = vadd.f32 0.0, %v754
  %v756 = vpop.f32.mrb[0].mxu0
  %v757 = vpop.f32.mrb[0].mxu0
  %v758 = vadd.f32 0.0, %v757
  %v759 = vpop.f32.mrb[0].mxu0
  %760 = vmatprep.mubr.bf16.mxu0 %v513
  %761 = vmatmul.mubr.bf16.gmra.mrb[0].mxu0 %v337
  %v762 = vpop.f32.mrb[0].mxu0
  %v763 = vadd.f32 0.0, %v762
  %v764 = vpop.f32.mrb[0].mxu0
  %v765 = vpop.f32.mrb[0].mxu0
  %v766 = vadd.f32 0.0, %v765
  %v767 = vpop.f32.mrb[0].mxu0
  %768 = vmatprep.mubr.bf16.mxu0 %v516
  %769 = vmatmul.mubr.bf16.gmra.mrb[0].mxu0 %v339
  %v770 = vpop.f32.mrb[0].mxu0
  %v771 = vadd.f32 0.0, %v770
  %v772 = vpop.f32.mrb[0].mxu0
  %v773 = vpop.f32.mrb[0].mxu0
  %v774 = vadd.f32 0.0, %v773
  %v775 = vpop.f32.mrb[0].mxu0
  %776 = vmatprep.mubr.bf16.mxu0 %v519
  %777 = vmatmul.mubr.bf16.gmra.mrb[0].mxu0 %v341
  %v778 = vpop.f32.mrb[0].mxu0
  %v779 = vadd.f32 0.0, %v778
  %v780 = vpop.f32.mrb[0].mxu0
  %v781 = vpop.f32.mrb[0].mxu0
  %v782 = vadd.f32 0.0, %v781
  %v783 = vpop.f32.mrb[0].mxu0
  %784 = vmatprep.mubr.bf16.mxu0 %v522
  %785 = vmatmul.mubr.bf16.gmra.mrb[0].mxu0 %v343
  %v786 = vpop.f32.mrb[0].mxu0
  %v787 = vadd.f32 0.0, %v786
  %v788 = vpop.f32.mrb[0].mxu0
  %v789 = vpop.f32.mrb[0].mxu0
  %v790 = vadd.f32 0.0, %v789
  %v791 = vpop.f32.mrb[0].mxu0
  %792 = vmatprep.mubr.bf16.mxu0 %v525
  %793 = vmatmul.mubr.bf16.gmra.mrb[0].mxu0 %v345
  %v794 = vpop.f32.mrb[0].mxu0
  %v795 = vadd.f32 0.0, %v794
  %v796 = vpop.f32.mrb[0].mxu0
  %v797 = vpop.f32.mrb[0].mxu0
  %v798 = vadd.f32 0.0, %v797
  %v799 = vpop.f32.mrb[0].mxu0
  %800 = vmatprep.mubr.bf16.mxu0 %v528
  %801 = vmatmul.mubr.bf16.gmra.mrb[0].mxu0 %v347
  %v802 = vpop.f32.mrb[0].mxu0
  %v803 = vadd.f32 0.0, %v802
  %v804 = vpop.f32.mrb[0].mxu0
  %v805 = vpop.f32.mrb[0].mxu0
  %v806 = vadd.f32 0.0, %v805
  %v807 = vpop.f32.mrb[0].mxu0
  %808 = vmatprep.mubr.bf16.mxu0 %v531
  %809 = vmatmul.mubr.bf16.gmra.mrb[0].mxu0 %v349
  %v810 = vpop.f32.mrb[0].mxu0
  %v811 = vadd.f32 0.0, %v810
  %v812 = vpop.f32.mrb[0].mxu0
  %v813 = vpop.f32.mrb[0].mxu0
  %v814 = vadd.f32 0.0, %v813
  %v815 = vpop.f32.mrb[0].mxu0
  %816 = vmatprep.mubr.bf16.mxu0 %v534
  %817 = vmatmul.mubr.bf16.gmra.mrb[0].mxu0 %v351
  %v818 = vpop.f32.mrb[0].mxu0
  %v819 = vadd.f32 0.0, %v818
  %v820 = vpop.f32.mrb[0].mxu0
  %v821 = vpop.f32.mrb[0].mxu0
  %v822 = vadd.f32 0.0, %v821
  %v823 = vpop.f32.mrb[0].mxu0
  %824 = vdwg.mxu0
  %825 = vst [vmem:[%s2] sm:$0xff] %v571
  %826 = vst [vmem:[%s2 + $0x8] sm:$0xff] %v574
  %827 = vst [vmem:[%s2 + $0x10] sm:$0xff] %v579
  %828 = vst [vmem:[%s2 + $0x18] sm:$0xff] %v582
  %829 = vst [vmem:[%s2 + $0x20] sm:$0xff] %v587
  %830 = vst [vmem:[%s2 + $0x28] sm:$0xff] %v590
  %831 = vst [vmem:[%s2 + $0x30] sm:$0xff] %v595
  %832 = vst [vmem:[%s2 + $0x38] sm:$0xff] %v598
  %833 = vst [vmem:[%s2 + $0x40] sm:$0xff] %v603
  %834 = vst [vmem:[%s2 + $0x48] sm:$0xff] %v606
  %835 = vst [vmem:[%s2 + $0x50] sm:$0xff] %v611
  %836 = vst [vmem:[%s2 + $0x58] sm:$0xff] %v614
  %837 = vst [vmem:[%s2 + $0x60] sm:$0xff] %v619
  %838 = vst [vmem:[%s2 + $0x68] sm:$0xff] %v622
  %839 = vst [vmem:[%s2 + $0x70] sm:$0xff] %v627
  %840 = vst [vmem:[%s2 + $0x78] sm:$0xff] %v630
  %841 = vst [vmem:[%s2 + $0x80] sm:$0xff] %v635
  %842 = vst [vmem:[%s2 + $0x88] sm:$0xff] %v638
  %843 = vst [vmem:[%s2 + $0x90] sm:$0xff] %v643
  %844 = vst [vmem:[%s2 + $0x98] sm:$0xff] %v646
  %845 = vst [vmem:[%s2 + $0xa0] sm:$0xff] %v651
  %846 = vst [vmem:[%s2 + $0xa8] sm:$0xff] %v654
  %847 = vst [vmem:[%s2 + $0xb0] sm:$0xff] %v659
  %848 = vst [vmem:[%s2 + $0xb8] sm:$0xff] %v662
  %849 = vst [vmem:[%s2 + $0xc0] sm:$0xff] %v667
  %850 = vst [vmem:[%s2 + $0xc8] sm:$0xff] %v670
  %851 = vst [vmem:[%s2 + $0xd0] sm:$0xff] %v675
  %852 = vst [vmem:[%s2 + $0xd8] sm:$0xff] %v678
  %853 = vst [vmem:[%s2 + $0xe0] sm:$0xff] %v683
  %854 = vst [vmem:[%s2 + $0xe8] sm:$0xff] %v686
  %855 = vst [vmem:[%s2 + $0xf0] sm:$0xff] %v691
  %856 = vst [vmem:[%s2 + $0xf8] sm:$0xff] %v694
  %857 = vst [vmem:[%s2 + $0x100] sm:$0xff] %v699
  %858 = vst [vmem:[%s2 + $0x108] sm:$0xff] %v702
  %859 = vst [vmem:[%s2 + $0x110] sm:$0xff] %v707
  %860 = vst [vmem:[%s2 + $0x118] sm:$0xff] %v710
  %861 = vst [vmem:[%s2 + $0x120] sm:$0xff] %v715
  %862 = vst [vmem:[%s2 + $0x128] sm:$0xff] %v718
  %863 = vst [vmem:[%s2 + $0x130] sm:$0xff] %v723
  %864 = vst [vmem:[%s2 + $0x138] sm:$0xff] %v726
  %865 = vst [vmem:[%s2 + $0x140] sm:$0xff] %v731
  %866 = vst [vmem:[%s2 + $0x148] sm:$0xff] %v734
  %867 = vst [vmem:[%s2 + $0x150] sm:$0xff] %v739
  %868 = vst [vmem:[%s2 + $0x158] sm:$0xff] %v742
  %869 = vst [vmem:[%s2 + $0x160] sm:$0xff] %v747
  %870 = vst [vmem:[%s2 + $0x168] sm:$0xff] %v750
  %871 = vst [vmem:[%s2 + $0x170] sm:$0xff] %v755
  %872 = vst [vmem:[%s2 + $0x178] sm:$0xff] %v758
  %873 = vst [vmem:[%s2 + $0x180] sm:$0xff] %v763
  %874 = vst [vmem:[%s2 + $0x188] sm:$0xff] %v766
  %875 = vst [vmem:[%s2 + $0x190] sm:$0xff] %v771
  %876 = vst [vmem:[%s2 + $0x198] sm:$0xff] %v774
  %877 = vst [vmem:[%s2 + $0x1a0] sm:$0xff] %v779
  %878 = vst [vmem:[%s2 + $0x1a8] sm:$0xff] %v782
  %879 = vst [vmem:[%s2 + $0x1b0] sm:$0xff] %v787
  %880 = vst [vmem:[%s2 + $0x1b8] sm:$0xff] %v790
  %881 = vst [vmem:[%s2 + $0x1c0] sm:$0xff] %v795
  %882 = vst [vmem:[%s2 + $0x1c8] sm:$0xff] %v798
  %883 = vst [vmem:[%s2 + $0x1d0] sm:$0xff] %v803
  %884 = vst [vmem:[%s2 + $0x1d8] sm:$0xff] %v806
  %885 = vst [vmem:[%s2 + $0x1e0] sm:$0xff] %v811
  %886 = vst [vmem:[%s2 + $0x1e8] sm:$0xff] %v814
  %887 = vst [vmem:[%s2 + $0x1f0] sm:$0xff] %v819
  %888 = vst [vmem:[%s2 + $0x1f8] sm:$0xff] %v822
  %v889 = vadd.f32 %v571, %v574
  %v890 = vadd.f32 %v889, %v579
  %v891 = vadd.f32 %v890, %v582
  %v892 = vadd.f32 %v891, %v587
  %v893 = vadd.f32 %v892, %v590
  %v894 = vadd.f32 %v893, %v595
  %v895 = vadd.f32 %v894, %v598
  %v896 = vadd.f32 %v895, %v603
  %v897 = vadd.f32 %v896, %v606
  %v898 = vadd.f32 %v897, %v611
  %v899 = vadd.f32 %v898, %v614
  %v900 = vadd.f32 %v899, %v619
  %v901 = vadd.f32 %v900, %v622
  %v902 = vadd.f32 %v901, %v627
  %v903 = vadd.f32 %v902, %v630
  %v904 = vadd.f32 %v903, %v635
  %v905 = vadd.f32 %v904, %v638
  %v906 = vadd.f32 %v905, %v643
  %v907 = vadd.f32 %v906, %v646
  %v908 = vadd.f32 %v907, %v651
  %v909 = vadd.f32 %v908, %v654
  %v910 = vadd.f32 %v909, %v659
  %v911 = vadd.f32 %v910, %v662
  %v912 = vadd.f32 %v911, %v667
  %v913 = vadd.f32 %v912, %v670
  %v914 = vadd.f32 %v913, %v675
  %v915 = vadd.f32 %v914, %v678
  %v916 = vadd.f32 %v915, %v683
  %v917 = vadd.f32 %v916, %v686
  %v918 = vadd.f32 %v917, %v691
  %v919 = vadd.f32 %v918, %v694
  %v920 = vadd.f32 %v919, %v699
  %v921 = vadd.f32 %v920, %v702
  %v922 = vadd.f32 %v921, %v707
  %v923 = vadd.f32 %v922, %v710
  %v924 = vadd.f32 %v923, %v715
  %v925 = vadd.f32 %v924, %v718
  %v926 = vadd.f32 %v925, %v723
  %v927 = vadd.f32 %v926, %v726
  %v928 = vadd.f32 %v927, %v731
  %v929 = vadd.f32 %v928, %v734
  %v930 = vadd.f32 %v929, %v739
  %v931 = vadd.f32 %v930, %v742
  %v932 = vadd.f32 %v931, %v747
  %v933 = vadd.f32 %v932, %v750
  %v934 = vadd.f32 %v933, %v755
  %v935 = vadd.f32 %v934, %v758
  %v936 = vadd.f32 %v935, %v763
  %v937 = vadd.f32 %v936, %v766
  %v938 = vadd.f32 %v937, %v771
  %v939 = vadd.f32 %v938, %v774
  %v940 = vadd.f32 %v939, %v779
  %v941 = vadd.f32 %v940, %v782
  %v942 = vadd.f32 %v941, %v787
  %v943 = vadd.f32 %v942, %v790
  %v944 = vadd.f32 %v943, %v795
  %v945 = vadd.f32 %v944, %v798
  %v946 = vadd.f32 %v945, %v803
  %v947 = vadd.f32 %v946, %v806
  %v948 = vadd.f32 %v947, %v811
  %v949 = vadd.f32 %v948, %v814
  %v950 = vadd.f32 %v949, %v819
  %v951 = vadd.f32 %v950, %v822
  %v952 = vrot.slane %v951, 4
  %v953 = vadd.f32 %v951, %v952
  %v954 = vrot.slane %v953, 2
  %v955 = vadd.f32 %v953, %v954
  %v956 = vrot.slane %v955, 1
  %v957 = vadd.f32 %v955, %v956
  %958 = vst [vmem:[%s3] sm:$0x1] %v957
  %v959 = vmul.f32 %v571, %v571
  %v960 = vmul.f32 %v574, %v574
  %v961 = vmul.f32 %v579, %v579
  %v962 = vmul.f32 %v582, %v582
  %v963 = vmul.f32 %v587, %v587
  %v964 = vmul.f32 %v590, %v590
  %v965 = vmul.f32 %v595, %v595
  %v966 = vmul.f32 %v598, %v598
  %v967 = vmul.f32 %v603, %v603
  %v968 = vmul.f32 %v606, %v606
  %v969 = vmul.f32 %v611, %v611
  %v970 = vmul.f32 %v614, %v614
  %v971 = vmul.f32 %v619, %v619
  %v972 = vmul.f32 %v622, %v622
  %v973 = vmul.f32 %v627, %v627
  %v974 = vmul.f32 %v630, %v630
  %v975 = vmul.f32 %v635, %v635
  %v976 = vmul.f32 %v638, %v638
  %v977 = vmul.f32 %v643, %v643
  %v978 = vmul.f32 %v646, %v646
  %v979 = vmul.f32 %v651, %v651
  %v980 = vmul.f32 %v654, %v654
  %v981 = vmul.f32 %v659, %v659
  %v982 = vmul.f32 %v662, %v662
  %v983 = vmul.f32 %v667, %v667
  %v984 = vmul.f32 %v670, %v670
  %v985 = vmul.f32 %v675, %v675
  %v986 = vmul.f32 %v678, %v678
  %v987 = vmul.f32 %v683, %v683
  %v988 = vmul.f32 %v686, %v686
  %v989 = vmul.f32 %v691, %v691
  %v990 = vmul.f32 %v694, %v694
  %v991 = vmul.f32 %v699, %v699
  %v992 = vmul.f32 %v702, %v702
  %v993 = vmul.f32 %v707, %v707
  %v994 = vmul.f32 %v710, %v710
  %v995 = vmul.f32 %v715, %v715
  %v996 = vmul.f32 %v718, %v718
  %v997 = vmul.f32 %v723, %v723
  %v998 = vmul.f32 %v726, %v726
  %v999 = vmul.f32 %v731, %v731
  %v1000 = vmul.f32 %v734, %v734
  %v1001 = vmul.f32 %v739, %v739
  %v1002 = vmul.f32 %v742, %v742
  %v1003 = vmul.f32 %v747, %v747
  %v1004 = vmul.f32 %v750, %v750
  %v1005 = vmul.f32 %v755, %v755
  %v1006 = vmul.f32 %v758, %v758
  %v1007 = vmul.f32 %v763, %v763
  %v1008 = vmul.f32 %v766, %v766
  %v1009 = vmul.f32 %v771, %v771
  %v1010 = vmul.f32 %v774, %v774
  %v1011 = vmul.f32 %v779, %v779
  %v1012 = vmul.f32 %v782, %v782
  %v1013 = vmul.f32 %v787, %v787
  %v1014 = vmul.f32 %v790, %v790
  %v1015 = vmul.f32 %v795, %v795
  %v1016 = vmul.f32 %v798, %v798
  %v1017 = vmul.f32 %v803, %v803
  %v1018 = vmul.f32 %v806, %v806
  %v1019 = vmul.f32 %v811, %v811
  %v1020 = vmul.f32 %v814, %v814
  %v1021 = vmul.f32 %v819, %v819
  %v1022 = vmul.f32 %v822, %v822
  %v1023 = vadd.f32 %v959, %v960
  %v1024 = vadd.f32 %v1023, %v961
  %v1025 = vadd.f32 %v1024, %v962
  %v1026 = vadd.f32 %v1025, %v963
  %v1027 = vadd.f32 %v1026, %v964
  %v1028 = vadd.f32 %v1027, %v965
  %v1029 = vadd.f32 %v1028, %v966
  %v1030 = vadd.f32 %v1029, %v967
  %v1031 = vadd.f32 %v1030, %v968
  %v1032 = vadd.f32 %v1031, %v969
  %v1033 = vadd.f32 %v1032, %v970
  %v1034 = vadd.f32 %v1033, %v971
  %v1035 = vadd.f32 %v1034, %v972
  %v1036 = vadd.f32 %v1035, %v973
  %v1037 = vadd.f32 %v1036, %v974
  %v1038 = vadd.f32 %v1037, %v975
  %v1039 = vadd.f32 %v1038, %v976
  %v1040 = vadd.f32 %v1039, %v977
  %v1041 = vadd.f32 %v1040, %v978
  %v1042 = vadd.f32 %v1041, %v979
  %v1043 = vadd.f32 %v1042, %v980
  %v1044 = vadd.f32 %v1043, %v981
  %v1045 = vadd.f32 %v1044, %v982
  %v1046 = vadd.f32 %v1045, %v983
  %v1047 = vadd.f32 %v1046, %v984
  %v1048 = vadd.f32 %v1047, %v985
  %v1049 = vadd.f32 %v1048, %v986
  %v1050 = vadd.f32 %v1049, %v987
  %v1051 = vadd.f32 %v1050, %v988
  %v1052 = vadd.f32 %v1051, %v989
  %v1053 = vadd.f32 %v1052, %v990
  %v1054 = vadd.f32 %v1053, %v991
  %v1055 = vadd.f32 %v1054, %v992
  %v1056 = vadd.f32 %v1055, %v993
  %v1057 = vadd.f32 %v1056, %v994
  %v1058 = vadd.f32 %v1057, %v995
  %v1059 = vadd.f32 %v1058, %v996
  %v1060 = vadd.f32 %v1059, %v997
  %v1061 = vadd.f32 %v1060, %v998
  %v1062 = vadd.f32 %v1061, %v999
  %v1063 = vadd.f32 %v1062, %v1000
  %v1064 = vadd.f32 %v1063, %v1001
  %v1065 = vadd.f32 %v1064, %v1002
  %v1066 = vadd.f32 %v1065, %v1003
  %v1067 = vadd.f32 %v1066, %v1004
  %v1068 = vadd.f32 %v1067, %v1005
  %v1069 = vadd.f32 %v1068, %v1006
  %v1070 = vadd.f32 %v1069, %v1007
  %v1071 = vadd.f32 %v1070, %v1008
  %v1072 = vadd.f32 %v1071, %v1009
  %v1073 = vadd.f32 %v1072, %v1010
  %v1074 = vadd.f32 %v1073, %v1011
  %v1075 = vadd.f32 %v1074, %v1012
  %v1076 = vadd.f32 %v1075, %v1013
  %v1077 = vadd.f32 %v1076, %v1014
  %v1078 = vadd.f32 %v1077, %v1015
  %v1079 = vadd.f32 %v1078, %v1016
  %v1080 = vadd.f32 %v1079, %v1017
  %v1081 = vadd.f32 %v1080, %v1018
  %v1082 = vadd.f32 %v1081, %v1019
  %v1083 = vadd.f32 %v1082, %v1020
  %v1084 = vadd.f32 %v1083, %v1021
  %v1085 = vadd.f32 %v1084, %v1022
  %v1086 = vrot.slane %v1085, 4
  %v1087 = vadd.f32 %v1085, %v1086
  %v1088 = vrot.slane %v1087, 2
  %v1089 = vadd.f32 %v1087, %v1088
  %v1090 = vrot.slane %v1089, 1
  %v1091 = vadd.f32 %v1089, %v1090
  %1092 = vst [vmem:[%s4] sm:$0x1] %v1091
  // Predicated region
  $region10: #{_lambda_.22} parent=0 // pred_check
    _
  $region11: #{_lambda_.22} parent=0 // pred_check_branch
    %1094 = sbr.rel (0) target = $region13
  $region12: #{_lambda_.22} parent=0 // pred_region
    _
  $region13: #{_lambda_.22} parent=0 // pred_fallthru
    _
  // Predicated region
  $region14: #{_lambda_.22} parent=0 // pred_check
    _
  $region15: #{_lambda_.22} parent=0 // pred_check_branch
    %1096 = sbr.rel (0) target = $region17
  $region16: #{_lambda_.22} parent=0 // pred_region
    _
  $region17: #{_lambda_.22} parent=0 // pred_fallthru
    _
  // Predicated region
  $region18: #{_lambda_.22} parent=0 // pred_check
    _
  $region19: #{_lambda_.22} parent=0 // pred_check_branch
    %1098 = sbr.rel (0) target = $region21
  $region20: #{_lambda_.22} parent=0 // pred_region
    _
  $region21: #{_lambda_.22} parent=0 // pred_fallthru
    _
  // Predicated region
  $region22: #{_lambda_.22} parent=0 // pred_check
    _
  $region23: #{_lambda_.22} parent=0 // pred_check_branch
    %1100 = sbr.rel (0) target = $region25
  $region24: #{_lambda_.22} parent=0 // pred_region
    _
  $region25: #{_lambda_.22} parent=0 // pred_fallthru
    _
  // Predicated region
  $region26: #{_lambda_.22} parent=0 // pred_check
    _
  $region27: #{_lambda_.22} parent=0 // pred_check_branch
    %1102 = sbr.rel (0) target = $region29
  $region28: #{_lambda_.22} parent=0 // pred_region
    _
  $region29: #{_lambda_.22} parent=0 // pred_fallthru
    _
  // Predicated region
  $region30: #{_lambda_.22} parent=0 // pred_check
    _
  $region31: #{_lambda_.22} parent=0 // pred_check_branch
    %1104 = sbr.rel (0) target = $region33
  $region32: #{_lambda_.22} parent=0 // pred_region
    _
  $region33: #{_lambda_.22} parent=0 // pred_fallthru
    _

// kernel: _lambda_.23
$region0: #{_lambda_.23}
  #allocation0 [shape = 'u32[]', space=smem, size = 0x4, offset = 0x4, fixed_abs, tag = 'smem constant byte address 0x4 - core index']
  #allocation1 [shape = 'u32[144,128]{1,0:T(1,128)}', space=vmem, size = 0x12000, scoped, tag = 'internal scratch']
  %s0 = inlined_call_operand.vmem [shape: f32[512,128], index: 0, kind: input, shape index: {}]
  %s1 = inlined_call_operand.vmem [shape: f32[1,128], index: 1, kind: input, shape index: {}]
  %s2 = inlined_call_operand.vmem [shape: f32[1,128], index: 2, kind: input, shape index: {}]
  %s3 = inlined_call_operand.vmem [shape: bf16[512,128], index: 3, kind: output, shape index: {}]
  %s4 = sld [smem:[#allocation0]]
  $region22: #{_lambda_.23} parent=0
    _
  %s6 = ssub.s32 1, %s4
  %s7 = scalar_select 0, %s6, %s4
  // Predicated region
  $region2: #{_lambda_.23} parent=0 // pred_check
    _
  $region3: #{_lambda_.23} parent=0 // pred_check_branch
    %9 = sbr.rel (0) target = $region5
  $region4: #{_lambda_.23} parent=0 // pred_region
    _
  $region5: #{_lambda_.23} parent=0 // pred_fallthru
    _
  // Predicated region
  $region6: #{_lambda_.23} parent=0 // pred_check
    _
  $region7: #{_lambda_.23} parent=0 // pred_check_branch
    %11 = sbr.rel (0) target = $region9
  $region8: #{_lambda_.23} parent=0 // pred_region
    _
  $region9: #{_lambda_.23} parent=0 // pred_fallthru
    _
  // Predicated region
  $region10: #{_lambda_.23} parent=0 // pred_check
    _
  $region11: #{_lambda_.23} parent=0 // pred_check_branch
    %13 = sbr.rel (0) target = $region13
  $region12: #{_lambda_.23} parent=0 // pred_region
    _
  $region13: #{_lambda_.23} parent=0 // pred_fallthru
    _
  %v14 = vld [vmem:[%s0] sm:$0xff]
  %v15 = vld [vmem:[%s0 + $0x8] sm:$0xff]
  %v16 = vld [vmem:[%s0 + $0x10] sm:$0xff]
  %v17 = vld [vmem:[%s0 + $0x18] sm:$0xff]
  %v18 = vld [vmem:[%s0 + $0x20] sm:$0xff]
  %v19 = vld [vmem:[%s0 + $0x28] sm:$0xff]
  %v20 = vld [vmem:[%s0 + $0x30] sm:$0xff]
  %v21 = vld [vmem:[%s0 + $0x38] sm:$0xff]
  %v22 = vld [vmem:[%s0 + $0x40] sm:$0xff]
  %v23 = vld [vmem:[%s0 + $0x48] sm:$0xff]
  %v24 = vld [vmem:[%s0 + $0x50] sm:$0xff]
  %v25 = vld [vmem:[%s0 + $0x58] sm:$0xff]
  %v26 = vld [vmem:[%s0 + $0x60] sm:$0xff]
  %v27 = vld [vmem:[%s0 + $0x68] sm:$0xff]
  %v28 = vld [vmem:[%s0 + $0x70] sm:$0xff]
  %v29 = vld [vmem:[%s0 + $0x78] sm:$0xff]
  %v30 = vld [vmem:[%s0 + $0x80] sm:$0xff]
  %v31 = vld [vmem:[%s0 + $0x88] sm:$0xff]
  %v32 = vld [vmem:[%s0 + $0x90] sm:$0xff]
  %v33 = vld [vmem:[%s0 + $0x98] sm:$0xff]
  %v34 = vld [vmem:[%s0 + $0xa0] sm:$0xff]
  %v35 = vld [vmem:[%s0 + $0xa8] sm:$0xff]
  %v36 = vld [vmem:[%s0 + $0xb0] sm:$0xff]
  %v37 = vld [vmem:[%s0 + $0xb8] sm:$0xff]
  %v38 = vld [vmem:[%s0 + $0xc0] sm:$0xff]
  %v39 = vld [vmem:[%s0 + $0xc8] sm:$0xff]
  %v40 = vld [vmem:[%s0 + $0xd0] sm:$0xff]
  %v41 = vld [vmem:[%s0 + $0xd8] sm:$0xff]
  %v42 = vld [vmem:[%s0 + $0xe0] sm:$0xff]
  %v43 = vld [vmem:[%s0 + $0xe8] sm:$0xff]
  %v44 = vld [vmem:[%s0 + $0xf0] sm:$0xff]
  %v45 = vld [vmem:[%s0 + $0xf8] sm:$0xff]
  %v46 = vld [vmem:[%s0 + $0x100] sm:$0xff]
  %v47 = vld [vmem:[%s0 + $0x108] sm:$0xff]
  %v48 = vld [vmem:[%s0 + $0x110] sm:$0xff]
  %v49 = vld [vmem:[%s0 + $0x118] sm:$0xff]
  %v50 = vld [vmem:[%s0 + $0x120] sm:$0xff]
  %v51 = vld [vmem:[%s0 + $0x128] sm:$0xff]
  %v52 = vld [vmem:[%s0 + $0x130] sm:$0xff]
  %v53 = vld [vmem:[%s0 + $0x138] sm:$0xff]
  %v54 = vld [vmem:[%s0 + $0x140] sm:$0xff]
  %v55 = vld [vmem:[%s0 + $0x148] sm:$0xff]
  %v56 = vld [vmem:[%s0 + $0x150] sm:$0xff]
  %v57 = vld [vmem:[%s0 + $0x158] sm:$0xff]
  %v58 = vld [vmem:[%s0 + $0x160] sm:$0xff]
  %v59 = vld [vmem:[%s0 + $0x168] sm:$0xff]
  %v60 = vld [vmem:[%s0 + $0x170] sm:$0xff]
  %v61 = vld [vmem:[%s0 + $0x178] sm:$0xff]
  %v62 = vld [vmem:[%s0 + $0x180] sm:$0xff]
  %v63 = vld [vmem:[%s0 + $0x188] sm:$0xff]
  %v64 = vld [vmem:[%s0 + $0x190] sm:$0xff]
  %v65 = vld [vmem:[%s0 + $0x198] sm:$0xff]
  %v66 = vld [vmem:[%s0 + $0x1a0] sm:$0xff]
  %v67 = vld [vmem:[%s0 + $0x1a8] sm:$0xff]
  %v68 = vld [vmem:[%s0 + $0x1b0] sm:$0xff]
  %v69 = vld [vmem:[%s0 + $0x1b8] sm:$0xff]
  %v70 = vld [vmem:[%s0 + $0x1c0] sm:$0xff]
  %v71 = vld [vmem:[%s0 + $0x1c8] sm:$0xff]
  %v72 = vld [vmem:[%s0 + $0x1d0] sm:$0xff]
  %v73 = vld [vmem:[%s0 + $0x1d8] sm:$0xff]
  %v74 = vld [vmem:[%s0 + $0x1e0] sm:$0xff]
  %v75 = vld [vmem:[%s0 + $0x1e8] sm:$0xff]
  %v76 = vld [vmem:[%s0 + $0x1f0] sm:$0xff]
  %v77 = vld [vmem:[%s0 + $0x1f8] sm:$0xff]
  %v78 = vld [vmem:[%s1] sm:$0x1]
  %v80 = vlaneseq
  %v81 = vshrl.u32 %v80, 7
  %v82 = vsub.s32 0, %v81
  %v83 = vrot.slane %v78, %v82
  %v85 = vmul.f32 %v14, %v83
  %v86 = vmul.f32 %v15, %v83
  %v87 = vmul.f32 %v16, %v83
  %v88 = vmul.f32 %v17, %v83
  %v89 = vmul.f32 %v18, %v83
  %v90 = vmul.f32 %v19, %v83
  %v91 = vmul.f32 %v20, %v83
  %v92 = vmul.f32 %v21, %v83
  %v93 = vmul.f32 %v22, %v83
  %v94 = vmul.f32 %v23, %v83
  %v95 = vmul.f32 %v24, %v83
  %v96 = vmul.f32 %v25, %v83
  %v97 = vmul.f32 %v26, %v83
  %v98 = vmul.f32 %v27, %v83
  %v99 = vmul.f32 %v28, %v83
  %v100 = vmul.f32 %v29, %v83
  %v101 = vmul.f32 %v30, %v83
  %v102 = vmul.f32 %v31, %v83
  %v103 = vmul.f32 %v32, %v83
  %v104 = vmul.f32 %v33, %v83
  %v105 = vmul.f32 %v34, %v83
  %v106 = vmul.f32 %v35, %v83
  %v107 = vmul.f32 %v36, %v83
  %v108 = vmul.f32 %v37, %v83
  %v109 = vmul.f32 %v38, %v83
  %v110 = vmul.f32 %v39, %v83
  %v111 = vmul.f32 %v40, %v83
  %v112 = vmul.f32 %v41, %v83
  %v113 = vmul.f32 %v42, %v83
  %v114 = vmul.f32 %v43, %v83
  %v115 = vmul.f32 %v44, %v83
  %v116 = vmul.f32 %v45, %v83
  %v117 = vmul.f32 %v46, %v83
  %v118 = vmul.f32 %v47, %v83
  %v119 = vmul.f32 %v48, %v83
  %v120 = vmul.f32 %v49, %v83
  %v121 = vmul.f32 %v50, %v83
  %v122 = vmul.f32 %v51, %v83
  %v123 = vmul.f32 %v52, %v83
  %v124 = vmul.f32 %v53, %v83
  %v125 = vmul.f32 %v54, %v83
  %v126 = vmul.f32 %v55, %v83
  %v127 = vmul.f32 %v56, %v83
  %v128 = vmul.f32 %v57, %v83
  %v129 = vmul.f32 %v58, %v83
  %v130 = vmul.f32 %v59, %v83
  %v131 = vmul.f32 %v60, %v83
  %v132 = vmul.f32 %v61, %v83
  %v133 = vmul.f32 %v62, %v83
  %v134 = vmul.f32 %v63, %v83
  %v135 = vmul.f32 %v64, %v83
  %v136 = vmul.f32 %v65, %v83
  %v137 = vmul.f32 %v66, %v83
  %v138 = vmul.f32 %v67, %v83
  %v139 = vmul.f32 %v68, %v83
  %v140 = vmul.f32 %v69, %v83
  %v141 = vmul.f32 %v70, %v83
  %v142 = vmul.f32 %v71, %v83
  %v143 = vmul.f32 %v72, %v83
  %v144 = vmul.f32 %v73, %v83
  %v145 = vmul.f32 %v74, %v83
  %v146 = vmul.f32 %v75, %v83
  %v147 = vmul.f32 %v76, %v83
  %v148 = vmul.f32 %v77, %v83
  %v149 = vld [vmem:[%s2] sm:$0x1]
  %v151 = vlaneseq
  %v152 = vshrl.u32 %v151, 7
  %v153 = vsub.s32 0, %v152
  %v154 = vrot.slane %v149, %v153
  %v156 = vadd.f32 %v85, %v154
  %v157 = vadd.f32 %v86, %v154
  %v158 = vadd.f32 %v87, %v154
  %v159 = vadd.f32 %v88, %v154
  %v160 = vadd.f32 %v89, %v154
  %v161 = vadd.f32 %v90, %v154
  %v162 = vadd.f32 %v91, %v154
  %v163 = vadd.f32 %v92, %v154
  %v164 = vadd.f32 %v93, %v154
  %v165 = vadd.f32 %v94, %v154
  %v166 = vadd.f32 %v95, %v154
  %v167 = vadd.f32 %v96, %v154
  %v168 = vadd.f32 %v97, %v154
  %v169 = vadd.f32 %v98, %v154
  %v170 = vadd.f32 %v99, %v154
  %v171 = vadd.f32 %v100, %v154
  %v172 = vadd.f32 %v101, %v154
  %v173 = vadd.f32 %v102, %v154
  %v174 = vadd.f32 %v103, %v154
  %v175 = vadd.f32 %v104, %v154
  %v176 = vadd.f32 %v105, %v154
  %v177 = vadd.f32 %v106, %v154
  %v178 = vadd.f32 %v107, %v154
  %v179 = vadd.f32 %v108, %v154
  %v180 = vadd.f32 %v109, %v154
  %v181 = vadd.f32 %v110, %v154
  %v182 = vadd.f32 %v111, %v154
  %v183 = vadd.f32 %v112, %v154
  %v184 = vadd.f32 %v113, %v154
  %v185 = vadd.f32 %v114, %v154
  %v186 = vadd.f32 %v115, %v154
  %v187 = vadd.f32 %v116, %v154
  %v188 = vadd.f32 %v117, %v154
  %v189 = vadd.f32 %v118, %v154
  %v190 = vadd.f32 %v119, %v154
  %v191 = vadd.f32 %v120, %v154
  %v192 = vadd.f32 %v121, %v154
  %v193 = vadd.f32 %v122, %v154
  %v194 = vadd.f32 %v123, %v154
  %v195 = vadd.f32 %v124, %v154
  %v196 = vadd.f32 %v125, %v154
  %v197 = vadd.f32 %v126, %v154
  %v198 = vadd.f32 %v127, %v154
  %v199 = vadd.f32 %v128, %v154
  %v200 = vadd.f32 %v129, %v154
  %v201 = vadd.f32 %v130, %v154
  %v202 = vadd.f32 %v131, %v154
  %v203 = vadd.f32 %v132, %v154
  %v204 = vadd.f32 %v133, %v154
  %v205 = vadd.f32 %v134, %v154
  %v206 = vadd.f32 %v135, %v154
  %v207 = vadd.f32 %v136, %v154
  %v208 = vadd.f32 %v137, %v154
  %v209 = vadd.f32 %v138, %v154
  %v210 = vadd.f32 %v139, %v154
  %v211 = vadd.f32 %v140, %v154
  %v212 = vadd.f32 %v141, %v154
  %v213 = vadd.f32 %v142, %v154
  %v214 = vadd.f32 %v143, %v154
  %v215 = vadd.f32 %v144, %v154
  %v216 = vadd.f32 %v145, %v154
  %v217 = vadd.f32 %v146, %v154
  %v218 = vadd.f32 %v147, %v154
  %v219 = vadd.f32 %v148, %v154
  %v220 = vmax.f32 %v156, 0.0
  %v221 = vmax.f32 %v157, 0.0
  %v222 = vmax.f32 %v158, 0.0
  %v223 = vmax.f32 %v159, 0.0
  %v224 = vmax.f32 %v160, 0.0
  %v225 = vmax.f32 %v161, 0.0
  %v226 = vmax.f32 %v162, 0.0
  %v227 = vmax.f32 %v163, 0.0
  %v228 = vmax.f32 %v164, 0.0
  %v229 = vmax.f32 %v165, 0.0
  %v230 = vmax.f32 %v166, 0.0
  %v231 = vmax.f32 %v167, 0.0
  %v232 = vmax.f32 %v168, 0.0
  %v233 = vmax.f32 %v169, 0.0
  %v234 = vmax.f32 %v170, 0.0
  %v235 = vmax.f32 %v171, 0.0
  %v236 = vmax.f32 %v172, 0.0
  %v237 = vmax.f32 %v173, 0.0
  %v238 = vmax.f32 %v174, 0.0
  %v239 = vmax.f32 %v175, 0.0
  %v240 = vmax.f32 %v176, 0.0
  %v241 = vmax.f32 %v177, 0.0
  %v242 = vmax.f32 %v178, 0.0
  %v243 = vmax.f32 %v179, 0.0
  %v244 = vmax.f32 %v180, 0.0
  %v245 = vmax.f32 %v181, 0.0
  %v246 = vmax.f32 %v182, 0.0
  %v247 = vmax.f32 %v183, 0.0
  %v248 = vmax.f32 %v184, 0.0
  %v249 = vmax.f32 %v185, 0.0
  %v250 = vmax.f32 %v186, 0.0
  %v251 = vmax.f32 %v187, 0.0
  %v252 = vmax.f32 %v188, 0.0
  %v253 = vmax.f32 %v189, 0.0
  %v254 = vmax.f32 %v190, 0.0
  %v255 = vmax.f32 %v191, 0.0
  %v256 = vmax.f32 %v192, 0.0
  %v257 = vmax.f32 %v193, 0.0
  %v258 = vmax.f32 %v194, 0.0
  %v259 = vmax.f32 %v195, 0.0
  %v260 = vmax.f32 %v196, 0.0
  %v261 = vmax.f32 %v197, 0.0
  %v262 = vmax.f32 %v198, 0.0
  %v263 = vmax.f32 %v199, 0.0
  %v264 = vmax.f32 %v200, 0.0
  %v265 = vmax.f32 %v201, 0.0
  %v266 = vmax.f32 %v202, 0.0
  %v267 = vmax.f32 %v203, 0.0
  %v268 = vmax.f32 %v204, 0.0
  %v269 = vmax.f32 %v205, 0.0
  %v270 = vmax.f32 %v206, 0.0
  %v271 = vmax.f32 %v207, 0.0
  %v272 = vmax.f32 %v208, 0.0
  %v273 = vmax.f32 %v209, 0.0
  %v274 = vmax.f32 %v210, 0.0
  %v275 = vmax.f32 %v211, 0.0
  %v276 = vmax.f32 %v212, 0.0
  %v277 = vmax.f32 %v213, 0.0
  %v278 = vmax.f32 %v214, 0.0
  %v279 = vmax.f32 %v215, 0.0
  %v280 = vmax.f32 %v216, 0.0
  %v281 = vmax.f32 %v217, 0.0
  %v282 = vmax.f32 %v218, 0.0
  %v283 = vmax.f32 %v219, 0.0
  %v284 = vpack.c.bf16 %v221, %v220
  %v285 = vpack.c.bf16 %v223, %v222
  %v286 = vpack.c.bf16 %v225, %v224
  %v287 = vpack.c.bf16 %v227, %v226
  %v288 = vpack.c.bf16 %v229, %v228
  %v289 = vpack.c.bf16 %v231, %v230
  %v290 = vpack.c.bf16 %v233, %v232
  %v291 = vpack.c.bf16 %v235, %v234
  %v292 = vpack.c.bf16 %v237, %v236
  %v293 = vpack.c.bf16 %v239, %v238
  %v294 = vpack.c.bf16 %v241, %v240
  %v295 = vpack.c.bf16 %v243, %v242
  %v296 = vpack.c.bf16 %v245, %v244
  %v297 = vpack.c.bf16 %v247, %v246
  %v298 = vpack.c.bf16 %v249, %v248
  %v299 = vpack.c.bf16 %v251, %v250
  %v300 = vpack.c.bf16 %v253, %v252
  %v301 = vpack.c.bf16 %v255, %v254
  %v302 = vpack.c.bf16 %v257, %v256
  %v303 = vpack.c.bf16 %v259, %v258
  %v304 = vpack.c.bf16 %v261, %v260
  %v305 = vpack.c.bf16 %v263, %v262
  %v306 = vpack.c.bf16 %v265, %v264
  %v307 = vpack.c.bf16 %v267, %v266
  %v308 = vpack.c.bf16 %v269, %v268
  %v309 = vpack.c.bf16 %v271, %v270
  %v310 = vpack.c.bf16 %v273, %v272
  %v311 = vpack.c.bf16 %v275, %v274
  %v312 = vpack.c.bf16 %v277, %v276
  %v313 = vpack.c.bf16 %v279, %v278
  %v314 = vpack.c.bf16 %v281, %v280
  %v315 = vpack.c.bf16 %v283, %v282
  %v348 = vunpack.c.l.b16 %v284
  %v349 = vunpack.c.h.b16 %v284
  %v350 = vunpack.c.l.b16 %v285
  %v351 = vunpack.c.h.b16 %v285
  %v352 = vunpack.c.l.b16 %v286
  %v353 = vunpack.c.h.b16 %v286
  %v354 = vunpack.c.l.b16 %v287
  %v355 = vunpack.c.h.b16 %v287
  %v356 = vunpack.c.l.b16 %v288
  %v357 = vunpack.c.h.b16 %v288
  %v358 = vunpack.c.l.b16 %v289
  %v359 = vunpack.c.h.b16 %v289
  %v360 = vunpack.c.l.b16 %v290
  %v361 = vunpack.c.h.b16 %v290
  %v362 = vunpack.c.l.b16 %v291
  %v363 = vunpack.c.h.b16 %v291
  %v364 = vunpack.c.l.b16 %v292
  %v365 = vunpack.c.h.b16 %v292
  %v366 = vunpack.c.l.b16 %v293
  %v367 = vunpack.c.h.b16 %v293
  %v368 = vunpack.c.l.b16 %v294
  %v369 = vunpack.c.h.b16 %v294
  %v370 = vunpack.c.l.b16 %v295
  %v371 = vunpack.c.h.b16 %v295
  %v372 = vunpack.c.l.b16 %v296
  %v373 = vunpack.c.h.b16 %v296
  %v374 = vunpack.c.l.b16 %v297
  %v375 = vunpack.c.h.b16 %v297
  %v376 = vunpack.c.l.b16 %v298
  %v377 = vunpack.c.h.b16 %v298
  %v378 = vunpack.c.l.b16 %v299
  %v379 = vunpack.c.h.b16 %v299
  %v380 = vunpack.c.l.b16 %v300
  %v381 = vunpack.c.h.b16 %v300
  %v382 = vunpack.c.l.b16 %v301
  %v383 = vunpack.c.h.b16 %v301
  %v384 = vunpack.c.l.b16 %v302
  %v385 = vunpack.c.h.b16 %v302
  %v386 = vunpack.c.l.b16 %v303
  %v387 = vunpack.c.h.b16 %v303
  %v388 = vunpack.c.l.b16 %v304
  %v389 = vunpack.c.h.b16 %v304
  %v390 = vunpack.c.l.b16 %v305
  %v391 = vunpack.c.h.b16 %v305
  %v392 = vunpack.c.l.b16 %v306
  %v393 = vunpack.c.h.b16 %v306
  %v394 = vunpack.c.l.b16 %v307
  %v395 = vunpack.c.h.b16 %v307
  %v396 = vunpack.c.l.b16 %v308
  %v397 = vunpack.c.h.b16 %v308
  %v398 = vunpack.c.l.b16 %v309
  %v399 = vunpack.c.h.b16 %v309
  %v400 = vunpack.c.l.b16 %v310
  %v401 = vunpack.c.h.b16 %v310
  %v402 = vunpack.c.l.b16 %v311
  %v403 = vunpack.c.h.b16 %v311
  %v404 = vunpack.c.l.b16 %v312
  %v405 = vunpack.c.h.b16 %v312
  %v406 = vunpack.c.l.b16 %v313
  %v407 = vunpack.c.h.b16 %v313
  %v408 = vunpack.c.l.b16 %v314
  %v409 = vunpack.c.h.b16 %v314
  %v410 = vunpack.c.l.b16 %v315
  %v411 = vunpack.c.h.b16 %v315
  %v412 = vpack.c.b16 %v348, %v348
  %v413 = vpack.c.b16 %v349, %v349
  %v414 = vpack.c.b16 %v350, %v350
  %v415 = vpack.c.b16 %v351, %v351
  %v416 = vpack.c.b16 %v352, %v352
  %v417 = vpack.c.b16 %v353, %v353
  %v418 = vpack.c.b16 %v354, %v354
  %v419 = vpack.c.b16 %v355, %v355
  %v420 = vpack.c.b16 %v356, %v356
  %v421 = vpack.c.b16 %v357, %v357
  %v422 = vpack.c.b16 %v358, %v358
  %v423 = vpack.c.b16 %v359, %v359
  %v424 = vpack.c.b16 %v360, %v360
  %v425 = vpack.c.b16 %v361, %v361
  %v426 = vpack.c.b16 %v362, %v362
  %v427 = vpack.c.b16 %v363, %v363
  %v428 = vpack.c.b16 %v364, %v364
  %v429 = vpack.c.b16 %v365, %v365
  %v430 = vpack.c.b16 %v366, %v366
  %v431 = vpack.c.b16 %v367, %v367
  %v432 = vpack.c.b16 %v368, %v368
  %v433 = vpack.c.b16 %v369, %v369
  %v434 = vpack.c.b16 %v370, %v370
  %v435 = vpack.c.b16 %v371, %v371
  %v436 = vpack.c.b16 %v372, %v372
  %v437 = vpack.c.b16 %v373, %v373
  %v438 = vpack.c.b16 %v374, %v374
  %v439 = vpack.c.b16 %v375, %v375
  %v440 = vpack.c.b16 %v376, %v376
  %v441 = vpack.c.b16 %v377, %v377
  %v442 = vpack.c.b16 %v378, %v378
  %v443 = vpack.c.b16 %v379, %v379
  %v444 = vpack.c.b16 %v380, %v380
  %v445 = vpack.c.b16 %v381, %v381
  %v446 = vpack.c.b16 %v382, %v382
  %v447 = vpack.c.b16 %v383, %v383
  %v448 = vpack.c.b16 %v384, %v384
  %v449 = vpack.c.b16 %v385, %v385
  %v450 = vpack.c.b16 %v386, %v386
  %v451 = vpack.c.b16 %v387, %v387
  %v452 = vpack.c.b16 %v388, %v388
  %v453 = vpack.c.b16 %v389, %v389
  %v454 = vpack.c.b16 %v390, %v390
  %v455 = vpack.c.b16 %v391, %v391
  %v456 = vpack.c.b16 %v392, %v392
  %v457 = vpack.c.b16 %v393, %v393
  %v458 = vpack.c.b16 %v394, %v394
  %v459 = vpack.c.b16 %v395, %v395
  %v460 = vpack.c.b16 %v396, %v396
  %v461 = vpack.c.b16 %v397, %v397
  %v462 = vpack.c.b16 %v398, %v398
  %v463 = vpack.c.b16 %v399, %v399
  %v464 = vpack.c.b16 %v400, %v400
  %v465 = vpack.c.b16 %v401, %v401
  %v466 = vpack.c.b16 %v402, %v402
  %v467 = vpack.c.b16 %v403, %v403
  %v468 = vpack.c.b16 %v404, %v404
  %v469 = vpack.c.b16 %v405, %v405
  %v470 = vpack.c.b16 %v406, %v406
  %v471 = vpack.c.b16 %v407, %v407
  %v472 = vpack.c.b16 %v408, %v408
  %v473 = vpack.c.b16 %v409, %v409
  %v474 = vpack.c.b16 %v410, %v410
  %v475 = vpack.c.b16 %v411, %v411
  %540 = vst [vmem:[%s3] sm:$0xf] %v412
  %541 = vst [vmem:[%s3 + $0x4] sm:$0xf] %v413
  %542 = vst [vmem:[%s3 + $0x8] sm:$0xf] %v414
  %543 = vst [vmem:[%s3 + $0xc] sm:$0xf] %v415
  %544 = vst [vmem:[%s3 + $0x10] sm:$0xf] %v416
  %545 = vst [vmem:[%s3 + $0x14] sm:$0xf] %v417
  %546 = vst [vmem:[%s3 + $0x18] sm:$0xf] %v418
  %547 = vst [vmem:[%s3 + $0x1c] sm:$0xf] %v419
  %548 = vst [vmem:[%s3 + $0x20] sm:$0xf] %v420
  %549 = vst [vmem:[%s3 + $0x24] sm:$0xf] %v421
  %550 = vst [vmem:[%s3 + $0x28] sm:$0xf] %v422
  %551 = vst [vmem:[%s3 + $0x2c] sm:$0xf] %v423
  %552 = vst [vmem:[%s3 + $0x30] sm:$0xf] %v424
  %553 = vst [vmem:[%s3 + $0x34] sm:$0xf] %v425
  %554 = vst [vmem:[%s3 + $0x38] sm:$0xf] %v426
  %555 = vst [vmem:[%s3 + $0x3c] sm:$0xf] %v427
  %556 = vst [vmem:[%s3 + $0x40] sm:$0xf] %v428
  %557 = vst [vmem:[%s3 + $0x44] sm:$0xf] %v429
  %558 = vst [vmem:[%s3 + $0x48] sm:$0xf] %v430
  %559 = vst [vmem:[%s3 + $0x4c] sm:$0xf] %v431
  %560 = vst [vmem:[%s3 + $0x50] sm:$0xf] %v432
  %561 = vst [vmem:[%s3 + $0x54] sm:$0xf] %v433
  %562 = vst [vmem:[%s3 + $0x58] sm:$0xf] %v434
  %563 = vst [vmem:[%s3 + $0x5c] sm:$0xf] %v435
  %564 = vst [vmem:[%s3 + $0x60] sm:$0xf] %v436
  %565 = vst [vmem:[%s3 + $0x64] sm:$0xf] %v437
  %566 = vst [vmem:[%s3 + $0x68] sm:$0xf] %v438
  %567 = vst [vmem:[%s3 + $0x6c] sm:$0xf] %v439
  %568 = vst [vmem:[%s3 + $0x70] sm:$0xf] %v440
  %569 = vst [vmem:[%s3 + $0x74] sm:$0xf] %v441
  %570 = vst [vmem:[%s3 + $0x78] sm:$0xf] %v442
  %571 = vst [vmem:[%s3 + $0x7c] sm:$0xf] %v443
  %572 = vst [vmem:[%s3 + $0x80] sm:$0xf] %v444
  %573 = vst [vmem:[%s3 + $0x84] sm:$0xf] %v445
  %574 = vst [vmem:[%s3 + $0x88] sm:$0xf] %v446
  %575 = vst [vmem:[%s3 + $0x8c] sm:$0xf] %v447
  %576 = vst [vmem:[%s3 + $0x90] sm:$0xf] %v448
  %577 = vst [vmem:[%s3 + $0x94] sm:$0xf] %v449
  %578 = vst [vmem:[%s3 + $0x98] sm:$0xf] %v450
  %579 = vst [vmem:[%s3 + $0x9c] sm:$0xf] %v451
  %580 = vst [vmem:[%s3 + $0xa0] sm:$0xf] %v452
  %581 = vst [vmem:[%s3 + $0xa4] sm:$0xf] %v453
  %582 = vst [vmem:[%s3 + $0xa8] sm:$0xf] %v454
  %583 = vst [vmem:[%s3 + $0xac] sm:$0xf] %v455
  %584 = vst [vmem:[%s3 + $0xb0] sm:$0xf] %v456
  %585 = vst [vmem:[%s3 + $0xb4] sm:$0xf] %v457
  %586 = vst [vmem:[%s3 + $0xb8] sm:$0xf] %v458
  %587 = vst [vmem:[%s3 + $0xbc] sm:$0xf] %v459
  %588 = vst [vmem:[%s3 + $0xc0] sm:$0xf] %v460
  %589 = vst [vmem:[%s3 + $0xc4] sm:$0xf] %v461
  %590 = vst [vmem:[%s3 + $0xc8] sm:$0xf] %v462
  %591 = vst [vmem:[%s3 + $0xcc] sm:$0xf] %v463
  %592 = vst [vmem:[%s3 + $0xd0] sm:$0xf] %v464
  %593 = vst [vmem:[%s3 + $0xd4] sm:$0xf] %v465
  %594 = vst [vmem:[%s3 + $0xd8] sm:$0xf] %v466
  %595 = vst [vmem:[%s3 + $0xdc] sm:$0xf] %v467
  %596 = vst [vmem:[%s3 + $0xe0] sm:$0xf] %v468
  %597 = vst [vmem:[%s3 + $0xe4] sm:$0xf] %v469
  %598 = vst [vmem:[%s3 + $0xe8] sm:$0xf] %v470
  %599 = vst [vmem:[%s3 + $0xec] sm:$0xf] %v471
  %600 = vst [vmem:[%s3 + $0xf0] sm:$0xf] %v472
  %601 = vst [vmem:[%s3 + $0xf4] sm:$0xf] %v473
  %602 = vst [vmem:[%s3 + $0xf8] sm:$0xf] %v474
  %603 = vst [vmem:[%s3 + $0xfc] sm:$0xf] %v475
  // Predicated region
  $region14: #{_lambda_.23} parent=0 // pred_check
    _
  $region15: #{_lambda_.23} parent=0 // pred_check_branch
    %605 = sbr.rel (0) target = $region17
  $region16: #{_lambda_.23} parent=0 // pred_region
    _
  $region17: #{_lambda_.23} parent=0 // pred_fallthru
    _
  // Predicated region
  $region18: #{_lambda_.23} parent=0 // pred_check
    _
  $region19: #{_lambda_.23} parent=0 // pred_check_branch
    %607 = sbr.rel (0) target = $region21
  $region20: #{_lambda_.23} parent=0 // pred_region
    _
  $region21: #{_lambda_.23} parent=0 // pred_fallthru
    _

// kernel: _lambda_.25
$region0: #{_lambda_.25}
  #allocation0 [shape = 'u32[]', space=smem, size = 0x4, offset = 0x4, fixed_abs, tag = 'smem constant byte address 0x4 - core index']
  #allocation1 [shape = 'u32[144,128]{1,0:T(1,128)}', space=vmem, size = 0x12000, scoped, tag = 'internal scratch']
  %s0 = inlined_call_operand.vmem [shape: bf16[512,288], index: 0, kind: input, shape index: {}]
  %s1 = inlined_call_operand.vmem [shape: bf16[288,128], index: 1, kind: input, shape index: {}]
  %s2 = inlined_call_operand.vmem [shape: f32[512,128], index: 2, kind: input, shape index: {}]
  %s3 = inlined_call_operand.vmem [shape: f32[1,128], index: 3, kind: input, shape index: {}]
  %s4 = inlined_call_operand.vmem [shape: f32[1,128], index: 4, kind: input, shape index: {}]
  %s5 = inlined_call_operand.vmem [shape: f32[512,128], index: 5, kind: output, shape index: {0}]
  %s6 = inlined_call_operand.vmem [shape: f32[1,1,128], index: 6, kind: output, shape index: {1}]
  %s7 = inlined_call_operand.vmem [shape: f32[1,1,128], index: 7, kind: output, shape index: {2}]
  %8 = xla_tuple %s5, %s6, %s7
  %s9 = sld [smem:[#allocation0]]
  $region46: #{_lambda_.25} parent=0
    _
  %s11 = ssub.s32 1, %s9
  %s12 = scalar_select 0, %s11, %s9
  // Predicated region
  $region2: #{_lambda_.25} parent=0 // pred_check
    _
  $region3: #{_lambda_.25} parent=0 // pred_check_branch
    %14 = sbr.rel (0) target = $region5
  $region4: #{_lambda_.25} parent=0 // pred_region
    _
  $region5: #{_lambda_.25} parent=0 // pred_fallthru
    _
  // Predicated region
  $region6: #{_lambda_.25} parent=0 // pred_check
    _
  $region7: #{_lambda_.25} parent=0 // pred_check_branch
    %16 = sbr.rel (0) target = $region9
  $region8: #{_lambda_.25} parent=0 // pred_region
    _
  $region9: #{_lambda_.25} parent=0 // pred_fallthru
    _
  // Predicated region
  $region10: #{_lambda_.25} parent=0 // pred_check
    _
  $region11: #{_lambda_.25} parent=0 // pred_check_branch
    %18 = sbr.rel (0) target = $region13
  $region12: #{_lambda_.25} parent=0 // pred_region
    _
  $region13: #{_lambda_.25} parent=0 // pred_fallthru
    _
  // Predicated region
  $region14: #{_lambda_.25} parent=0 // pred_check
    _
  $region15: #{_lambda_.25} parent=0 // pred_check_branch
    %20 = sbr.rel (0) target = $region17
  $region16: #{_lambda_.25} parent=0 // pred_region
    _
  $region17: #{_lambda_.25} parent=0 // pred_fallthru
    _
  // Predicated region
  $region18: #{_lambda_.25} parent=0 // pred_check
    _
  $region19: #{_lambda_.25} parent=0 // pred_check_branch
    %22 = sbr.rel (0) target = $region21
  $region20: #{_lambda_.25} parent=0 // pred_region
    _
  $region21: #{_lambda_.25} parent=0 // pred_fallthru
    _
  %v24 = vld [vmem:[%s0] sm:$0xff]
  %v25 = vld [vmem:[%s0 + $0x8] sm:$0xf]
  %v26 = vld [vmem:[%s0 + $0xc] sm:$0xff]
  %v27 = vld [vmem:[%s0 + $0x14] sm:$0xf]
  %v28 = vld [vmem:[%s0 + $0x18] sm:$0xff]
  %v29 = vld [vmem:[%s0 + $0x20] sm:$0xf]
  %v30 = vld [vmem:[%s0 + $0x24] sm:$0xff]
  %v31 = vld [vmem:[%s0 + $0x2c] sm:$0xf]
  %v32 = vld [vmem:[%s0 + $0x30] sm:$0xff]
  %v33 = vld [vmem:[%s0 + $0x38] sm:$0xf]
  %v34 = vld [vmem:[%s0 + $0x3c] sm:$0xff]
  %v35 = vld [vmem:[%s0 + $0x44] sm:$0xf]
  %v36 = vld [vmem:[%s0 + $0x48] sm:$0xff]
  %v37 = vld [vmem:[%s0 + $0x50] sm:$0xf]
  %v38 = vld [vmem:[%s0 + $0x54] sm:$0xff]
  %v39 = vld [vmem:[%s0 + $0x5c] sm:$0xf]
  %v40 = vld [vmem:[%s0 + $0x60] sm:$0xff]
  %v41 = vld [vmem:[%s0 + $0x68] sm:$0xf]
  %v42 = vld [vmem:[%s0 + $0x6c] sm:$0xff]
  %v43 = vld [vmem:[%s0 + $0x74] sm:$0xf]
  %v44 = vld [vmem:[%s0 + $0x78] sm:$0xff]
  %v45 = vld [vmem:[%s0 + $0x80] sm:$0xf]
  %v46 = vld [vmem:[%s0 + $0x84] sm:$0xff]
  %v47 = vld [vmem:[%s0 + $0x8c] sm:$0xf]
  %v48 = vld [vmem:[%s0 + $0x90] sm:$0xff]
  %v49 = vld [vmem:[%s0 + $0x98] sm:$0xf]
  %v50 = vld [vmem:[%s0 + $0x9c] sm:$0xff]
  %v51 = vld [vmem:[%s0 + $0xa4] sm:$0xf]
  %v52 = vld [vmem:[%s0 + $0xa8] sm:$0xff]
  %v53 = vld [vmem:[%s0 + $0xb0] sm:$0xf]
  %v54 = vld [vmem:[%s0 + $0xb4] sm:$0xff]
  %v55 = vld [vmem:[%s0 + $0xbc] sm:$0xf]
  %v56 = vld [vmem:[%s0 + $0xc0] sm:$0xff]
  %v57 = vld [vmem:[%s0 + $0xc8] sm:$0xf]
  %v58 = vld [vmem:[%s0 + $0xcc] sm:$0xff]
  %v59 = vld [vmem:[%s0 + $0xd4] sm:$0xf]
  %v60 = vld [vmem:[%s0 + $0xd8] sm:$0xff]
  %v61 = vld [vmem:[%s0 + $0xe0] sm:$0xf]
  %v62 = vld [vmem:[%s0 + $0xe4] sm:$0xff]
  %v63 = vld [vmem:[%s0 + $0xec] sm:$0xf]
  %v64 = vld [vmem:[%s0 + $0xf0] sm:$0xff]
  %v65 = vld [vmem:[%s0 + $0xf8] sm:$0xf]
  %v66 = vld [vmem:[%s0 + $0xfc] sm:$0xff]
  %v67 = vld [vmem:[%s0 + $0x104] sm:$0xf]
  %v68 = vld [vmem:[%s0 + $0x108] sm:$0xff]
  %v69 = vld [vmem:[%s0 + $0x110] sm:$0xf]
  %v70 = vld [vmem:[%s0 + $0x114] sm:$0xff]
  %v71 = vld [vmem:[%s0 + $0x11c] sm:$0xf]
  %v72 = vld [vmem:[%s0 + $0x120] sm:$0xff]
  %v73 = vld [vmem:[%s0 + $0x128] sm:$0xf]
  %v74 = vld [vmem:[%s0 + $0x12c] sm:$0xff]
  %v75 = vld [vmem:[%s0 + $0x134] sm:$0xf]
  %v76 = vld [vmem:[%s0 + $0x138] sm:$0xff]
  %v77 = vld [vmem:[%s0 + $0x140] sm:$0xf]
  %v78 = vld [vmem:[%s0 + $0x144] sm:$0xff]
  %v79 = vld [vmem:[%s0 + $0x14c] sm:$0xf]
  %v80 = vld [vmem:[%s0 + $0x150] sm:$0xff]
  %v81 = vld [vmem:[%s0 + $0x158] sm:$0xf]
  %v82 = vld [vmem:[%s0 + $0x15c] sm:$0xff]
  %v83 = vld [vmem:[%s0 + $0x164] sm:$0xf]
  %v84 = vld [vmem:[%s0 + $0x168] sm:$0xff]
  %v85 = vld [vmem:[%s0 + $0x170] sm:$0xf]
  %v86 = vld [vmem:[%s0 + $0x174] sm:$0xff]
  %v87 = vld [vmem:[%s0 + $0x17c] sm:$0xf]
  %v88 = vld [vmem:[%s0 + $0x180] sm:$0xff]
  %v89 = vld [vmem:[%s0 + $0x188] sm:$0xf]
  %v90 = vld [vmem:[%s0 + $0x18c] sm:$0xff]
  %v91 = vld [vmem:[%s0 + $0x194] sm:$0xf]
  %v92 = vld [vmem:[%s0 + $0x198] sm:$0xff]
  %v93 = vld [vmem:[%s0 + $0x1a0] sm:$0xf]
  %v94 = vld [vmem:[%s0 + $0x1a4] sm:$0xff]
  %v95 = vld [vmem:[%s0 + $0x1ac] sm:$0xf]
  %v96 = vld [vmem:[%s0 + $0x1b0] sm:$0xff]
  %v97 = vld [vmem:[%s0 + $0x1b8] sm:$0xf]
  %v98 = vld [vmem:[%s0 + $0x1bc] sm:$0xff]
  %v99 = vld [vmem:[%s0 + $0x1c4] sm:$0xf]
  %v100 = vld [vmem:[%s0 + $0x1c8] sm:$0xff]
  %v101 = vld [vmem:[%s0 + $0x1d0] sm:$0xf]
  %v102 = vld [vmem:[%s0 + $0x1d4] sm:$0xff]
  %v103 = vld [vmem:[%s0 + $0x1dc] sm:$0xf]
  %v104 = vld [vmem:[%s0 + $0x1e0] sm:$0xff]
  %v105 = vld [vmem:[%s0 + $0x1e8] sm:$0xf]
  %v106 = vld [vmem:[%s0 + $0x1ec] sm:$0xff]
  %v107 = vld [vmem:[%s0 + $0x1f4] sm:$0xf]
  %v108 = vld [vmem:[%s0 + $0x1f8] sm:$0xff]
  %v109 = vld [vmem:[%s0 + $0x200] sm:$0xf]
  %v110 = vld [vmem:[%s0 + $0x204] sm:$0xff]
  %v111 = vld [vmem:[%s0 + $0x20c] sm:$0xf]
  %v112 = vld [vmem:[%s0 + $0x210] sm:$0xff]
  %v113 = vld [vmem:[%s0 + $0x218] sm:$0xf]
  %v114 = vld [vmem:[%s0 + $0x21c] sm:$0xff]
  %v115 = vld [vmem:[%s0 + $0x224] sm:$0xf]
  %v116 = vld [vmem:[%s0 + $0x228] sm:$0xff]
  %v117 = vld [vmem:[%s0 + $0x230] sm:$0xf]
  %v118 = vld [vmem:[%s0 + $0x234] sm:$0xff]
  %v119 = vld [vmem:[%s0 + $0x23c] sm:$0xf]
  %v120 = vld [vmem:[%s0 + $0x240] sm:$0xff]
  %v121 = vld [vmem:[%s0 + $0x248] sm:$0xf]
  %v122 = vld [vmem:[%s0 + $0x24c] sm:$0xff]
  %v123 = vld [vmem:[%s0 + $0x254] sm:$0xf]
  %v124 = vld [vmem:[%s0 + $0x258] sm:$0xff]
  %v125 = vld [vmem:[%s0 + $0x260] sm:$0xf]
  %v126 = vld [vmem:[%s0 + $0x264] sm:$0xff]
  %v127 = vld [vmem:[%s0 + $0x26c] sm:$0xf]
  %v128 = vld [vmem:[%s0 + $0x270] sm:$0xff]
  %v129 = vld [vmem:[%s0 + $0x278] sm:$0xf]
  %v130 = vld [vmem:[%s0 + $0x27c] sm:$0xff]
  %v131 = vld [vmem:[%s0 + $0x284] sm:$0xf]
  %v132 = vld [vmem:[%s0 + $0x288] sm:$0xff]
  %v133 = vld [vmem:[%s0 + $0x290] sm:$0xf]
  %v134 = vld [vmem:[%s0 + $0x294] sm:$0xff]
  %v135 = vld [vmem:[%s0 + $0x29c] sm:$0xf]
  %v136 = vld [vmem:[%s0 + $0x2a0] sm:$0xff]
  %v137 = vld [vmem:[%s0 + $0x2a8] sm:$0xf]
  %v138 = vld [vmem:[%s0 + $0x2ac] sm:$0xff]
  %v139 = vld [vmem:[%s0 + $0x2b4] sm:$0xf]
  %v140 = vld [vmem:[%s0 + $0x2b8] sm:$0xff]
  %v141 = vld [vmem:[%s0 + $0x2c0] sm:$0xf]
  %v142 = vld [vmem:[%s0 + $0x2c4] sm:$0xff]
  %v143 = vld [vmem:[%s0 + $0x2cc] sm:$0xf]
  %v144 = vld [vmem:[%s0 + $0x2d0] sm:$0xff]
  %v145 = vld [vmem:[%s0 + $0x2d8] sm:$0xf]
  %v146 = vld [vmem:[%s0 + $0x2dc] sm:$0xff]
  %v147 = vld [vmem:[%s0 + $0x2e4] sm:$0xf]
  %v148 = vld [vmem:[%s0 + $0x2e8] sm:$0xff]
  %v149 = vld [vmem:[%s0 + $0x2f0] sm:$0xf]
  %v150 = vld [vmem:[%s0 + $0x2f4] sm:$0xff]
  %v151 = vld [vmem:[%s0 + $0x2fc] sm:$0xf]
  %v152 = vld [vmem:[%s1] sm:$0xf]
  %v153 = vld [vmem:[%s1 + $0x4] sm:$0xf]
  %v154 = vld [vmem:[%s1 + $0x8] sm:$0xf]
  %v155 = vld [vmem:[%s1 + $0xc] sm:$0xf]
  %v156 = vld [vmem:[%s1 + $0x10] sm:$0xf]
  %v157 = vld [vmem:[%s1 + $0x14] sm:$0xf]
  %v158 = vld [vmem:[%s1 + $0x18] sm:$0xf]
  %v159 = vld [vmem:[%s1 + $0x1c] sm:$0xf]
  %v160 = vld [vmem:[%s1 + $0x20] sm:$0xf]
  %v161 = vld [vmem:[%s1 + $0x24] sm:$0xf]
  %v162 = vld [vmem:[%s1 + $0x28] sm:$0xf]
  %v163 = vld [vmem:[%s1 + $0x2c] sm:$0xf]
  %v164 = vld [vmem:[%s1 + $0x30] sm:$0xf]
  %v165 = vld [vmem:[%s1 + $0x34] sm:$0xf]
  %v166 = vld [vmem:[%s1 + $0x38] sm:$0xf]
  %v167 = vld [vmem:[%s1 + $0x3c] sm:$0xf]
  %v168 = vld [vmem:[%s1 + $0x40] sm:$0xf]
  %v169 = vld [vmem:[%s1 + $0x44] sm:$0xf]
  %v170 = vld [vmem:[%s1 + $0x48] sm:$0xf]
  %v171 = vld [vmem:[%s1 + $0x4c] sm:$0xf]
  %v172 = vld [vmem:[%s1 + $0x50] sm:$0xf]
  %v173 = vld [vmem:[%s1 + $0x54] sm:$0xf]
  %v174 = vld [vmem:[%s1 + $0x58] sm:$0xf]
  %v175 = vld [vmem:[%s1 + $0x5c] sm:$0xf]
  %v176 = vld [vmem:[%s1 + $0x60] sm:$0xf]
  %v177 = vld [vmem:[%s1 + $0x64] sm:$0xf]
  %v178 = vld [vmem:[%s1 + $0x68] sm:$0xf]
  %v179 = vld [vmem:[%s1 + $0x6c] sm:$0xf]
  %v180 = vld [vmem:[%s1 + $0x70] sm:$0xf]
  %v181 = vld [vmem:[%s1 + $0x74] sm:$0xf]
  %v182 = vld [vmem:[%s1 + $0x78] sm:$0xf]
  %v183 = vld [vmem:[%s1 + $0x7c] sm:$0xf]
  %v184 = vld [vmem:[%s1 + $0x80] sm:$0xf]
  %v185 = vld [vmem:[%s1 + $0x84] sm:$0xf]
  %v186 = vld [vmem:[%s1 + $0x88] sm:$0xf]
  %v187 = vld [vmem:[%s1 + $0x8c] sm:$0xf]
  %v188 = vld [vmem:[%s2] sm:$0xff]
  %v189 = vld [vmem:[%s2 + $0x8] sm:$0xff]
  %v190 = vld [vmem:[%s2 + $0x10] sm:$0xff]
  %v191 = vld [vmem:[%s2 + $0x18] sm:$0xff]
  %v192 = vld [vmem:[%s2 + $0x20] sm:$0xff]
  %v193 = vld [vmem:[%s2 + $0x28] sm:$0xff]
  %v194 = vld [vmem:[%s2 + $0x30] sm:$0xff]
  %v195 = vld [vmem:[%s2 + $0x38] sm:$0xff]
  %v196 = vld [vmem:[%s2 + $0x40] sm:$0xff]
  %v197 = vld [vmem:[%s2 + $0x48] sm:$0xff]
  %v198 = vld [vmem:[%s2 + $0x50] sm:$0xff]
  %v199 = vld [vmem:[%s2 + $0x58] sm:$0xff]
  %v200 = vld [vmem:[%s2 + $0x60] sm:$0xff]
  %v201 = vld [vmem:[%s2 + $0x68] sm:$0xff]
  %v202 = vld [vmem:[%s2 + $0x70] sm:$0xff]
  %v203 = vld [vmem:[%s2 + $0x78] sm:$0xff]
  %v204 = vld [vmem:[%s2 + $0x80] sm:$0xff]
  %v205 = vld [vmem:[%s2 + $0x88] sm:$0xff]
  %v206 = vld [vmem:[%s2 + $0x90] sm:$0xff]
  %v207 = vld [vmem:[%s2 + $0x98] sm:$0xff]
  %v208 = vld [vmem:[%s2 + $0xa0] sm:$0xff]
  %v209 = vld [vmem:[%s2 + $0xa8] sm:$0xff]
  %v210 = vld [vmem:[%s2 + $0xb0] sm:$0xff]
  %v211 = vld [vmem:[%s2 + $0xb8] sm:$0xff]
  %v212 = vld [vmem:[%s2 + $0xc0] sm:$0xff]
  %v213 = vld [vmem:[%s2 + $0xc8] sm:$0xff]
  %v214 = vld [vmem:[%s2 + $0xd0] sm:$0xff]
  %v215 = vld [vmem:[%s2 + $0xd8] sm:$0xff]
  %v216 = vld [vmem:[%s2 + $0xe0] sm:$0xff]
  %v217 = vld [vmem:[%s2 + $0xe8] sm:$0xff]
  %v218 = vld [vmem:[%s2 + $0xf0] sm:$0xff]
  %v219 = vld [vmem:[%s2 + $0xf8] sm:$0xff]
  %v220 = vld [vmem:[%s2 + $0x100] sm:$0xff]
  %v221 = vld [vmem:[%s2 + $0x108] sm:$0xff]
  %v222 = vld [vmem:[%s2 + $0x110] sm:$0xff]
  %v223 = vld [vmem:[%s2 + $0x118] sm:$0xff]
  %v224 = vld [vmem:[%s2 + $0x120] sm:$0xff]
  %v225 = vld [vmem:[%s2 + $0x128] sm:$0xff]
  %v226 = vld [vmem:[%s2 + $0x130] sm:$0xff]
  %v227 = vld [vmem:[%s2 + $0x138] sm:$0xff]
  %v228 = vld [vmem:[%s2 + $0x140] sm:$0xff]
  %v229 = vld [vmem:[%s2 + $0x148] sm:$0xff]
  %v230 = vld [vmem:[%s2 + $0x150] sm:$0xff]
  %v231 = vld [vmem:[%s2 + $0x158] sm:$0xff]
  %v232 = vld [vmem:[%s2 + $0x160] sm:$0xff]
  %v233 = vld [vmem:[%s2 + $0x168] sm:$0xff]
  %v234 = vld [vmem:[%s2 + $0x170] sm:$0xff]
  %v235 = vld [vmem:[%s2 + $0x178] sm:$0xff]
  %v236 = vld [vmem:[%s2 + $0x180] sm:$0xff]
  %v237 = vld [vmem:[%s2 + $0x188] sm:$0xff]
  %v238 = vld [vmem:[%s2 + $0x190] sm:$0xff]
  %v239 = vld [vmem:[%s2 + $0x198] sm:$0xff]
  %v240 = vld [vmem:[%s2 + $0x1a0] sm:$0xff]
  %v241 = vld [vmem:[%s2 + $0x1a8] sm:$0xff]
  %v242 = vld [vmem:[%s2 + $0x1b0] sm:$0xff]
  %v243 = vld [vmem:[%s2 + $0x1b8] sm:$0xff]
  %v244 = vld [vmem:[%s2 + $0x1c0] sm:$0xff]
  %v245 = vld [vmem:[%s2 + $0x1c8] sm:$0xff]
  %v246 = vld [vmem:[%s2 + $0x1d0] sm:$0xff]
  %v247 = vld [vmem:[%s2 + $0x1d8] sm:$0xff]
  %v248 = vld [vmem:[%s2 + $0x1e0] sm:$0xff]
  %v249 = vld [vmem:[%s2 + $0x1e8] sm:$0xff]
  %v250 = vld [vmem:[%s2 + $0x1f0] sm:$0xff]
  %v251 = vld [vmem:[%s2 + $0x1f8] sm:$0xff]
  %v252 = vld [vmem:[%s3] sm:$0x1]
  %v254 = vlaneseq
  %v255 = vshrl.u32 %v254, 7
  %v256 = vsub.s32 0, %v255
  %v257 = vrot.slane %v252, %v256
  %v259 = vmul.f32 %v188, %v257
  %v260 = vmul.f32 %v189, %v257
  %v261 = vmul.f32 %v190, %v257
  %v262 = vmul.f32 %v191, %v257
  %v263 = vmul.f32 %v192, %v257
  %v264 = vmul.f32 %v193, %v257
  %v265 = vmul.f32 %v194, %v257
  %v266 = vmul.f32 %v195, %v257
  %v267 = vmul.f32 %v196, %v257
  %v268 = vmul.f32 %v197, %v257
  %v269 = vmul.f32 %v198, %v257
  %v270 = vmul.f32 %v199, %v257
  %v271 = vmul.f32 %v200, %v257
  %v272 = vmul.f32 %v201, %v257
  %v273 = vmul.f32 %v202, %v257
  %v274 = vmul.f32 %v203, %v257
  %v275 = vmul.f32 %v204, %v257
  %v276 = vmul.f32 %v205, %v257
  %v277 = vmul.f32 %v206, %v257
  %v278 = vmul.f32 %v207, %v257
  %v279 = vmul.f32 %v208, %v257
  %v280 = vmul.f32 %v209, %v257
  %v281 = vmul.f32 %v210, %v257
  %v282 = vmul.f32 %v211, %v257
  %v283 = vmul.f32 %v212, %v257
  %v284 = vmul.f32 %v213, %v257
  %v285 = vmul.f32 %v214, %v257
  %v286 = vmul.f32 %v215, %v257
  %v287 = vmul.f32 %v216, %v257
  %v288 = vmul.f32 %v217, %v257
  %v289 = vmul.f32 %v218, %v257
  %v290 = vmul.f32 %v219, %v257
  %v291 = vmul.f32 %v220, %v257
  %v292 = vmul.f32 %v221, %v257
  %v293 = vmul.f32 %v222, %v257
  %v294 = vmul.f32 %v223, %v257
  %v295 = vmul.f32 %v224, %v257
  %v296 = vmul.f32 %v225, %v257
  %v297 = vmul.f32 %v226, %v257
  %v298 = vmul.f32 %v227, %v257
  %v299 = vmul.f32 %v228, %v257
  %v300 = vmul.f32 %v229, %v257
  %v301 = vmul.f32 %v230, %v257
  %v302 = vmul.f32 %v231, %v257
  %v303 = vmul.f32 %v232, %v257
  %v304 = vmul.f32 %v233, %v257
  %v305 = vmul.f32 %v234, %v257
  %v306 = vmul.f32 %v235, %v257
  %v307 = vmul.f32 %v236, %v257
  %v308 = vmul.f32 %v237, %v257
  %v309 = vmul.f32 %v238, %v257
  %v310 = vmul.f32 %v239, %v257
  %v311 = vmul.f32 %v240, %v257
  %v312 = vmul.f32 %v241, %v257
  %v313 = vmul.f32 %v242, %v257
  %v314 = vmul.f32 %v243, %v257
  %v315 = vmul.f32 %v244, %v257
  %v316 = vmul.f32 %v245, %v257
  %v317 = vmul.f32 %v246, %v257
  %v318 = vmul.f32 %v247, %v257
  %v319 = vmul.f32 %v248, %v257
  %v320 = vmul.f32 %v249, %v257
  %v321 = vmul.f32 %v250, %v257
  %v322 = vmul.f32 %v251, %v257
  %v451 = vunpack.c.l.b16 %v24
  %v452 = vunpack.c.h.b16 %v24
  %v453 = vunpack.c.l.b16 %v25
  %v454 = vunpack.c.l.b16 %v26
  %v455 = vunpack.c.h.b16 %v26
  %v456 = vunpack.c.l.b16 %v27
  %v457 = vunpack.c.l.b16 %v28
  %v458 = vunpack.c.h.b16 %v28
  %v459 = vunpack.c.l.b16 %v29
  %v460 = vunpack.c.l.b16 %v30
  %v461 = vunpack.c.h.b16 %v30
  %v462 = vunpack.c.l.b16 %v31
  %v463 = vunpack.c.l.b16 %v32
  %v464 = vunpack.c.h.b16 %v32
  %v465 = vunpack.c.l.b16 %v33
  %v466 = vunpack.c.l.b16 %v34
  %v467 = vunpack.c.h.b16 %v34
  %v468 = vunpack.c.l.b16 %v35
  %v469 = vunpack.c.l.b16 %v36
  %v470 = vunpack.c.h.b16 %v36
  %v471 = vunpack.c.l.b16 %v37
  %v472 = vunpack.c.l.b16 %v38
  %v473 = vunpack.c.h.b16 %v38
  %v474 = vunpack.c.l.b16 %v39
  %v475 = vunpack.c.l.b16 %v40
  %v476 = vunpack.c.h.b16 %v40
  %v477 = vunpack.c.l.b16 %v41
  %v478 = vunpack.c.l.b16 %v42
  %v479 = vunpack.c.h.b16 %v42
  %v480 = vunpack.c.l.b16 %v43
  %v481 = vunpack.c.l.b16 %v44
  %v482 = vunpack.c.h.b16 %v44
  %v483 = vunpack.c.l.b16 %v45
  %v484 = vunpack.c.l.b16 %v46
  %v485 = vunpack.c.h.b16 %v46
  %v486 = vunpack.c.l.b16 %v47
  %v487 = vunpack.c.l.b16 %v48
  %v488 = vunpack.c.h.b16 %v48
  %v489 = vunpack.c.l.b16 %v49
  %v490 = vunpack.c.l.b16 %v50
  %v491 = vunpack.c.h.b16 %v50
  %v492 = vunpack.c.l.b16 %v51
  %v493 = vunpack.c.l.b16 %v52
  %v494 = vunpack.c.h.b16 %v52
  %v495 = vunpack.c.l.b16 %v53
  %v496 = vunpack.c.l.b16 %v54
  %v497 = vunpack.c.h.b16 %v54
  %v498 = vunpack.c.l.b16 %v55
  %v499 = vunpack.c.l.b16 %v56
  %v500 = vunpack.c.h.b16 %v56
  %v501 = vunpack.c.l.b16 %v57
  %v502 = vunpack.c.l.b16 %v58
  %v503 = vunpack.c.h.b16 %v58
  %v504 = vunpack.c.l.b16 %v59
  %v505 = vunpack.c.l.b16 %v60
  %v506 = vunpack.c.h.b16 %v60
  %v507 = vunpack.c.l.b16 %v61
  %v508 = vunpack.c.l.b16 %v62
  %v509 = vunpack.c.h.b16 %v62
  %v510 = vunpack.c.l.b16 %v63
  %v511 = vunpack.c.l.b16 %v64
  %v512 = vunpack.c.h.b16 %v64
  %v513 = vunpack.c.l.b16 %v65
  %v514 = vunpack.c.l.b16 %v66
  %v515 = vunpack.c.h.b16 %v66
  %v516 = vunpack.c.l.b16 %v67
  %v517 = vunpack.c.l.b16 %v68
  %v518 = vunpack.c.h.b16 %v68
  %v519 = vunpack.c.l.b16 %v69
  %v520 = vunpack.c.l.b16 %v70
  %v521 = vunpack.c.h.b16 %v70
  %v522 = vunpack.c.l.b16 %v71
  %v523 = vunpack.c.l.b16 %v72
  %v524 = vunpack.c.h.b16 %v72
  %v525 = vunpack.c.l.b16 %v73
  %v526 = vunpack.c.l.b16 %v74
  %v527 = vunpack.c.h.b16 %v74
  %v528 = vunpack.c.l.b16 %v75
  %v529 = vunpack.c.l.b16 %v76
  %v530 = vunpack.c.h.b16 %v76
  %v531 = vunpack.c.l.b16 %v77
  %v532 = vunpack.c.l.b16 %v78
  %v533 = vunpack.c.h.b16 %v78
  %v534 = vunpack.c.l.b16 %v79
  %v535 = vunpack.c.l.b16 %v80
  %v536 = vunpack.c.h.b16 %v80
  %v537 = vunpack.c.l.b16 %v81
  %v538 = vunpack.c.l.b16 %v82
  %v539 = vunpack.c.h.b16 %v82
  %v540 = vunpack.c.l.b16 %v83
  %v541 = vunpack.c.l.b16 %v84
  %v542 = vunpack.c.h.b16 %v84
  %v543 = vunpack.c.l.b16 %v85
  %v544 = vunpack.c.l.b16 %v86
  %v545 = vunpack.c.h.b16 %v86
  %v546 = vunpack.c.l.b16 %v87
  %v547 = vunpack.c.l.b16 %v88
  %v548 = vunpack.c.h.b16 %v88
  %v549 = vunpack.c.l.b16 %v89
  %v550 = vunpack.c.l.b16 %v90
  %v551 = vunpack.c.h.b16 %v90
  %v552 = vunpack.c.l.b16 %v91
  %v553 = vunpack.c.l.b16 %v92
  %v554 = vunpack.c.h.b16 %v92
  %v555 = vunpack.c.l.b16 %v93
  %v556 = vunpack.c.l.b16 %v94
  %v557 = vunpack.c.h.b16 %v94
  %v558 = vunpack.c.l.b16 %v95
  %v559 = vunpack.c.l.b16 %v96
  %v560 = vunpack.c.h.b16 %v96
  %v561 = vunpack.c.l.b16 %v97
  %v562 = vunpack.c.l.b16 %v98
  %v563 = vunpack.c.h.b16 %v98
  %v564 = vunpack.c.l.b16 %v99
  %v565 = vunpack.c.l.b16 %v100
  %v566 = vunpack.c.h.b16 %v100
  %v567 = vunpack.c.l.b16 %v101
  %v568 = vunpack.c.l.b16 %v102
  %v569 = vunpack.c.h.b16 %v102
  %v570 = vunpack.c.l.b16 %v103
  %v571 = vunpack.c.l.b16 %v104
  %v572 = vunpack.c.h.b16 %v104
  %v573 = vunpack.c.l.b16 %v105
  %v574 = vunpack.c.l.b16 %v106
  %v575 = vunpack.c.h.b16 %v106
  %v576 = vunpack.c.l.b16 %v107
  %v577 = vunpack.c.l.b16 %v108
  %v578 = vunpack.c.h.b16 %v108
  %v579 = vunpack.c.l.b16 %v109
  %v580 = vunpack.c.l.b16 %v110
  %v581 = vunpack.c.h.b16 %v110
  %v582 = vunpack.c.l.b16 %v111
  %v583 = vunpack.c.l.b16 %v112
  %v584 = vunpack.c.h.b16 %v112
  %v585 = vunpack.c.l.b16 %v113
  %v586 = vunpack.c.l.b16 %v114
  %v587 = vunpack.c.h.b16 %v114
  %v588 = vunpack.c.l.b16 %v115
  %v589 = vunpack.c.l.b16 %v116
  %v590 = vunpack.c.h.b16 %v116
  %v591 = vunpack.c.l.b16 %v117
  %v592 = vunpack.c.l.b16 %v118
  %v593 = vunpack.c.h.b16 %v118
  %v594 = vunpack.c.l.b16 %v119
  %v595 = vunpack.c.l.b16 %v120
  %v596 = vunpack.c.h.b16 %v120
  %v597 = vunpack.c.l.b16 %v121
  %v598 = vunpack.c.l.b16 %v122
  %v599 = vunpack.c.h.b16 %v122
  %v600 = vunpack.c.l.b16 %v123
  %v601 = vunpack.c.l.b16 %v124
  %v602 = vunpack.c.h.b16 %v124
  %v603 = vunpack.c.l.b16 %v125
  %v604 = vunpack.c.l.b16 %v126
  %v605 = vunpack.c.h.b16 %v126
  %v606 = vunpack.c.l.b16 %v127
  %v607 = vunpack.c.l.b16 %v128
  %v608 = vunpack.c.h.b16 %v128
  %v609 = vunpack.c.l.b16 %v129
  %v610 = vunpack.c.l.b16 %v130
  %v611 = vunpack.c.h.b16 %v130
  %v612 = vunpack.c.l.b16 %v131
  %v613 = vunpack.c.l.b16 %v132
  %v614 = vunpack.c.h.b16 %v132
  %v615 = vunpack.c.l.b16 %v133
  %v616 = vunpack.c.l.b16 %v134
  %v617 = vunpack.c.h.b16 %v134
  %v618 = vunpack.c.l.b16 %v135
  %v619 = vunpack.c.l.b16 %v136
  %v620 = vunpack.c.h.b16 %v136
  %v621 = vunpack.c.l.b16 %v137
  %v622 = vunpack.c.l.b16 %v138
  %v623 = vunpack.c.h.b16 %v138
  %v624 = vunpack.c.l.b16 %v139
  %v625 = vunpack.c.l.b16 %v140
  %v626 = vunpack.c.h.b16 %v140
  %v627 = vunpack.c.l.b16 %v141
  %v628 = vunpack.c.l.b16 %v142
  %v629 = vunpack.c.h.b16 %v142
  %v630 = vunpack.c.l.b16 %v143
  %v631 = vunpack.c.l.b16 %v144
  %v632 = vunpack.c.h.b16 %v144
  %v633 = vunpack.c.l.b16 %v145
  %v634 = vunpack.c.l.b16 %v146
  %v635 = vunpack.c.h.b16 %v146
  %v636 = vunpack.c.l.b16 %v147
  %v637 = vunpack.c.l.b16 %v148
  %v638 = vunpack.c.h.b16 %v148
  %v639 = vunpack.c.l.b16 %v149
  %v640 = vunpack.c.l.b16 %v150
  %v641 = vunpack.c.h.b16 %v150
  %v642 = vunpack.c.l.b16 %v151
  %v643 = vpack.c.b16 %v454, %v451
  %v644 = vpack.c.b16 %v455, %v452
  %v645 = vpack.c.b16 %v456, %v453
  %v646 = vpack.c.b16 %v460, %v457
  %v647 = vpack.c.b16 %v461, %v458
  %v648 = vpack.c.b16 %v462, %v459
  %v649 = vpack.c.b16 %v466, %v463
  %v650 = vpack.c.b16 %v467, %v464
  %v651 = vpack.c.b16 %v468, %v465
  %v652 = vpack.c.b16 %v472, %v469
  %v653 = vpack.c.b16 %v473, %v470
  %v654 = vpack.c.b16 %v474, %v471
  %v655 = vpack.c.b16 %v478, %v475
  %v656 = vpack.c.b16 %v479, %v476
  %v657 = vpack.c.b16 %v480, %v477
  %v658 = vpack.c.b16 %v484, %v481
  %v659 = vpack.c.b16 %v485, %v482
  %v660 = vpack.c.b16 %v486, %v483
  %v661 = vpack.c.b16 %v490, %v487
  %v662 = vpack.c.b16 %v491, %v488
  %v663 = vpack.c.b16 %v492, %v489
  %v664 = vpack.c.b16 %v496, %v493
  %v665 = vpack.c.b16 %v497, %v494
  %v666 = vpack.c.b16 %v498, %v495
  %v667 = vpack.c.b16 %v502, %v499
  %v668 = vpack.c.b16 %v503, %v500
  %v669 = vpack.c.b16 %v504, %v501
  %v670 = vpack.c.b16 %v508, %v505
  %v671 = vpack.c.b16 %v509, %v506
  %v672 = vpack.c.b16 %v510, %v507
  %v673 = vpack.c.b16 %v514, %v511
  %v674 = vpack.c.b16 %v515, %v512
  %v675 = vpack.c.b16 %v516, %v513
  %v676 = vpack.c.b16 %v520, %v517
  %v677 = vpack.c.b16 %v521, %v518
  %v678 = vpack.c.b16 %v522, %v519
  %v679 = vpack.c.b16 %v526, %v523
  %v680 = vpack.c.b16 %v527, %v524
  %v681 = vpack.c.b16 %v528, %v525
  %v682 = vpack.c.b16 %v532, %v529
  %v683 = vpack.c.b16 %v533, %v530
  %v684 = vpack.c.b16 %v534, %v531
  %v685 = vpack.c.b16 %v538, %v535
  %v686 = vpack.c.b16 %v539, %v536
  %v687 = vpack.c.b16 %v540, %v537
  %v688 = vpack.c.b16 %v544, %v541
  %v689 = vpack.c.b16 %v545, %v542
  %v690 = vpack.c.b16 %v546, %v543
  %v691 = vpack.c.b16 %v550, %v547
  %v692 = vpack.c.b16 %v551, %v548
  %v693 = vpack.c.b16 %v552, %v549
  %v694 = vpack.c.b16 %v556, %v553
  %v695 = vpack.c.b16 %v557, %v554
  %v696 = vpack.c.b16 %v558, %v555
  %v697 = vpack.c.b16 %v562, %v559
  %v698 = vpack.c.b16 %v563, %v560
  %v699 = vpack.c.b16 %v564, %v561
  %v700 = vpack.c.b16 %v568, %v565
  %v701 = vpack.c.b16 %v569, %v566
  %v702 = vpack.c.b16 %v570, %v567
  %v703 = vpack.c.b16 %v574, %v571
  %v704 = vpack.c.b16 %v575, %v572
  %v705 = vpack.c.b16 %v576, %v573
  %v706 = vpack.c.b16 %v580, %v577
  %v707 = vpack.c.b16 %v581, %v578
  %v708 = vpack.c.b16 %v582, %v579
  %v709 = vpack.c.b16 %v586, %v583
  %v710 = vpack.c.b16 %v587, %v584
  %v711 = vpack.c.b16 %v588, %v585
  %v712 = vpack.c.b16 %v592, %v589
  %v713 = vpack.c.b16 %v593, %v590
  %v714 = vpack.c.b16 %v594, %v591
  %v715 = vpack.c.b16 %v598, %v595
  %v716 = vpack.c.b16 %v599, %v596
  %v717 = vpack.c.b16 %v600, %v597
  %v718 = vpack.c.b16 %v604, %v601
  %v719 = vpack.c.b16 %v605, %v602
  %v720 = vpack.c.b16 %v606, %v603
  %v721 = vpack.c.b16 %v610, %v607
  %v722 = vpack.c.b16 %v611, %v608
  %v723 = vpack.c.b16 %v612, %v609
  %v724 = vpack.c.b16 %v616, %v613
  %v725 = vpack.c.b16 %v617, %v614
  %v726 = vpack.c.b16 %v618, %v615
  %v727 = vpack.c.b16 %v622, %v619
  %v728 = vpack.c.b16 %v623, %v620
  %v729 = vpack.c.b16 %v624, %v621
  %v730 = vpack.c.b16 %v628, %v625
  %v731 = vpack.c.b16 %v629, %v626
  %v732 = vpack.c.b16 %v630, %v627
  %v733 = vpack.c.b16 %v634, %v631
  %v734 = vpack.c.b16 %v635, %v632
  %v735 = vpack.c.b16 %v636, %v633
  %v736 = vpack.c.b16 %v640, %v637
  %v737 = vpack.c.b16 %v641, %v638
  %v738 = vpack.c.b16 %v642, %v639
  %v839 = vunpack.c.l.b16 %v152
  %v840 = vunpack.c.l.b16 %v153
  %v841 = vunpack.c.l.b16 %v154
  %v842 = vunpack.c.l.b16 %v155
  %v843 = vunpack.c.l.b16 %v156
  %v844 = vunpack.c.l.b16 %v157
  %v845 = vunpack.c.l.b16 %v158
  %v846 = vunpack.c.l.b16 %v159
  %v847 = vunpack.c.l.b16 %v160
  %v848 = vunpack.c.l.b16 %v161
  %v849 = vunpack.c.l.b16 %v162
  %v850 = vunpack.c.l.b16 %v163
  %v851 = vunpack.c.l.b16 %v164
  %v852 = vunpack.c.l.b16 %v165
  %v853 = vunpack.c.l.b16 %v166
  %v854 = vunpack.c.l.b16 %v167
  %v855 = vunpack.c.l.b16 %v168
  %v856 = vunpack.c.l.b16 %v169
  %v857 = vunpack.c.l.b16 %v170
  %v858 = vunpack.c.l.b16 %v171
  %v859 = vunpack.c.l.b16 %v172
  %v860 = vunpack.c.l.b16 %v173
  %v861 = vunpack.c.l.b16 %v174
  %v862 = vunpack.c.l.b16 %v175
  %v863 = vunpack.c.l.b16 %v176
  %v864 = vunpack.c.l.b16 %v177
  %v865 = vunpack.c.l.b16 %v178
  %v866 = vunpack.c.l.b16 %v179
  %v867 = vunpack.c.l.b16 %v180
  %v868 = vunpack.c.l.b16 %v181
  %v869 = vunpack.c.l.b16 %v182
  %v870 = vunpack.c.l.b16 %v183
  %v871 = vunpack.c.l.b16 %v184
  %v872 = vunpack.c.l.b16 %v185
  %v873 = vunpack.c.l.b16 %v186
  %v874 = vunpack.c.l.b16 %v187
  %v875 = vpack.c.b16 %v840, %v839
  %v876 = vpack.c.b16 %v842, %v841
  %v877 = vpack.c.b16 %v844, %v843
  %v878 = vpack.c.b16 %v846, %v845
  %v879 = vpack.c.b16 %v848, %v847
  %v880 = vpack.c.b16 %v850, %v849
  %v881 = vpack.c.b16 %v852, %v851
  %v882 = vpack.c.b16 %v854, %v853
  %v883 = vpack.c.b16 %v856, %v855
  %v884 = vpack.c.b16 %v858, %v857
  %v885 = vpack.c.b16 %v860, %v859
  %v886 = vpack.c.b16 %v862, %v861
  %v887 = vpack.c.b16 %v864, %v863
  %v888 = vpack.c.b16 %v866, %v865
  %v889 = vpack.c.b16 %v868, %v867
  %v890 = vpack.c.b16 %v870, %v869
  %v891 = vpack.c.b16 %v872, %v871
  %v892 = vpack.c.b16 %v874, %v873
  %vm911 = vcmask 261120
  %v913 = vsel %vm911, %v645, 0
  %v916 = vsel %vm911, %v648, 0
  %v919 = vsel %vm911, %v651, 0
  %v922 = vsel %vm911, %v654, 0
  %v925 = vsel %vm911, %v657, 0
  %v928 = vsel %vm911, %v660, 0
  %v931 = vsel %vm911, %v663, 0
  %v934 = vsel %vm911, %v666, 0
  %v937 = vsel %vm911, %v669, 0
  %v940 = vsel %vm911, %v672, 0
  %v943 = vsel %vm911, %v675, 0
  %v946 = vsel %vm911, %v678, 0
  %v949 = vsel %vm911, %v681, 0
  %v952 = vsel %vm911, %v684, 0
  %v955 = vsel %vm911, %v687, 0
  %v958 = vsel %vm911, %v690, 0
  %v961 = vsel %vm911, %v693, 0
  %v964 = vsel %vm911, %v696, 0
  %v967 = vsel %vm911, %v699, 0
  %v970 = vsel %vm911, %v702, 0
  %v973 = vsel %vm911, %v705, 0
  %v976 = vsel %vm911, %v708, 0
  %v979 = vsel %vm911, %v711, 0
  %v982 = vsel %vm911, %v714, 0
  %v985 = vsel %vm911, %v717, 0
  %v988 = vsel %vm911, %v720, 0
  %v991 = vsel %vm911, %v723, 0
  %v994 = vsel %vm911, %v726, 0
  %v997 = vsel %vm911, %v729, 0
  %v1000 = vsel %vm911, %v732, 0
  %v1003 = vsel %vm911, %v735, 0
  %v1006 = vsel %vm911, %v738, 0
  %1008 = vmatprep.subr.bf16.mxu0 0
  %1009 = vmatpush1.bf16.msra.mxu0 %v875
  %1010 = vmatprep.subr.bf16.mxu0 0
  %1011 = vmatpush1.bf16.msra.mxu0 %v876
  %1012 = vmatprep.subr.bf16.mxu0 0
  %1013 = vmatpush1.bf16.msra.mxu0 %v877
  %1014 = vmatprep.subr.bf16.mxu0 0
  %1015 = vmatpush1.bf16.msra.mxu0 %v878
  %1016 = vmatprep.subr.bf16.mxu0 0
  %1017 = vmatpush1.bf16.msra.mxu0 %v879
  %1018 = vmatprep.subr.bf16.mxu0 0
  %1019 = vmatpush1.bf16.msra.mxu0 %v880
  %1020 = vmatprep.subr.bf16.mxu0 0
  %1021 = vmatpush1.bf16.msra.mxu0 %v881
  %1022 = vmatprep.subr.bf16.mxu0 0
  %1023 = vmatpush1.bf16.msra.mxu0 %v882
  %1024 = vmatprep.subr.bf16.mxu0 0
  %1025 = vmatpush1.bf16.msra.mxu0 %v883
  %1026 = vmatprep.subr.bf16.mxu0 0
  %1027 = vmatpush1.bf16.msra.mxu0 %v884
  %1028 = vmatprep.subr.bf16.mxu0 0
  %1029 = vmatpush1.bf16.msra.mxu0 %v885
  %1030 = vmatprep.subr.bf16.mxu0 0
  %1031 = vmatpush1.bf16.msra.mxu0 %v886
  %1032 = vmatprep.subr.bf16.mxu0 0
  %1033 = vmatpush1.bf16.msra.mxu0 %v887
  %1034 = vmatprep.subr.bf16.mxu0 0
  %1035 = vmatpush1.bf16.msra.mxu0 %v888
  %1036 = vmatprep.subr.bf16.mxu0 0
  %1037 = vmatpush1.bf16.msra.mxu0 %v889
  %1038 = vmatprep.subr.bf16.mxu0 0
  %1039 = vmatpush1.bf16.msra.mxu0 %v890
  %1040 = vmatprep.mubr.bf16.mxu0 %v644
  %1041 = vmatmul.mubr.bf16.gmra.mrb[0].mxu0 %v643
  %v1042 = vpop.f32.mrb[0].mxu0
  %v1043 = vadd.f32 %v259, %v1042
  %v1044 = vpop.f32.mrb[0].mxu0
  %v1045 = vpop.f32.mrb[0].mxu0
  %v1046 = vadd.f32 %v260, %v1045
  %v1047 = vpop.f32.mrb[0].mxu0
  %1048 = vmatprep.mubr.bf16.mxu0 %v647
  %1049 = vmatmul.mubr.bf16.gmra.mrb[0].mxu0 %v646
  %v1050 = vpop.f32.mrb[0].mxu0
  %v1051 = vadd.f32 %v261, %v1050
  %v1052 = vpop.f32.mrb[0].mxu0
  %v1053 = vpop.f32.mrb[0].mxu0
  %v1054 = vadd.f32 %v262, %v1053
  %v1055 = vpop.f32.mrb[0].mxu0
  %1056 = vmatprep.mubr.bf16.mxu0 %v650
  %1057 = vmatmul.mubr.bf16.gmra.mrb[0].mxu0 %v649
  %v1058 = vpop.f32.mrb[0].mxu0
  %v1059 = vadd.f32 %v263, %v1058
  %v1060 = vpop.f32.mrb[0].mxu0
  %v1061 = vpop.f32.mrb[0].mxu0
  %v1062 = vadd.f32 %v264, %v1061
  %v1063 = vpop.f32.mrb[0].mxu0
  %1064 = vmatprep.mubr.bf16.mxu0 %v653
  %1065 = vmatmul.mubr.bf16.gmra.mrb[0].mxu0 %v652
  %v1066 = vpop.f32.mrb[0].mxu0
  %v1067 = vadd.f32 %v265, %v1066
  %v1068 = vpop.f32.mrb[0].mxu0
  %v1069 = vpop.f32.mrb[0].mxu0
  %v1070 = vadd.f32 %v266, %v1069
  %v1071 = vpop.f32.mrb[0].mxu0
  %1072 = vmatprep.mubr.bf16.mxu0 %v656
  %1073 = vmatmul.mubr.bf16.gmra.mrb[0].mxu0 %v655
  %v1074 = vpop.f32.mrb[0].mxu0
  %v1075 = vadd.f32 %v267, %v1074
  %v1076 = vpop.f32.mrb[0].mxu0
  %v1077 = vpop.f32.mrb[0].mxu0
  %v1078 = vadd.f32 %v268, %v1077
  %v1079 = vpop.f32.mrb[0].mxu0
  %1080 = vmatprep.mubr.bf16.mxu0 %v659
  %1081 = vmatmul.mubr.bf16.gmra.mrb[0].mxu0 %v658
  %v1082 = vpop.f32.mrb[0].mxu0
  %v1083 = vadd.f32 %v269, %v1082
  %v1084 = vpop.f32.mrb[0].mxu0
  %v1085 = vpop.f32.mrb[0].mxu0
  %v1086 = vadd.f32 %v270, %v1085
  %v1087 = vpop.f32.mrb[0].mxu0
  %1088 = vmatprep.mubr.bf16.mxu0 %v662
  %1089 = vmatmul.mubr.bf16.gmra.mrb[0].mxu0 %v661
  %v1090 = vpop.f32.mrb[0].mxu0
  %v1091 = vadd.f32 %v271, %v1090
  %v1092 = vpop.f32.mrb[0].mxu0
  %v1093 = vpop.f32.mrb[0].mxu0
  %v1094 = vadd.f32 %v272, %v1093
  %v1095 = vpop.f32.mrb[0].mxu0
  %1096 = vmatprep.mubr.bf16.mxu0 %v665
  %1097 = vmatmul.mubr.bf16.gmra.mrb[0].mxu0 %v664
  %v1098 = vpop.f32.mrb[0].mxu0
  %v1099 = vadd.f32 %v273, %v1098
  %v1100 = vpop.f32.mrb[0].mxu0
  %v1101 = vpop.f32.mrb[0].mxu0
  %v1102 = vadd.f32 %v274, %v1101
  %v1103 = vpop.f32.mrb[0].mxu0
  %1104 = vmatprep.mubr.bf16.mxu0 %v668
  %1105 = vmatmul.mubr.bf16.gmra.mrb[0].mxu0 %v667
  %v1106 = vpop.f32.mrb[0].mxu0
  %v1107 = vadd.f32 %v275, %v1106
  %v1108 = vpop.f32.mrb[0].mxu0
  %v1109 = vpop.f32.mrb[0].mxu0
  %v1110 = vadd.f32 %v276, %v1109
  %v1111 = vpop.f32.mrb[0].mxu0
  %1112 = vmatprep.mubr.bf16.mxu0 %v671
  %1113 = vmatmul.mubr.bf16.gmra.mrb[0].mxu0 %v670
  %v1114 = vpop.f32.mrb[0].mxu0
  %v1115 = vadd.f32 %v277, %v1114
  %v1116 = vpop.f32.mrb[0].mxu0
  %v1117 = vpop.f32.mrb[0].mxu0
  %v1118 = vadd.f32 %v278, %v1117
  %v1119 = vpop.f32.mrb[0].mxu0
  %1120 = vmatprep.mubr.bf16.mxu0 %v674
  %1121 = vmatmul.mubr.bf16.gmra.mrb[0].mxu0 %v673
  %v1122 = vpop.f32.mrb[0].mxu0
  %v1123 = vadd.f32 %v279, %v1122
  %v1124 = vpop.f32.mrb[0].mxu0
  %v1125 = vpop.f32.mrb[0].mxu0
  %v1126 = vadd.f32 %v280, %v1125
  %v1127 = vpop.f32.mrb[0].mxu0
  %1128 = vmatprep.mubr.bf16.mxu0 %v677
  %1129 = vmatmul.mubr.bf16.gmra.mrb[0].mxu0 %v676
  %v1130 = vpop.f32.mrb[0].mxu0
  %v1131 = vadd.f32 %v281, %v1130
  %v1132 = vpop.f32.mrb[0].mxu0
  %v1133 = vpop.f32.mrb[0].mxu0
  %v1134 = vadd.f32 %v282, %v1133
  %v1135 = vpop.f32.mrb[0].mxu0
  %1136 = vmatprep.mubr.bf16.mxu0 %v680
  %1137 = vmatmul.mubr.bf16.gmra.mrb[0].mxu0 %v679
  %v1138 = vpop.f32.mrb[0].mxu0
  %v1139 = vadd.f32 %v283, %v1138
  %v1140 = vpop.f32.mrb[0].mxu0
  %v1141 = vpop.f32.mrb[0].mxu0
  %v1142 = vadd.f32 %v284, %v1141
  %v1143 = vpop.f32.mrb[0].mxu0
  %1144 = vmatprep.mubr.bf16.mxu0 %v683
  %1145 = vmatmul.mubr.bf16.gmra.mrb[0].mxu0 %v682
  %v1146 = vpop.f32.mrb[0].mxu0
  %v1147 = vadd.f32 %v285, %v1146
  %v1148 = vpop.f32.mrb[0].mxu0
  %v1149 = vpop.f32.mrb[0].mxu0
  %v1150 = vadd.f32 %v286, %v1149
  %v1151 = vpop.f32.mrb[0].mxu0
  %1152 = vmatprep.mubr.bf16.mxu0 %v686
  %1153 = vmatmul.mubr.bf16.gmra.mrb[0].mxu0 %v685
  %v1154 = vpop.f32.mrb[0].mxu0
  %v1155 = vadd.f32 %v287, %v1154
  %v1156 = vpop.f32.mrb[0].mxu0
  %v1157 = vpop.f32.mrb[0].mxu0
  %v1158 = vadd.f32 %v288, %v1157
  %v1159 = vpop.f32.mrb[0].mxu0
  %1160 = vmatprep.mubr.bf16.mxu0 %v689
  %1161 = vmatmul.mubr.bf16.gmra.mrb[0].mxu0 %v688
  %v1162 = vpop.f32.mrb[0].mxu0
  %v1163 = vadd.f32 %v289, %v1162
  %v1164 = vpop.f32.mrb[0].mxu0
  %v1165 = vpop.f32.mrb[0].mxu0
  %v1166 = vadd.f32 %v290, %v1165
  %v1167 = vpop.f32.mrb[0].mxu0
  %1168 = vmatprep.mubr.bf16.mxu0 %v692
  %1169 = vmatmul.mubr.bf16.gmra.mrb[0].mxu0 %v691
  %v1170 = vpop.f32.mrb[0].mxu0
  %v1171 = vadd.f32 %v291, %v1170
  %v1172 = vpop.f32.mrb[0].mxu0
  %v1173 = vpop.f32.mrb[0].mxu0
  %v1174 = vadd.f32 %v292, %v1173
  %v1175 = vpop.f32.mrb[0].mxu0
  %1176 = vmatprep.mubr.bf16.mxu0 %v695
  %1177 = vmatmul.mubr.bf16.gmra.mrb[0].mxu0 %v694
  %v1178 = vpop.f32.mrb[0].mxu0
  %v1179 = vadd.f32 %v293, %v1178
  %v1180 = vpop.f32.mrb[0].mxu0
  %v1181 = vpop.f32.mrb[0].mxu0
  %v1182 = vadd.f32 %v294, %v1181
  %v1183 = vpop.f32.mrb[0].mxu0
  %1184 = vmatprep.mubr.bf16.mxu0 %v698
  %1185 = vmatmul.mubr.bf16.gmra.mrb[0].mxu0 %v697
  %v1186 = vpop.f32.mrb[0].mxu0
  %v1187 = vadd.f32 %v295, %v1186
  %v1188 = vpop.f32.mrb[0].mxu0
  %v1189 = vpop.f32.mrb[0].mxu0
  %v1190 = vadd.f32 %v296, %v1189
  %v1191 = vpop.f32.mrb[0].mxu0
  %1192 = vmatprep.mubr.bf16.mxu0 %v701
  %1193 = vmatmul.mubr.bf16.gmra.mrb[0].mxu0 %v700
  %v1194 = vpop.f32.mrb[0].mxu0
  %v1195 = vadd.f32 %v297, %v1194
  %v1196 = vpop.f32.mrb[0].mxu0
  %v1197 = vpop.f32.mrb[0].mxu0
  %v1198 = vadd.f32 %v298, %v1197
  %v1199 = vpop.f32.mrb[0].mxu0
  %1200 = vmatprep.mubr.bf16.mxu0 %v704
  %1201 = vmatmul.mubr.bf16.gmra.mrb[0].mxu0 %v703
  %v1202 = vpop.f32.mrb[0].mxu0
  %v1203 = vadd.f32 %v299, %v1202
  %v1204 = vpop.f32.mrb[0].mxu0
  %v1205 = vpop.f32.mrb[0].mxu0
  %v1206 = vadd.f32 %v300, %v1205
  %v1207 = vpop.f32.mrb[0].mxu0
  %1208 = vmatprep.mubr.bf16.mxu0 %v707
  %1209 = vmatmul.mubr.bf16.gmra.mrb[0].mxu0 %v706
  %v1210 = vpop.f32.mrb[0].mxu0
  %v1211 = vadd.f32 %v301, %v1210
  %v1212 = vpop.f32.mrb[0].mxu0
  %v1213 = vpop.f32.mrb[0].mxu0
  %v1214 = vadd.f32 %v302, %v1213
  %v1215 = vpop.f32.mrb[0].mxu0
  %1216 = vmatprep.mubr.bf16.mxu0 %v710
  %1217 = vmatmul.mubr.bf16.gmra.mrb[0].mxu0 %v709
  %v1218 = vpop.f32.mrb[0].mxu0
  %v1219 = vadd.f32 %v303, %v1218
  %v1220 = vpop.f32.mrb[0].mxu0
  %v1221 = vpop.f32.mrb[0].mxu0
  %v1222 = vadd.f32 %v304, %v1221
  %v1223 = vpop.f32.mrb[0].mxu0
  %1224 = vmatprep.mubr.bf16.mxu0 %v713
  %1225 = vmatmul.mubr.bf16.gmra.mrb[0].mxu0 %v712
  %v1226 = vpop.f32.mrb[0].mxu0
  %v1227 = vadd.f32 %v305, %v1226
  %v1228 = vpop.f32.mrb[0].mxu0
  %v1229 = vpop.f32.mrb[0].mxu0
  %v1230 = vadd.f32 %v306, %v1229
  %v1231 = vpop.f32.mrb[0].mxu0
  %1232 = vmatprep.mubr.bf16.mxu0 %v716
  %1233 = vmatmul.mubr.bf16.gmra.mrb[0].mxu0 %v715
  %v1234 = vpop.f32.mrb[0].mxu0
  %v1235 = vadd.f32 %v307, %v1234
  %v1236 = vpop.f32.mrb[0].mxu0
  %v1237 = vpop.f32.mrb[0].mxu0
  %v1238 = vadd.f32 %v308, %v1237
  %v1239 = vpop.f32.mrb[0].mxu0
  %1240 = vmatprep.mubr.bf16.mxu0 %v719
  %1241 = vmatmul.mubr.bf16.gmra.mrb[0].mxu0 %v718
  %v1242 = vpop.f32.mrb[0].mxu0
  %v1243 = vadd.f32 %v309, %v1242
  %v1244 = vpop.f32.mrb[0].mxu0
  %v1245 = vpop.f32.mrb[0].mxu0
  %v1246 = vadd.f32 %v310, %v1245
  %v1247 = vpop.f32.mrb[0].mxu0
  %1248 = vmatprep.mubr.bf16.mxu0 %v722
  %1249 = vmatmul.mubr.bf16.gmra.mrb[0].mxu0 %v721
  %v1250 = vpop.f32.mrb[0].mxu0
  %v1251 = vadd.f32 %v311, %v1250
  %v1252 = vpop.f32.mrb[0].mxu0
  %v1253 = vpop.f32.mrb[0].mxu0
  %v1254 = vadd.f32 %v312, %v1253
  %v1255 = vpop.f32.mrb[0].mxu0
  %1256 = vmatprep.mubr.bf16.mxu0 %v725
  %1257 = vmatmul.mubr.bf16.gmra.mrb[0].mxu0 %v724
  %v1258 = vpop.f32.mrb[0].mxu0
  %v1259 = vadd.f32 %v313, %v1258
  %v1260 = vpop.f32.mrb[0].mxu0
  %v1261 = vpop.f32.mrb[0].mxu0
  %v1262 = vadd.f32 %v314, %v1261
  %v1263 = vpop.f32.mrb[0].mxu0
  %1264 = vmatprep.mubr.bf16.mxu0 %v728
  %1265 = vmatmul.mubr.bf16.gmra.mrb[0].mxu0 %v727
  %v1266 = vpop.f32.mrb[0].mxu0
  %v1267 = vadd.f32 %v315, %v1266
  %v1268 = vpop.f32.mrb[0].mxu0
  %v1269 = vpop.f32.mrb[0].mxu0
  %v1270 = vadd.f32 %v316, %v1269
  %v1271 = vpop.f32.mrb[0].mxu0
  %1272 = vmatprep.mubr.bf16.mxu0 %v731
  %1273 = vmatmul.mubr.bf16.gmra.mrb[0].mxu0 %v730
  %v1274 = vpop.f32.mrb[0].mxu0
  %v1275 = vadd.f32 %v317, %v1274
  %v1276 = vpop.f32.mrb[0].mxu0
  %v1277 = vpop.f32.mrb[0].mxu0
  %v1278 = vadd.f32 %v318, %v1277
  %v1279 = vpop.f32.mrb[0].mxu0
  %1280 = vmatprep.mubr.bf16.mxu0 %v734
  %1281 = vmatmul.mubr.bf16.gmra.mrb[0].mxu0 %v733
  %v1282 = vpop.f32.mrb[0].mxu0
  %v1283 = vadd.f32 %v319, %v1282
  %v1284 = vpop.f32.mrb[0].mxu0
  %v1285 = vpop.f32.mrb[0].mxu0
  %v1286 = vadd.f32 %v320, %v1285
  %v1287 = vpop.f32.mrb[0].mxu0
  %1288 = vmatprep.mubr.bf16.mxu0 %v737
  %1289 = vmatmul.mubr.bf16.gmra.mrb[0].mxu0 %v736
  %v1290 = vpop.f32.mrb[0].mxu0
  %v1291 = vadd.f32 %v321, %v1290
  %v1292 = vpop.f32.mrb[0].mxu0
  %v1293 = vpop.f32.mrb[0].mxu0
  %v1294 = vadd.f32 %v322, %v1293
  %v1295 = vpop.f32.mrb[0].mxu0
  %1296 = vdwg.mxu0
  %1297 = vmatprep.subr.bf16.mxu0 0
  %1298 = vmatpush1.bf16.msra.mxu0 %v891
  %1299 = vmatprep.subr.bf16.mxu0 0
  %1300 = vmatpush1.bf16.msra.mxu0 %v892
  %1301 = vmatprep.subr.bf16.mxu0 0
  %1302 = vmatpush1.bf16.msra.mxu0 0
  %1303 = vmatprep.subr.bf16.mxu0 0
  %1304 = vmatpush1.bf16.msra.mxu0 0
  %1305 = vmatprep.subr.bf16.mxu0 0
  %1306 = vmatpush1.bf16.msra.mxu0 0
  %1307 = vmatprep.subr.bf16.mxu0 0
  %1308 = vmatpush1.bf16.msra.mxu0 0
  %1309 = vmatprep.subr.bf16.mxu0 0
  %1310 = vmatpush1.bf16.msra.mxu0 0
  %1311 = vmatprep.subr.bf16.mxu0 0
  %1312 = vmatpush1.bf16.msra.mxu0 0
  %1313 = vmatprep.subr.bf16.mxu0 0
  %1314 = vmatpush1.bf16.msra.mxu0 0
  %1315 = vmatprep.subr.bf16.mxu0 0
  %1316 = vmatpush1.bf16.msra.mxu0 0
  %1317 = vmatprep.subr.bf16.mxu0 0
  %1318 = vmatpush1.bf16.msra.mxu0 0
  %1319 = vmatprep.subr.bf16.mxu0 0
  %1320 = vmatpush1.bf16.msra.mxu0 0
  %1321 = vmatprep.subr.bf16.mxu0 0
  %1322 = vmatpush1.bf16.msra.mxu0 0
  %1323 = vmatprep.subr.bf16.mxu0 0
  %1324 = vmatpush1.bf16.msra.mxu0 0
  %1325 = vmatprep.subr.bf16.mxu0 0
  %1326 = vmatpush1.bf16.msra.mxu0 0
  %1327 = vmatprep.subr.bf16.mxu0 0
  %1328 = vmatpush1.bf16.msra.mxu0 0
  %1329 = vmatprep.mubr.bf16.mxu0 0
  %1330 = vmatmul.mubr.bf16.gmra.mrb[0].mxu0 %v913
  %v1331 = vpop.f32.mrb[0].mxu0
  %v1332 = vadd.f32 %v1043, %v1331
  %v1333 = vpop.f32.mrb[0].mxu0
  %v1334 = vpop.f32.mrb[0].mxu0
  %v1335 = vadd.f32 %v1046, %v1334
  %v1336 = vpop.f32.mrb[0].mxu0
  %1337 = vmatprep.mubr.bf16.mxu0 0
  %1338 = vmatmul.mubr.bf16.gmra.mrb[0].mxu0 %v916
  %v1339 = vpop.f32.mrb[0].mxu0
  %v1340 = vadd.f32 %v1051, %v1339
  %v1341 = vpop.f32.mrb[0].mxu0
  %v1342 = vpop.f32.mrb[0].mxu0
  %v1343 = vadd.f32 %v1054, %v1342
  %v1344 = vpop.f32.mrb[0].mxu0
  %1345 = vmatprep.mubr.bf16.mxu0 0
  %1346 = vmatmul.mubr.bf16.gmra.mrb[0].mxu0 %v919
  %v1347 = vpop.f32.mrb[0].mxu0
  %v1348 = vadd.f32 %v1059, %v1347
  %v1349 = vpop.f32.mrb[0].mxu0
  %v1350 = vpop.f32.mrb[0].mxu0
  %v1351 = vadd.f32 %v1062, %v1350
  %v1352 = vpop.f32.mrb[0].mxu0
  %1353 = vmatprep.mubr.bf16.mxu0 0
  %1354 = vmatmul.mubr.bf16.gmra.mrb[0].mxu0 %v922
  %v1355 = vpop.f32.mrb[0].mxu0
  %v1356 = vadd.f32 %v1067, %v1355
  %v1357 = vpop.f32.mrb[0].mxu0
  %v1358 = vpop.f32.mrb[0].mxu0
  %v1359 = vadd.f32 %v1070, %v1358
  %v1360 = vpop.f32.mrb[0].mxu0
  %1361 = vmatprep.mubr.bf16.mxu0 0
  %1362 = vmatmul.mubr.bf16.gmra.mrb[0].mxu0 %v925
  %v1363 = vpop.f32.mrb[0].mxu0
  %v1364 = vadd.f32 %v1075, %v1363
  %v1365 = vpop.f32.mrb[0].mxu0
  %v1366 = vpop.f32.mrb[0].mxu0
  %v1367 = vadd.f32 %v1078, %v1366
  %v1368 = vpop.f32.mrb[0].mxu0
  %1369 = vmatprep.mubr.bf16.mxu0 0
  %1370 = vmatmul.mubr.bf16.gmra.mrb[0].mxu0 %v928
  %v1371 = vpop.f32.mrb[0].mxu0
  %v1372 = vadd.f32 %v1083, %v1371
  %v1373 = vpop.f32.mrb[0].mxu0
  %v1374 = vpop.f32.mrb[0].mxu0
  %v1375 = vadd.f32 %v1086, %v1374
  %v1376 = vpop.f32.mrb[0].mxu0
  %1377 = vmatprep.mubr.bf16.mxu0 0
  %1378 = vmatmul.mubr.bf16.gmra.mrb[0].mxu0 %v931
  %v1379 = vpop.f32.mrb[0].mxu0
  %v1380 = vadd.f32 %v1091, %v1379
  %v1381 = vpop.f32.mrb[0].mxu0
  %v1382 = vpop.f32.mrb[0].mxu0
  %v1383 = vadd.f32 %v1094, %v1382
  %v1384 = vpop.f32.mrb[0].mxu0
  %1385 = vmatprep.mubr.bf16.mxu0 0
  %1386 = vmatmul.mubr.bf16.gmra.mrb[0].mxu0 %v934
  %v1387 = vpop.f32.mrb[0].mxu0
  %v1388 = vadd.f32 %v1099, %v1387
  %v1389 = vpop.f32.mrb[0].mxu0
  %v1390 = vpop.f32.mrb[0].mxu0
  %v1391 = vadd.f32 %v1102, %v1390
  %v1392 = vpop.f32.mrb[0].mxu0
  %1393 = vmatprep.mubr.bf16.mxu0 0
  %1394 = vmatmul.mubr.bf16.gmra.mrb[0].mxu0 %v937
  %v1395 = vpop.f32.mrb[0].mxu0
  %v1396 = vadd.f32 %v1107, %v1395
  %v1397 = vpop.f32.mrb[0].mxu0
  %v1398 = vpop.f32.mrb[0].mxu0
  %v1399 = vadd.f32 %v1110, %v1398
  %v1400 = vpop.f32.mrb[0].mxu0
  %1401 = vmatprep.mubr.bf16.mxu0 0
  %1402 = vmatmul.mubr.bf16.gmra.mrb[0].mxu0 %v940
  %v1403 = vpop.f32.mrb[0].mxu0
  %v1404 = vadd.f32 %v1115, %v1403
  %v1405 = vpop.f32.mrb[0].mxu0
  %v1406 = vpop.f32.mrb[0].mxu0
  %v1407 = vadd.f32 %v1118, %v1406
  %v1408 = vpop.f32.mrb[0].mxu0
  %1409 = vmatprep.mubr.bf16.mxu0 0
  %1410 = vmatmul.mubr.bf16.gmra.mrb[0].mxu0 %v943
  %v1411 = vpop.f32.mrb[0].mxu0
  %v1412 = vadd.f32 %v1123, %v1411
  %v1413 = vpop.f32.mrb[0].mxu0
  %v1414 = vpop.f32.mrb[0].mxu0
  %v1415 = vadd.f32 %v1126, %v1414
  %v1416 = vpop.f32.mrb[0].mxu0
  %1417 = vmatprep.mubr.bf16.mxu0 0
  %1418 = vmatmul.mubr.bf16.gmra.mrb[0].mxu0 %v946
  %v1419 = vpop.f32.mrb[0].mxu0
  %v1420 = vadd.f32 %v1131, %v1419
  %v1421 = vpop.f32.mrb[0].mxu0
  %v1422 = vpop.f32.mrb[0].mxu0
  %v1423 = vadd.f32 %v1134, %v1422
  %v1424 = vpop.f32.mrb[0].mxu0
  %1425 = vmatprep.mubr.bf16.mxu0 0
  %1426 = vmatmul.mubr.bf16.gmra.mrb[0].mxu0 %v949
  %v1427 = vpop.f32.mrb[0].mxu0
  %v1428 = vadd.f32 %v1139, %v1427
  %v1429 = vpop.f32.mrb[0].mxu0
  %v1430 = vpop.f32.mrb[0].mxu0
  %v1431 = vadd.f32 %v1142, %v1430
  %v1432 = vpop.f32.mrb[0].mxu0
  %1433 = vmatprep.mubr.bf16.mxu0 0
  %1434 = vmatmul.mubr.bf16.gmra.mrb[0].mxu0 %v952
  %v1435 = vpop.f32.mrb[0].mxu0
  %v1436 = vadd.f32 %v1147, %v1435
  %v1437 = vpop.f32.mrb[0].mxu0
  %v1438 = vpop.f32.mrb[0].mxu0
  %v1439 = vadd.f32 %v1150, %v1438
  %v1440 = vpop.f32.mrb[0].mxu0
  %1441 = vmatprep.mubr.bf16.mxu0 0
  %1442 = vmatmul.mubr.bf16.gmra.mrb[0].mxu0 %v955
  %v1443 = vpop.f32.mrb[0].mxu0
  %v1444 = vadd.f32 %v1155, %v1443
  %v1445 = vpop.f32.mrb[0].mxu0
  %v1446 = vpop.f32.mrb[0].mxu0
  %v1447 = vadd.f32 %v1158, %v1446
  %v1448 = vpop.f32.mrb[0].mxu0
  %1449 = vmatprep.mubr.bf16.mxu0 0
  %1450 = vmatmul.mubr.bf16.gmra.mrb[0].mxu0 %v958
  %v1451 = vpop.f32.mrb[0].mxu0
  %v1452 = vadd.f32 %v1163, %v1451
  %v1453 = vpop.f32.mrb[0].mxu0
  %v1454 = vpop.f32.mrb[0].mxu0
  %v1455 = vadd.f32 %v1166, %v1454
  %v1456 = vpop.f32.mrb[0].mxu0
  %1457 = vmatprep.mubr.bf16.mxu0 0
  %1458 = vmatmul.mubr.bf16.gmra.mrb[0].mxu0 %v961
  %v1459 = vpop.f32.mrb[0].mxu0
  %v1460 = vadd.f32 %v1171, %v1459
  %v1461 = vpop.f32.mrb[0].mxu0
  %v1462 = vpop.f32.mrb[0].mxu0
  %v1463 = vadd.f32 %v1174, %v1462
  %v1464 = vpop.f32.mrb[0].mxu0
  %1465 = vmatprep.mubr.bf16.mxu0 0
  %1466 = vmatmul.mubr.bf16.gmra.mrb[0].mxu0 %v964
  %v1467 = vpop.f32.mrb[0].mxu0
  %v1468 = vadd.f32 %v1179, %v1467
  %v1469 = vpop.f32.mrb[0].mxu0
  %v1470 = vpop.f32.mrb[0].mxu0
  %v1471 = vadd.f32 %v1182, %v1470
  %v1472 = vpop.f32.mrb[0].mxu0
  %1473 = vmatprep.mubr.bf16.mxu0 0
  %1474 = vmatmul.mubr.bf16.gmra.mrb[0].mxu0 %v967
  %v1475 = vpop.f32.mrb[0].mxu0
  %v1476 = vadd.f32 %v1187, %v1475
  %v1477 = vpop.f32.mrb[0].mxu0
  %v1478 = vpop.f32.mrb[0].mxu0
  %v1479 = vadd.f32 %v1190, %v1478
  %v1480 = vpop.f32.mrb[0].mxu0
  %1481 = vmatprep.mubr.bf16.mxu0 0
  %1482 = vmatmul.mubr.bf16.gmra.mrb[0].mxu0 %v970
  %v1483 = vpop.f32.mrb[0].mxu0
  %v1484 = vadd.f32 %v1195, %v1483
  %v1485 = vpop.f32.mrb[0].mxu0
  %v1486 = vpop.f32.mrb[0].mxu0
  %v1487 = vadd.f32 %v1198, %v1486
  %v1488 = vpop.f32.mrb[0].mxu0
  %1489 = vmatprep.mubr.bf16.mxu0 0
  %1490 = vmatmul.mubr.bf16.gmra.mrb[0].mxu0 %v973
  %v1491 = vpop.f32.mrb[0].mxu0
  %v1492 = vadd.f32 %v1203, %v1491
  %v1493 = vpop.f32.mrb[0].mxu0
  %v1494 = vpop.f32.mrb[0].mxu0
  %v1495 = vadd.f32 %v1206, %v1494
  %v1496 = vpop.f32.mrb[0].mxu0
  %1497 = vmatprep.mubr.bf16.mxu0 0
  %1498 = vmatmul.mubr.bf16.gmra.mrb[0].mxu0 %v976
  %v1499 = vpop.f32.mrb[0].mxu0
  %v1500 = vadd.f32 %v1211, %v1499
  %v1501 = vpop.f32.mrb[0].mxu0
  %v1502 = vpop.f32.mrb[0].mxu0
  %v1503 = vadd.f32 %v1214, %v1502
  %v1504 = vpop.f32.mrb[0].mxu0
  %1505 = vmatprep.mubr.bf16.mxu0 0
  %1506 = vmatmul.mubr.bf16.gmra.mrb[0].mxu0 %v979
  %v1507 = vpop.f32.mrb[0].mxu0
  %v1508 = vadd.f32 %v1219, %v1507
  %v1509 = vpop.f32.mrb[0].mxu0
  %v1510 = vpop.f32.mrb[0].mxu0
  %v1511 = vadd.f32 %v1222, %v1510
  %v1512 = vpop.f32.mrb[0].mxu0
  %1513 = vmatprep.mubr.bf16.mxu0 0
  %1514 = vmatmul.mubr.bf16.gmra.mrb[0].mxu0 %v982
  %v1515 = vpop.f32.mrb[0].mxu0
  %v1516 = vadd.f32 %v1227, %v1515
  %v1517 = vpop.f32.mrb[0].mxu0
  %v1518 = vpop.f32.mrb[0].mxu0
  %v1519 = vadd.f32 %v1230, %v1518
  %v1520 = vpop.f32.mrb[0].mxu0
  %1521 = vmatprep.mubr.bf16.mxu0 0
  %1522 = vmatmul.mubr.bf16.gmra.mrb[0].mxu0 %v985
  %v1523 = vpop.f32.mrb[0].mxu0
  %v1524 = vadd.f32 %v1235, %v1523
  %v1525 = vpop.f32.mrb[0].mxu0
  %v1526 = vpop.f32.mrb[0].mxu0
  %v1527 = vadd.f32 %v1238, %v1526
  %v1528 = vpop.f32.mrb[0].mxu0
  %1529 = vmatprep.mubr.bf16.mxu0 0
  %1530 = vmatmul.mubr.bf16.gmra.mrb[0].mxu0 %v988
  %v1531 = vpop.f32.mrb[0].mxu0
  %v1532 = vadd.f32 %v1243, %v1531
  %v1533 = vpop.f32.mrb[0].mxu0
  %v1534 = vpop.f32.mrb[0].mxu0
  %v1535 = vadd.f32 %v1246, %v1534
  %v1536 = vpop.f32.mrb[0].mxu0
  %1537 = vmatprep.mubr.bf16.mxu0 0
  %1538 = vmatmul.mubr.bf16.gmra.mrb[0].mxu0 %v991
  %v1539 = vpop.f32.mrb[0].mxu0
  %v1540 = vadd.f32 %v1251, %v1539
  %v1541 = vpop.f32.mrb[0].mxu0
  %v1542 = vpop.f32.mrb[0].mxu0
  %v1543 = vadd.f32 %v1254, %v1542
  %v1544 = vpop.f32.mrb[0].mxu0
  %1545 = vmatprep.mubr.bf16.mxu0 0
  %1546 = vmatmul.mubr.bf16.gmra.mrb[0].mxu0 %v994
  %v1547 = vpop.f32.mrb[0].mxu0
  %v1548 = vadd.f32 %v1259, %v1547
  %v1549 = vpop.f32.mrb[0].mxu0
  %v1550 = vpop.f32.mrb[0].mxu0
  %v1551 = vadd.f32 %v1262, %v1550
  %v1552 = vpop.f32.mrb[0].mxu0
  %1553 = vmatprep.mubr.bf16.mxu0 0
  %1554 = vmatmul.mubr.bf16.gmra.mrb[0].mxu0 %v997
  %v1555 = vpop.f32.mrb[0].mxu0
  %v1556 = vadd.f32 %v1267, %v1555
  %v1557 = vpop.f32.mrb[0].mxu0
  %v1558 = vpop.f32.mrb[0].mxu0
  %v1559 = vadd.f32 %v1270, %v1558
  %v1560 = vpop.f32.mrb[0].mxu0
  %1561 = vmatprep.mubr.bf16.mxu0 0
  %1562 = vmatmul.mubr.bf16.gmra.mrb[0].mxu0 %v1000
  %v1563 = vpop.f32.mrb[0].mxu0
  %v1564 = vadd.f32 %v1275, %v1563
  %v1565 = vpop.f32.mrb[0].mxu0
  %v1566 = vpop.f32.mrb[0].mxu0
  %v1567 = vadd.f32 %v1278, %v1566
  %v1568 = vpop.f32.mrb[0].mxu0
  %1569 = vmatprep.mubr.bf16.mxu0 0
  %1570 = vmatmul.mubr.bf16.gmra.mrb[0].mxu0 %v1003
  %v1571 = vpop.f32.mrb[0].mxu0
  %v1572 = vadd.f32 %v1283, %v1571
  %v1573 = vpop.f32.mrb[0].mxu0
  %v1574 = vpop.f32.mrb[0].mxu0
  %v1575 = vadd.f32 %v1286, %v1574
  %v1576 = vpop.f32.mrb[0].mxu0
  %1577 = vmatprep.mubr.bf16.mxu0 0
  %1578 = vmatmul.mubr.bf16.gmra.mrb[0].mxu0 %v1006
  %v1579 = vpop.f32.mrb[0].mxu0
  %v1580 = vadd.f32 %v1291, %v1579
  %v1581 = vpop.f32.mrb[0].mxu0
  %v1582 = vpop.f32.mrb[0].mxu0
  %v1583 = vadd.f32 %v1294, %v1582
  %v1584 = vpop.f32.mrb[0].mxu0
  %1585 = vdwg.mxu0
  %v1586 = vld [vmem:[%s4] sm:$0x1]
  %v1588 = vlaneseq
  %v1589 = vshrl.u32 %v1588, 7
  %v1590 = vsub.s32 0, %v1589
  %v1591 = vrot.slane %v1586, %v1590
  %v1593 = vadd.f32 %v1332, %v1591
  %v1594 = vadd.f32 %v1335, %v1591
  %v1595 = vadd.f32 %v1340, %v1591
  %v1596 = vadd.f32 %v1343, %v1591
  %v1597 = vadd.f32 %v1348, %v1591
  %v1598 = vadd.f32 %v1351, %v1591
  %v1599 = vadd.f32 %v1356, %v1591
  %v1600 = vadd.f32 %v1359, %v1591
  %v1601 = vadd.f32 %v1364, %v1591
  %v1602 = vadd.f32 %v1367, %v1591
  %v1603 = vadd.f32 %v1372, %v1591
  %v1604 = vadd.f32 %v1375, %v1591
  %v1605 = vadd.f32 %v1380, %v1591
  %v1606 = vadd.f32 %v1383, %v1591
  %v1607 = vadd.f32 %v1388, %v1591
  %v1608 = vadd.f32 %v1391, %v1591
  %v1609 = vadd.f32 %v1396, %v1591
  %v1610 = vadd.f32 %v1399, %v1591
  %v1611 = vadd.f32 %v1404, %v1591
  %v1612 = vadd.f32 %v1407, %v1591
  %v1613 = vadd.f32 %v1412, %v1591
  %v1614 = vadd.f32 %v1415, %v1591
  %v1615 = vadd.f32 %v1420, %v1591
  %v1616 = vadd.f32 %v1423, %v1591
  %v1617 = vadd.f32 %v1428, %v1591
  %v1618 = vadd.f32 %v1431, %v1591
  %v1619 = vadd.f32 %v1436, %v1591
  %v1620 = vadd.f32 %v1439, %v1591
  %v1621 = vadd.f32 %v1444, %v1591
  %v1622 = vadd.f32 %v1447, %v1591
  %v1623 = vadd.f32 %v1452, %v1591
  %v1624 = vadd.f32 %v1455, %v1591
  %v1625 = vadd.f32 %v1460, %v1591
  %v1626 = vadd.f32 %v1463, %v1591
  %v1627 = vadd.f32 %v1468, %v1591
  %v1628 = vadd.f32 %v1471, %v1591
  %v1629 = vadd.f32 %v1476, %v1591
  %v1630 = vadd.f32 %v1479, %v1591
  %v1631 = vadd.f32 %v1484, %v1591
  %v1632 = vadd.f32 %v1487, %v1591
  %v1633 = vadd.f32 %v1492, %v1591
  %v1634 = vadd.f32 %v1495, %v1591
  %v1635 = vadd.f32 %v1500, %v1591
  %v1636 = vadd.f32 %v1503, %v1591
  %v1637 = vadd.f32 %v1508, %v1591
  %v1638 = vadd.f32 %v1511, %v1591
  %v1639 = vadd.f32 %v1516, %v1591
  %v1640 = vadd.f32 %v1519, %v1591
  %v1641 = vadd.f32 %v1524, %v1591
  %v1642 = vadd.f32 %v1527, %v1591
  %v1643 = vadd.f32 %v1532, %v1591
  %v1644 = vadd.f32 %v1535, %v1591
  %v1645 = vadd.f32 %v1540, %v1591
  %v1646 = vadd.f32 %v1543, %v1591
  %v1647 = vadd.f32 %v1548, %v1591
  %v1648 = vadd.f32 %v1551, %v1591
  %v1649 = vadd.f32 %v1556, %v1591
  %v1650 = vadd.f32 %v1559, %v1591
  %v1651 = vadd.f32 %v1564, %v1591
  %v1652 = vadd.f32 %v1567, %v1591
  %v1653 = vadd.f32 %v1572, %v1591
  %v1654 = vadd.f32 %v1575, %v1591
  %v1655 = vadd.f32 %v1580, %v1591
  %v1656 = vadd.f32 %v1583, %v1591
  %1657 = vst [vmem:[%s5] sm:$0xff] %v1593
  %1658 = vst [vmem:[%s5 + $0x8] sm:$0xff] %v1594
  %1659 = vst [vmem:[%s5 + $0x10] sm:$0xff] %v1595
  %1660 = vst [vmem:[%s5 + $0x18] sm:$0xff] %v1596
  %1661 = vst [vmem:[%s5 + $0x20] sm:$0xff] %v1597
  %1662 = vst [vmem:[%s5 + $0x28] sm:$0xff] %v1598
  %1663 = vst [vmem:[%s5 + $0x30] sm:$0xff] %v1599
  %1664 = vst [vmem:[%s5 + $0x38] sm:$0xff] %v1600
  %1665 = vst [vmem:[%s5 + $0x40] sm:$0xff] %v1601
  %1666 = vst [vmem:[%s5 + $0x48] sm:$0xff] %v1602
  %1667 = vst [vmem:[%s5 + $0x50] sm:$0xff] %v1603
  %1668 = vst [vmem:[%s5 + $0x58] sm:$0xff] %v1604
  %1669 = vst [vmem:[%s5 + $0x60] sm:$0xff] %v1605
  %1670 = vst [vmem:[%s5 + $0x68] sm:$0xff] %v1606
  %1671 = vst [vmem:[%s5 + $0x70] sm:$0xff] %v1607
  %1672 = vst [vmem:[%s5 + $0x78] sm:$0xff] %v1608
  %1673 = vst [vmem:[%s5 + $0x80] sm:$0xff] %v1609
  %1674 = vst [vmem:[%s5 + $0x88] sm:$0xff] %v1610
  %1675 = vst [vmem:[%s5 + $0x90] sm:$0xff] %v1611
  %1676 = vst [vmem:[%s5 + $0x98] sm:$0xff] %v1612
  %1677 = vst [vmem:[%s5 + $0xa0] sm:$0xff] %v1613
  %1678 = vst [vmem:[%s5 + $0xa8] sm:$0xff] %v1614
  %1679 = vst [vmem:[%s5 + $0xb0] sm:$0xff] %v1615
  %1680 = vst [vmem:[%s5 + $0xb8] sm:$0xff] %v1616
  %1681 = vst [vmem:[%s5 + $0xc0] sm:$0xff] %v1617
  %1682 = vst [vmem:[%s5 + $0xc8] sm:$0xff] %v1618
  %1683 = vst [vmem:[%s5 + $0xd0] sm:$0xff] %v1619
  %1684 = vst [vmem:[%s5 + $0xd8] sm:$0xff] %v1620
  %1685 = vst [vmem:[%s5 + $0xe0] sm:$0xff] %v1621
  %1686 = vst [vmem:[%s5 + $0xe8] sm:$0xff] %v1622
  %1687 = vst [vmem:[%s5 + $0xf0] sm:$0xff] %v1623
  %1688 = vst [vmem:[%s5 + $0xf8] sm:$0xff] %v1624
  %1689 = vst [vmem:[%s5 + $0x100] sm:$0xff] %v1625
  %1690 = vst [vmem:[%s5 + $0x108] sm:$0xff] %v1626
  %1691 = vst [vmem:[%s5 + $0x110] sm:$0xff] %v1627
  %1692 = vst [vmem:[%s5 + $0x118] sm:$0xff] %v1628
  %1693 = vst [vmem:[%s5 + $0x120] sm:$0xff] %v1629
  %1694 = vst [vmem:[%s5 + $0x128] sm:$0xff] %v1630
  %1695 = vst [vmem:[%s5 + $0x130] sm:$0xff] %v1631
  %1696 = vst [vmem:[%s5 + $0x138] sm:$0xff] %v1632
  %1697 = vst [vmem:[%s5 + $0x140] sm:$0xff] %v1633
  %1698 = vst [vmem:[%s5 + $0x148] sm:$0xff] %v1634
  %1699 = vst [vmem:[%s5 + $0x150] sm:$0xff] %v1635
  %1700 = vst [vmem:[%s5 + $0x158] sm:$0xff] %v1636
  %1701 = vst [vmem:[%s5 + $0x160] sm:$0xff] %v1637
  %1702 = vst [vmem:[%s5 + $0x168] sm:$0xff] %v1638
  %1703 = vst [vmem:[%s5 + $0x170] sm:$0xff] %v1639
  %1704 = vst [vmem:[%s5 + $0x178] sm:$0xff] %v1640
  %1705 = vst [vmem:[%s5 + $0x180] sm:$0xff] %v1641
  %1706 = vst [vmem:[%s5 + $0x188] sm:$0xff] %v1642
  %1707 = vst [vmem:[%s5 + $0x190] sm:$0xff] %v1643
  %1708 = vst [vmem:[%s5 + $0x198] sm:$0xff] %v1644
  %1709 = vst [vmem:[%s5 + $0x1a0] sm:$0xff] %v1645
  %1710 = vst [vmem:[%s5 + $0x1a8] sm:$0xff] %v1646
  %1711 = vst [vmem:[%s5 + $0x1b0] sm:$0xff] %v1647
  %1712 = vst [vmem:[%s5 + $0x1b8] sm:$0xff] %v1648
  %1713 = vst [vmem:[%s5 + $0x1c0] sm:$0xff] %v1649
  %1714 = vst [vmem:[%s5 + $0x1c8] sm:$0xff] %v1650
  %1715 = vst [vmem:[%s5 + $0x1d0] sm:$0xff] %v1651
  %1716 = vst [vmem:[%s5 + $0x1d8] sm:$0xff] %v1652
  %1717 = vst [vmem:[%s5 + $0x1e0] sm:$0xff] %v1653
  %1718 = vst [vmem:[%s5 + $0x1e8] sm:$0xff] %v1654
  %1719 = vst [vmem:[%s5 + $0x1f0] sm:$0xff] %v1655
  %1720 = vst [vmem:[%s5 + $0x1f8] sm:$0xff] %v1656
  %v1721 = vadd.f32 %v1593, %v1594
  %v1722 = vadd.f32 %v1721, %v1595
  %v1723 = vadd.f32 %v1722, %v1596
  %v1724 = vadd.f32 %v1723, %v1597
  %v1725 = vadd.f32 %v1724, %v1598
  %v1726 = vadd.f32 %v1725, %v1599
  %v1727 = vadd.f32 %v1726, %v1600
  %v1728 = vadd.f32 %v1727, %v1601
  %v1729 = vadd.f32 %v1728, %v1602
  %v1730 = vadd.f32 %v1729, %v1603
  %v1731 = vadd.f32 %v1730, %v1604
  %v1732 = vadd.f32 %v1731, %v1605
  %v1733 = vadd.f32 %v1732, %v1606
  %v1734 = vadd.f32 %v1733, %v1607
  %v1735 = vadd.f32 %v1734, %v1608
  %v1736 = vadd.f32 %v1735, %v1609
  %v1737 = vadd.f32 %v1736, %v1610
  %v1738 = vadd.f32 %v1737, %v1611
  %v1739 = vadd.f32 %v1738, %v1612
  %v1740 = vadd.f32 %v1739, %v1613
  %v1741 = vadd.f32 %v1740, %v1614
  %v1742 = vadd.f32 %v1741, %v1615
  %v1743 = vadd.f32 %v1742, %v1616
  %v1744 = vadd.f32 %v1743, %v1617
  %v1745 = vadd.f32 %v1744, %v1618
  %v1746 = vadd.f32 %v1745, %v1619
  %v1747 = vadd.f32 %v1746, %v1620
  %v1748 = vadd.f32 %v1747, %v1621
  %v1749 = vadd.f32 %v1748, %v1622
  %v1750 = vadd.f32 %v1749, %v1623
  %v1751 = vadd.f32 %v1750, %v1624
  %v1752 = vadd.f32 %v1751, %v1625
  %v1753 = vadd.f32 %v1752, %v1626
  %v1754 = vadd.f32 %v1753, %v1627
  %v1755 = vadd.f32 %v1754, %v1628
  %v1756 = vadd.f32 %v1755, %v1629
  %v1757 = vadd.f32 %v1756, %v1630
  %v1758 = vadd.f32 %v1757, %v1631
  %v1759 = vadd.f32 %v1758, %v1632
  %v1760 = vadd.f32 %v1759, %v1633
  %v1761 = vadd.f32 %v1760, %v1634
  %v1762 = vadd.f32 %v1761, %v1635
  %v1763 = vadd.f32 %v1762, %v1636
  %v1764 = vadd.f32 %v1763, %v1637
  %v1765 = vadd.f32 %v1764, %v1638
  %v1766 = vadd.f32 %v1765, %v1639
  %v1767 = vadd.f32 %v1766, %v1640
  %v1768 = vadd.f32 %v1767, %v1641
  %v1769 = vadd.f32 %v1768, %v1642
  %v1770 = vadd.f32 %v1769, %v1643
  %v1771 = vadd.f32 %v1770, %v1644
  %v1772 = vadd.f32 %v1771, %v1645
  %v1773 = vadd.f32 %v1772, %v1646
  %v1774 = vadd.f32 %v1773, %v1647
  %v1775 = vadd.f32 %v1774, %v1648
  %v1776 = vadd.f32 %v1775, %v1649
  %v1777 = vadd.f32 %v1776, %v1650
  %v1778 = vadd.f32 %v1777, %v1651
  %v1779 = vadd.f32 %v1778, %v1652
  %v1780 = vadd.f32 %v1779, %v1653
  %v1781 = vadd.f32 %v1780, %v1654
  %v1782 = vadd.f32 %v1781, %v1655
  %v1783 = vadd.f32 %v1782, %v1656
  %v1784 = vrot.slane %v1783, 4
  %v1785 = vadd.f32 %v1783, %v1784
  %v1786 = vrot.slane %v1785, 2
  %v1787 = vadd.f32 %v1785, %v1786
  %v1788 = vrot.slane %v1787, 1
  %v1789 = vadd.f32 %v1787, %v1788
  %1790 = vst [vmem:[%s6] sm:$0x1] %v1789
  %v1791 = vmul.f32 %v1593, %v1593
  %v1792 = vmul.f32 %v1594, %v1594
  %v1793 = vmul.f32 %v1595, %v1595
  %v1794 = vmul.f32 %v1596, %v1596
  %v1795 = vmul.f32 %v1597, %v1597
  %v1796 = vmul.f32 %v1598, %v1598
  %v1797 = vmul.f32 %v1599, %v1599
  %v1798 = vmul.f32 %v1600, %v1600
  %v1799 = vmul.f32 %v1601, %v1601
  %v1800 = vmul.f32 %v1602, %v1602
  %v1801 = vmul.f32 %v1603, %v1603
  %v1802 = vmul.f32 %v1604, %v1604
  %v1803 = vmul.f32 %v1605, %v1605
  %v1804 = vmul.f32 %v1606, %v1606
  %v1805 = vmul.f32 %v1607, %v1607
  %v1806 = vmul.f32 %v1608, %v1608
  %v1807 = vmul.f32 %v1609, %v1609
  %v1808 = vmul.f32 %v1610, %v1610
  %v1809 = vmul.f32 %v1611, %v1611
  %v1810 = vmul.f32 %v1612, %v1612
  %v1811 = vmul.f32 %v1613, %v1613
  %v1812 = vmul.f32 %v1614, %v1614
  %v1813 = vmul.f32 %v1615, %v1615
  %v1814 = vmul.f32 %v1616, %v1616
  %v1815 = vmul.f32 %v1617, %v1617
  %v1816 = vmul.f32 %v1618, %v1618
  %v1817 = vmul.f32 %v1619, %v1619
  %v1818 = vmul.f32 %v1620, %v1620
  %v1819 = vmul.f32 %v1621, %v1621
  %v1820 = vmul.f32 %v1622, %v1622
  %v1821 = vmul.f32 %v1623, %v1623
  %v1822 = vmul.f32 %v1624, %v1624
  %v1823 = vmul.f32 %v1625, %v1625
  %v1824 = vmul.f32 %v1626, %v1626
  %v1825 = vmul.f32 %v1627, %v1627
  %v1826 = vmul.f32 %v1628, %v1628
  %v1827 = vmul.f32 %v1629, %v1629
  %v1828 = vmul.f32 %v1630, %v1630
  %v1829 = vmul.f32 %v1631, %v1631
  %v1830 = vmul.f32 %v1632, %v1632
  %v1831 = vmul.f32 %v1633, %v1633
  %v1832 = vmul.f32 %v1634, %v1634
  %v1833 = vmul.f32 %v1635, %v1635
  %v1834 = vmul.f32 %v1636, %v1636
  %v1835 = vmul.f32 %v1637, %v1637
  %v1836 = vmul.f32 %v1638, %v1638
  %v1837 = vmul.f32 %v1639, %v1639
  %v1838 = vmul.f32 %v1640, %v1640
  %v1839 = vmul.f32 %v1641, %v1641
  %v1840 = vmul.f32 %v1642, %v1642
  %v1841 = vmul.f32 %v1643, %v1643
  %v1842 = vmul.f32 %v1644, %v1644
  %v1843 = vmul.f32 %v1645, %v1645
  %v1844 = vmul.f32 %v1646, %v1646
  %v1845 = vmul.f32 %v1647, %v1647
  %v1846 = vmul.f32 %v1648, %v1648
  %v1847 = vmul.f32 %v1649, %v1649
  %v1848 = vmul.f32 %v1650, %v1650
  %v1849 = vmul.f32 %v1651, %v1651
  %v1850 = vmul.f32 %v1652, %v1652
  %v1851 = vmul.f32 %v1653, %v1653
  %v1852 = vmul.f32 %v1654, %v1654
  %v1853 = vmul.f32 %v1655, %v1655
  %v1854 = vmul.f32 %v1656, %v1656
  %v1855 = vadd.f32 %v1791, %v1792
  %v1856 = vadd.f32 %v1855, %v1793
  %v1857 = vadd.f32 %v1856, %v1794
  %v1858 = vadd.f32 %v1857, %v1795
  %v1859 = vadd.f32 %v1858, %v1796
  %v1860 = vadd.f32 %v1859, %v1797
  %v1861 = vadd.f32 %v1860, %v1798
  %v1862 = vadd.f32 %v1861, %v1799
  %v1863 = vadd.f32 %v1862, %v1800
  %v1864 = vadd.f32 %v1863, %v1801
  %v1865 = vadd.f32 %v1864, %v1802
  %v1866 = vadd.f32 %v1865, %v1803
  %v1867 = vadd.f32 %v1866, %v1804
  %v1868 = vadd.f32 %v1867, %v1805
  %v1869 = vadd.f32 %v1868, %v1806
  %v1870 = vadd.f32 %v1869, %v1807
  %v1871 = vadd.f32 %v1870, %v1808
  %v1872 = vadd.f32 %v1871, %v1809
  %v1873 = vadd.f32 %v1872, %v1810
  %v1874 = vadd.f32 %v1873, %v1811
  %v1875 = vadd.f32 %v1874, %v1812
  %v1876 = vadd.f32 %v1875, %v1813
  %v1877 = vadd.f32 %v1876, %v1814
  %v1878 = vadd.f32 %v1877, %v1815
  %v1879 = vadd.f32 %v1878, %v1816
  %v1880 = vadd.f32 %v1879, %v1817
  %v1881 = vadd.f32 %v1880, %v1818
  %v1882 = vadd.f32 %v1881, %v1819
  %v1883 = vadd.f32 %v1882, %v1820
  %v1884 = vadd.f32 %v1883, %v1821
  %v1885 = vadd.f32 %v1884, %v1822
  %v1886 = vadd.f32 %v1885, %v1823
  %v1887 = vadd.f32 %v1886, %v1824
  %v1888 = vadd.f32 %v1887, %v1825
  %v1889 = vadd.f32 %v1888, %v1826
  %v1890 = vadd.f32 %v1889, %v1827
  %v1891 = vadd.f32 %v1890, %v1828
  %v1892 = vadd.f32 %v1891, %v1829
  %v1893 = vadd.f32 %v1892, %v1830
  %v1894 = vadd.f32 %v1893, %v1831
  %v1895 = vadd.f32 %v1894, %v1832
  %v1896 = vadd.f32 %v1895, %v1833
  %v1897 = vadd.f32 %v1896, %v1834
  %v1898 = vadd.f32 %v1897, %v1835
  %v1899 = vadd.f32 %v1898, %v1836
  %v1900 = vadd.f32 %v1899, %v1837
  %v1901 = vadd.f32 %v1900, %v1838
  %v1902 = vadd.f32 %v1901, %v1839
  %v1903 = vadd.f32 %v1902, %v1840
  %v1904 = vadd.f32 %v1903, %v1841
  %v1905 = vadd.f32 %v1904, %v1842
  %v1906 = vadd.f32 %v1905, %v1843
  %v1907 = vadd.f32 %v1906, %v1844
  %v1908 = vadd.f32 %v1907, %v1845
  %v1909 = vadd.f32 %v1908, %v1846
  %v1910 = vadd.f32 %v1909, %v1847
  %v1911 = vadd.f32 %v1910, %v1848
  %v1912 = vadd.f32 %v1911, %v1849
  %v1913 = vadd.f32 %v1912, %v1850
  %v1914 = vadd.f32 %v1913, %v1851
  %v1915 = vadd.f32 %v1914, %v1852
  %v1916 = vadd.f32 %v1915, %v1853
  %v1917 = vadd.f32 %v1916, %v1854
  %v1918 = vrot.slane %v1917, 4
  %v1919 = vadd.f32 %v1917, %v1918
  %v1920 = vrot.slane %v1919, 2
  %v1921 = vadd.f32 %v1919, %v1920
  %v1922 = vrot.slane %v1921, 1
  %v1923 = vadd.f32 %v1921, %v1922
  %1924 = vst [vmem:[%s7] sm:$0x1] %v1923
  // Predicated region
  $region22: #{_lambda_.25} parent=0 // pred_check
    _
  $region23: #{_lambda_.25} parent=0 // pred_check_branch
    %1926 = sbr.rel (0) target = $region25
  $region24: #{_lambda_.25} parent=0 // pred_region
    _
  $region25: #{_lambda_.25} parent=0 // pred_fallthru
    _
  // Predicated region
  $region26: #{_lambda_.25} parent=0 // pred_check
    _
  $region27: #{_lambda_.25} parent=0 // pred_check_branch
    %1928 = sbr.rel (0) target = $region29
  $region28: #{_lambda_.25} parent=0 // pred_region
    _
  $region29: #{_lambda_.25} parent=0 // pred_fallthru
    _
  // Predicated region
  $region30: #{_lambda_.25} parent=0 // pred_check
    _
  $region31: #{_lambda_.25} parent=0 // pred_check_branch
    %1930 = sbr.rel (0) target = $region33
  $region32: #{_lambda_.25} parent=0 // pred_region
    _
  $region33: #{_lambda_.25} parent=0 // pred_fallthru
    _
  // Predicated region
  $region34: #{_lambda_.25} parent=0 // pred_check
    _
  $region35: #{_lambda_.25} parent=0 // pred_check_branch
    %1932 = sbr.rel (0) target = $region37
  $region36: #{_lambda_.25} parent=0 // pred_region
    _
  $region37: #{_lambda_.25} parent=0 // pred_fallthru
    _
  // Predicated region
  $region38: #{_lambda_.25} parent=0 // pred_check
    _
  $region39: #{_lambda_.25} parent=0 // pred_check_branch
    %1934 = sbr.rel (0) target = $region41
  $region40: #{_lambda_.25} parent=0 // pred_region
    _
  $region41: #{_lambda_.25} parent=0 // pred_fallthru
    _
  // Predicated region
  $region42: #{_lambda_.25} parent=0 // pred_check
    _
  $region43: #{_lambda_.25} parent=0 // pred_check_branch
    %1936 = sbr.rel (0) target = $region45
  $region44: #{_lambda_.25} parent=0 // pred_region
    _
  $region45: #{_lambda_.25} parent=0 // pred_fallthru
    _

// kernel: _lambda_.29
$region0: #{_lambda_.29}
  #allocation0 [shape = 'u32[]', space=smem, size = 0x4, offset = 0x4, fixed_abs, tag = 'smem constant byte address 0x4 - core index']
  #allocation1 [shape = 'u32[144,128]{1,0:T(1,128)}', space=vmem, size = 0x12000, scoped, tag = 'internal scratch']
  %s0 = inlined_call_operand.vmem [shape: bf16[128,32], index: 0, kind: input, shape index: {}]
  %s1 = inlined_call_operand.vmem [shape: bf16[32,128], index: 1, kind: input, shape index: {}]
  %s2 = inlined_call_operand.vmem [shape: f32[128,128], index: 2, kind: output, shape index: {0}]
  %s3 = inlined_call_operand.vmem [shape: f32[1,1,128], index: 3, kind: output, shape index: {1}]
  %s4 = inlined_call_operand.vmem [shape: f32[1,1,128], index: 4, kind: output, shape index: {2}]
  %5 = xla_tuple %s2, %s3, %s4
  %s6 = sld [smem:[#allocation0]]
  $region34: #{_lambda_.29} parent=0
    _
  %s8 = ssub.s32 1, %s6
  %s9 = scalar_select 0, %s8, %s6
  // Predicated region
  $region2: #{_lambda_.29} parent=0 // pred_check
    _
  $region3: #{_lambda_.29} parent=0 // pred_check_branch
    %11 = sbr.rel (0) target = $region5
  $region4: #{_lambda_.29} parent=0 // pred_region
    _
  $region5: #{_lambda_.29} parent=0 // pred_fallthru
    _
  // Predicated region
  $region6: #{_lambda_.29} parent=0 // pred_check
    _
  $region7: #{_lambda_.29} parent=0 // pred_check_branch
    %13 = sbr.rel (0) target = $region9
  $region8: #{_lambda_.29} parent=0 // pred_region
    _
  $region9: #{_lambda_.29} parent=0 // pred_fallthru
    _
  %v15 = vld [vmem:[%s0] sm:$0xf]
  %v16 = vld [vmem:[%s0 + $0x4] sm:$0xf]
  %v17 = vld [vmem:[%s0 + $0x8] sm:$0xf]
  %v18 = vld [vmem:[%s0 + $0xc] sm:$0xf]
  %v19 = vld [vmem:[%s0 + $0x10] sm:$0xf]
  %v20 = vld [vmem:[%s0 + $0x14] sm:$0xf]
  %v21 = vld [vmem:[%s0 + $0x18] sm:$0xf]
  %v22 = vld [vmem:[%s0 + $0x1c] sm:$0xf]
  %v23 = vld [vmem:[%s0 + $0x20] sm:$0xf]
  %v24 = vld [vmem:[%s0 + $0x24] sm:$0xf]
  %v25 = vld [vmem:[%s0 + $0x28] sm:$0xf]
  %v26 = vld [vmem:[%s0 + $0x2c] sm:$0xf]
  %v27 = vld [vmem:[%s0 + $0x30] sm:$0xf]
  %v28 = vld [vmem:[%s0 + $0x34] sm:$0xf]
  %v29 = vld [vmem:[%s0 + $0x38] sm:$0xf]
  %v30 = vld [vmem:[%s0 + $0x3c] sm:$0xf]
  %v31 = vld [vmem:[%s1] sm:$0xf]
  %v32 = vld [vmem:[%s1 + $0x4] sm:$0xf]
  %v33 = vld [vmem:[%s1 + $0x8] sm:$0xf]
  %v34 = vld [vmem:[%s1 + $0xc] sm:$0xf]
  %v51 = vunpack.c.l.b16 %v15
  %v52 = vunpack.c.l.b16 %v16
  %v53 = vunpack.c.l.b16 %v17
  %v54 = vunpack.c.l.b16 %v18
  %v55 = vunpack.c.l.b16 %v19
  %v56 = vunpack.c.l.b16 %v20
  %v57 = vunpack.c.l.b16 %v21
  %v58 = vunpack.c.l.b16 %v22
  %v59 = vunpack.c.l.b16 %v23
  %v60 = vunpack.c.l.b16 %v24
  %v61 = vunpack.c.l.b16 %v25
  %v62 = vunpack.c.l.b16 %v26
  %v63 = vunpack.c.l.b16 %v27
  %v64 = vunpack.c.l.b16 %v28
  %v65 = vunpack.c.l.b16 %v29
  %v66 = vunpack.c.l.b16 %v30
  %v67 = vpack.c.b16 %v52, %v51
  %v68 = vpack.c.b16 %v54, %v53
  %v69 = vpack.c.b16 %v56, %v55
  %v70 = vpack.c.b16 %v58, %v57
  %v71 = vpack.c.b16 %v60, %v59
  %v72 = vpack.c.b16 %v62, %v61
  %v73 = vpack.c.b16 %v64, %v63
  %v74 = vpack.c.b16 %v66, %v65
  %v79 = vunpack.c.l.b16 %v31
  %v80 = vunpack.c.l.b16 %v32
  %v81 = vunpack.c.l.b16 %v33
  %v82 = vunpack.c.l.b16 %v34
  %v83 = vpack.c.b16 %v80, %v79
  %v84 = vpack.c.b16 %v82, %v81
  %vm87 = vcmask 261120
  %v89 = vsel %vm87, %v67, 0
  %v92 = vsel %vm87, %v68, 0
  %v95 = vsel %vm87, %v69, 0
  %v98 = vsel %vm87, %v70, 0
  %v101 = vsel %vm87, %v71, 0
  %v104 = vsel %vm87, %v72, 0
  %v107 = vsel %vm87, %v73, 0
  %v110 = vsel %vm87, %v74, 0
  %112 = vmatprep.subr.bf16.mxu0 0
  %113 = vmatpush1.bf16.msra.mxu0 %v83
  %114 = vmatprep.subr.bf16.mxu0 0
  %115 = vmatpush1.bf16.msra.mxu0 %v84
  %116 = vmatprep.subr.bf16.mxu0 0
  %117 = vmatpush1.bf16.msra.mxu0 0
  %118 = vmatprep.subr.bf16.mxu0 0
  %119 = vmatpush1.bf16.msra.mxu0 0
  %120 = vmatprep.subr.bf16.mxu0 0
  %121 = vmatpush1.bf16.msra.mxu0 0
  %122 = vmatprep.subr.bf16.mxu0 0
  %123 = vmatpush1.bf16.msra.mxu0 0
  %124 = vmatprep.subr.bf16.mxu0 0
  %125 = vmatpush1.bf16.msra.mxu0 0
  %126 = vmatprep.subr.bf16.mxu0 0
  %127 = vmatpush1.bf16.msra.mxu0 0
  %128 = vmatprep.subr.bf16.mxu0 0
  %129 = vmatpush1.bf16.msra.mxu0 0
  %130 = vmatprep.subr.bf16.mxu0 0
  %131 = vmatpush1.bf16.msra.mxu0 0
  %132 = vmatprep.subr.bf16.mxu0 0
  %133 = vmatpush1.bf16.msra.mxu0 0
  %134 = vmatprep.subr.bf16.mxu0 0
  %135 = vmatpush1.bf16.msra.mxu0 0
  %136 = vmatprep.subr.bf16.mxu0 0
  %137 = vmatpush1.bf16.msra.mxu0 0
  %138 = vmatprep.subr.bf16.mxu0 0
  %139 = vmatpush1.bf16.msra.mxu0 0
  %140 = vmatprep.subr.bf16.mxu0 0
  %141 = vmatpush1.bf16.msra.mxu0 0
  %142 = vmatprep.subr.bf16.mxu0 0
  %143 = vmatpush1.bf16.msra.mxu0 0
  %144 = vmatprep.mubr.bf16.mxu0 0
  %145 = vmatmul.mubr.bf16.gmra.mrb[0].mxu0 %v89
  %v146 = vpop.f32.mrb[0].mxu0
  %v147 = vadd.f32 0.0, %v146
  %v148 = vpop.f32.mrb[0].mxu0
  %v149 = vpop.f32.mrb[0].mxu0
  %v150 = vadd.f32 0.0, %v149
  %v151 = vpop.f32.mrb[0].mxu0
  %152 = vmatprep.mubr.bf16.mxu0 0
  %153 = vmatmul.mubr.bf16.gmra.mrb[0].mxu0 %v92
  %v154 = vpop.f32.mrb[0].mxu0
  %v155 = vadd.f32 0.0, %v154
  %v156 = vpop.f32.mrb[0].mxu0
  %v157 = vpop.f32.mrb[0].mxu0
  %v158 = vadd.f32 0.0, %v157
  %v159 = vpop.f32.mrb[0].mxu0
  %160 = vmatprep.mubr.bf16.mxu0 0
  %161 = vmatmul.mubr.bf16.gmra.mrb[0].mxu0 %v95
  %v162 = vpop.f32.mrb[0].mxu0
  %v163 = vadd.f32 0.0, %v162
  %v164 = vpop.f32.mrb[0].mxu0
  %v165 = vpop.f32.mrb[0].mxu0
  %v166 = vadd.f32 0.0, %v165
  %v167 = vpop.f32.mrb[0].mxu0
  %168 = vmatprep.mubr.bf16.mxu0 0
  %169 = vmatmul.mubr.bf16.gmra.mrb[0].mxu0 %v98
  %v170 = vpop.f32.mrb[0].mxu0
  %v171 = vadd.f32 0.0, %v170
  %v172 = vpop.f32.mrb[0].mxu0
  %v173 = vpop.f32.mrb[0].mxu0
  %v174 = vadd.f32 0.0, %v173
  %v175 = vpop.f32.mrb[0].mxu0
  %176 = vmatprep.mubr.bf16.mxu0 0
  %177 = vmatmul.mubr.bf16.gmra.mrb[0].mxu0 %v101
  %v178 = vpop.f32.mrb[0].mxu0
  %v179 = vadd.f32 0.0, %v178
  %v180 = vpop.f32.mrb[0].mxu0
  %v181 = vpop.f32.mrb[0].mxu0
  %v182 = vadd.f32 0.0, %v181
  %v183 = vpop.f32.mrb[0].mxu0
  %184 = vmatprep.mubr.bf16.mxu0 0
  %185 = vmatmul.mubr.bf16.gmra.mrb[0].mxu0 %v104
  %v186 = vpop.f32.mrb[0].mxu0
  %v187 = vadd.f32 0.0, %v186
  %v188 = vpop.f32.mrb[0].mxu0
  %v189 = vpop.f32.mrb[0].mxu0
  %v190 = vadd.f32 0.0, %v189
  %v191 = vpop.f32.mrb[0].mxu0
  %192 = vmatprep.mubr.bf16.mxu0 0
  %193 = vmatmul.mubr.bf16.gmra.mrb[0].mxu0 %v107
  %v194 = vpop.f32.mrb[0].mxu0
  %v195 = vadd.f32 0.0, %v194
  %v196 = vpop.f32.mrb[0].mxu0
  %v197 = vpop.f32.mrb[0].mxu0
  %v198 = vadd.f32 0.0, %v197
  %v199 = vpop.f32.mrb[0].mxu0
  %200 = vmatprep.mubr.bf16.mxu0 0
  %201 = vmatmul.mubr.bf16.gmra.mrb[0].mxu0 %v110
  %v202 = vpop.f32.mrb[0].mxu0
  %v203 = vadd.f32 0.0, %v202
  %v204 = vpop.f32.mrb[0].mxu0
  %v205 = vpop.f32.mrb[0].mxu0
  %v206 = vadd.f32 0.0, %v205
  %v207 = vpop.f32.mrb[0].mxu0
  %208 = vdwg.mxu0
  %209 = vst [vmem:[%s2] sm:$0xff] %v147
  %210 = vst [vmem:[%s2 + $0x8] sm:$0xff] %v150
  %211 = vst [vmem:[%s2 + $0x10] sm:$0xff] %v155
  %212 = vst [vmem:[%s2 + $0x18] sm:$0xff] %v158
  %213 = vst [vmem:[%s2 + $0x20] sm:$0xff] %v163
  %214 = vst [vmem:[%s2 + $0x28] sm:$0xff] %v166
  %215 = vst [vmem:[%s2 + $0x30] sm:$0xff] %v171
  %216 = vst [vmem:[%s2 + $0x38] sm:$0xff] %v174
  %217 = vst [vmem:[%s2 + $0x40] sm:$0xff] %v179
  %218 = vst [vmem:[%s2 + $0x48] sm:$0xff] %v182
  %219 = vst [vmem:[%s2 + $0x50] sm:$0xff] %v187
  %220 = vst [vmem:[%s2 + $0x58] sm:$0xff] %v190
  %221 = vst [vmem:[%s2 + $0x60] sm:$0xff] %v195
  %222 = vst [vmem:[%s2 + $0x68] sm:$0xff] %v198
  %223 = vst [vmem:[%s2 + $0x70] sm:$0xff] %v203
  %224 = vst [vmem:[%s2 + $0x78] sm:$0xff] %v206
  %v225 = vadd.f32 %v147, %v150
  %v226 = vadd.f32 %v225, %v155
  %v227 = vadd.f32 %v226, %v158
  %v228 = vadd.f32 %v227, %v163
  %v229 = vadd.f32 %v228, %v166
  %v230 = vadd.f32 %v229, %v171
  %v231 = vadd.f32 %v230, %v174
  %v232 = vadd.f32 %v231, %v179
  %v233 = vadd.f32 %v232, %v182
  %v234 = vadd.f32 %v233, %v187
  %v235 = vadd.f32 %v234, %v190
  %v236 = vadd.f32 %v235, %v195
  %v237 = vadd.f32 %v236, %v198
  %v238 = vadd.f32 %v237, %v203
  %v239 = vadd.f32 %v238, %v206
  %v240 = vrot.slane %v239, 4
  %v241 = vadd.f32 %v239, %v240
  %v242 = vrot.slane %v241, 2
  %v243 = vadd.f32 %v241, %v242
  %v244 = vrot.slane %v243, 1
  %v245 = vadd.f32 %v243, %v244
  %246 = vst [vmem:[%s3] sm:$0x1] %v245
  %v247 = vmul.f32 %v147, %v147
  %v248 = vmul.f32 %v150, %v150
  %v249 = vmul.f32 %v155, %v155
  %v250 = vmul.f32 %v158, %v158
  %v251 = vmul.f32 %v163, %v163
  %v252 = vmul.f32 %v166, %v166
  %v253 = vmul.f32 %v171, %v171
  %v254 = vmul.f32 %v174, %v174
  %v255 = vmul.f32 %v179, %v179
  %v256 = vmul.f32 %v182, %v182
  %v257 = vmul.f32 %v187, %v187
  %v258 = vmul.f32 %v190, %v190
  %v259 = vmul.f32 %v195, %v195
  %v260 = vmul.f32 %v198, %v198
  %v261 = vmul.f32 %v203, %v203
  %v262 = vmul.f32 %v206, %v206
  %v263 = vadd.f32 %v247, %v248
  %v264 = vadd.f32 %v263, %v249
  %v265 = vadd.f32 %v264, %v250
  %v266 = vadd.f32 %v265, %v251
  %v267 = vadd.f32 %v266, %v252
  %v268 = vadd.f32 %v267, %v253
  %v269 = vadd.f32 %v268, %v254
  %v270 = vadd.f32 %v269, %v255
  %v271 = vadd.f32 %v270, %v256
  %v272 = vadd.f32 %v271, %v257
  %v273 = vadd.f32 %v272, %v258
  %v274 = vadd.f32 %v273, %v259
  %v275 = vadd.f32 %v274, %v260
  %v276 = vadd.f32 %v275, %v261
  %v277 = vadd.f32 %v276, %v262
  %v278 = vrot.slane %v277, 4
  %v279 = vadd.f32 %v277, %v278
  %v280 = vrot.slane %v279, 2
  %v281 = vadd.f32 %v279, %v280
  %v282 = vrot.slane %v281, 1
  %v283 = vadd.f32 %v281, %v282
  %284 = vst [vmem:[%s4] sm:$0x1] %v283
  // Predicated region
  $region10: #{_lambda_.29} parent=0 // pred_check
    _
  $region11: #{_lambda_.29} parent=0 // pred_check_branch
    %286 = sbr.rel (0) target = $region13
  $region12: #{_lambda_.29} parent=0 // pred_region
    _
  $region13: #{_lambda_.29} parent=0 // pred_fallthru
    _
  // Predicated region
  $region14: #{_lambda_.29} parent=0 // pred_check
    _
  $region15: #{_lambda_.29} parent=0 // pred_check_branch
    %288 = sbr.rel (0) target = $region17
  $region16: #{_lambda_.29} parent=0 // pred_region
    _
  $region17: #{_lambda_.29} parent=0 // pred_fallthru
    _
  // Predicated region
  $region18: #{_lambda_.29} parent=0 // pred_check
    _
  $region19: #{_lambda_.29} parent=0 // pred_check_branch
    %290 = sbr.rel (0) target = $region21
  $region20: #{_lambda_.29} parent=0 // pred_region
    _
  $region21: #{_lambda_.29} parent=0 // pred_fallthru
    _
  // Predicated region
  $region22: #{_lambda_.29} parent=0 // pred_check
    _
  $region23: #{_lambda_.29} parent=0 // pred_check_branch
    %292 = sbr.rel (0) target = $region25
  $region24: #{_lambda_.29} parent=0 // pred_region
    _
  $region25: #{_lambda_.29} parent=0 // pred_fallthru
    _
  // Predicated region
  $region26: #{_lambda_.29} parent=0 // pred_check
    _
  $region27: #{_lambda_.29} parent=0 // pred_check_branch
    %294 = sbr.rel (0) target = $region29
  $region28: #{_lambda_.29} parent=0 // pred_region
    _
  $region29: #{_lambda_.29} parent=0 // pred_fallthru
    _
  // Predicated region
  $region30: #{_lambda_.29} parent=0 // pred_check
    _
  $region31: #{_lambda_.29} parent=0 // pred_check_branch
    %296 = sbr.rel (0) target = $region33
  $region32: #{_lambda_.29} parent=0 // pred_region
    _
  $region33: #{_lambda_.29} parent=0 // pred_fallthru
    _

// kernel: _lambda_.28
$region0: #{_lambda_.28}
  #allocation0 [shape = 'u32[]', space=smem, size = 0x4, offset = 0x4, fixed_abs, tag = 'smem constant byte address 0x4 - core index']
  #allocation1 [shape = 'u32[144,128]{1,0:T(1,128)}', space=vmem, size = 0x12000, scoped, tag = 'internal scratch']
  %s0 = inlined_call_operand.vmem [shape: f32[128,128], index: 0, kind: input, shape index: {}]
  %s1 = inlined_call_operand.vmem [shape: f32[1,128], index: 1, kind: input, shape index: {}]
  %s2 = inlined_call_operand.vmem [shape: f32[1,128], index: 2, kind: input, shape index: {}]
  %s3 = inlined_call_operand.vmem [shape: bf16[128,128], index: 3, kind: output, shape index: {}]
  %s4 = sld [smem:[#allocation0]]
  $region22: #{_lambda_.28} parent=0
    _
  %s6 = ssub.s32 1, %s4
  %s7 = scalar_select 0, %s6, %s4
  // Predicated region
  $region2: #{_lambda_.28} parent=0 // pred_check
    _
  $region3: #{_lambda_.28} parent=0 // pred_check_branch
    %9 = sbr.rel (0) target = $region5
  $region4: #{_lambda_.28} parent=0 // pred_region
    _
  $region5: #{_lambda_.28} parent=0 // pred_fallthru
    _
  // Predicated region
  $region6: #{_lambda_.28} parent=0 // pred_check
    _
  $region7: #{_lambda_.28} parent=0 // pred_check_branch
    %11 = sbr.rel (0) target = $region9
  $region8: #{_lambda_.28} parent=0 // pred_region
    _
  $region9: #{_lambda_.28} parent=0 // pred_fallthru
    _
  // Predicated region
  $region10: #{_lambda_.28} parent=0 // pred_check
    _
  $region11: #{_lambda_.28} parent=0 // pred_check_branch
    %13 = sbr.rel (0) target = $region13
  $region12: #{_lambda_.28} parent=0 // pred_region
    _
  $region13: #{_lambda_.28} parent=0 // pred_fallthru
    _
  %v14 = vld [vmem:[%s0] sm:$0xff]
  %v15 = vld [vmem:[%s0 + $0x8] sm:$0xff]
  %v16 = vld [vmem:[%s0 + $0x10] sm:$0xff]
  %v17 = vld [vmem:[%s0 + $0x18] sm:$0xff]
  %v18 = vld [vmem:[%s0 + $0x20] sm:$0xff]
  %v19 = vld [vmem:[%s0 + $0x28] sm:$0xff]
  %v20 = vld [vmem:[%s0 + $0x30] sm:$0xff]
  %v21 = vld [vmem:[%s0 + $0x38] sm:$0xff]
  %v22 = vld [vmem:[%s0 + $0x40] sm:$0xff]
  %v23 = vld [vmem:[%s0 + $0x48] sm:$0xff]
  %v24 = vld [vmem:[%s0 + $0x50] sm:$0xff]
  %v25 = vld [vmem:[%s0 + $0x58] sm:$0xff]
  %v26 = vld [vmem:[%s0 + $0x60] sm:$0xff]
  %v27 = vld [vmem:[%s0 + $0x68] sm:$0xff]
  %v28 = vld [vmem:[%s0 + $0x70] sm:$0xff]
  %v29 = vld [vmem:[%s0 + $0x78] sm:$0xff]
  %v30 = vld [vmem:[%s1] sm:$0x1]
  %v32 = vlaneseq
  %v33 = vshrl.u32 %v32, 7
  %v34 = vsub.s32 0, %v33
  %v35 = vrot.slane %v30, %v34
  %v37 = vmul.f32 %v14, %v35
  %v38 = vmul.f32 %v15, %v35
  %v39 = vmul.f32 %v16, %v35
  %v40 = vmul.f32 %v17, %v35
  %v41 = vmul.f32 %v18, %v35
  %v42 = vmul.f32 %v19, %v35
  %v43 = vmul.f32 %v20, %v35
  %v44 = vmul.f32 %v21, %v35
  %v45 = vmul.f32 %v22, %v35
  %v46 = vmul.f32 %v23, %v35
  %v47 = vmul.f32 %v24, %v35
  %v48 = vmul.f32 %v25, %v35
  %v49 = vmul.f32 %v26, %v35
  %v50 = vmul.f32 %v27, %v35
  %v51 = vmul.f32 %v28, %v35
  %v52 = vmul.f32 %v29, %v35
  %v53 = vld [vmem:[%s2] sm:$0x1]
  %v55 = vlaneseq
  %v56 = vshrl.u32 %v55, 7
  %v57 = vsub.s32 0, %v56
  %v58 = vrot.slane %v53, %v57
  %v60 = vadd.f32 %v37, %v58
  %v61 = vadd.f32 %v38, %v58
  %v62 = vadd.f32 %v39, %v58
  %v63 = vadd.f32 %v40, %v58
  %v64 = vadd.f32 %v41, %v58
  %v65 = vadd.f32 %v42, %v58
  %v66 = vadd.f32 %v43, %v58
  %v67 = vadd.f32 %v44, %v58
  %v68 = vadd.f32 %v45, %v58
  %v69 = vadd.f32 %v46, %v58
  %v70 = vadd.f32 %v47, %v58
  %v71 = vadd.f32 %v48, %v58
  %v72 = vadd.f32 %v49, %v58
  %v73 = vadd.f32 %v50, %v58
  %v74 = vadd.f32 %v51, %v58
  %v75 = vadd.f32 %v52, %v58
  %v76 = vmax.f32 %v60, 0.0
  %v77 = vmax.f32 %v61, 0.0
  %v78 = vmax.f32 %v62, 0.0
  %v79 = vmax.f32 %v63, 0.0
  %v80 = vmax.f32 %v64, 0.0
  %v81 = vmax.f32 %v65, 0.0
  %v82 = vmax.f32 %v66, 0.0
  %v83 = vmax.f32 %v67, 0.0
  %v84 = vmax.f32 %v68, 0.0
  %v85 = vmax.f32 %v69, 0.0
  %v86 = vmax.f32 %v70, 0.0
  %v87 = vmax.f32 %v71, 0.0
  %v88 = vmax.f32 %v72, 0.0
  %v89 = vmax.f32 %v73, 0.0
  %v90 = vmax.f32 %v74, 0.0
  %v91 = vmax.f32 %v75, 0.0
  %v92 = vpack.c.bf16 %v77, %v76
  %v93 = vpack.c.bf16 %v79, %v78
  %v94 = vpack.c.bf16 %v81, %v80
  %v95 = vpack.c.bf16 %v83, %v82
  %v96 = vpack.c.bf16 %v85, %v84
  %v97 = vpack.c.bf16 %v87, %v86
  %v98 = vpack.c.bf16 %v89, %v88
  %v99 = vpack.c.bf16 %v91, %v90
  %v108 = vunpack.c.l.b16 %v92
  %v109 = vunpack.c.h.b16 %v92
  %v110 = vunpack.c.l.b16 %v93
  %v111 = vunpack.c.h.b16 %v93
  %v112 = vunpack.c.l.b16 %v94
  %v113 = vunpack.c.h.b16 %v94
  %v114 = vunpack.c.l.b16 %v95
  %v115 = vunpack.c.h.b16 %v95
  %v116 = vunpack.c.l.b16 %v96
  %v117 = vunpack.c.h.b16 %v96
  %v118 = vunpack.c.l.b16 %v97
  %v119 = vunpack.c.h.b16 %v97
  %v120 = vunpack.c.l.b16 %v98
  %v121 = vunpack.c.h.b16 %v98
  %v122 = vunpack.c.l.b16 %v99
  %v123 = vunpack.c.h.b16 %v99
  %v124 = vpack.c.b16 %v108, %v108
  %v125 = vpack.c.b16 %v109, %v109
  %v126 = vpack.c.b16 %v110, %v110
  %v127 = vpack.c.b16 %v111, %v111
  %v128 = vpack.c.b16 %v112, %v112
  %v129 = vpack.c.b16 %v113, %v113
  %v130 = vpack.c.b16 %v114, %v114
  %v131 = vpack.c.b16 %v115, %v115
  %v132 = vpack.c.b16 %v116, %v116
  %v133 = vpack.c.b16 %v117, %v117
  %v134 = vpack.c.b16 %v118, %v118
  %v135 = vpack.c.b16 %v119, %v119
  %v136 = vpack.c.b16 %v120, %v120
  %v137 = vpack.c.b16 %v121, %v121
  %v138 = vpack.c.b16 %v122, %v122
  %v139 = vpack.c.b16 %v123, %v123
  %156 = vst [vmem:[%s3] sm:$0xf] %v124
  %157 = vst [vmem:[%s3 + $0x4] sm:$0xf] %v125
  %158 = vst [vmem:[%s3 + $0x8] sm:$0xf] %v126
  %159 = vst [vmem:[%s3 + $0xc] sm:$0xf] %v127
  %160 = vst [vmem:[%s3 + $0x10] sm:$0xf] %v128
  %161 = vst [vmem:[%s3 + $0x14] sm:$0xf] %v129
  %162 = vst [vmem:[%s3 + $0x18] sm:$0xf] %v130
  %163 = vst [vmem:[%s3 + $0x1c] sm:$0xf] %v131
  %164 = vst [vmem:[%s3 + $0x20] sm:$0xf] %v132
  %165 = vst [vmem:[%s3 + $0x24] sm:$0xf] %v133
  %166 = vst [vmem:[%s3 + $0x28] sm:$0xf] %v134
  %167 = vst [vmem:[%s3 + $0x2c] sm:$0xf] %v135
  %168 = vst [vmem:[%s3 + $0x30] sm:$0xf] %v136
  %169 = vst [vmem:[%s3 + $0x34] sm:$0xf] %v137
  %170 = vst [vmem:[%s3 + $0x38] sm:$0xf] %v138
  %171 = vst [vmem:[%s3 + $0x3c] sm:$0xf] %v139
  // Predicated region
  $region14: #{_lambda_.28} parent=0 // pred_check
    _
  $region15: #{_lambda_.28} parent=0 // pred_check_branch
    %173 = sbr.rel (0) target = $region17
  $region16: #{_lambda_.28} parent=0 // pred_region
    _
  $region17: #{_lambda_.28} parent=0 // pred_fallthru
    _
  // Predicated region
  $region18: #{_lambda_.28} parent=0 // pred_check
    _
  $region19: #{_lambda_.28} parent=0 // pred_check_branch
    %175 = sbr.rel (0) target = $region21
  $region20: #{_lambda_.28} parent=0 // pred_region
    _
  $region21: #{_lambda_.28} parent=0 // pred_fallthru
    _

// kernel: _lambda_.27
$region0: #{_lambda_.27}
  #allocation0 [shape = 'u32[]', space=smem, size = 0x4, offset = 0x4, fixed_abs, tag = 'smem constant byte address 0x4 - core index']
  #allocation1 [shape = 'u32[144,128]{1,0:T(1,128)}', space=vmem, size = 0x12000, scoped, tag = 'internal scratch']
  %s0 = inlined_call_operand.vmem [shape: bf16[128,288], index: 0, kind: input, shape index: {}]
  %s1 = inlined_call_operand.vmem [shape: bf16[288,128], index: 1, kind: input, shape index: {}]
  %s2 = inlined_call_operand.vmem [shape: f32[128,128], index: 2, kind: output, shape index: {0}]
  %s3 = inlined_call_operand.vmem [shape: f32[1,1,128], index: 3, kind: output, shape index: {1}]
  %s4 = inlined_call_operand.vmem [shape: f32[1,1,128], index: 4, kind: output, shape index: {2}]
  %5 = xla_tuple %s2, %s3, %s4
  %s6 = sld [smem:[#allocation0]]
  $region34: #{_lambda_.27} parent=0
    _
  %s8 = ssub.s32 1, %s6
  %s9 = scalar_select 0, %s8, %s6
  // Predicated region
  $region2: #{_lambda_.27} parent=0 // pred_check
    _
  $region3: #{_lambda_.27} parent=0 // pred_check_branch
    %11 = sbr.rel (0) target = $region5
  $region4: #{_lambda_.27} parent=0 // pred_region
    _
  $region5: #{_lambda_.27} parent=0 // pred_fallthru
    _
  // Predicated region
  $region6: #{_lambda_.27} parent=0 // pred_check
    _
  $region7: #{_lambda_.27} parent=0 // pred_check_branch
    %13 = sbr.rel (0) target = $region9
  $region8: #{_lambda_.27} parent=0 // pred_region
    _
  $region9: #{_lambda_.27} parent=0 // pred_fallthru
    _
  %v15 = vld [vmem:[%s0] sm:$0xff]
  %v16 = vld [vmem:[%s0 + $0x8] sm:$0xf]
  %v17 = vld [vmem:[%s0 + $0xc] sm:$0xff]
  %v18 = vld [vmem:[%s0 + $0x14] sm:$0xf]
  %v19 = vld [vmem:[%s0 + $0x18] sm:$0xff]
  %v20 = vld [vmem:[%s0 + $0x20] sm:$0xf]
  %v21 = vld [vmem:[%s0 + $0x24] sm:$0xff]
  %v22 = vld [vmem:[%s0 + $0x2c] sm:$0xf]
  %v23 = vld [vmem:[%s0 + $0x30] sm:$0xff]
  %v24 = vld [vmem:[%s0 + $0x38] sm:$0xf]
  %v25 = vld [vmem:[%s0 + $0x3c] sm:$0xff]
  %v26 = vld [vmem:[%s0 + $0x44] sm:$0xf]
  %v27 = vld [vmem:[%s0 + $0x48] sm:$0xff]
  %v28 = vld [vmem:[%s0 + $0x50] sm:$0xf]
  %v29 = vld [vmem:[%s0 + $0x54] sm:$0xff]
  %v30 = vld [vmem:[%s0 + $0x5c] sm:$0xf]
  %v31 = vld [vmem:[%s0 + $0x60] sm:$0xff]
  %v32 = vld [vmem:[%s0 + $0x68] sm:$0xf]
  %v33 = vld [vmem:[%s0 + $0x6c] sm:$0xff]
  %v34 = vld [vmem:[%s0 + $0x74] sm:$0xf]
  %v35 = vld [vmem:[%s0 + $0x78] sm:$0xff]
  %v36 = vld [vmem:[%s0 + $0x80] sm:$0xf]
  %v37 = vld [vmem:[%s0 + $0x84] sm:$0xff]
  %v38 = vld [vmem:[%s0 + $0x8c] sm:$0xf]
  %v39 = vld [vmem:[%s0 + $0x90] sm:$0xff]
  %v40 = vld [vmem:[%s0 + $0x98] sm:$0xf]
  %v41 = vld [vmem:[%s0 + $0x9c] sm:$0xff]
  %v42 = vld [vmem:[%s0 + $0xa4] sm:$0xf]
  %v43 = vld [vmem:[%s0 + $0xa8] sm:$0xff]
  %v44 = vld [vmem:[%s0 + $0xb0] sm:$0xf]
  %v45 = vld [vmem:[%s0 + $0xb4] sm:$0xff]
  %v46 = vld [vmem:[%s0 + $0xbc] sm:$0xf]
  %v47 = vld [vmem:[%s1] sm:$0xf]
  %v48 = vld [vmem:[%s1 + $0x4] sm:$0xf]
  %v49 = vld [vmem:[%s1 + $0x8] sm:$0xf]
  %v50 = vld [vmem:[%s1 + $0xc] sm:$0xf]
  %v51 = vld [vmem:[%s1 + $0x10] sm:$0xf]
  %v52 = vld [vmem:[%s1 + $0x14] sm:$0xf]
  %v53 = vld [vmem:[%s1 + $0x18] sm:$0xf]
  %v54 = vld [vmem:[%s1 + $0x1c] sm:$0xf]
  %v55 = vld [vmem:[%s1 + $0x20] sm:$0xf]
  %v56 = vld [vmem:[%s1 + $0x24] sm:$0xf]
  %v57 = vld [vmem:[%s1 + $0x28] sm:$0xf]
  %v58 = vld [vmem:[%s1 + $0x2c] sm:$0xf]
  %v59 = vld [vmem:[%s1 + $0x30] sm:$0xf]
  %v60 = vld [vmem:[%s1 + $0x34] sm:$0xf]
  %v61 = vld [vmem:[%s1 + $0x38] sm:$0xf]
  %v62 = vld [vmem:[%s1 + $0x3c] sm:$0xf]
  %v63 = vld [vmem:[%s1 + $0x40] sm:$0xf]
  %v64 = vld [vmem:[%s1 + $0x44] sm:$0xf]
  %v65 = vld [vmem:[%s1 + $0x48] sm:$0xf]
  %v66 = vld [vmem:[%s1 + $0x4c] sm:$0xf]
  %v67 = vld [vmem:[%s1 + $0x50] sm:$0xf]
  %v68 = vld [vmem:[%s1 + $0x54] sm:$0xf]
  %v69 = vld [vmem:[%s1 + $0x58] sm:$0xf]
  %v70 = vld [vmem:[%s1 + $0x5c] sm:$0xf]
  %v71 = vld [vmem:[%s1 + $0x60] sm:$0xf]
  %v72 = vld [vmem:[%s1 + $0x64] sm:$0xf]
  %v73 = vld [vmem:[%s1 + $0x68] sm:$0xf]
  %v74 = vld [vmem:[%s1 + $0x6c] sm:$0xf]
  %v75 = vld [vmem:[%s1 + $0x70] sm:$0xf]
  %v76 = vld [vmem:[%s1 + $0x74] sm:$0xf]
  %v77 = vld [vmem:[%s1 + $0x78] sm:$0xf]
  %v78 = vld [vmem:[%s1 + $0x7c] sm:$0xf]
  %v79 = vld [vmem:[%s1 + $0x80] sm:$0xf]
  %v80 = vld [vmem:[%s1 + $0x84] sm:$0xf]
  %v81 = vld [vmem:[%s1 + $0x88] sm:$0xf]
  %v82 = vld [vmem:[%s1 + $0x8c] sm:$0xf]
  %v115 = vunpack.c.l.b16 %v15
  %v116 = vunpack.c.h.b16 %v15
  %v117 = vunpack.c.l.b16 %v16
  %v118 = vunpack.c.l.b16 %v17
  %v119 = vunpack.c.h.b16 %v17
  %v120 = vunpack.c.l.b16 %v18
  %v121 = vunpack.c.l.b16 %v19
  %v122 = vunpack.c.h.b16 %v19
  %v123 = vunpack.c.l.b16 %v20
  %v124 = vunpack.c.l.b16 %v21
  %v125 = vunpack.c.h.b16 %v21
  %v126 = vunpack.c.l.b16 %v22
  %v127 = vunpack.c.l.b16 %v23
  %v128 = vunpack.c.h.b16 %v23
  %v129 = vunpack.c.l.b16 %v24
  %v130 = vunpack.c.l.b16 %v25
  %v131 = vunpack.c.h.b16 %v25
  %v132 = vunpack.c.l.b16 %v26
  %v133 = vunpack.c.l.b16 %v27
  %v134 = vunpack.c.h.b16 %v27
  %v135 = vunpack.c.l.b16 %v28
  %v136 = vunpack.c.l.b16 %v29
  %v137 = vunpack.c.h.b16 %v29
  %v138 = vunpack.c.l.b16 %v30
  %v139 = vunpack.c.l.b16 %v31
  %v140 = vunpack.c.h.b16 %v31
  %v141 = vunpack.c.l.b16 %v32
  %v142 = vunpack.c.l.b16 %v33
  %v143 = vunpack.c.h.b16 %v33
  %v144 = vunpack.c.l.b16 %v34
  %v145 = vunpack.c.l.b16 %v35
  %v146 = vunpack.c.h.b16 %v35
  %v147 = vunpack.c.l.b16 %v36
  %v148 = vunpack.c.l.b16 %v37
  %v149 = vunpack.c.h.b16 %v37
  %v150 = vunpack.c.l.b16 %v38
  %v151 = vunpack.c.l.b16 %v39
  %v152 = vunpack.c.h.b16 %v39
  %v153 = vunpack.c.l.b16 %v40
  %v154 = vunpack.c.l.b16 %v41
  %v155 = vunpack.c.h.b16 %v41
  %v156 = vunpack.c.l.b16 %v42
  %v157 = vunpack.c.l.b16 %v43
  %v158 = vunpack.c.h.b16 %v43
  %v159 = vunpack.c.l.b16 %v44
  %v160 = vunpack.c.l.b16 %v45
  %v161 = vunpack.c.h.b16 %v45
  %v162 = vunpack.c.l.b16 %v46
  %v163 = vpack.c.b16 %v118, %v115
  %v164 = vpack.c.b16 %v119, %v116
  %v165 = vpack.c.b16 %v120, %v117
  %v166 = vpack.c.b16 %v124, %v121
  %v167 = vpack.c.b16 %v125, %v122
  %v168 = vpack.c.b16 %v126, %v123
  %v169 = vpack.c.b16 %v130, %v127
  %v170 = vpack.c.b16 %v131, %v128
  %v171 = vpack.c.b16 %v132, %v129
  %v172 = vpack.c.b16 %v136, %v133
  %v173 = vpack.c.b16 %v137, %v134
  %v174 = vpack.c.b16 %v138, %v135
  %v175 = vpack.c.b16 %v142, %v139
  %v176 = vpack.c.b16 %v143, %v140
  %v177 = vpack.c.b16 %v144, %v141
  %v178 = vpack.c.b16 %v148, %v145
  %v179 = vpack.c.b16 %v149, %v146
  %v180 = vpack.c.b16 %v150, %v147
  %v181 = vpack.c.b16 %v154, %v151
  %v182 = vpack.c.b16 %v155, %v152
  %v183 = vpack.c.b16 %v156, %v153
  %v184 = vpack.c.b16 %v160, %v157
  %v185 = vpack.c.b16 %v161, %v158
  %v186 = vpack.c.b16 %v162, %v159
  %v239 = vunpack.c.l.b16 %v47
  %v240 = vunpack.c.l.b16 %v48
  %v241 = vunpack.c.l.b16 %v49
  %v242 = vunpack.c.l.b16 %v50
  %v243 = vunpack.c.l.b16 %v51
  %v244 = vunpack.c.l.b16 %v52
  %v245 = vunpack.c.l.b16 %v53
  %v246 = vunpack.c.l.b16 %v54
  %v247 = vunpack.c.l.b16 %v55
  %v248 = vunpack.c.l.b16 %v56
  %v249 = vunpack.c.l.b16 %v57
  %v250 = vunpack.c.l.b16 %v58
  %v251 = vunpack.c.l.b16 %v59
  %v252 = vunpack.c.l.b16 %v60
  %v253 = vunpack.c.l.b16 %v61
  %v254 = vunpack.c.l.b16 %v62
  %v255 = vunpack.c.l.b16 %v63
  %v256 = vunpack.c.l.b16 %v64
  %v257 = vunpack.c.l.b16 %v65
  %v258 = vunpack.c.l.b16 %v66
  %v259 = vunpack.c.l.b16 %v67
  %v260 = vunpack.c.l.b16 %v68
  %v261 = vunpack.c.l.b16 %v69
  %v262 = vunpack.c.l.b16 %v70
  %v263 = vunpack.c.l.b16 %v71
  %v264 = vunpack.c.l.b16 %v72
  %v265 = vunpack.c.l.b16 %v73
  %v266 = vunpack.c.l.b16 %v74
  %v267 = vunpack.c.l.b16 %v75
  %v268 = vunpack.c.l.b16 %v76
  %v269 = vunpack.c.l.b16 %v77
  %v270 = vunpack.c.l.b16 %v78
  %v271 = vunpack.c.l.b16 %v79
  %v272 = vunpack.c.l.b16 %v80
  %v273 = vunpack.c.l.b16 %v81
  %v274 = vunpack.c.l.b16 %v82
  %v275 = vpack.c.b16 %v240, %v239
  %v276 = vpack.c.b16 %v242, %v241
  %v277 = vpack.c.b16 %v244, %v243
  %v278 = vpack.c.b16 %v246, %v245
  %v279 = vpack.c.b16 %v248, %v247
  %v280 = vpack.c.b16 %v250, %v249
  %v281 = vpack.c.b16 %v252, %v251
  %v282 = vpack.c.b16 %v254, %v253
  %v283 = vpack.c.b16 %v256, %v255
  %v284 = vpack.c.b16 %v258, %v257
  %v285 = vpack.c.b16 %v260, %v259
  %v286 = vpack.c.b16 %v262, %v261
  %v287 = vpack.c.b16 %v264, %v263
  %v288 = vpack.c.b16 %v266, %v265
  %v289 = vpack.c.b16 %v268, %v267
  %v290 = vpack.c.b16 %v270, %v269
  %v291 = vpack.c.b16 %v272, %v271
  %v292 = vpack.c.b16 %v274, %v273
  %vm311 = vcmask 261120
  %v313 = vsel %vm311, %v165, 0
  %v316 = vsel %vm311, %v168, 0
  %v319 = vsel %vm311, %v171, 0
  %v322 = vsel %vm311, %v174, 0
  %v325 = vsel %vm311, %v177, 0
  %v328 = vsel %vm311, %v180, 0
  %v331 = vsel %vm311, %v183, 0
  %v334 = vsel %vm311, %v186, 0
  %336 = vmatprep.subr.bf16.mxu0 0
  %337 = vmatpush1.bf16.msra.mxu0 %v275
  %338 = vmatprep.subr.bf16.mxu0 0
  %339 = vmatpush1.bf16.msra.mxu0 %v276
  %340 = vmatprep.subr.bf16.mxu0 0
  %341 = vmatpush1.bf16.msra.mxu0 %v277
  %342 = vmatprep.subr.bf16.mxu0 0
  %343 = vmatpush1.bf16.msra.mxu0 %v278
  %344 = vmatprep.subr.bf16.mxu0 0
  %345 = vmatpush1.bf16.msra.mxu0 %v279
  %346 = vmatprep.subr.bf16.mxu0 0
  %347 = vmatpush1.bf16.msra.mxu0 %v280
  %348 = vmatprep.subr.bf16.mxu0 0
  %349 = vmatpush1.bf16.msra.mxu0 %v281
  %350 = vmatprep.subr.bf16.mxu0 0
  %351 = vmatpush1.bf16.msra.mxu0 %v282
  %352 = vmatprep.subr.bf16.mxu0 0
  %353 = vmatpush1.bf16.msra.mxu0 %v283
  %354 = vmatprep.subr.bf16.mxu0 0
  %355 = vmatpush1.bf16.msra.mxu0 %v284
  %356 = vmatprep.subr.bf16.mxu0 0
  %357 = vmatpush1.bf16.msra.mxu0 %v285
  %358 = vmatprep.subr.bf16.mxu0 0
  %359 = vmatpush1.bf16.msra.mxu0 %v286
  %360 = vmatprep.subr.bf16.mxu0 0
  %361 = vmatpush1.bf16.msra.mxu0 %v287
  %362 = vmatprep.subr.bf16.mxu0 0
  %363 = vmatpush1.bf16.msra.mxu0 %v288
  %364 = vmatprep.subr.bf16.mxu0 0
  %365 = vmatpush1.bf16.msra.mxu0 %v289
  %366 = vmatprep.subr.bf16.mxu0 0
  %367 = vmatpush1.bf16.msra.mxu0 %v290
  %368 = vmatprep.mubr.bf16.mxu0 %v164
  %369 = vmatmul.mubr.bf16.gmra.mrb[0].mxu0 %v163
  %v370 = vpop.f32.mrb[0].mxu0
  %v371 = vadd.f32 0.0, %v370
  %v372 = vpop.f32.mrb[0].mxu0
  %v373 = vpop.f32.mrb[0].mxu0
  %v374 = vadd.f32 0.0, %v373
  %v375 = vpop.f32.mrb[0].mxu0
  %376 = vmatprep.mubr.bf16.mxu0 %v167
  %377 = vmatmul.mubr.bf16.gmra.mrb[0].mxu0 %v166
  %v378 = vpop.f32.mrb[0].mxu0
  %v379 = vadd.f32 0.0, %v378
  %v380 = vpop.f32.mrb[0].mxu0
  %v381 = vpop.f32.mrb[0].mxu0
  %v382 = vadd.f32 0.0, %v381
  %v383 = vpop.f32.mrb[0].mxu0
  %384 = vmatprep.mubr.bf16.mxu0 %v170
  %385 = vmatmul.mubr.bf16.gmra.mrb[0].mxu0 %v169
  %v386 = vpop.f32.mrb[0].mxu0
  %v387 = vadd.f32 0.0, %v386
  %v388 = vpop.f32.mrb[0].mxu0
  %v389 = vpop.f32.mrb[0].mxu0
  %v390 = vadd.f32 0.0, %v389
  %v391 = vpop.f32.mrb[0].mxu0
  %392 = vmatprep.mubr.bf16.mxu0 %v173
  %393 = vmatmul.mubr.bf16.gmra.mrb[0].mxu0 %v172
  %v394 = vpop.f32.mrb[0].mxu0
  %v395 = vadd.f32 0.0, %v394
  %v396 = vpop.f32.mrb[0].mxu0
  %v397 = vpop.f32.mrb[0].mxu0
  %v398 = vadd.f32 0.0, %v397
  %v399 = vpop.f32.mrb[0].mxu0
  %400 = vmatprep.mubr.bf16.mxu0 %v176
  %401 = vmatmul.mubr.bf16.gmra.mrb[0].mxu0 %v175
  %v402 = vpop.f32.mrb[0].mxu0
  %v403 = vadd.f32 0.0, %v402
  %v404 = vpop.f32.mrb[0].mxu0
  %v405 = vpop.f32.mrb[0].mxu0
  %v406 = vadd.f32 0.0, %v405
  %v407 = vpop.f32.mrb[0].mxu0
  %408 = vmatprep.mubr.bf16.mxu0 %v179
  %409 = vmatmul.mubr.bf16.gmra.mrb[0].mxu0 %v178
  %v410 = vpop.f32.mrb[0].mxu0
  %v411 = vadd.f32 0.0, %v410
  %v412 = vpop.f32.mrb[0].mxu0
  %v413 = vpop.f32.mrb[0].mxu0
  %v414 = vadd.f32 0.0, %v413
  %v415 = vpop.f32.mrb[0].mxu0
  %416 = vmatprep.mubr.bf16.mxu0 %v182
  %417 = vmatmul.mubr.bf16.gmra.mrb[0].mxu0 %v181
  %v418 = vpop.f32.mrb[0].mxu0
  %v419 = vadd.f32 0.0, %v418
  %v420 = vpop.f32.mrb[0].mxu0
  %v421 = vpop.f32.mrb[0].mxu0
  %v422 = vadd.f32 0.0, %v421
  %v423 = vpop.f32.mrb[0].mxu0
  %424 = vmatprep.mubr.bf16.mxu0 %v185
  %425 = vmatmul.mubr.bf16.gmra.mrb[0].mxu0 %v184
  %v426 = vpop.f32.mrb[0].mxu0
  %v427 = vadd.f32 0.0, %v426
  %v428 = vpop.f32.mrb[0].mxu0
  %v429 = vpop.f32.mrb[0].mxu0
  %v430 = vadd.f32 0.0, %v429
  %v431 = vpop.f32.mrb[0].mxu0
  %432 = vdwg.mxu0
  %433 = vmatprep.subr.bf16.mxu0 0
  %434 = vmatpush1.bf16.msra.mxu0 %v291
  %435 = vmatprep.subr.bf16.mxu0 0
  %436 = vmatpush1.bf16.msra.mxu0 %v292
  %437 = vmatprep.subr.bf16.mxu0 0
  %438 = vmatpush1.bf16.msra.mxu0 0
  %439 = vmatprep.subr.bf16.mxu0 0
  %440 = vmatpush1.bf16.msra.mxu0 0
  %441 = vmatprep.subr.bf16.mxu0 0
  %442 = vmatpush1.bf16.msra.mxu0 0
  %443 = vmatprep.subr.bf16.mxu0 0
  %444 = vmatpush1.bf16.msra.mxu0 0
  %445 = vmatprep.subr.bf16.mxu0 0
  %446 = vmatpush1.bf16.msra.mxu0 0
  %447 = vmatprep.subr.bf16.mxu0 0
  %448 = vmatpush1.bf16.msra.mxu0 0
  %449 = vmatprep.subr.bf16.mxu0 0
  %450 = vmatpush1.bf16.msra.mxu0 0
  %451 = vmatprep.subr.bf16.mxu0 0
  %452 = vmatpush1.bf16.msra.mxu0 0
  %453 = vmatprep.subr.bf16.mxu0 0
  %454 = vmatpush1.bf16.msra.mxu0 0
  %455 = vmatprep.subr.bf16.mxu0 0
  %456 = vmatpush1.bf16.msra.mxu0 0
  %457 = vmatprep.subr.bf16.mxu0 0
  %458 = vmatpush1.bf16.msra.mxu0 0
  %459 = vmatprep.subr.bf16.mxu0 0
  %460 = vmatpush1.bf16.msra.mxu0 0
  %461 = vmatprep.subr.bf16.mxu0 0
  %462 = vmatpush1.bf16.msra.mxu0 0
  %463 = vmatprep.subr.bf16.mxu0 0
  %464 = vmatpush1.bf16.msra.mxu0 0
  %465 = vmatprep.mubr.bf16.mxu0 0
  %466 = vmatmul.mubr.bf16.gmra.mrb[0].mxu0 %v313
  %v467 = vpop.f32.mrb[0].mxu0
  %v468 = vadd.f32 %v371, %v467
  %v469 = vpop.f32.mrb[0].mxu0
  %v470 = vpop.f32.mrb[0].mxu0
  %v471 = vadd.f32 %v374, %v470
  %v472 = vpop.f32.mrb[0].mxu0
  %473 = vmatprep.mubr.bf16.mxu0 0
  %474 = vmatmul.mubr.bf16.gmra.mrb[0].mxu0 %v316
  %v475 = vpop.f32.mrb[0].mxu0
  %v476 = vadd.f32 %v379, %v475
  %v477 = vpop.f32.mrb[0].mxu0
  %v478 = vpop.f32.mrb[0].mxu0
  %v479 = vadd.f32 %v382, %v478
  %v480 = vpop.f32.mrb[0].mxu0
  %481 = vmatprep.mubr.bf16.mxu0 0
  %482 = vmatmul.mubr.bf16.gmra.mrb[0].mxu0 %v319
  %v483 = vpop.f32.mrb[0].mxu0
  %v484 = vadd.f32 %v387, %v483
  %v485 = vpop.f32.mrb[0].mxu0
  %v486 = vpop.f32.mrb[0].mxu0
  %v487 = vadd.f32 %v390, %v486
  %v488 = vpop.f32.mrb[0].mxu0
  %489 = vmatprep.mubr.bf16.mxu0 0
  %490 = vmatmul.mubr.bf16.gmra.mrb[0].mxu0 %v322
  %v491 = vpop.f32.mrb[0].mxu0
  %v492 = vadd.f32 %v395, %v491
  %v493 = vpop.f32.mrb[0].mxu0
  %v494 = vpop.f32.mrb[0].mxu0
  %v495 = vadd.f32 %v398, %v494
  %v496 = vpop.f32.mrb[0].mxu0
  %497 = vmatprep.mubr.bf16.mxu0 0
  %498 = vmatmul.mubr.bf16.gmra.mrb[0].mxu0 %v325
  %v499 = vpop.f32.mrb[0].mxu0
  %v500 = vadd.f32 %v403, %v499
  %v501 = vpop.f32.mrb[0].mxu0
  %v502 = vpop.f32.mrb[0].mxu0
  %v503 = vadd.f32 %v406, %v502
  %v504 = vpop.f32.mrb[0].mxu0
  %505 = vmatprep.mubr.bf16.mxu0 0
  %506 = vmatmul.mubr.bf16.gmra.mrb[0].mxu0 %v328
  %v507 = vpop.f32.mrb[0].mxu0
  %v508 = vadd.f32 %v411, %v507
  %v509 = vpop.f32.mrb[0].mxu0
  %v510 = vpop.f32.mrb[0].mxu0
  %v511 = vadd.f32 %v414, %v510
  %v512 = vpop.f32.mrb[0].mxu0
  %513 = vmatprep.mubr.bf16.mxu0 0
  %514 = vmatmul.mubr.bf16.gmra.mrb[0].mxu0 %v331
  %v515 = vpop.f32.mrb[0].mxu0
  %v516 = vadd.f32 %v419, %v515
  %v517 = vpop.f32.mrb[0].mxu0
  %v518 = vpop.f32.mrb[0].mxu0
  %v519 = vadd.f32 %v422, %v518
  %v520 = vpop.f32.mrb[0].mxu0
  %521 = vmatprep.mubr.bf16.mxu0 0
  %522 = vmatmul.mubr.bf16.gmra.mrb[0].mxu0 %v334
  %v523 = vpop.f32.mrb[0].mxu0
  %v524 = vadd.f32 %v427, %v523
  %v525 = vpop.f32.mrb[0].mxu0
  %v526 = vpop.f32.mrb[0].mxu0
  %v527 = vadd.f32 %v430, %v526
  %v528 = vpop.f32.mrb[0].mxu0
  %529 = vdwg.mxu0
  %530 = vst [vmem:[%s2] sm:$0xff] %v468
  %531 = vst [vmem:[%s2 + $0x8] sm:$0xff] %v471
  %532 = vst [vmem:[%s2 + $0x10] sm:$0xff] %v476
  %533 = vst [vmem:[%s2 + $0x18] sm:$0xff] %v479
  %534 = vst [vmem:[%s2 + $0x20] sm:$0xff] %v484
  %535 = vst [vmem:[%s2 + $0x28] sm:$0xff] %v487
  %536 = vst [vmem:[%s2 + $0x30] sm:$0xff] %v492
  %537 = vst [vmem:[%s2 + $0x38] sm:$0xff] %v495
  %538 = vst [vmem:[%s2 + $0x40] sm:$0xff] %v500
  %539 = vst [vmem:[%s2 + $0x48] sm:$0xff] %v503
  %540 = vst [vmem:[%s2 + $0x50] sm:$0xff] %v508
  %541 = vst [vmem:[%s2 + $0x58] sm:$0xff] %v511
  %542 = vst [vmem:[%s2 + $0x60] sm:$0xff] %v516
  %543 = vst [vmem:[%s2 + $0x68] sm:$0xff] %v519
  %544 = vst [vmem:[%s2 + $0x70] sm:$0xff] %v524
  %545 = vst [vmem:[%s2 + $0x78] sm:$0xff] %v527
  %v546 = vadd.f32 %v468, %v471
  %v547 = vadd.f32 %v546, %v476
  %v548 = vadd.f32 %v547, %v479
  %v549 = vadd.f32 %v548, %v484
  %v550 = vadd.f32 %v549, %v487
  %v551 = vadd.f32 %v550, %v492
  %v552 = vadd.f32 %v551, %v495
  %v553 = vadd.f32 %v552, %v500
  %v554 = vadd.f32 %v553, %v503
  %v555 = vadd.f32 %v554, %v508
  %v556 = vadd.f32 %v555, %v511
  %v557 = vadd.f32 %v556, %v516
  %v558 = vadd.f32 %v557, %v519
  %v559 = vadd.f32 %v558, %v524
  %v560 = vadd.f32 %v559, %v527
  %v561 = vrot.slane %v560, 4
  %v562 = vadd.f32 %v560, %v561
  %v563 = vrot.slane %v562, 2
  %v564 = vadd.f32 %v562, %v563
  %v565 = vrot.slane %v564, 1
  %v566 = vadd.f32 %v564, %v565
  %567 = vst [vmem:[%s3] sm:$0x1] %v566
  %v568 = vmul.f32 %v468, %v468
  %v569 = vmul.f32 %v471, %v471
  %v570 = vmul.f32 %v476, %v476
  %v571 = vmul.f32 %v479, %v479
  %v572 = vmul.f32 %v484, %v484
  %v573 = vmul.f32 %v487, %v487
  %v574 = vmul.f32 %v492, %v492
  %v575 = vmul.f32 %v495, %v495
  %v576 = vmul.f32 %v500, %v500
  %v577 = vmul.f32 %v503, %v503
  %v578 = vmul.f32 %v508, %v508
  %v579 = vmul.f32 %v511, %v511
  %v580 = vmul.f32 %v516, %v516
  %v581 = vmul.f32 %v519, %v519
  %v582 = vmul.f32 %v524, %v524
  %v583 = vmul.f32 %v527, %v527
  %v584 = vadd.f32 %v568, %v569
  %v585 = vadd.f32 %v584, %v570
  %v586 = vadd.f32 %v585, %v571
  %v587 = vadd.f32 %v586, %v572
  %v588 = vadd.f32 %v587, %v573
  %v589 = vadd.f32 %v588, %v574
  %v590 = vadd.f32 %v589, %v575
  %v591 = vadd.f32 %v590, %v576
  %v592 = vadd.f32 %v591, %v577
  %v593 = vadd.f32 %v592, %v578
  %v594 = vadd.f32 %v593, %v579
  %v595 = vadd.f32 %v594, %v580
  %v596 = vadd.f32 %v595, %v581
  %v597 = vadd.f32 %v596, %v582
  %v598 = vadd.f32 %v597, %v583
  %v599 = vrot.slane %v598, 4
  %v600 = vadd.f32 %v598, %v599
  %v601 = vrot.slane %v600, 2
  %v602 = vadd.f32 %v600, %v601
  %v603 = vrot.slane %v602, 1
  %v604 = vadd.f32 %v602, %v603
  %605 = vst [vmem:[%s4] sm:$0x1] %v604
  // Predicated region
  $region10: #{_lambda_.27} parent=0 // pred_check
    _
  $region11: #{_lambda_.27} parent=0 // pred_check_branch
    %607 = sbr.rel (0) target = $region13
  $region12: #{_lambda_.27} parent=0 // pred_region
    _
  $region13: #{_lambda_.27} parent=0 // pred_fallthru
    _
  // Predicated region
  $region14: #{_lambda_.27} parent=0 // pred_check
    _
  $region15: #{_lambda_.27} parent=0 // pred_check_branch
    %609 = sbr.rel (0) target = $region17
  $region16: #{_lambda_.27} parent=0 // pred_region
    _
  $region17: #{_lambda_.27} parent=0 // pred_fallthru
    _
  // Predicated region
  $region18: #{_lambda_.27} parent=0 // pred_check
    _
  $region19: #{_lambda_.27} parent=0 // pred_check_branch
    %611 = sbr.rel (0) target = $region21
  $region20: #{_lambda_.27} parent=0 // pred_region
    _
  $region21: #{_lambda_.27} parent=0 // pred_fallthru
    _
  // Predicated region
  $region22: #{_lambda_.27} parent=0 // pred_check
    _
  $region23: #{_lambda_.27} parent=0 // pred_check_branch
    %613 = sbr.rel (0) target = $region25
  $region24: #{_lambda_.27} parent=0 // pred_region
    _
  $region25: #{_lambda_.27} parent=0 // pred_fallthru
    _
  // Predicated region
  $region26: #{_lambda_.27} parent=0 // pred_check
    _
  $region27: #{_lambda_.27} parent=0 // pred_check_branch
    %615 = sbr.rel (0) target = $region29
  $region28: #{_lambda_.27} parent=0 // pred_region
    _
  $region29: #{_lambda_.27} parent=0 // pred_fallthru
    _
  // Predicated region
  $region30: #{_lambda_.27} parent=0 // pred_check
    _
  $region31: #{_lambda_.27} parent=0 // pred_check_branch
    %617 = sbr.rel (0) target = $region33
  $region32: #{_lambda_.27} parent=0 // pred_region
    _
  $region33: #{_lambda_.27} parent=0 // pred_fallthru
    _

// kernel: _lambda_.31
$region0: #{_lambda_.31}
  #allocation0 [shape = 'u32[]', space=smem, size = 0x4, offset = 0x4, fixed_abs, tag = 'smem constant byte address 0x4 - core index']
  #allocation1 [shape = 'u32[144,128]{1,0:T(1,128)}', space=vmem, size = 0x12000, scoped, tag = 'internal scratch']
  %s0 = inlined_call_operand.vmem [shape: f32[2,64,128], index: 0, kind: input, shape index: {}]
  %s1 = inlined_call_operand.vmem [shape: f32[1,1,128], index: 1, kind: input, shape index: {}]
  %s2 = inlined_call_operand.vmem [shape: f32[1,1,128], index: 2, kind: input, shape index: {}]
  %s3 = inlined_call_operand.vmem [shape: f32[128,10], index: 3, kind: input, shape index: {}]
  %s4 = inlined_call_operand.vmem [shape: f32[1,10], index: 4, kind: input, shape index: {}]
  %s5 = inlined_call_operand.hbm [shape: f32[2,10], index: 5, kind: output, shape index: {}]
  %s6 = sld [smem:[#allocation0]]
  $region30: #{_lambda_.31} parent=0
    _
  %s8 = ssub.s32 1, %s6
  %s9 = scalar_select 0, %s8, %s6
  $region1: #{_lambda_.31} parent=0
    #allocation2 [shape = 'u8[1024]{0}', space=vmem, size = 0x400, scoped, tag = 'output window, operand 0, single buffered']
    #allocation3 [shape = 's32[1]{0}', space=sflag, size = 0x4, scoped, tag = 'scoped memory for _lambda_.31']
    %10 = vsyncpa [#allocation3], 0
    // Predicated region
    $region2: #{_lambda_.31} parent=1 // pred_check
      _
    $region3: #{_lambda_.31} parent=1 // pred_check_branch
      %12 = sbr.rel (0) target = $region5
    $region4: #{_lambda_.31} parent=1 // pred_region
      _
    $region5: #{_lambda_.31} parent=1 // pred_fallthru
      _
    // Predicated region
    $region6: #{_lambda_.31} parent=1 // pred_check
      _
    $region7: #{_lambda_.31} parent=1 // pred_check_branch
      %14 = sbr.rel (0) target = $region9
    $region8: #{_lambda_.31} parent=1 // pred_region
      _
    $region9: #{_lambda_.31} parent=1 // pred_fallthru
      _
    // Predicated region
    $region10: #{_lambda_.31} parent=1 // pred_check
      _
    $region11: #{_lambda_.31} parent=1 // pred_check_branch
      %16 = sbr.rel (0) target = $region13
    $region12: #{_lambda_.31} parent=1 // pred_region
      _
    $region13: #{_lambda_.31} parent=1 // pred_fallthru
      _
    // Predicated region
    $region14: #{_lambda_.31} parent=1 // pred_check
      _
    $region15: #{_lambda_.31} parent=1 // pred_check_branch
      %18 = sbr.rel (0) target = $region17
    $region16: #{_lambda_.31} parent=1 // pred_region
      _
    $region17: #{_lambda_.31} parent=1 // pred_fallthru
      _
    // Predicated region
    $region18: #{_lambda_.31} parent=1 // pred_check
      _
    $region19: #{_lambda_.31} parent=1 // pred_check_branch
      %20 = sbr.rel (0) target = $region21
    $region20: #{_lambda_.31} parent=1 // pred_region
      _
    $region21: #{_lambda_.31} parent=1 // pred_fallthru
      _
    %v21 = vld [vmem:[%s0] sm:$0xff]
    %v22 = vld [vmem:[%s0 + $0x8] sm:$0xff]
    %v23 = vld [vmem:[%s0 + $0x10] sm:$0xff]
    %v24 = vld [vmem:[%s0 + $0x18] sm:$0xff]
    %v25 = vld [vmem:[%s0 + $0x20] sm:$0xff]
    %v26 = vld [vmem:[%s0 + $0x28] sm:$0xff]
    %v27 = vld [vmem:[%s0 + $0x30] sm:$0xff]
    %v28 = vld [vmem:[%s0 + $0x38] sm:$0xff]
    %v29 = vld [vmem:[%s0 + $0x40] sm:$0xff]
    %v30 = vld [vmem:[%s0 + $0x48] sm:$0xff]
    %v31 = vld [vmem:[%s0 + $0x50] sm:$0xff]
    %v32 = vld [vmem:[%s0 + $0x58] sm:$0xff]
    %v33 = vld [vmem:[%s0 + $0x60] sm:$0xff]
    %v34 = vld [vmem:[%s0 + $0x68] sm:$0xff]
    %v35 = vld [vmem:[%s0 + $0x70] sm:$0xff]
    %v36 = vld [vmem:[%s0 + $0x78] sm:$0xff]
    %v37 = vld [vmem:[%s1] sm:$0x1]
    %v39 = vlaneseq
    %v40 = vshrl.u32 %v39, 7
    %v41 = vsub.s32 0, %v40
    %v42 = vrot.slane %v37, %v41
    %v44 = vmul.f32 %v21, %v42
    %v45 = vmul.f32 %v22, %v42
    %v46 = vmul.f32 %v23, %v42
    %v47 = vmul.f32 %v24, %v42
    %v48 = vmul.f32 %v25, %v42
    %v49 = vmul.f32 %v26, %v42
    %v50 = vmul.f32 %v27, %v42
    %v51 = vmul.f32 %v28, %v42
    %v52 = vmul.f32 %v29, %v42
    %v53 = vmul.f32 %v30, %v42
    %v54 = vmul.f32 %v31, %v42
    %v55 = vmul.f32 %v32, %v42
    %v56 = vmul.f32 %v33, %v42
    %v57 = vmul.f32 %v34, %v42
    %v58 = vmul.f32 %v35, %v42
    %v59 = vmul.f32 %v36, %v42
    %v60 = vld [vmem:[%s2] sm:$0x1]
    %v62 = vlaneseq
    %v63 = vshrl.u32 %v62, 7
    %v64 = vsub.s32 0, %v63
    %v65 = vrot.slane %v60, %v64
    %v67 = vadd.f32 %v44, %v65
    %v68 = vadd.f32 %v45, %v65
    %v69 = vadd.f32 %v46, %v65
    %v70 = vadd.f32 %v47, %v65
    %v71 = vadd.f32 %v48, %v65
    %v72 = vadd.f32 %v49, %v65
    %v73 = vadd.f32 %v50, %v65
    %v74 = vadd.f32 %v51, %v65
    %v75 = vadd.f32 %v52, %v65
    %v76 = vadd.f32 %v53, %v65
    %v77 = vadd.f32 %v54, %v65
    %v78 = vadd.f32 %v55, %v65
    %v79 = vadd.f32 %v56, %v65
    %v80 = vadd.f32 %v57, %v65
    %v81 = vadd.f32 %v58, %v65
    %v82 = vadd.f32 %v59, %v65
    %v83 = vmax.f32 %v67, 0.0
    %v84 = vmax.f32 %v68, 0.0
    %v85 = vmax.f32 %v69, 0.0
    %v86 = vmax.f32 %v70, 0.0
    %v87 = vmax.f32 %v71, 0.0
    %v88 = vmax.f32 %v72, 0.0
    %v89 = vmax.f32 %v73, 0.0
    %v90 = vmax.f32 %v74, 0.0
    %v91 = vmax.f32 %v75, 0.0
    %v92 = vmax.f32 %v76, 0.0
    %v93 = vmax.f32 %v77, 0.0
    %v94 = vmax.f32 %v78, 0.0
    %v95 = vmax.f32 %v79, 0.0
    %v96 = vmax.f32 %v80, 0.0
    %v97 = vmax.f32 %v81, 0.0
    %v98 = vmax.f32 %v82, 0.0
    %v99 = vadd.f32 %v83, %v84
    %v100 = vadd.f32 %v99, %v85
    %v101 = vadd.f32 %v100, %v86
    %v102 = vadd.f32 %v101, %v87
    %v103 = vadd.f32 %v102, %v88
    %v104 = vadd.f32 %v103, %v89
    %v105 = vadd.f32 %v104, %v90
    %v106 = vrot.slane %v105, 4
    %v107 = vadd.f32 %v105, %v106
    %v108 = vrot.slane %v107, 2
    %v109 = vadd.f32 %v107, %v108
    %v110 = vrot.slane %v109, 1
    %v111 = vadd.f32 %v109, %v110
    %v112 = vadd.f32 %v91, %v92
    %v113 = vadd.f32 %v112, %v93
    %v114 = vadd.f32 %v113, %v94
    %v115 = vadd.f32 %v114, %v95
    %v116 = vadd.f32 %v115, %v96
    %v117 = vadd.f32 %v116, %v97
    %v118 = vadd.f32 %v117, %v98
    %v119 = vrot.slane %v118, 4
    %v120 = vadd.f32 %v118, %v119
    %v121 = vrot.slane %v120, 2
    %v122 = vadd.f32 %v120, %v121
    %v123 = vrot.slane %v122, 1
    %v124 = vadd.f32 %v122, %v123
    %v125 = vrcp.pop 64.0
    %v126 = vmul.f32 %v111, %v125
    %v127 = vmul.f32 %v124, %v125
    %v128 = vld [vmem:[%s3] sm:$0xff]
    %v129 = vld [vmem:[%s3 + $0x8] sm:$0xff]
    %v130 = vld [vmem:[%s3 + $0x10] sm:$0xff]
    %v131 = vld [vmem:[%s3 + $0x18] sm:$0xff]
    %v132 = vld [vmem:[%s3 + $0x20] sm:$0xff]
    %v133 = vld [vmem:[%s3 + $0x28] sm:$0xff]
    %v134 = vld [vmem:[%s3 + $0x30] sm:$0xff]
    %v135 = vld [vmem:[%s3 + $0x38] sm:$0xff]
    %v136 = vld [vmem:[%s3 + $0x40] sm:$0xff]
    %v137 = vld [vmem:[%s3 + $0x48] sm:$0xff]
    %v138 = vld [vmem:[%s3 + $0x50] sm:$0xff]
    %v139 = vld [vmem:[%s3 + $0x58] sm:$0xff]
    %v140 = vld [vmem:[%s3 + $0x60] sm:$0xff]
    %v141 = vld [vmem:[%s3 + $0x68] sm:$0xff]
    %v142 = vld [vmem:[%s3 + $0x70] sm:$0xff]
    %v143 = vld [vmem:[%s3 + $0x78] sm:$0xff]
    %v144 = vld [vmem:[%s4] sm:$0x1]
    %v146 = vlaneseq
    %v147 = vshrl.u32 %v146, 7
    %v148 = vsub.s32 0, %v147
    %v149 = vrot.slane %v144, %v148
    %vm153 = vcmask 1041409
    %v154 = vsel %vm153, %v127, %v126
    %156 = vmatprep.subr.mxu0 0.0
    %157 = vmatpush1.msra.mxu0 %v128
    %158 = vmatprep.subr.mxu0 0.0
    %159 = vmatpush1.msra.mxu0 %v129
    %160 = vmatprep.subr.mxu0 0.0
    %161 = vmatpush1.msra.mxu0 %v130
    %162 = vmatprep.subr.mxu0 0.0
    %163 = vmatpush1.msra.mxu0 %v131
    %164 = vmatprep.subr.mxu0 0.0
    %165 = vmatpush1.msra.mxu0 %v132
    %166 = vmatprep.subr.mxu0 0.0
    %167 = vmatpush1.msra.mxu0 %v133
    %168 = vmatprep.subr.mxu0 0.0
    %169 = vmatpush1.msra.mxu0 %v134
    %170 = vmatprep.subr.mxu0 0.0
    %171 = vmatpush1.msra.mxu0 %v135
    %172 = vmatprep.subr.mxu0 0.0
    %173 = vmatpush1.msra.mxu0 %v136
    %174 = vmatprep.subr.mxu0 0.0
    %175 = vmatpush1.msra.mxu0 %v137
    %176 = vmatprep.subr.mxu0 0.0
    %177 = vmatpush1.msra.mxu0 %v138
    %178 = vmatprep.subr.mxu0 0.0
    %179 = vmatpush1.msra.mxu0 %v139
    %180 = vmatprep.subr.mxu0 0.0
    %181 = vmatpush1.msra.mxu0 %v140
    %182 = vmatprep.subr.mxu0 0.0
    %183 = vmatpush1.msra.mxu0 %v141
    %184 = vmatprep.subr.mxu0 0.0
    %185 = vmatpush1.msra.mxu0 %v142
    %186 = vmatprep.subr.mxu0 0.0
    %187 = vmatpush1.msra.mxu0 %v143
    %188 = vmatprep.subr.mxu0 0.0
    %189 = vmatpush1.msra.mxu0 0.0
    %190 = vmatprep.subr.mxu0 0.0
    %191 = vmatpush1.msra.mxu0 0.0
    %192 = vmatprep.subr.mxu0 0.0
    %193 = vmatpush1.msra.mxu0 0.0
    %194 = vmatprep.subr.mxu0 0.0
    %195 = vmatpush1.msra.mxu0 0.0
    %196 = vmatprep.subr.mxu0 0.0
    %197 = vmatpush1.msra.mxu0 0.0
    %198 = vmatprep.subr.mxu0 0.0
    %199 = vmatpush1.msra.mxu0 0.0
    %200 = vmatprep.subr.mxu0 0.0
    %201 = vmatpush1.msra.mxu0 0.0
    %202 = vmatprep.subr.mxu0 0.0
    %203 = vmatpush1.msra.mxu0 0.0
    %204 = vmatprep.subr.mxu0 0.0
    %205 = vmatpush1.msra.mxu0 0.0
    %206 = vmatprep.subr.mxu0 0.0
    %207 = vmatpush1.msra.mxu0 0.0
    %208 = vmatprep.subr.mxu0 0.0
    %209 = vmatpush1.msra.mxu0 0.0
    %210 = vmatprep.subr.mxu0 0.0
    %211 = vmatpush1.msra.mxu0 0.0
    %212 = vmatprep.subr.mxu0 0.0
    %213 = vmatpush1.msra.mxu0 0.0
    %214 = vmatprep.subr.mxu0 0.0
    %215 = vmatpush1.msra.mxu0 0.0
    %216 = vmatprep.subr.mxu0 0.0
    %217 = vmatpush1.msra.mxu0 0.0
    %218 = vmatprep.subr.mxu0 0.0
    %219 = vmatpush1.msra.mxu0 0.0
    %220 = vmatprep.mubr.f32.mxu0 0.0
    %221 = vmatmul.mubr.f32.gmra.mrb[0].mxu0 %v154
    %v222 = vpop.f32.mrb[0].mxu0
    %v223 = vadd.f32 %v149, %v222
    %v224 = vpop.f32.mrb[0].mxu0
    %225 = vdwg.mxu0
    %vm226 = vcmask 74752
    %227 = vst.msk [vmem:[#allocation2] sm:$0x3] %vm226, %v223
    // Predicated region
    $region22: #{_lambda_.31} parent=1 // pred_check
      _
    $region23: #{_lambda_.31} parent=1 // pred_check_branch
      %229 = sbr.rel (0) target = $region25
    $region24: #{_lambda_.31} parent=1 // pred_region
      %s231 = ssub.s32 32, 32
      %232 = vsyncadd [#allocation3], %s231
      %s234 = sshll.u32 [#allocation2], 4
      %s235 = int_to_ptr.vmem [resolvable:$true] %s234
      %237 = dma.vmem_to_hbm [thread:$0]  %s235, 32, %s5, [#allocation3]
    $region25: #{_lambda_.31} parent=1 // pred_fallthru
      _
    // Predicated region
    $region26: #{_lambda_.31} parent=1 // pred_check
      _
    $region27: #{_lambda_.31} parent=1 // pred_check_branch
      %239 = sbr.rel (0) target = $region29
    $region28: #{_lambda_.31} parent=1 // pred_region
      %240 = dma.done [#allocation3], 32
    $region29: #{_lambda_.31} parent=1 // pred_fallthru
      _
    %241 = vsyncpa [#allocation3], 1

// kernel: _lambda_.30
$region0: #{_lambda_.30}
  #allocation0 [shape = 'u32[]', space=smem, size = 0x4, offset = 0x4, fixed_abs, tag = 'smem constant byte address 0x4 - core index']
  #allocation1 [shape = 'u32[144,128]{1,0:T(1,128)}', space=vmem, size = 0x12000, scoped, tag = 'internal scratch']
  %s0 = inlined_call_operand.vmem [shape: bf16[128,576], index: 0, kind: input, shape index: {}]
  %s1 = inlined_call_operand.vmem [shape: bf16[576,128], index: 1, kind: input, shape index: {}]
  %s2 = inlined_call_operand.vmem [shape: f32[128,128], index: 2, kind: input, shape index: {}]
  %s3 = inlined_call_operand.vmem [shape: f32[1,128], index: 3, kind: input, shape index: {}]
  %s4 = inlined_call_operand.vmem [shape: f32[1,128], index: 4, kind: input, shape index: {}]
  %s5 = inlined_call_operand.vmem [shape: f32[128,128], index: 5, kind: output, shape index: {0}]
  %s6 = inlined_call_operand.vmem [shape: f32[1,1,128], index: 6, kind: output, shape index: {1}]
  %s7 = inlined_call_operand.vmem [shape: f32[1,1,128], index: 7, kind: output, shape index: {2}]
  %8 = xla_tuple %s5, %s6, %s7
  %s9 = sld [smem:[#allocation0]]
  $region46: #{_lambda_.30} parent=0
    _
  %s11 = ssub.s32 1, %s9
  %s12 = scalar_select 0, %s11, %s9
  // Predicated region
  $region2: #{_lambda_.30} parent=0 // pred_check
    _
  $region3: #{_lambda_.30} parent=0 // pred_check_branch
    %14 = sbr.rel (0) target = $region5
  $region4: #{_lambda_.30} parent=0 // pred_region
    _
  $region5: #{_lambda_.30} parent=0 // pred_fallthru
    _
  // Predicated region
  $region6: #{_lambda_.30} parent=0 // pred_check
    _
  $region7: #{_lambda_.30} parent=0 // pred_check_branch
    %16 = sbr.rel (0) target = $region9
  $region8: #{_lambda_.30} parent=0 // pred_region
    _
  $region9: #{_lambda_.30} parent=0 // pred_fallthru
    _
  // Predicated region
  $region10: #{_lambda_.30} parent=0 // pred_check
    _
  $region11: #{_lambda_.30} parent=0 // pred_check_branch
    %18 = sbr.rel (0) target = $region13
  $region12: #{_lambda_.30} parent=0 // pred_region
    _
  $region13: #{_lambda_.30} parent=0 // pred_fallthru
    _
  // Predicated region
  $region14: #{_lambda_.30} parent=0 // pred_check
    _
  $region15: #{_lambda_.30} parent=0 // pred_check_branch
    %20 = sbr.rel (0) target = $region17
  $region16: #{_lambda_.30} parent=0 // pred_region
    _
  $region17: #{_lambda_.30} parent=0 // pred_fallthru
    _
  // Predicated region
  $region18: #{_lambda_.30} parent=0 // pred_check
    _
  $region19: #{_lambda_.30} parent=0 // pred_check_branch
    %22 = sbr.rel (0) target = $region21
  $region20: #{_lambda_.30} parent=0 // pred_region
    _
  $region21: #{_lambda_.30} parent=0 // pred_fallthru
    _
  %v24 = vld [vmem:[%s0] sm:$0xff]
  %v25 = vld [vmem:[%s0 + $0x8] sm:$0xff]
  %v26 = vld [vmem:[%s0 + $0x10] sm:$0xf]
  %v27 = vld [vmem:[%s0 + $0x14] sm:$0xff]
  %v28 = vld [vmem:[%s0 + $0x1c] sm:$0xff]
  %v29 = vld [vmem:[%s0 + $0x24] sm:$0xf]
  %v30 = vld [vmem:[%s0 + $0x28] sm:$0xff]
  %v31 = vld [vmem:[%s0 + $0x30] sm:$0xff]
  %v32 = vld [vmem:[%s0 + $0x38] sm:$0xf]
  %v33 = vld [vmem:[%s0 + $0x3c] sm:$0xff]
  %v34 = vld [vmem:[%s0 + $0x44] sm:$0xff]
  %v35 = vld [vmem:[%s0 + $0x4c] sm:$0xf]
  %v36 = vld [vmem:[%s0 + $0x50] sm:$0xff]
  %v37 = vld [vmem:[%s0 + $0x58] sm:$0xff]
  %v38 = vld [vmem:[%s0 + $0x60] sm:$0xf]
  %v39 = vld [vmem:[%s0 + $0x64] sm:$0xff]
  %v40 = vld [vmem:[%s0 + $0x6c] sm:$0xff]
  %v41 = vld [vmem:[%s0 + $0x74] sm:$0xf]
  %v42 = vld [vmem:[%s0 + $0x78] sm:$0xff]
  %v43 = vld [vmem:[%s0 + $0x80] sm:$0xff]
  %v44 = vld [vmem:[%s0 + $0x88] sm:$0xf]
  %v45 = vld [vmem:[%s0 + $0x8c] sm:$0xff]
  %v46 = vld [vmem:[%s0 + $0x94] sm:$0xff]
  %v47 = vld [vmem:[%s0 + $0x9c] sm:$0xf]
  %v48 = vld [vmem:[%s0 + $0xa0] sm:$0xff]
  %v49 = vld [vmem:[%s0 + $0xa8] sm:$0xff]
  %v50 = vld [vmem:[%s0 + $0xb0] sm:$0xf]
  %v51 = vld [vmem:[%s0 + $0xb4] sm:$0xff]
  %v52 = vld [vmem:[%s0 + $0xbc] sm:$0xff]
  %v53 = vld [vmem:[%s0 + $0xc4] sm:$0xf]
  %v54 = vld [vmem:[%s0 + $0xc8] sm:$0xff]
  %v55 = vld [vmem:[%s0 + $0xd0] sm:$0xff]
  %v56 = vld [vmem:[%s0 + $0xd8] sm:$0xf]
  %v57 = vld [vmem:[%s0 + $0xdc] sm:$0xff]
  %v58 = vld [vmem:[%s0 + $0xe4] sm:$0xff]
  %v59 = vld [vmem:[%s0 + $0xec] sm:$0xf]
  %v60 = vld [vmem:[%s0 + $0xf0] sm:$0xff]
  %v61 = vld [vmem:[%s0 + $0xf8] sm:$0xff]
  %v62 = vld [vmem:[%s0 + $0x100] sm:$0xf]
  %v63 = vld [vmem:[%s0 + $0x104] sm:$0xff]
  %v64 = vld [vmem:[%s0 + $0x10c] sm:$0xff]
  %v65 = vld [vmem:[%s0 + $0x114] sm:$0xf]
  %v66 = vld [vmem:[%s0 + $0x118] sm:$0xff]
  %v67 = vld [vmem:[%s0 + $0x120] sm:$0xff]
  %v68 = vld [vmem:[%s0 + $0x128] sm:$0xf]
  %v69 = vld [vmem:[%s0 + $0x12c] sm:$0xff]
  %v70 = vld [vmem:[%s0 + $0x134] sm:$0xff]
  %v71 = vld [vmem:[%s0 + $0x13c] sm:$0xf]
  %v72 = vld [vmem:[%s1] sm:$0xf]
  %v73 = vld [vmem:[%s1 + $0x4] sm:$0xf]
  %v74 = vld [vmem:[%s1 + $0x8] sm:$0xf]
  %v75 = vld [vmem:[%s1 + $0xc] sm:$0xf]
  %v76 = vld [vmem:[%s1 + $0x10] sm:$0xf]
  %v77 = vld [vmem:[%s1 + $0x14] sm:$0xf]
  %v78 = vld [vmem:[%s1 + $0x18] sm:$0xf]
  %v79 = vld [vmem:[%s1 + $0x1c] sm:$0xf]
  %v80 = vld [vmem:[%s1 + $0x20] sm:$0xf]
  %v81 = vld [vmem:[%s1 + $0x24] sm:$0xf]
  %v82 = vld [vmem:[%s1 + $0x28] sm:$0xf]
  %v83 = vld [vmem:[%s1 + $0x2c] sm:$0xf]
  %v84 = vld [vmem:[%s1 + $0x30] sm:$0xf]
  %v85 = vld [vmem:[%s1 + $0x34] sm:$0xf]
  %v86 = vld [vmem:[%s1 + $0x38] sm:$0xf]
  %v87 = vld [vmem:[%s1 + $0x3c] sm:$0xf]
  %v88 = vld [vmem:[%s1 + $0x40] sm:$0xf]
  %v89 = vld [vmem:[%s1 + $0x44] sm:$0xf]
  %v90 = vld [vmem:[%s1 + $0x48] sm:$0xf]
  %v91 = vld [vmem:[%s1 + $0x4c] sm:$0xf]
  %v92 = vld [vmem:[%s1 + $0x50] sm:$0xf]
  %v93 = vld [vmem:[%s1 + $0x54] sm:$0xf]
  %v94 = vld [vmem:[%s1 + $0x58] sm:$0xf]
  %v95 = vld [vmem:[%s1 + $0x5c] sm:$0xf]
  %v96 = vld [vmem:[%s1 + $0x60] sm:$0xf]
  %v97 = vld [vmem:[%s1 + $0x64] sm:$0xf]
  %v98 = vld [vmem:[%s1 + $0x68] sm:$0xf]
  %v99 = vld [vmem:[%s1 + $0x6c] sm:$0xf]
  %v100 = vld [vmem:[%s1 + $0x70] sm:$0xf]
  %v101 = vld [vmem:[%s1 + $0x74] sm:$0xf]
  %v102 = vld [vmem:[%s1 + $0x78] sm:$0xf]
  %v103 = vld [vmem:[%s1 + $0x7c] sm:$0xf]
  %v104 = vld [vmem:[%s1 + $0x80] sm:$0xf]
  %v105 = vld [vmem:[%s1 + $0x84] sm:$0xf]
  %v106 = vld [vmem:[%s1 + $0x88] sm:$0xf]
  %v107 = vld [vmem:[%s1 + $0x8c] sm:$0xf]
  %v108 = vld [vmem:[%s1 + $0x90] sm:$0xf]
  %v109 = vld [vmem:[%s1 + $0x94] sm:$0xf]
  %v110 = vld [vmem:[%s1 + $0x98] sm:$0xf]
  %v111 = vld [vmem:[%s1 + $0x9c] sm:$0xf]
  %v112 = vld [vmem:[%s1 + $0xa0] sm:$0xf]
  %v113 = vld [vmem:[%s1 + $0xa4] sm:$0xf]
  %v114 = vld [vmem:[%s1 + $0xa8] sm:$0xf]
  %v115 = vld [vmem:[%s1 + $0xac] sm:$0xf]
  %v116 = vld [vmem:[%s1 + $0xb0] sm:$0xf]
  %v117 = vld [vmem:[%s1 + $0xb4] sm:$0xf]
  %v118 = vld [vmem:[%s1 + $0xb8] sm:$0xf]
  %v119 = vld [vmem:[%s1 + $0xbc] sm:$0xf]
  %v120 = vld [vmem:[%s1 + $0xc0] sm:$0xf]
  %v121 = vld [vmem:[%s1 + $0xc4] sm:$0xf]
  %v122 = vld [vmem:[%s1 + $0xc8] sm:$0xf]
  %v123 = vld [vmem:[%s1 + $0xcc] sm:$0xf]
  %v124 = vld [vmem:[%s1 + $0xd0] sm:$0xf]
  %v125 = vld [vmem:[%s1 + $0xd4] sm:$0xf]
  %v126 = vld [vmem:[%s1 + $0xd8] sm:$0xf]
  %v127 = vld [vmem:[%s1 + $0xdc] sm:$0xf]
  %v128 = vld [vmem:[%s1 + $0xe0] sm:$0xf]
  %v129 = vld [vmem:[%s1 + $0xe4] sm:$0xf]
  %v130 = vld [vmem:[%s1 + $0xe8] sm:$0xf]
  %v131 = vld [vmem:[%s1 + $0xec] sm:$0xf]
  %v132 = vld [vmem:[%s1 + $0xf0] sm:$0xf]
  %v133 = vld [vmem:[%s1 + $0xf4] sm:$0xf]
  %v134 = vld [vmem:[%s1 + $0xf8] sm:$0xf]
  %v135 = vld [vmem:[%s1 + $0xfc] sm:$0xf]
  %v136 = vld [vmem:[%s1 + $0x100] sm:$0xf]
  %v137 = vld [vmem:[%s1 + $0x104] sm:$0xf]
  %v138 = vld [vmem:[%s1 + $0x108] sm:$0xf]
  %v139 = vld [vmem:[%s1 + $0x10c] sm:$0xf]
  %v140 = vld [vmem:[%s1 + $0x110] sm:$0xf]
  %v141 = vld [vmem:[%s1 + $0x114] sm:$0xf]
  %v142 = vld [vmem:[%s1 + $0x118] sm:$0xf]
  %v143 = vld [vmem:[%s1 + $0x11c] sm:$0xf]
  %v144 = vld [vmem:[%s2] sm:$0xff]
  %v145 = vld [vmem:[%s2 + $0x8] sm:$0xff]
  %v146 = vld [vmem:[%s2 + $0x10] sm:$0xff]
  %v147 = vld [vmem:[%s2 + $0x18] sm:$0xff]
  %v148 = vld [vmem:[%s2 + $0x20] sm:$0xff]
  %v149 = vld [vmem:[%s2 + $0x28] sm:$0xff]
  %v150 = vld [vmem:[%s2 + $0x30] sm:$0xff]
  %v151 = vld [vmem:[%s2 + $0x38] sm:$0xff]
  %v152 = vld [vmem:[%s2 + $0x40] sm:$0xff]
  %v153 = vld [vmem:[%s2 + $0x48] sm:$0xff]
  %v154 = vld [vmem:[%s2 + $0x50] sm:$0xff]
  %v155 = vld [vmem:[%s2 + $0x58] sm:$0xff]
  %v156 = vld [vmem:[%s2 + $0x60] sm:$0xff]
  %v157 = vld [vmem:[%s2 + $0x68] sm:$0xff]
  %v158 = vld [vmem:[%s2 + $0x70] sm:$0xff]
  %v159 = vld [vmem:[%s2 + $0x78] sm:$0xff]
  %v160 = vld [vmem:[%s3] sm:$0x1]
  %v162 = vlaneseq
  %v163 = vshrl.u32 %v162, 7
  %v164 = vsub.s32 0, %v163
  %v165 = vrot.slane %v160, %v164
  %v167 = vmul.f32 %v144, %v165
  %v168 = vmul.f32 %v145, %v165
  %v169 = vmul.f32 %v146, %v165
  %v170 = vmul.f32 %v147, %v165
  %v171 = vmul.f32 %v148, %v165
  %v172 = vmul.f32 %v149, %v165
  %v173 = vmul.f32 %v150, %v165
  %v174 = vmul.f32 %v151, %v165
  %v175 = vmul.f32 %v152, %v165
  %v176 = vmul.f32 %v153, %v165
  %v177 = vmul.f32 %v154, %v165
  %v178 = vmul.f32 %v155, %v165
  %v179 = vmul.f32 %v156, %v165
  %v180 = vmul.f32 %v157, %v165
  %v181 = vmul.f32 %v158, %v165
  %v182 = vmul.f32 %v159, %v165
  %v231 = vunpack.c.l.b16 %v24
  %v232 = vunpack.c.h.b16 %v24
  %v233 = vunpack.c.l.b16 %v25
  %v234 = vunpack.c.h.b16 %v25
  %v235 = vunpack.c.l.b16 %v26
  %v236 = vunpack.c.l.b16 %v27
  %v237 = vunpack.c.h.b16 %v27
  %v238 = vunpack.c.l.b16 %v28
  %v239 = vunpack.c.h.b16 %v28
  %v240 = vunpack.c.l.b16 %v29
  %v241 = vunpack.c.l.b16 %v30
  %v242 = vunpack.c.h.b16 %v30
  %v243 = vunpack.c.l.b16 %v31
  %v244 = vunpack.c.h.b16 %v31
  %v245 = vunpack.c.l.b16 %v32
  %v246 = vunpack.c.l.b16 %v33
  %v247 = vunpack.c.h.b16 %v33
  %v248 = vunpack.c.l.b16 %v34
  %v249 = vunpack.c.h.b16 %v34
  %v250 = vunpack.c.l.b16 %v35
  %v251 = vunpack.c.l.b16 %v36
  %v252 = vunpack.c.h.b16 %v36
  %v253 = vunpack.c.l.b16 %v37
  %v254 = vunpack.c.h.b16 %v37
  %v255 = vunpack.c.l.b16 %v38
  %v256 = vunpack.c.l.b16 %v39
  %v257 = vunpack.c.h.b16 %v39
  %v258 = vunpack.c.l.b16 %v40
  %v259 = vunpack.c.h.b16 %v40
  %v260 = vunpack.c.l.b16 %v41
  %v261 = vunpack.c.l.b16 %v42
  %v262 = vunpack.c.h.b16 %v42
  %v263 = vunpack.c.l.b16 %v43
  %v264 = vunpack.c.h.b16 %v43
  %v265 = vunpack.c.l.b16 %v44
  %v266 = vunpack.c.l.b16 %v45
  %v267 = vunpack.c.h.b16 %v45
  %v268 = vunpack.c.l.b16 %v46
  %v269 = vunpack.c.h.b16 %v46
  %v270 = vunpack.c.l.b16 %v47
  %v271 = vunpack.c.l.b16 %v48
  %v272 = vunpack.c.h.b16 %v48
  %v273 = vunpack.c.l.b16 %v49
  %v274 = vunpack.c.h.b16 %v49
  %v275 = vunpack.c.l.b16 %v50
  %v276 = vunpack.c.l.b16 %v51
  %v277 = vunpack.c.h.b16 %v51
  %v278 = vunpack.c.l.b16 %v52
  %v279 = vunpack.c.h.b16 %v52
  %v280 = vunpack.c.l.b16 %v53
  %v281 = vunpack.c.l.b16 %v54
  %v282 = vunpack.c.h.b16 %v54
  %v283 = vunpack.c.l.b16 %v55
  %v284 = vunpack.c.h.b16 %v55
  %v285 = vunpack.c.l.b16 %v56
  %v286 = vunpack.c.l.b16 %v57
  %v287 = vunpack.c.h.b16 %v57
  %v288 = vunpack.c.l.b16 %v58
  %v289 = vunpack.c.h.b16 %v58
  %v290 = vunpack.c.l.b16 %v59
  %v291 = vunpack.c.l.b16 %v60
  %v292 = vunpack.c.h.b16 %v60
  %v293 = vunpack.c.l.b16 %v61
  %v294 = vunpack.c.h.b16 %v61
  %v295 = vunpack.c.l.b16 %v62
  %v296 = vunpack.c.l.b16 %v63
  %v297 = vunpack.c.h.b16 %v63
  %v298 = vunpack.c.l.b16 %v64
  %v299 = vunpack.c.h.b16 %v64
  %v300 = vunpack.c.l.b16 %v65
  %v301 = vunpack.c.l.b16 %v66
  %v302 = vunpack.c.h.b16 %v66
  %v303 = vunpack.c.l.b16 %v67
  %v304 = vunpack.c.h.b16 %v67
  %v305 = vunpack.c.l.b16 %v68
  %v306 = vunpack.c.l.b16 %v69
  %v307 = vunpack.c.h.b16 %v69
  %v308 = vunpack.c.l.b16 %v70
  %v309 = vunpack.c.h.b16 %v70
  %v310 = vunpack.c.l.b16 %v71
  %v311 = vpack.c.b16 %v236, %v231
  %v312 = vpack.c.b16 %v237, %v232
  %v313 = vpack.c.b16 %v238, %v233
  %v314 = vpack.c.b16 %v239, %v234
  %v315 = vpack.c.b16 %v240, %v235
  %v316 = vpack.c.b16 %v246, %v241
  %v317 = vpack.c.b16 %v247, %v242
  %v318 = vpack.c.b16 %v248, %v243
  %v319 = vpack.c.b16 %v249, %v244
  %v320 = vpack.c.b16 %v250, %v245
  %v321 = vpack.c.b16 %v256, %v251
  %v322 = vpack.c.b16 %v257, %v252
  %v323 = vpack.c.b16 %v258, %v253
  %v324 = vpack.c.b16 %v259, %v254
  %v325 = vpack.c.b16 %v260, %v255
  %v326 = vpack.c.b16 %v266, %v261
  %v327 = vpack.c.b16 %v267, %v262
  %v328 = vpack.c.b16 %v268, %v263
  %v329 = vpack.c.b16 %v269, %v264
  %v330 = vpack.c.b16 %v270, %v265
  %v331 = vpack.c.b16 %v276, %v271
  %v332 = vpack.c.b16 %v277, %v272
  %v333 = vpack.c.b16 %v278, %v273
  %v334 = vpack.c.b16 %v279, %v274
  %v335 = vpack.c.b16 %v280, %v275
  %v336 = vpack.c.b16 %v286, %v281
  %v337 = vpack.c.b16 %v287, %v282
  %v338 = vpack.c.b16 %v288, %v283
  %v339 = vpack.c.b16 %v289, %v284
  %v340 = vpack.c.b16 %v290, %v285
  %v341 = vpack.c.b16 %v296, %v291
  %v342 = vpack.c.b16 %v297, %v292
  %v343 = vpack.c.b16 %v298, %v293
  %v344 = vpack.c.b16 %v299, %v294
  %v345 = vpack.c.b16 %v300, %v295
  %v346 = vpack.c.b16 %v306, %v301
  %v347 = vpack.c.b16 %v307, %v302
  %v348 = vpack.c.b16 %v308, %v303
  %v349 = vpack.c.b16 %v309, %v304
  %v350 = vpack.c.b16 %v310, %v305
  %v455 = vunpack.c.l.b16 %v72
  %v456 = vunpack.c.l.b16 %v73
  %v457 = vunpack.c.l.b16 %v74
  %v458 = vunpack.c.l.b16 %v75
  %v459 = vunpack.c.l.b16 %v76
  %v460 = vunpack.c.l.b16 %v77
  %v461 = vunpack.c.l.b16 %v78
  %v462 = vunpack.c.l.b16 %v79
  %v463 = vunpack.c.l.b16 %v80
  %v464 = vunpack.c.l.b16 %v81
  %v465 = vunpack.c.l.b16 %v82
  %v466 = vunpack.c.l.b16 %v83
  %v467 = vunpack.c.l.b16 %v84
  %v468 = vunpack.c.l.b16 %v85
  %v469 = vunpack.c.l.b16 %v86
  %v470 = vunpack.c.l.b16 %v87
  %v471 = vunpack.c.l.b16 %v88
  %v472 = vunpack.c.l.b16 %v89
  %v473 = vunpack.c.l.b16 %v90
  %v474 = vunpack.c.l.b16 %v91
  %v475 = vunpack.c.l.b16 %v92
  %v476 = vunpack.c.l.b16 %v93
  %v477 = vunpack.c.l.b16 %v94
  %v478 = vunpack.c.l.b16 %v95
  %v479 = vunpack.c.l.b16 %v96
  %v480 = vunpack.c.l.b16 %v97
  %v481 = vunpack.c.l.b16 %v98
  %v482 = vunpack.c.l.b16 %v99
  %v483 = vunpack.c.l.b16 %v100
  %v484 = vunpack.c.l.b16 %v101
  %v485 = vunpack.c.l.b16 %v102
  %v486 = vunpack.c.l.b16 %v103
  %v487 = vunpack.c.l.b16 %v104
  %v488 = vunpack.c.l.b16 %v105
  %v489 = vunpack.c.l.b16 %v106
  %v490 = vunpack.c.l.b16 %v107
  %v491 = vunpack.c.l.b16 %v108
  %v492 = vunpack.c.l.b16 %v109
  %v493 = vunpack.c.l.b16 %v110
  %v494 = vunpack.c.l.b16 %v111
  %v495 = vunpack.c.l.b16 %v112
  %v496 = vunpack.c.l.b16 %v113
  %v497 = vunpack.c.l.b16 %v114
  %v498 = vunpack.c.l.b16 %v115
  %v499 = vunpack.c.l.b16 %v116
  %v500 = vunpack.c.l.b16 %v117
  %v501 = vunpack.c.l.b16 %v118
  %v502 = vunpack.c.l.b16 %v119
  %v503 = vunpack.c.l.b16 %v120
  %v504 = vunpack.c.l.b16 %v121
  %v505 = vunpack.c.l.b16 %v122
  %v506 = vunpack.c.l.b16 %v123
  %v507 = vunpack.c.l.b16 %v124
  %v508 = vunpack.c.l.b16 %v125
  %v509 = vunpack.c.l.b16 %v126
  %v510 = vunpack.c.l.b16 %v127
  %v511 = vunpack.c.l.b16 %v128
  %v512 = vunpack.c.l.b16 %v129
  %v513 = vunpack.c.l.b16 %v130
  %v514 = vunpack.c.l.b16 %v131
  %v515 = vunpack.c.l.b16 %v132
  %v516 = vunpack.c.l.b16 %v133
  %v517 = vunpack.c.l.b16 %v134
  %v518 = vunpack.c.l.b16 %v135
  %v519 = vunpack.c.l.b16 %v136
  %v520 = vunpack.c.l.b16 %v137
  %v521 = vunpack.c.l.b16 %v138
  %v522 = vunpack.c.l.b16 %v139
  %v523 = vunpack.c.l.b16 %v140
  %v524 = vunpack.c.l.b16 %v141
  %v525 = vunpack.c.l.b16 %v142
  %v526 = vunpack.c.l.b16 %v143
  %v527 = vpack.c.b16 %v456, %v455
  %v528 = vpack.c.b16 %v458, %v457
  %v529 = vpack.c.b16 %v460, %v459
  %v530 = vpack.c.b16 %v462, %v461
  %v531 = vpack.c.b16 %v464, %v463
  %v532 = vpack.c.b16 %v466, %v465
  %v533 = vpack.c.b16 %v468, %v467
  %v534 = vpack.c.b16 %v470, %v469
  %v535 = vpack.c.b16 %v472, %v471
  %v536 = vpack.c.b16 %v474, %v473
  %v537 = vpack.c.b16 %v476, %v475
  %v538 = vpack.c.b16 %v478, %v477
  %v539 = vpack.c.b16 %v480, %v479
  %v540 = vpack.c.b16 %v482, %v481
  %v541 = vpack.c.b16 %v484, %v483
  %v542 = vpack.c.b16 %v486, %v485
  %v543 = vpack.c.b16 %v488, %v487
  %v544 = vpack.c.b16 %v490, %v489
  %v545 = vpack.c.b16 %v492, %v491
  %v546 = vpack.c.b16 %v494, %v493
  %v547 = vpack.c.b16 %v496, %v495
  %v548 = vpack.c.b16 %v498, %v497
  %v549 = vpack.c.b16 %v500, %v499
  %v550 = vpack.c.b16 %v502, %v501
  %v551 = vpack.c.b16 %v504, %v503
  %v552 = vpack.c.b16 %v506, %v505
  %v553 = vpack.c.b16 %v508, %v507
  %v554 = vpack.c.b16 %v510, %v509
  %v555 = vpack.c.b16 %v512, %v511
  %v556 = vpack.c.b16 %v514, %v513
  %v557 = vpack.c.b16 %v516, %v515
  %v558 = vpack.c.b16 %v518, %v517
  %v559 = vpack.c.b16 %v520, %v519
  %v560 = vpack.c.b16 %v522, %v521
  %v561 = vpack.c.b16 %v524, %v523
  %v562 = vpack.c.b16 %v526, %v525
  %vm599 = vcmask 523264
  %v601 = vsel %vm599, %v315, 0
  %v604 = vsel %vm599, %v320, 0
  %v607 = vsel %vm599, %v325, 0
  %v610 = vsel %vm599, %v330, 0
  %v613 = vsel %vm599, %v335, 0
  %v616 = vsel %vm599, %v340, 0
  %v619 = vsel %vm599, %v345, 0
  %v622 = vsel %vm599, %v350, 0
  %624 = vmatprep.subr.bf16.mxu0 0
  %625 = vmatpush1.bf16.msra.mxu0 %v527
  %626 = vmatprep.subr.bf16.mxu0 0
  %627 = vmatpush1.bf16.msra.mxu0 %v528
  %628 = vmatprep.subr.bf16.mxu0 0
  %629 = vmatpush1.bf16.msra.mxu0 %v529
  %630 = vmatprep.subr.bf16.mxu0 0
  %631 = vmatpush1.bf16.msra.mxu0 %v530
  %632 = vmatprep.subr.bf16.mxu0 0
  %633 = vmatpush1.bf16.msra.mxu0 %v531
  %634 = vmatprep.subr.bf16.mxu0 0
  %635 = vmatpush1.bf16.msra.mxu0 %v532
  %636 = vmatprep.subr.bf16.mxu0 0
  %637 = vmatpush1.bf16.msra.mxu0 %v533
  %638 = vmatprep.subr.bf16.mxu0 0
  %639 = vmatpush1.bf16.msra.mxu0 %v534
  %640 = vmatprep.subr.bf16.mxu0 0
  %641 = vmatpush1.bf16.msra.mxu0 %v535
  %642 = vmatprep.subr.bf16.mxu0 0
  %643 = vmatpush1.bf16.msra.mxu0 %v536
  %644 = vmatprep.subr.bf16.mxu0 0
  %645 = vmatpush1.bf16.msra.mxu0 %v537
  %646 = vmatprep.subr.bf16.mxu0 0
  %647 = vmatpush1.bf16.msra.mxu0 %v538
  %648 = vmatprep.subr.bf16.mxu0 0
  %649 = vmatpush1.bf16.msra.mxu0 %v539
  %650 = vmatprep.subr.bf16.mxu0 0
  %651 = vmatpush1.bf16.msra.mxu0 %v540
  %652 = vmatprep.subr.bf16.mxu0 0
  %653 = vmatpush1.bf16.msra.mxu0 %v541
  %654 = vmatprep.subr.bf16.mxu0 0
  %655 = vmatpush1.bf16.msra.mxu0 %v542
  %656 = vmatprep.mubr.bf16.mxu0 %v312
  %657 = vmatmul.mubr.bf16.gmra.mrb[0].mxu0 %v311
  %v658 = vpop.f32.mrb[0].mxu0
  %v659 = vadd.f32 %v167, %v658
  %v660 = vpop.f32.mrb[0].mxu0
  %v661 = vpop.f32.mrb[0].mxu0
  %v662 = vadd.f32 %v168, %v661
  %v663 = vpop.f32.mrb[0].mxu0
  %664 = vmatprep.mubr.bf16.mxu0 %v317
  %665 = vmatmul.mubr.bf16.gmra.mrb[0].mxu0 %v316
  %v666 = vpop.f32.mrb[0].mxu0
  %v667 = vadd.f32 %v169, %v666
  %v668 = vpop.f32.mrb[0].mxu0
  %v669 = vpop.f32.mrb[0].mxu0
  %v670 = vadd.f32 %v170, %v669
  %v671 = vpop.f32.mrb[0].mxu0
  %672 = vmatprep.mubr.bf16.mxu0 %v322
  %673 = vmatmul.mubr.bf16.gmra.mrb[0].mxu0 %v321
  %v674 = vpop.f32.mrb[0].mxu0
  %v675 = vadd.f32 %v171, %v674
  %v676 = vpop.f32.mrb[0].mxu0
  %v677 = vpop.f32.mrb[0].mxu0
  %v678 = vadd.f32 %v172, %v677
  %v679 = vpop.f32.mrb[0].mxu0
  %680 = vmatprep.mubr.bf16.mxu0 %v327
  %681 = vmatmul.mubr.bf16.gmra.mrb[0].mxu0 %v326
  %v682 = vpop.f32.mrb[0].mxu0
  %v683 = vadd.f32 %v173, %v682
  %v684 = vpop.f32.mrb[0].mxu0
  %v685 = vpop.f32.mrb[0].mxu0
  %v686 = vadd.f32 %v174, %v685
  %v687 = vpop.f32.mrb[0].mxu0
  %688 = vmatprep.mubr.bf16.mxu0 %v332
  %689 = vmatmul.mubr.bf16.gmra.mrb[0].mxu0 %v331
  %v690 = vpop.f32.mrb[0].mxu0
  %v691 = vadd.f32 %v175, %v690
  %v692 = vpop.f32.mrb[0].mxu0
  %v693 = vpop.f32.mrb[0].mxu0
  %v694 = vadd.f32 %v176, %v693
  %v695 = vpop.f32.mrb[0].mxu0
  %696 = vmatprep.mubr.bf16.mxu0 %v337
  %697 = vmatmul.mubr.bf16.gmra.mrb[0].mxu0 %v336
  %v698 = vpop.f32.mrb[0].mxu0
  %v699 = vadd.f32 %v177, %v698
  %v700 = vpop.f32.mrb[0].mxu0
  %v701 = vpop.f32.mrb[0].mxu0
  %v702 = vadd.f32 %v178, %v701
  %v703 = vpop.f32.mrb[0].mxu0
  %704 = vmatprep.mubr.bf16.mxu0 %v342
  %705 = vmatmul.mubr.bf16.gmra.mrb[0].mxu0 %v341
  %v706 = vpop.f32.mrb[0].mxu0
  %v707 = vadd.f32 %v179, %v706
  %v708 = vpop.f32.mrb[0].mxu0
  %v709 = vpop.f32.mrb[0].mxu0
  %v710 = vadd.f32 %v180, %v709
  %v711 = vpop.f32.mrb[0].mxu0
  %712 = vmatprep.mubr.bf16.mxu0 %v347
  %713 = vmatmul.mubr.bf16.gmra.mrb[0].mxu0 %v346
  %v714 = vpop.f32.mrb[0].mxu0
  %v715 = vadd.f32 %v181, %v714
  %v716 = vpop.f32.mrb[0].mxu0
  %v717 = vpop.f32.mrb[0].mxu0
  %v718 = vadd.f32 %v182, %v717
  %v719 = vpop.f32.mrb[0].mxu0
  %720 = vdwg.mxu0
  %721 = vmatprep.subr.bf16.mxu0 0
  %722 = vmatpush1.bf16.msra.mxu0 %v543
  %723 = vmatprep.subr.bf16.mxu0 0
  %724 = vmatpush1.bf16.msra.mxu0 %v544
  %725 = vmatprep.subr.bf16.mxu0 0
  %726 = vmatpush1.bf16.msra.mxu0 %v545
  %727 = vmatprep.subr.bf16.mxu0 0
  %728 = vmatpush1.bf16.msra.mxu0 %v546
  %729 = vmatprep.subr.bf16.mxu0 0
  %730 = vmatpush1.bf16.msra.mxu0 %v547
  %731 = vmatprep.subr.bf16.mxu0 0
  %732 = vmatpush1.bf16.msra.mxu0 %v548
  %733 = vmatprep.subr.bf16.mxu0 0
  %734 = vmatpush1.bf16.msra.mxu0 %v549
  %735 = vmatprep.subr.bf16.mxu0 0
  %736 = vmatpush1.bf16.msra.mxu0 %v550
  %737 = vmatprep.subr.bf16.mxu0 0
  %738 = vmatpush1.bf16.msra.mxu0 %v551
  %739 = vmatprep.subr.bf16.mxu0 0
  %740 = vmatpush1.bf16.msra.mxu0 %v552
  %741 = vmatprep.subr.bf16.mxu0 0
  %742 = vmatpush1.bf16.msra.mxu0 %v553
  %743 = vmatprep.subr.bf16.mxu0 0
  %744 = vmatpush1.bf16.msra.mxu0 %v554
  %745 = vmatprep.subr.bf16.mxu0 0
  %746 = vmatpush1.bf16.msra.mxu0 %v555
  %747 = vmatprep.subr.bf16.mxu0 0
  %748 = vmatpush1.bf16.msra.mxu0 %v556
  %749 = vmatprep.subr.bf16.mxu0 0
  %750 = vmatpush1.bf16.msra.mxu0 %v557
  %751 = vmatprep.subr.bf16.mxu0 0
  %752 = vmatpush1.bf16.msra.mxu0 %v558
  %753 = vmatprep.mubr.bf16.mxu0 %v314
  %754 = vmatmul.mubr.bf16.gmra.mrb[0].mxu0 %v313
  %v755 = vpop.f32.mrb[0].mxu0
  %v756 = vadd.f32 %v659, %v755
  %v757 = vpop.f32.mrb[0].mxu0
  %v758 = vpop.f32.mrb[0].mxu0
  %v759 = vadd.f32 %v662, %v758
  %v760 = vpop.f32.mrb[0].mxu0
  %761 = vmatprep.mubr.bf16.mxu0 %v319
  %762 = vmatmul.mubr.bf16.gmra.mrb[0].mxu0 %v318
  %v763 = vpop.f32.mrb[0].mxu0
  %v764 = vadd.f32 %v667, %v763
  %v765 = vpop.f32.mrb[0].mxu0
  %v766 = vpop.f32.mrb[0].mxu0
  %v767 = vadd.f32 %v670, %v766
  %v768 = vpop.f32.mrb[0].mxu0
  %769 = vmatprep.mubr.bf16.mxu0 %v324
  %770 = vmatmul.mubr.bf16.gmra.mrb[0].mxu0 %v323
  %v771 = vpop.f32.mrb[0].mxu0
  %v772 = vadd.f32 %v675, %v771
  %v773 = vpop.f32.mrb[0].mxu0
  %v774 = vpop.f32.mrb[0].mxu0
  %v775 = vadd.f32 %v678, %v774
  %v776 = vpop.f32.mrb[0].mxu0
  %777 = vmatprep.mubr.bf16.mxu0 %v329
  %778 = vmatmul.mubr.bf16.gmra.mrb[0].mxu0 %v328
  %v779 = vpop.f32.mrb[0].mxu0
  %v780 = vadd.f32 %v683, %v779
  %v781 = vpop.f32.mrb[0].mxu0
  %v782 = vpop.f32.mrb[0].mxu0
  %v783 = vadd.f32 %v686, %v782
  %v784 = vpop.f32.mrb[0].mxu0
  %785 = vmatprep.mubr.bf16.mxu0 %v334
  %786 = vmatmul.mubr.bf16.gmra.mrb[0].mxu0 %v333
  %v787 = vpop.f32.mrb[0].mxu0
  %v788 = vadd.f32 %v691, %v787
  %v789 = vpop.f32.mrb[0].mxu0
  %v790 = vpop.f32.mrb[0].mxu0
  %v791 = vadd.f32 %v694, %v790
  %v792 = vpop.f32.mrb[0].mxu0
  %793 = vmatprep.mubr.bf16.mxu0 %v339
  %794 = vmatmul.mubr.bf16.gmra.mrb[0].mxu0 %v338
  %v795 = vpop.f32.mrb[0].mxu0
  %v796 = vadd.f32 %v699, %v795
  %v797 = vpop.f32.mrb[0].mxu0
  %v798 = vpop.f32.mrb[0].mxu0
  %v799 = vadd.f32 %v702, %v798
  %v800 = vpop.f32.mrb[0].mxu0
  %801 = vmatprep.mubr.bf16.mxu0 %v344
  %802 = vmatmul.mubr.bf16.gmra.mrb[0].mxu0 %v343
  %v803 = vpop.f32.mrb[0].mxu0
  %v804 = vadd.f32 %v707, %v803
  %v805 = vpop.f32.mrb[0].mxu0
  %v806 = vpop.f32.mrb[0].mxu0
  %v807 = vadd.f32 %v710, %v806
  %v808 = vpop.f32.mrb[0].mxu0
  %809 = vmatprep.mubr.bf16.mxu0 %v349
  %810 = vmatmul.mubr.bf16.gmra.mrb[0].mxu0 %v348
  %v811 = vpop.f32.mrb[0].mxu0
  %v812 = vadd.f32 %v715, %v811
  %v813 = vpop.f32.mrb[0].mxu0
  %v814 = vpop.f32.mrb[0].mxu0
  %v815 = vadd.f32 %v718, %v814
  %v816 = vpop.f32.mrb[0].mxu0
  %817 = vdwg.mxu0
  %818 = vmatprep.subr.bf16.mxu0 0
  %819 = vmatpush1.bf16.msra.mxu0 %v559
  %820 = vmatprep.subr.bf16.mxu0 0
  %821 = vmatpush1.bf16.msra.mxu0 %v560
  %822 = vmatprep.subr.bf16.mxu0 0
  %823 = vmatpush1.bf16.msra.mxu0 %v561
  %824 = vmatprep.subr.bf16.mxu0 0
  %825 = vmatpush1.bf16.msra.mxu0 %v562
  %826 = vmatprep.subr.bf16.mxu0 0
  %827 = vmatpush1.bf16.msra.mxu0 0
  %828 = vmatprep.subr.bf16.mxu0 0
  %829 = vmatpush1.bf16.msra.mxu0 0
  %830 = vmatprep.subr.bf16.mxu0 0
  %831 = vmatpush1.bf16.msra.mxu0 0
  %832 = vmatprep.subr.bf16.mxu0 0
  %833 = vmatpush1.bf16.msra.mxu0 0
  %834 = vmatprep.subr.bf16.mxu0 0
  %835 = vmatpush1.bf16.msra.mxu0 0
  %836 = vmatprep.subr.bf16.mxu0 0
  %837 = vmatpush1.bf16.msra.mxu0 0
  %838 = vmatprep.subr.bf16.mxu0 0
  %839 = vmatpush1.bf16.msra.mxu0 0
  %840 = vmatprep.subr.bf16.mxu0 0
  %841 = vmatpush1.bf16.msra.mxu0 0
  %842 = vmatprep.subr.bf16.mxu0 0
  %843 = vmatpush1.bf16.msra.mxu0 0
  %844 = vmatprep.subr.bf16.mxu0 0
  %845 = vmatpush1.bf16.msra.mxu0 0
  %846 = vmatprep.subr.bf16.mxu0 0
  %847 = vmatpush1.bf16.msra.mxu0 0
  %848 = vmatprep.subr.bf16.mxu0 0
  %849 = vmatpush1.bf16.msra.mxu0 0
  %850 = vmatprep.mubr.bf16.mxu0 0
  %851 = vmatmul.mubr.bf16.gmra.mrb[0].mxu0 %v601
  %v852 = vpop.f32.mrb[0].mxu0
  %v853 = vadd.f32 %v756, %v852
  %v854 = vpop.f32.mrb[0].mxu0
  %v855 = vpop.f32.mrb[0].mxu0
  %v856 = vadd.f32 %v759, %v855
  %v857 = vpop.f32.mrb[0].mxu0
  %858 = vmatprep.mubr.bf16.mxu0 0
  %859 = vmatmul.mubr.bf16.gmra.mrb[0].mxu0 %v604
  %v860 = vpop.f32.mrb[0].mxu0
  %v861 = vadd.f32 %v764, %v860
  %v862 = vpop.f32.mrb[0].mxu0
  %v863 = vpop.f32.mrb[0].mxu0
  %v864 = vadd.f32 %v767, %v863
  %v865 = vpop.f32.mrb[0].mxu0
  %866 = vmatprep.mubr.bf16.mxu0 0
  %867 = vmatmul.mubr.bf16.gmra.mrb[0].mxu0 %v607
  %v868 = vpop.f32.mrb[0].mxu0
  %v869 = vadd.f32 %v772, %v868
  %v870 = vpop.f32.mrb[0].mxu0
  %v871 = vpop.f32.mrb[0].mxu0
  %v872 = vadd.f32 %v775, %v871
  %v873 = vpop.f32.mrb[0].mxu0
  %874 = vmatprep.mubr.bf16.mxu0 0
  %875 = vmatmul.mubr.bf16.gmra.mrb[0].mxu0 %v610
  %v876 = vpop.f32.mrb[0].mxu0
  %v877 = vadd.f32 %v780, %v876
  %v878 = vpop.f32.mrb[0].mxu0
  %v879 = vpop.f32.mrb[0].mxu0
  %v880 = vadd.f32 %v783, %v879
  %v881 = vpop.f32.mrb[0].mxu0
  %882 = vmatprep.mubr.bf16.mxu0 0
  %883 = vmatmul.mubr.bf16.gmra.mrb[0].mxu0 %v613
  %v884 = vpop.f32.mrb[0].mxu0
  %v885 = vadd.f32 %v788, %v884
  %v886 = vpop.f32.mrb[0].mxu0
  %v887 = vpop.f32.mrb[0].mxu0
  %v888 = vadd.f32 %v791, %v887
  %v889 = vpop.f32.mrb[0].mxu0
  %890 = vmatprep.mubr.bf16.mxu0 0
  %891 = vmatmul.mubr.bf16.gmra.mrb[0].mxu0 %v616
  %v892 = vpop.f32.mrb[0].mxu0
  %v893 = vadd.f32 %v796, %v892
  %v894 = vpop.f32.mrb[0].mxu0
  %v895 = vpop.f32.mrb[0].mxu0
  %v896 = vadd.f32 %v799, %v895
  %v897 = vpop.f32.mrb[0].mxu0
  %898 = vmatprep.mubr.bf16.mxu0 0
  %899 = vmatmul.mubr.bf16.gmra.mrb[0].mxu0 %v619
  %v900 = vpop.f32.mrb[0].mxu0
  %v901 = vadd.f32 %v804, %v900
  %v902 = vpop.f32.mrb[0].mxu0
  %v903 = vpop.f32.mrb[0].mxu0
  %v904 = vadd.f32 %v807, %v903
  %v905 = vpop.f32.mrb[0].mxu0
  %906 = vmatprep.mubr.bf16.mxu0 0
  %907 = vmatmul.mubr.bf16.gmra.mrb[0].mxu0 %v622
  %v908 = vpop.f32.mrb[0].mxu0
  %v909 = vadd.f32 %v812, %v908
  %v910 = vpop.f32.mrb[0].mxu0
  %v911 = vpop.f32.mrb[0].mxu0
  %v912 = vadd.f32 %v815, %v911
  %v913 = vpop.f32.mrb[0].mxu0
  %914 = vdwg.mxu0
  %v915 = vld [vmem:[%s4] sm:$0x1]
  %v917 = vlaneseq
  %v918 = vshrl.u32 %v917, 7
  %v919 = vsub.s32 0, %v918
  %v920 = vrot.slane %v915, %v919
  %v922 = vadd.f32 %v853, %v920
  %v923 = vadd.f32 %v856, %v920
  %v924 = vadd.f32 %v861, %v920
  %v925 = vadd.f32 %v864, %v920
  %v926 = vadd.f32 %v869, %v920
  %v927 = vadd.f32 %v872, %v920
  %v928 = vadd.f32 %v877, %v920
  %v929 = vadd.f32 %v880, %v920
  %v930 = vadd.f32 %v885, %v920
  %v931 = vadd.f32 %v888, %v920
  %v932 = vadd.f32 %v893, %v920
  %v933 = vadd.f32 %v896, %v920
  %v934 = vadd.f32 %v901, %v920
  %v935 = vadd.f32 %v904, %v920
  %v936 = vadd.f32 %v909, %v920
  %v937 = vadd.f32 %v912, %v920
  %938 = vst [vmem:[%s5] sm:$0xff] %v922
  %939 = vst [vmem:[%s5 + $0x8] sm:$0xff] %v923
  %940 = vst [vmem:[%s5 + $0x10] sm:$0xff] %v924
  %941 = vst [vmem:[%s5 + $0x18] sm:$0xff] %v925
  %942 = vst [vmem:[%s5 + $0x20] sm:$0xff] %v926
  %943 = vst [vmem:[%s5 + $0x28] sm:$0xff] %v927
  %944 = vst [vmem:[%s5 + $0x30] sm:$0xff] %v928
  %945 = vst [vmem:[%s5 + $0x38] sm:$0xff] %v929
  %946 = vst [vmem:[%s5 + $0x40] sm:$0xff] %v930
  %947 = vst [vmem:[%s5 + $0x48] sm:$0xff] %v931
  %948 = vst [vmem:[%s5 + $0x50] sm:$0xff] %v932
  %949 = vst [vmem:[%s5 + $0x58] sm:$0xff] %v933
  %950 = vst [vmem:[%s5 + $0x60] sm:$0xff] %v934
  %951 = vst [vmem:[%s5 + $0x68] sm:$0xff] %v935
  %952 = vst [vmem:[%s5 + $0x70] sm:$0xff] %v936
  %953 = vst [vmem:[%s5 + $0x78] sm:$0xff] %v937
  %v954 = vadd.f32 %v922, %v923
  %v955 = vadd.f32 %v954, %v924
  %v956 = vadd.f32 %v955, %v925
  %v957 = vadd.f32 %v956, %v926
  %v958 = vadd.f32 %v957, %v927
  %v959 = vadd.f32 %v958, %v928
  %v960 = vadd.f32 %v959, %v929
  %v961 = vadd.f32 %v960, %v930
  %v962 = vadd.f32 %v961, %v931
  %v963 = vadd.f32 %v962, %v932
  %v964 = vadd.f32 %v963, %v933
  %v965 = vadd.f32 %v964, %v934
  %v966 = vadd.f32 %v965, %v935
  %v967 = vadd.f32 %v966, %v936
  %v968 = vadd.f32 %v967, %v937
  %v969 = vrot.slane %v968, 4
  %v970 = vadd.f32 %v968, %v969
  %v971 = vrot.slane %v970, 2
  %v972 = vadd.f32 %v970, %v971
  %v973 = vrot.slane %v972, 1
  %v974 = vadd.f32 %v972, %v973
  %975 = vst [vmem:[%s6] sm:$0x1] %v974
  %v976 = vmul.f32 %v922, %v922
  %v977 = vmul.f32 %v923, %v923
  %v978 = vmul.f32 %v924, %v924
  %v979 = vmul.f32 %v925, %v925
  %v980 = vmul.f32 %v926, %v926
  %v981 = vmul.f32 %v927, %v927
  %v982 = vmul.f32 %v928, %v928
  %v983 = vmul.f32 %v929, %v929
  %v984 = vmul.f32 %v930, %v930
  %v985 = vmul.f32 %v931, %v931
  %v986 = vmul.f32 %v932, %v932
  %v987 = vmul.f32 %v933, %v933
  %v988 = vmul.f32 %v934, %v934
  %v989 = vmul.f32 %v935, %v935
  %v990 = vmul.f32 %v936, %v936
  %v991 = vmul.f32 %v937, %v937
  %v992 = vadd.f32 %v976, %v977
  %v993 = vadd.f32 %v992, %v978
  %v994 = vadd.f32 %v993, %v979
  %v995 = vadd.f32 %v994, %v980
  %v996 = vadd.f32 %v995, %v981
  %v997 = vadd.f32 %v996, %v982
  %v998 = vadd.f32 %v997, %v983
  %v999 = vadd.f32 %v998, %v984
  %v1000 = vadd.f32 %v999, %v985
  %v1001 = vadd.f32 %v1000, %v986
  %v1002 = vadd.f32 %v1001, %v987
  %v1003 = vadd.f32 %v1002, %v988
  %v1004 = vadd.f32 %v1003, %v989
  %v1005 = vadd.f32 %v1004, %v990
  %v1006 = vadd.f32 %v1005, %v991
  %v1007 = vrot.slane %v1006, 4
  %v1008 = vadd.f32 %v1006, %v1007
  %v1009 = vrot.slane %v1008, 2
  %v1010 = vadd.f32 %v1008, %v1009
  %v1011 = vrot.slane %v1010, 1
  %v1012 = vadd.f32 %v1010, %v1011
  %1013 = vst [vmem:[%s7] sm:$0x1] %v1012
  // Predicated region
  $region22: #{_lambda_.30} parent=0 // pred_check
    _
  $region23: #{_lambda_.30} parent=0 // pred_check_branch
    %1015 = sbr.rel (0) target = $region25
  $region24: #{_lambda_.30} parent=0 // pred_region
    _
  $region25: #{_lambda_.30} parent=0 // pred_fallthru
    _
  // Predicated region
  $region26: #{_lambda_.30} parent=0 // pred_check
    _
  $region27: #{_lambda_.30} parent=0 // pred_check_branch
    %1017 = sbr.rel (0) target = $region29
  $region28: #{_lambda_.30} parent=0 // pred_region
    _
  $region29: #{_lambda_.30} parent=0 // pred_fallthru
    _
  // Predicated region
  $region30: #{_lambda_.30} parent=0 // pred_check
    _
  $region31: #{_lambda_.30} parent=0 // pred_check_branch
    %1019 = sbr.rel (0) target = $region33
  $region32: #{_lambda_.30} parent=0 // pred_region
    _
  $region33: #{_lambda_.30} parent=0 // pred_fallthru
    _
  // Predicated region
  $region34: #{_lambda_.30} parent=0 // pred_check
    _
  $region35: #{_lambda_.30} parent=0 // pred_check_branch
    %1021 = sbr.rel (0) target = $region37
  $region36: #{_lambda_.30} parent=0 // pred_region
    _
  $region37: #{_lambda_.30} parent=0 // pred_fallthru
    _
  // Predicated region
  $region38: #{_lambda_.30} parent=0 // pred_check
    _
  $region39: #{_lambda_.30} parent=0 // pred_check_branch
    %1023 = sbr.rel (0) target = $region41
  $region40: #{_lambda_.30} parent=0 // pred_region
    _
  $region41: #{_lambda_.30} parent=0 // pred_fallthru
    _
  // Predicated region
  $region42: #{_lambda_.30} parent=0 // pred_check
    _
  $region43: #{_lambda_.30} parent=0 // pred_check_branch
    %1025 = sbr.rel (0) target = $region45
  $region44: #{_lambda_.30} parent=0 // pred_region
    _
  $region45: #{_lambda_.30} parent=0 // pred_fallthru
    _

</llo_original>
